<compile_context>
chip_gen: v5e
topology: v5e:2x2
jax: 0.10.0
libtpu: 0.0.40
codegen_flags: <defaults>
</compile_context>

<pallas_src>
import math

import jax
import jax.numpy as jnp
from jax import lax
from jax.experimental import pallas as pl
from jax.experimental.pallas import tpu as pltpu

D_K = 64
D_V = 64
N_HEADS = 8
D_FF = 2048
LN_EPS = 1e-5
NEG_INF = -1e9


def _layernorm(x):
    # PyTorch nn.LayerNorm(d_model) with fresh params: weight=1, bias=0 (f32 math).
    mu = jnp.mean(x, axis=-1, keepdims=True)
    var = jnp.mean((x - mu) ** 2, axis=-1, keepdims=True)
    return (x - mu) * lax.rsqrt(var + LN_EPS)


def _bmm(a, b, ca, cb):
    # Head-batched matmul: batch dim 0 on both operands, contract a[ca] with b[cb].
    return lax.dot_general(a, b, (((ca,), (cb,)), ((0,), (0,))),
                           preferred_element_type=jnp.float32)


def _attention(x_q, x_kv, add_mask, wq, wk, wv, wfc):
    """Head-batched scaled-dot-product attention for one batch element.

    x_q: (Lq, D) f32        x_kv: (Lk, D) f32
    add_mask: (Lq, Lk) f32 additive mask (0 = visible, -1e9 = masked)
    wq, wk: (H, d_k, D) bf16 (wq pre-scaled by 1/sqrt(d_k))
    wv:     (H, d_v, D) bf16
    wfc:    (H, d_v, D) bf16
    Returns (pre-residual output (Lq, D) f32, probs (H, Lq, Lk) f32).
    """
    H = wq.shape[0]
    bf16 = jnp.bfloat16
    xq_b = jnp.broadcast_to(x_q.astype(bf16)[None], (H,) + x_q.shape)
    xk_b = jnp.broadcast_to(x_kv.astype(bf16)[None], (H,) + x_kv.shape)

    # Per-head projections as single head-batched MXU matmuls (f32 accumulation).
    qh = _bmm(xq_b, wq, 2, 2)                 # (H, Lq, d_k)
    kh = _bmm(xk_b, wk, 2, 2)                 # (H, Lk, d_k)
    vh = _bmm(xk_b, wv, 2, 2)                 # (H, Lk, d_v)

    # Scores: contract d_k (no explicit transpose of K), batch over heads.
    scores = _bmm(qh.astype(bf16), kh.astype(bf16), 2, 2)   # (H, Lq, Lk)
    scores = scores + add_mask[None]          # additive mask: single VPU add

    # Softmax in f32; reciprocal on the EUP slot.
    m = jnp.max(scores, axis=-1, keepdims=True)
    e = jnp.exp(scores - m)
    probs = e * pl.reciprocal(jnp.sum(e, axis=-1, keepdims=True), approx=True)

    # Context + output projection, head-batched; accumulate over heads.
    ctx = _bmm(probs.astype(bf16), vh.astype(bf16), 2, 1)    # (H, Lq, d_v)
    out_h = _bmm(ctx.astype(bf16), wfc, 2, 1)                # (H, Lq, D)
    return jnp.sum(out_h, axis=0), probs


def decoder_layer_kernel(dec_ref, enc_ref, smask_ref, emask_ref,
                         swq_ref, swk_ref, swv_ref, swfc_ref,
                         ewq_ref, ewk_ref, ewv_ref, ewfc_ref,
                         w1_ref, w2_ref,
                         out_ref, sattn_ref, eattn_ref):
    x = dec_ref[0]                       # (Lq, D) f32 (residual kept in f32)
    enc = enc_ref[0]                     # (Ls, D) f32

    # --- decoder self-attention + residual + LayerNorm ------------------------
    a1, p1 = _attention(x, x, smask_ref[0],
                        swq_ref[...], swk_ref[...], swv_ref[...], swfc_ref[...])
    x1 = _layernorm(a1 + x)
    sattn_ref[0] = p1

    # --- encoder-decoder cross-attention + residual + LayerNorm ---------------
    a2, p2 = _attention(x1, enc, emask_ref[0],
                        ewq_ref[...], ewk_ref[...], ewv_ref[...], ewfc_ref[...])
    x2 = _layernorm(a2 + x1)
    eattn_ref[0] = p2

    # --- position-wise feed-forward + residual + LayerNorm --------------------
    h = jnp.dot(x2.astype(jnp.bfloat16), w1_ref[...],
                preferred_element_type=jnp.float32)           # (Lq, d_ff) f32
    h = jnp.maximum(h, 0.0)
    y = jnp.dot(h.astype(jnp.bfloat16), w2_ref[...],
                preferred_element_type=jnp.float32)           # (Lq, D) f32
    out_ref[0] = _layernorm(y + x2)


def _split_heads(w, d_head):
    # (D, H*d_head) -> (H, d_head, D): lane-dense (last dim = d_model) per-head layout.
    D = w.shape[0]
    return jnp.transpose(w.reshape(D, N_HEADS, d_head), (1, 2, 0))


def decoder_layer(params, dec_inputs, enc_outputs,
                  dec_self_attn_mask, dec_enc_attn_mask):
    B, Lq, D = dec_inputs.shape
    Ls = enc_outputs.shape[1]
    f32 = jnp.float32
    bf16 = jnp.bfloat16

    def attn_weights(p):
        wq = _split_heads(p["wq"] * (1.0 / math.sqrt(D_K)), D_K).astype(bf16)
        wk = _split_heads(p["wk"], D_K).astype(bf16)
        wv = _split_heads(p["wv"], D_V).astype(bf16)
        wfc = p["wfc"].reshape(N_HEADS, D_V, D).astype(bf16)
        return wq, wk, wv, wfc

    swq, swk, swv, swfc = attn_weights(params["self_attn"])
    ewq, ewk, ewv, ewfc = attn_weights(params["enc_attn"])
    w1 = params["ffn"]["w1"].astype(bf16)
    w2 = params["ffn"]["w2"].astype(bf16)

    # Additive masks: 0 = visible, -1e9 = masked (same effect as masked_fill).
    smask_add = (dec_self_attn_mask * NEG_INF).astype(f32)
    emask_add = (dec_enc_attn_mask * NEG_INF).astype(f32)

    def batch3(s1, s2):
        return pl.BlockSpec((1, s1, s2), lambda b: (b, 0, 0))

    def batch4(s1, s2, s3):
        return pl.BlockSpec((1, s1, s2, s3), lambda b: (b, 0, 0, 0))

    def whole3(s):
        return pl.BlockSpec(s, lambda b: (0, 0, 0))

    def whole2(s):
        return pl.BlockSpec(s, lambda b: (0, 0))

    in_specs = [
        batch3(Lq, D),                       # dec_inputs
        batch3(Ls, D),                       # enc_outputs
        batch3(Lq, Lq),                      # self-attn additive mask
        batch3(Lq, Ls),                      # enc-attn additive mask
        whole3((N_HEADS, D_K, D)),           # self wq
        whole3((N_HEADS, D_K, D)),           # self wk
        whole3((N_HEADS, D_V, D)),           # self wv
        whole3((N_HEADS, D_V, D)),           # self wfc
        whole3((N_HEADS, D_K, D)),           # enc wq
        whole3((N_HEADS, D_K, D)),           # enc wk
        whole3((N_HEADS, D_V, D)),           # enc wv
        whole3((N_HEADS, D_V, D)),           # enc wfc
        whole2((D, D_FF)),                   # ffn w1
        whole2((D_FF, D)),                   # ffn w2
    ]
    out_specs = (
        batch3(Lq, D),
        batch4(N_HEADS, Lq, Lq),
        batch4(N_HEADS, Lq, Ls),
    )
    out_shape = (
        jax.ShapeDtypeStruct((B, Lq, D), f32),
        jax.ShapeDtypeStruct((B, N_HEADS, Lq, Lq), f32),
        jax.ShapeDtypeStruct((B, N_HEADS, Lq, Ls), f32),
    )

    return pl.pallas_call(
        decoder_layer_kernel,
        grid=(B,),
        in_specs=in_specs,
        out_specs=out_specs,
        out_shape=out_shape,
        compiler_params=pltpu.CompilerParams(
            dimension_semantics=("parallel",),
            vmem_limit_bytes=32 * 1024 * 1024),
    )(dec_inputs.astype(f32), enc_outputs.astype(f32), smask_add, emask_add,
      swq, swk, swv, swfc, ewq, ewk, ewv, ewfc, w1, w2)


# ---------------------------------------------------------------------------
# Pure-JAX f32 reference (PyTorch semantics) for a sanity check
# ---------------------------------------------------------------------------
def _ref_mha(x_q, x_kv, mask, wq, wk, wv, wfc):
    B, Lq, D = x_q.shape
    Lk = x_kv.shape[1]
    Q = (x_q @ wq).reshape(B, Lq, N_HEADS, D_K).transpose(0, 2, 1, 3)
    K = (x_kv @ wk).reshape(B, Lk, N_HEADS, D_K).transpose(0, 2, 1, 3)
    V = (x_kv @ wv).reshape(B, Lk, N_HEADS, D_V).transpose(0, 2, 1, 3)
    scores = jnp.einsum("bhqd,bhkd->bhqk", Q, K) / math.sqrt(D_K)
    scores = jnp.where(mask[:, None] > 0.5, NEG_INF, scores)
    attn = jax.nn.softmax(scores, axis=-1)
    ctx = jnp.einsum("bhqk,bhkd->bhqd", attn, V)
    ctx = ctx.transpose(0, 2, 1, 3).reshape(B, Lq, N_HEADS * D_V)
    return _layernorm(ctx @ wfc + x_q), attn


def _ref_decoder_layer(params, dec_inputs, enc_outputs, m_self, m_enc):
    p = params["self_attn"]
    x, a1 = _ref_mha(dec_inputs, dec_inputs, m_self,
                     p["wq"], p["wk"], p["wv"], p["wfc"])
    p = params["enc_attn"]
    x, a2 = _ref_mha(x, enc_outputs, m_enc,
                     p["wq"], p["wk"], p["wv"], p["wfc"])
    p = params["ffn"]
    h = jnp.maximum(x @ p["w1"], 0.0) @ p["w2"]
    return _layernorm(h + x), a1, a2


def init_params(key, d_model):
    ks = jax.random.split(key, 10)
    s = 0.02

    def mha_params(k0, k1, k2, k3):
        return {
            "wq": jax.random.normal(k0, (d_model, N_HEADS * D_K), jnp.float32) * s,
            "wk": jax.random.normal(k1, (d_model, N_HEADS * D_K), jnp.float32) * s,
            "wv": jax.random.normal(k2, (d_model, N_HEADS * D_V), jnp.float32) * s,
            "wfc": jax.random.normal(k3, (N_HEADS * D_V, d_model), jnp.float32) * s,
        }

    return {
        "self_attn": mha_params(*ks[0:4]),
        "enc_attn": mha_params(*ks[4:8]),
        "ffn": {
            "w1": jax.random.normal(ks[8], (d_model, D_FF), jnp.float32) * s,
            "w2": jax.random.normal(ks[9], (D_FF, d_model), jnp.float32) * s,
        },
    }


if __name__ == "__main__":
    B, TGT_LEN, SRC_LEN, D_MODEL = 2, 16, 32, 128

    key = jax.random.PRNGKey(0)
    kp, kd, ke = jax.random.split(key, 3)
    params = init_params(kp, D_MODEL)

    dec_inputs = jax.random.normal(kd, (B, TGT_LEN, D_MODEL), jnp.float32)
    enc_outputs = jax.random.normal(ke, (B, SRC_LEN, D_MODEL), jnp.float32)

    # Masks: 1.0 = masked (like the PyTorch bool masked_fill). Self-attn uses the
    # standard causal (subsequent) mask; enc-dec mask leaves everything visible.
    causal = jnp.triu(jnp.ones((TGT_LEN, TGT_LEN), jnp.float32), k=1)
    dec_self_attn_mask = jnp.broadcast_to(causal, (B, TGT_LEN, TGT_LEN))
    dec_enc_attn_mask = jnp.zeros((B, TGT_LEN, SRC_LEN), jnp.float32)

    fwd = jax.jit(decoder_layer)
    out, self_attn, enc_attn = jax.block_until_ready(
        fwd(params, dec_inputs, enc_outputs,
            dec_self_attn_mask, dec_enc_attn_mask))

    # Sanity check against the pure-f32 reference (bf16 MXU inputs => loosened tol).
    ref_out, ref_sa, ref_ea = _ref_decoder_layer(
        params, dec_inputs, enc_outputs, dec_self_attn_mask, dec_enc_attn_mask)
    assert out.shape == (B, TGT_LEN, D_MODEL)
    assert self_attn.shape == (B, N_HEADS, TGT_LEN, TGT_LEN)
    assert enc_attn.shape == (B, N_HEADS, TGT_LEN, SRC_LEN)
    assert jnp.allclose(out, ref_out, rtol=3e-2, atol=3e-2)
    assert jnp.allclose(self_attn, ref_sa, rtol=5e-2, atol=5e-3)
    assert jnp.allclose(enc_attn, ref_ea, rtol=5e-2, atol=5e-3)

    print("KERNEL_OK")
</pallas_src>

<mosaic_0001>
module attributes {stable_mosaic.version = 11 : i64} {
  func.func @decoder_layer_kernel(%arg0: i32, %arg1: memref<1x16x128xf32, #tpu.memory_space<vmem>>, %arg2: memref<1x32x128xf32, #tpu.memory_space<vmem>>, %arg3: memref<1x16x16xf32, #tpu.memory_space<vmem>>, %arg4: memref<1x16x32xf32, #tpu.memory_space<vmem>>, %arg5: memref<8x64x128xbf16, #tpu.memory_space<vmem>>, %arg6: memref<8x64x128xbf16, #tpu.memory_space<vmem>>, %arg7: memref<8x64x128xbf16, #tpu.memory_space<vmem>>, %arg8: memref<8x64x128xbf16, #tpu.memory_space<vmem>>, %arg9: memref<8x64x128xbf16, #tpu.memory_space<vmem>>, %arg10: memref<8x64x128xbf16, #tpu.memory_space<vmem>>, %arg11: memref<8x64x128xbf16, #tpu.memory_space<vmem>>, %arg12: memref<8x64x128xbf16, #tpu.memory_space<vmem>>, %arg13: memref<128x2048xbf16, #tpu.memory_space<vmem>>, %arg14: memref<2048x128xbf16, #tpu.memory_space<vmem>>, %arg15: memref<1x16x128xf32, #tpu.memory_space<vmem>>, %arg16: memref<1x8x16x16xf32, #tpu.memory_space<vmem>>, %arg17: memref<1x8x16x32xf32, #tpu.memory_space<vmem>>) attributes {dimension_semantics = [#tpu.dimension_semantics<parallel>], iteration_bounds = array<i64: 2>, scalar_prefetch = 0 : i64, scratch_operands = 0 : i64, tpu.core_type = #tpu.core_type<tc>, window_params = [{transform_indices = @transform_0, window_bounds = array<i64: 1, 16, 128>}, {transform_indices = @transform_1, window_bounds = array<i64: 1, 32, 128>}, {transform_indices = @transform_2, window_bounds = array<i64: 1, 16, 16>}, {transform_indices = @transform_3, window_bounds = array<i64: 1, 16, 32>}, {pipeline_mode = #tpu.pipeline_mode<synchronous>, transform_indices = @transform_4, window_bounds = array<i64: 8, 64, 128>}, {pipeline_mode = #tpu.pipeline_mode<synchronous>, transform_indices = @transform_5, window_bounds = array<i64: 8, 64, 128>}, {pipeline_mode = #tpu.pipeline_mode<synchronous>, transform_indices = @transform_6, window_bounds = array<i64: 8, 64, 128>}, {pipeline_mode = #tpu.pipeline_mode<synchronous>, transform_indices = @transform_7, window_bounds = array<i64: 8, 64, 128>}, {pipeline_mode = #tpu.pipeline_mode<synchronous>, transform_indices = @transform_8, window_bounds = array<i64: 8, 64, 128>}, {pipeline_mode = #tpu.pipeline_mode<synchronous>, transform_indices = @transform_9, window_bounds = array<i64: 8, 64, 128>}, {pipeline_mode = #tpu.pipeline_mode<synchronous>, transform_indices = @transform_10, window_bounds = array<i64: 8, 64, 128>}, {pipeline_mode = #tpu.pipeline_mode<synchronous>, transform_indices = @transform_11, window_bounds = array<i64: 8, 64, 128>}, {pipeline_mode = #tpu.pipeline_mode<synchronous>, transform_indices = @transform_12, window_bounds = array<i64: 128, 2048>}, {pipeline_mode = #tpu.pipeline_mode<synchronous>, transform_indices = @transform_13, window_bounds = array<i64: 2048, 128>}, {transform_indices = @transform_14, window_bounds = array<i64: 1, 16, 128>}, {transform_indices = @transform_15, window_bounds = array<i64: 1, 8, 16, 16>}, {transform_indices = @transform_16, window_bounds = array<i64: 1, 8, 16, 32>}]} {
    %c0 = arith.constant 0 : index
    %c0_0 = arith.constant 0 : index
    %c0_1 = arith.constant 0 : index
    %0 = vector.load %arg1[%c0, %c0_0, %c0_1] : memref<1x16x128xf32, #tpu.memory_space<vmem>>, vector<1x16x128xf32>
    %1 = vector.shape_cast %0 : vector<1x16x128xf32> to vector<16x128xf32>
    %c0_2 = arith.constant 0 : index
    %c0_3 = arith.constant 0 : index
    %c0_4 = arith.constant 0 : index
    %2 = vector.load %arg2[%c0_2, %c0_3, %c0_4] : memref<1x32x128xf32, #tpu.memory_space<vmem>>, vector<1x32x128xf32>
    %3 = vector.shape_cast %2 : vector<1x32x128xf32> to vector<32x128xf32>
    %c0_5 = arith.constant 0 : index
    %c0_6 = arith.constant 0 : index
    %c0_7 = arith.constant 0 : index
    %4 = vector.load %arg3[%c0_5, %c0_6, %c0_7] : memref<1x16x16xf32, #tpu.memory_space<vmem>>, vector<1x16x16xf32>
    %5 = vector.shape_cast %4 : vector<1x16x16xf32> to vector<16x16xf32>
    %c0_8 = arith.constant 0 : index
    %c0_9 = arith.constant 0 : index
    %c0_10 = arith.constant 0 : index
    %6 = vector.load %arg5[%c0_8, %c0_9, %c0_10] : memref<8x64x128xbf16, #tpu.memory_space<vmem>>, vector<8x64x128xbf16>
    %c0_11 = arith.constant 0 : index
    %c0_12 = arith.constant 0 : index
    %c0_13 = arith.constant 0 : index
    %7 = vector.load %arg6[%c0_11, %c0_12, %c0_13] : memref<8x64x128xbf16, #tpu.memory_space<vmem>>, vector<8x64x128xbf16>
    %c0_14 = arith.constant 0 : index
    %c0_15 = arith.constant 0 : index
    %c0_16 = arith.constant 0 : index
    %8 = vector.load %arg7[%c0_14, %c0_15, %c0_16] : memref<8x64x128xbf16, #tpu.memory_space<vmem>>, vector<8x64x128xbf16>
    %c0_17 = arith.constant 0 : index
    %c0_18 = arith.constant 0 : index
    %c0_19 = arith.constant 0 : index
    %9 = vector.load %arg8[%c0_17, %c0_18, %c0_19] : memref<8x64x128xbf16, #tpu.memory_space<vmem>>, vector<8x64x128xbf16>
    %10 = arith.truncf %1 : vector<16x128xf32> to vector<16x128xbf16>
    %11 = vector.shape_cast %10 : vector<16x128xbf16> to vector<1x16x128xbf16>
    %12 = vector.shape_cast %11 : vector<1x16x128xbf16> to vector<1x16x128xbf16>
    %13 = vector.broadcast %12 : vector<1x16x128xbf16> to vector<8x16x128xbf16>
    %14 = arith.truncf %1 : vector<16x128xf32> to vector<16x128xbf16>
    %15 = vector.shape_cast %14 : vector<16x128xbf16> to vector<1x16x128xbf16>
    %16 = vector.shape_cast %15 : vector<1x16x128xbf16> to vector<1x16x128xbf16>
    %17 = vector.broadcast %16 : vector<1x16x128xbf16> to vector<8x16x128xbf16>
    %cst = arith.constant dense<0.000000e+00> : vector<8x16x64xf32>
    %18 = tpu.matmul %13, %6, %cst {dimension_numbers = #tpu.dot_dimension_numbers<[2], [2], [1], [1], [0, 0, 0, 1, 1, 1], [0], [0]>} : vector<8x16x128xbf16>, vector<8x64x128xbf16>, vector<8x16x64xf32> -> vector<8x16x64xf32>
    %cst_20 = arith.constant dense<0.000000e+00> : vector<8x16x64xf32>
    %19 = tpu.matmul %17, %7, %cst_20 {dimension_numbers = #tpu.dot_dimension_numbers<[2], [2], [1], [1], [0, 0, 0, 1, 1, 1], [0], [0]>} : vector<8x16x128xbf16>, vector<8x64x128xbf16>, vector<8x16x64xf32> -> vector<8x16x64xf32>
    %cst_21 = arith.constant dense<0.000000e+00> : vector<8x16x64xf32>
    %20 = tpu.matmul %17, %8, %cst_21 {dimension_numbers = #tpu.dot_dimension_numbers<[2], [2], [1], [1], [0, 0, 0, 1, 1, 1], [0], [0]>} : vector<8x16x128xbf16>, vector<8x64x128xbf16>, vector<8x16x64xf32> -> vector<8x16x64xf32>
    %21 = arith.truncf %18 : vector<8x16x64xf32> to vector<8x16x64xbf16>
    %22 = arith.truncf %19 : vector<8x16x64xf32> to vector<8x16x64xbf16>
    %cst_22 = arith.constant dense<0.000000e+00> : vector<8x16x16xf32>
    %23 = tpu.matmul %21, %22, %cst_22 {dimension_numbers = #tpu.dot_dimension_numbers<[2], [2], [1], [1], [0, 0, 0, 1, 1, 1], [0], [0]>} : vector<8x16x64xbf16>, vector<8x16x64xbf16>, vector<8x16x16xf32> -> vector<8x16x16xf32>
    %24 = vector.shape_cast %5 : vector<16x16xf32> to vector<1x16x16xf32>
    %25 = vector.broadcast %24 : vector<1x16x16xf32> to vector<8x16x16xf32>
    %26 = arith.addf %23, %25 : vector<8x16x16xf32>
    %cst_23 = arith.constant dense<0xFF800000> : vector<8x16xf32>
    %27 = vector.multi_reduction <maximumf>, %26, %cst_23 [2] : vector<8x16x16xf32> to vector<8x16xf32>
    %28 = vector.shape_cast %27 : vector<8x16xf32> to vector<8x16x1xf32>
    %29 = vector.broadcast %28 : vector<8x16x1xf32> to vector<8x16x16xf32>
    %30 = arith.subf %26, %29 : vector<8x16x16xf32>
    %31 = math.exp %30 : vector<8x16x16xf32>
    %cst_24 = arith.constant dense<0.000000e+00> : vector<8x16xf32>
    %32 = vector.multi_reduction <add>, %31, %cst_24 [2] : vector<8x16x16xf32> to vector<8x16xf32>
    %33 = vector.shape_cast %32 : vector<8x16xf32> to vector<8x16x1xf32>
    %34 = tpu.reciprocal %33 {approx = true} : vector<8x16x1xf32> -> vector<8x16x1xf32>
    %35 = vector.broadcast %34 : vector<8x16x1xf32> to vector<8x16x16xf32>
    %36 = arith.mulf %31, %35 : vector<8x16x16xf32>
    %37 = arith.truncf %36 : vector<8x16x16xf32> to vector<8x16x16xbf16>
    %38 = arith.truncf %20 : vector<8x16x64xf32> to vector<8x16x64xbf16>
    %cst_25 = arith.constant dense<0.000000e+00> : vector<8x16x64xf32>
    %39 = tpu.matmul %37, %38, %cst_25 {dimension_numbers = #tpu.dot_dimension_numbers<[2], [1], [1], [2], [0, 0, 0, 1, 1, 2], [0], [0]>} : vector<8x16x16xbf16>, vector<8x16x64xbf16>, vector<8x16x64xf32> -> vector<8x16x64xf32>
    %40 = arith.truncf %39 : vector<8x16x64xf32> to vector<8x16x64xbf16>
    %cst_26 = arith.constant dense<0.000000e+00> : vector<8x16x128xf32>
    %41 = tpu.matmul %40, %9, %cst_26 {dimension_numbers = #tpu.dot_dimension_numbers<[2], [1], [1], [2], [0, 0, 0, 1, 1, 2], [0], [0]>} : vector<8x16x64xbf16>, vector<8x64x128xbf16>, vector<8x16x128xf32> -> vector<8x16x128xf32>
    %cst_27 = arith.constant dense<0.000000e+00> : vector<16x128xf32>
    %42 = vector.multi_reduction <add>, %41, %cst_27 [0] : vector<8x16x128xf32> to vector<16x128xf32>
    %43 = arith.addf %42, %1 : vector<16x128xf32>
    %cst_28 = arith.constant dense<0.000000e+00> : vector<16xf32>
    %44 = vector.multi_reduction <add>, %43, %cst_28 [1] : vector<16x128xf32> to vector<16xf32>
    %45 = vector.shape_cast %44 : vector<16xf32> to vector<16x1xf32>
    %cst_29 = arith.constant 1.280000e+02 : f32
    %46 = vector.broadcast %cst_29 : f32 to vector<16x1xf32>
    %47 = arith.divf %45, %46 : vector<16x1xf32>
    %48 = vector.broadcast %47 : vector<16x1xf32> to vector<16x128xf32>
    %49 = arith.subf %43, %48 : vector<16x128xf32>
    %50 = arith.mulf %49, %49 : vector<16x128xf32>
    %cst_30 = arith.constant dense<0.000000e+00> : vector<16xf32>
    %51 = vector.multi_reduction <add>, %50, %cst_30 [1] : vector<16x128xf32> to vector<16xf32>
    %52 = vector.shape_cast %51 : vector<16xf32> to vector<16x1xf32>
    %cst_31 = arith.constant 1.280000e+02 : f32
    %53 = vector.broadcast %cst_31 : f32 to vector<16x1xf32>
    %54 = arith.divf %52, %53 : vector<16x1xf32>
    %55 = vector.broadcast %47 : vector<16x1xf32> to vector<16x128xf32>
    %56 = arith.subf %43, %55 : vector<16x128xf32>
    %cst_32 = arith.constant 9.99999974E-6 : f32
    %57 = vector.broadcast %cst_32 : f32 to vector<16x1xf32>
    %58 = arith.addf %54, %57 : vector<16x1xf32>
    %59 = math.rsqrt %58 : vector<16x1xf32>
    %60 = vector.broadcast %59 : vector<16x1xf32> to vector<16x128xf32>
    %61 = arith.mulf %56, %60 : vector<16x128xf32>
    %c0_33 = arith.constant 0 : index
    %c0_34 = arith.constant 0 : index
    %c0_35 = arith.constant 0 : index
    %c0_36 = arith.constant 0 : index
    %62 = vector.load %arg16[%c0_33, %c0_34, %c0_35, %c0_36] : memref<1x8x16x16xf32, #tpu.memory_space<vmem>>, vector<1x8x16x16xf32>
    %63 = vector.shape_cast %62 : vector<1x8x16x16xf32> to vector<8x16x16xf32>
    %64 = vector.shape_cast %36 : vector<8x16x16xf32> to vector<1x8x16x16xf32>
    tpu.vector_store %arg16[%c0_33, %c0_34, %c0_35, %c0_36], %64 {strides = array<i32>} : memref<1x8x16x16xf32, #tpu.memory_space<vmem>>, vector<1x8x16x16xf32>,
    %c0_37 = arith.constant 0 : index
    %c0_38 = arith.constant 0 : index
    %c0_39 = arith.constant 0 : index
    %65 = vector.load %arg4[%c0_37, %c0_38, %c0_39] : memref<1x16x32xf32, #tpu.memory_space<vmem>>, vector<1x16x32xf32>
    %66 = vector.shape_cast %65 : vector<1x16x32xf32> to vector<16x32xf32>
    %c0_40 = arith.constant 0 : index
    %c0_41 = arith.constant 0 : index
    %c0_42 = arith.constant 0 : index
    %67 = vector.load %arg9[%c0_40, %c0_41, %c0_42] : memref<8x64x128xbf16, #tpu.memory_space<vmem>>, vector<8x64x128xbf16>
    %c0_43 = arith.constant 0 : index
    %c0_44 = arith.constant 0 : index
    %c0_45 = arith.constant 0 : index
    %68 = vector.load %arg10[%c0_43, %c0_44, %c0_45] : memref<8x64x128xbf16, #tpu.memory_space<vmem>>, vector<8x64x128xbf16>
    %c0_46 = arith.constant 0 : index
    %c0_47 = arith.constant 0 : index
    %c0_48 = arith.constant 0 : index
    %69 = vector.load %arg11[%c0_46, %c0_47, %c0_48] : memref<8x64x128xbf16, #tpu.memory_space<vmem>>, vector<8x64x128xbf16>
    %c0_49 = arith.constant 0 : index
    %c0_50 = arith.constant 0 : index
    %c0_51 = arith.constant 0 : index
    %70 = vector.load %arg12[%c0_49, %c0_50, %c0_51] : memref<8x64x128xbf16, #tpu.memory_space<vmem>>, vector<8x64x128xbf16>
    %71 = arith.truncf %61 : vector<16x128xf32> to vector<16x128xbf16>
    %72 = vector.shape_cast %71 : vector<16x128xbf16> to vector<1x16x128xbf16>
    %73 = vector.shape_cast %72 : vector<1x16x128xbf16> to vector<1x16x128xbf16>
    %74 = vector.broadcast %73 : vector<1x16x128xbf16> to vector<8x16x128xbf16>
    %75 = arith.truncf %3 : vector<32x128xf32> to vector<32x128xbf16>
    %76 = vector.shape_cast %75 : vector<32x128xbf16> to vector<1x32x128xbf16>
    %77 = vector.shape_cast %76 : vector<1x32x128xbf16> to vector<1x32x128xbf16>
    %78 = vector.broadcast %77 : vector<1x32x128xbf16> to vector<8x32x128xbf16>
    %cst_52 = arith.constant dense<0.000000e+00> : vector<8x16x64xf32>
    %79 = tpu.matmul %74, %67, %cst_52 {dimension_numbers = #tpu.dot_dimension_numbers<[2], [2], [1], [1], [0, 0, 0, 1, 1, 1], [0], [0]>} : vector<8x16x128xbf16>, vector<8x64x128xbf16>, vector<8x16x64xf32> -> vector<8x16x64xf32>
    %cst_53 = arith.constant dense<0.000000e+00> : vector<8x32x64xf32>
    %80 = tpu.matmul %78, %68, %cst_53 {dimension_numbers = #tpu.dot_dimension_numbers<[2], [2], [1], [1], [0, 0, 0, 1, 1, 1], [0], [0]>} : vector<8x32x128xbf16>, vector<8x64x128xbf16>, vector<8x32x64xf32> -> vector<8x32x64xf32>
    %cst_54 = arith.constant dense<0.000000e+00> : vector<8x32x64xf32>
    %81 = tpu.matmul %78, %69, %cst_54 {dimension_numbers = #tpu.dot_dimension_numbers<[2], [2], [1], [1], [0, 0, 0, 1, 1, 1], [0], [0]>} : vector<8x32x128xbf16>, vector<8x64x128xbf16>, vector<8x32x64xf32> -> vector<8x32x64xf32>
    %82 = arith.truncf %79 : vector<8x16x64xf32> to vector<8x16x64xbf16>
    %83 = arith.truncf %80 : vector<8x32x64xf32> to vector<8x32x64xbf16>
    %cst_55 = arith.constant dense<0.000000e+00> : vector<8x16x32xf32>
    %84 = tpu.matmul %82, %83, %cst_55 {dimension_numbers = #tpu.dot_dimension_numbers<[2], [2], [1], [1], [0, 0, 0, 1, 1, 1], [0], [0]>} : vector<8x16x64xbf16>, vector<8x32x64xbf16>, vector<8x16x32xf32> -> vector<8x16x32xf32>
    %85 = vector.shape_cast %66 : vector<16x32xf32> to vector<1x16x32xf32>
    %86 = vector.broadcast %85 : vector<1x16x32xf32> to vector<8x16x32xf32>
    %87 = arith.addf %84, %86 : vector<8x16x32xf32>
    %cst_56 = arith.constant dense<0xFF800000> : vector<8x16xf32>
    %88 = vector.multi_reduction <maximumf>, %87, %cst_56 [2] : vector<8x16x32xf32> to vector<8x16xf32>
    %89 = vector.shape_cast %88 : vector<8x16xf32> to vector<8x16x1xf32>
    %90 = vector.broadcast %89 : vector<8x16x1xf32> to vector<8x16x32xf32>
    %91 = arith.subf %87, %90 : vector<8x16x32xf32>
    %92 = math.exp %91 : vector<8x16x32xf32>
    %cst_57 = arith.constant dense<0.000000e+00> : vector<8x16xf32>
    %93 = vector.multi_reduction <add>, %92, %cst_57 [2] : vector<8x16x32xf32> to vector<8x16xf32>
    %94 = vector.shape_cast %93 : vector<8x16xf32> to vector<8x16x1xf32>
    %95 = tpu.reciprocal %94 {approx = true} : vector<8x16x1xf32> -> vector<8x16x1xf32>
    %96 = vector.broadcast %95 : vector<8x16x1xf32> to vector<8x16x32xf32>
    %97 = arith.mulf %92, %96 : vector<8x16x32xf32>
    %98 = arith.truncf %97 : vector<8x16x32xf32> to vector<8x16x32xbf16>
    %99 = arith.truncf %81 : vector<8x32x64xf32> to vector<8x32x64xbf16>
    %cst_58 = arith.constant dense<0.000000e+00> : vector<8x16x64xf32>
    %100 = tpu.matmul %98, %99, %cst_58 {dimension_numbers = #tpu.dot_dimension_numbers<[2], [1], [1], [2], [0, 0, 0, 1, 1, 2], [0], [0]>} : vector<8x16x32xbf16>, vector<8x32x64xbf16>, vector<8x16x64xf32> -> vector<8x16x64xf32>
    %101 = arith.truncf %100 : vector<8x16x64xf32> to vector<8x16x64xbf16>
    %cst_59 = arith.constant dense<0.000000e+00> : vector<8x16x128xf32>
    %102 = tpu.matmul %101, %70, %cst_59 {dimension_numbers = #tpu.dot_dimension_numbers<[2], [1], [1], [2], [0, 0, 0, 1, 1, 2], [0], [0]>} : vector<8x16x64xbf16>, vector<8x64x128xbf16>, vector<8x16x128xf32> -> vector<8x16x128xf32>
    %cst_60 = arith.constant dense<0.000000e+00> : vector<16x128xf32>
    %103 = vector.multi_reduction <add>, %102, %cst_60 [0] : vector<8x16x128xf32> to vector<16x128xf32>
    %104 = arith.addf %103, %61 : vector<16x128xf32>
    %cst_61 = arith.constant dense<0.000000e+00> : vector<16xf32>
    %105 = vector.multi_reduction <add>, %104, %cst_61 [1] : vector<16x128xf32> to vector<16xf32>
    %106 = vector.shape_cast %105 : vector<16xf32> to vector<16x1xf32>
    %cst_62 = arith.constant 1.280000e+02 : f32
    %107 = vector.broadcast %cst_62 : f32 to vector<16x1xf32>
    %108 = arith.divf %106, %107 : vector<16x1xf32>
    %109 = vector.broadcast %108 : vector<16x1xf32> to vector<16x128xf32>
    %110 = arith.subf %104, %109 : vector<16x128xf32>
    %111 = arith.mulf %110, %110 : vector<16x128xf32>
    %cst_63 = arith.constant dense<0.000000e+00> : vector<16xf32>
    %112 = vector.multi_reduction <add>, %111, %cst_63 [1] : vector<16x128xf32> to vector<16xf32>
    %113 = vector.shape_cast %112 : vector<16xf32> to vector<16x1xf32>
    %cst_64 = arith.constant 1.280000e+02 : f32
    %114 = vector.broadcast %cst_64 : f32 to vector<16x1xf32>
    %115 = arith.divf %113, %114 : vector<16x1xf32>
    %116 = vector.broadcast %108 : vector<16x1xf32> to vector<16x128xf32>
    %117 = arith.subf %104, %116 : vector<16x128xf32>
    %cst_65 = arith.constant 9.99999974E-6 : f32
    %118 = vector.broadcast %cst_65 : f32 to vector<16x1xf32>
    %119 = arith.addf %115, %118 : vector<16x1xf32>
    %120 = math.rsqrt %119 : vector<16x1xf32>
    %121 = vector.broadcast %120 : vector<16x1xf32> to vector<16x128xf32>
    %122 = arith.mulf %117, %121 : vector<16x128xf32>
    %c0_66 = arith.constant 0 : index
    %c0_67 = arith.constant 0 : index
    %c0_68 = arith.constant 0 : index
    %c0_69 = arith.constant 0 : index
    %123 = vector.load %arg17[%c0_66, %c0_67, %c0_68, %c0_69] : memref<1x8x16x32xf32, #tpu.memory_space<vmem>>, vector<1x8x16x32xf32>
    %124 = vector.shape_cast %123 : vector<1x8x16x32xf32> to vector<8x16x32xf32>
    %125 = vector.shape_cast %97 : vector<8x16x32xf32> to vector<1x8x16x32xf32>
    tpu.vector_store %arg17[%c0_66, %c0_67, %c0_68, %c0_69], %125 {strides = array<i32>} : memref<1x8x16x32xf32, #tpu.memory_space<vmem>>, vector<1x8x16x32xf32>,
    %126 = arith.truncf %122 : vector<16x128xf32> to vector<16x128xbf16>
    %c0_70 = arith.constant 0 : index
    %c0_71 = arith.constant 0 : index
    %127 = vector.load %arg13[%c0_70, %c0_71] : memref<128x2048xbf16, #tpu.memory_space<vmem>>, vector<128x2048xbf16>
    %cst_72 = arith.constant dense<0.000000e+00> : vector<16x2048xf32>
    %128 = tpu.matmul %126, %127, %cst_72 {dimension_numbers = #tpu.dot_dimension_numbers<[1], [0], [0], [1], [0, 0, 1, 1], [], []>} : vector<16x128xbf16>, vector<128x2048xbf16>, vector<16x2048xf32> -> vector<16x2048xf32>
    %cst_73 = arith.constant 0.000000e+00 : f32
    %129 = vector.broadcast %cst_73 : f32 to vector<16x2048xf32>
    %130 = arith.maximumf %128, %129 : vector<16x2048xf32>
    %131 = arith.truncf %130 : vector<16x2048xf32> to vector<16x2048xbf16>
    %c0_74 = arith.constant 0 : index
    %c0_75 = arith.constant 0 : index
    %132 = vector.load %arg14[%c0_74, %c0_75] : memref<2048x128xbf16, #tpu.memory_space<vmem>>, vector<2048x128xbf16>
    %cst_76 = arith.constant dense<0.000000e+00> : vector<16x128xf32>
    %133 = tpu.matmul %131, %132, %cst_76 {dimension_numbers = #tpu.dot_dimension_numbers<[1], [0], [0], [1], [0, 0, 1, 1], [], []>} : vector<16x2048xbf16>, vector<2048x128xbf16>, vector<16x128xf32> -> vector<16x128xf32>
    %134 = arith.addf %133, %122 : vector<16x128xf32>
    %cst_77 = arith.constant dense<0.000000e+00> : vector<16xf32>
    %135 = vector.multi_reduction <add>, %134, %cst_77 [1] : vector<16x128xf32> to vector<16xf32>
    %136 = vector.shape_cast %135 : vector<16xf32> to vector<16x1xf32>
    %cst_78 = arith.constant 1.280000e+02 : f32
    %137 = vector.broadcast %cst_78 : f32 to vector<16x1xf32>
    %138 = arith.divf %136, %137 : vector<16x1xf32>
    %139 = vector.broadcast %138 : vector<16x1xf32> to vector<16x128xf32>
    %140 = arith.subf %134, %139 : vector<16x128xf32>
    %141 = arith.mulf %140, %140 : vector<16x128xf32>
    %cst_79 = arith.constant dense<0.000000e+00> : vector<16xf32>
    %142 = vector.multi_reduction <add>, %141, %cst_79 [1] : vector<16x128xf32> to vector<16xf32>
    %143 = vector.shape_cast %142 : vector<16xf32> to vector<16x1xf32>
    %cst_80 = arith.constant 1.280000e+02 : f32
    %144 = vector.broadcast %cst_80 : f32 to vector<16x1xf32>
    %145 = arith.divf %143, %144 : vector<16x1xf32>
    %146 = vector.broadcast %138 : vector<16x1xf32> to vector<16x128xf32>
    %147 = arith.subf %134, %146 : vector<16x128xf32>
    %cst_81 = arith.constant 9.99999974E-6 : f32
    %148 = vector.broadcast %cst_81 : f32 to vector<16x1xf32>
    %149 = arith.addf %145, %148 : vector<16x1xf32>
    %150 = math.rsqrt %149 : vector<16x1xf32>
    %151 = vector.broadcast %150 : vector<16x1xf32> to vector<16x128xf32>
    %152 = arith.mulf %147, %151 : vector<16x128xf32>
    %c0_82 = arith.constant 0 : index
    %c0_83 = arith.constant 0 : index
    %c0_84 = arith.constant 0 : index
    %153 = vector.load %arg15[%c0_82, %c0_83, %c0_84] : memref<1x16x128xf32, #tpu.memory_space<vmem>>, vector<1x16x128xf32>
    %154 = vector.shape_cast %153 : vector<1x16x128xf32> to vector<16x128xf32>
    %155 = vector.shape_cast %152 : vector<16x128xf32> to vector<1x16x128xf32>
    tpu.vector_store %arg15[%c0_82, %c0_83, %c0_84], %155 {strides = array<i32>} : memref<1x16x128xf32, #tpu.memory_space<vmem>>, vector<1x16x128xf32>,
    return
  }
  func.func @transform_0(%arg0: i32) -> (i32, i32, i32) {
    %c0_i32 = arith.constant 0 : i32
    %c0_i32_0 = arith.constant 0 : i32
    %c0_i32_1 = arith.constant 0 : i32
    return %arg0, %c0_i32, %c0_i32_0 : i32, i32, i32
  }
  func.func @transform_1(%arg0: i32) -> (i32, i32, i32) {
    %c0_i32 = arith.constant 0 : i32
    %c0_i32_0 = arith.constant 0 : i32
    %c0_i32_1 = arith.constant 0 : i32
    return %arg0, %c0_i32, %c0_i32_0 : i32, i32, i32
  }
  func.func @transform_2(%arg0: i32) -> (i32, i32, i32) {
    %c0_i32 = arith.constant 0 : i32
    %c0_i32_0 = arith.constant 0 : i32
    %c0_i32_1 = arith.constant 0 : i32
    return %arg0, %c0_i32, %c0_i32_0 : i32, i32, i32
  }
  func.func @transform_3(%arg0: i32) -> (i32, i32, i32) {
    %c0_i32 = arith.constant 0 : i32
    %c0_i32_0 = arith.constant 0 : i32
    %c0_i32_1 = arith.constant 0 : i32
    return %arg0, %c0_i32, %c0_i32_0 : i32, i32, i32
  }
  func.func @transform_4(%arg0: i32) -> (i32, i32, i32) {
    %c0_i32 = arith.constant 0 : i32
    %c0_i32_0 = arith.constant 0 : i32
    %c0_i32_1 = arith.constant 0 : i32
    %c0_i32_2 = arith.constant 0 : i32
    return %c0_i32, %c0_i32_0, %c0_i32_1 : i32, i32, i32
  }
  func.func @transform_5(%arg0: i32) -> (i32, i32, i32) {
    %c0_i32 = arith.constant 0 : i32
    %c0_i32_0 = arith.constant 0 : i32
    %c0_i32_1 = arith.constant 0 : i32
    %c0_i32_2 = arith.constant 0 : i32
    return %c0_i32, %c0_i32_0, %c0_i32_1 : i32, i32, i32
  }
  func.func @transform_6(%arg0: i32) -> (i32, i32, i32) {
    %c0_i32 = arith.constant 0 : i32
    %c0_i32_0 = arith.constant 0 : i32
    %c0_i32_1 = arith.constant 0 : i32
    %c0_i32_2 = arith.constant 0 : i32
    return %c0_i32, %c0_i32_0, %c0_i32_1 : i32, i32, i32
  }
  func.func @transform_7(%arg0: i32) -> (i32, i32, i32) {
    %c0_i32 = arith.constant 0 : i32
    %c0_i32_0 = arith.constant 0 : i32
    %c0_i32_1 = arith.constant 0 : i32
    %c0_i32_2 = arith.constant 0 : i32
    return %c0_i32, %c0_i32_0, %c0_i32_1 : i32, i32, i32
  }
  func.func @transform_8(%arg0: i32) -> (i32, i32, i32) {
    %c0_i32 = arith.constant 0 : i32
    %c0_i32_0 = arith.constant 0 : i32
    %c0_i32_1 = arith.constant 0 : i32
    %c0_i32_2 = arith.constant 0 : i32
    return %c0_i32, %c0_i32_0, %c0_i32_1 : i32, i32, i32
  }
  func.func @transform_9(%arg0: i32) -> (i32, i32, i32) {
    %c0_i32 = arith.constant 0 : i32
    %c0_i32_0 = arith.constant 0 : i32
    %c0_i32_1 = arith.constant 0 : i32
    %c0_i32_2 = arith.constant 0 : i32
    return %c0_i32, %c0_i32_0, %c0_i32_1 : i32, i32, i32
  }
  func.func @transform_10(%arg0: i32) -> (i32, i32, i32) {
    %c0_i32 = arith.constant 0 : i32
    %c0_i32_0 = arith.constant 0 : i32
    %c0_i32_1 = arith.constant 0 : i32
    %c0_i32_2 = arith.constant 0 : i32
    return %c0_i32, %c0_i32_0, %c0_i32_1 : i32, i32, i32
  }
  func.func @transform_11(%arg0: i32) -> (i32, i32, i32) {
    %c0_i32 = arith.constant 0 : i32
    %c0_i32_0 = arith.constant 0 : i32
    %c0_i32_1 = arith.constant 0 : i32
    %c0_i32_2 = arith.constant 0 : i32
    return %c0_i32, %c0_i32_0, %c0_i32_1 : i32, i32, i32
  }
  func.func @transform_12(%arg0: i32) -> (i32, i32) {
    %c0_i32 = arith.constant 0 : i32
    %c0_i32_0 = arith.constant 0 : i32
    %c0_i32_1 = arith.constant 0 : i32
    return %c0_i32, %c0_i32_0 : i32, i32
  }
  func.func @transform_13(%arg0: i32) -> (i32, i32) {
    %c0_i32 = arith.constant 0 : i32
    %c0_i32_0 = arith.constant 0 : i32
    %c0_i32_1 = arith.constant 0 : i32
    return %c0_i32, %c0_i32_0 : i32, i32
  }
  func.func @transform_14(%arg0: i32) -> (i32, i32, i32) {
    %c0_i32 = arith.constant 0 : i32
    %c0_i32_0 = arith.constant 0 : i32
    %c0_i32_1 = arith.constant 0 : i32
    return %arg0, %c0_i32, %c0_i32_0 : i32, i32, i32
  }
  func.func @transform_15(%arg0: i32) -> (i32, i32, i32, i32) {
    %c0_i32 = arith.constant 0 : i32
    %c0_i32_0 = arith.constant 0 : i32
    %c0_i32_1 = arith.constant 0 : i32
    %c0_i32_2 = arith.constant 0 : i32
    return %arg0, %c0_i32, %c0_i32_0, %c0_i32_1 : i32, i32, i32, i32
  }
  func.func @transform_16(%arg0: i32) -> (i32, i32, i32, i32) {
    %c0_i32 = arith.constant 0 : i32
    %c0_i32_0 = arith.constant 0 : i32
    %c0_i32_1 = arith.constant 0 : i32
    %c0_i32_2 = arith.constant 0 : i32
    return %arg0, %c0_i32, %c0_i32_0, %c0_i32_1 : i32, i32, i32, i32
  }
}

</mosaic_0001>

<llo_original>
// kernel: decoder_layer.1
$region0: #{decoder_layer.1}
  #allocation0 [shape = 'u32[]', space=smem, size = 0x4, offset = 0x4, fixed_abs, tag = 'smem constant byte address 0x4 - core index']
  #allocation1 [shape = 'u32[72,128]{1,0:T(1,128)}', space=vmem, size = 0x9000, scoped, tag = 'internal scratch']
  %s0 = inlined_call_operand.vmem [shape: f32[2,16,128], index: 0, kind: input, shape index: {}]
  %s1 = inlined_call_operand.vmem [shape: f32[2,32,128], index: 1, kind: input, shape index: {}]
  %s2 = inlined_call_operand.vmem [shape: f32[2,16,16], index: 2, kind: input, shape index: {}]
  %s3 = inlined_call_operand.vmem [shape: f32[2,16,32], index: 3, kind: input, shape index: {}]
  %s4 = inlined_call_operand.vmem [shape: bf16[8,64,128], index: 4, kind: input, shape index: {}]
  %s5 = inlined_call_operand.vmem [shape: bf16[8,64,128], index: 5, kind: input, shape index: {}]
  %s6 = inlined_call_operand.vmem [shape: bf16[8,64,128], index: 6, kind: input, shape index: {}]
  %s7 = inlined_call_operand.vmem [shape: bf16[8,64,128], index: 7, kind: input, shape index: {}]
  %s8 = inlined_call_operand.vmem [shape: bf16[8,64,128], index: 8, kind: input, shape index: {}]
  %s9 = inlined_call_operand.vmem [shape: bf16[8,64,128], index: 9, kind: input, shape index: {}]
  %s10 = inlined_call_operand.vmem [shape: bf16[8,64,128], index: 10, kind: input, shape index: {}]
  %s11 = inlined_call_operand.vmem [shape: bf16[8,64,128], index: 11, kind: input, shape index: {}]
  %s12 = inlined_call_operand.vmem [shape: bf16[128,2048], index: 12, kind: input, shape index: {}]
  %s13 = inlined_call_operand.vmem [shape: bf16[2048,128], index: 13, kind: input, shape index: {}]
  %s14 = inlined_call_operand.hbm [shape: f32[2,16,128], index: 14, kind: output, shape index: {0}]
  %s15 = inlined_call_operand.hbm [shape: f32[2,8,16,16], index: 15, kind: output, shape index: {1}]
  %s16 = inlined_call_operand.hbm [shape: f32[2,8,16,32], index: 16, kind: output, shape index: {2}]
  %17 = xla_tuple %s14, %s15, %s16
  %s18 = sld [smem:[#allocation0]]
  $region105: #{decoder_layer.1} parent=0
    _
  %s20 = ssub.s32 1, %s18
  %s21 = scalar_select 0, %s20, %s18
  $region1: #{decoder_layer.1} parent=0
    #allocation2 [shape = 'u8[16384]{0}', space=vmem, size = 0x4000, scoped, tag = 'output window, operand 0']
    #allocation3 [shape = 's32[2]{0}', space=sflag, size = 0x8, scoped, tag = 'scoped memory for decoder_layer.1']
    #allocation4 [shape = 'u8[131072]{0}', space=vmem, size = 0x20000, scoped, tag = 'output window, operand 1']
    #allocation5 [shape = 's32[2]{0}', space=sflag, size = 0x8, scoped, tag = 'scoped memory for decoder_layer.1']
    #allocation6 [shape = 'u8[131072]{0}', space=vmem, size = 0x20000, scoped, tag = 'output window, operand 2']
    %22 = vsyncpa [#allocation3], 0
    %s23 = scalar_lea.sflag [#allocation3], 1
    %24 = vsyncpa %s23, 0
    %25 = vsyncpa [#allocation5], 0
    %s26 = scalar_lea.sflag [#allocation5], 1
    %27 = vsyncpa %s26, 0
    loop: start=0, step=1, limit=4
    $region2: #{decoder_layer.1} parent=1 // loop_pre_header
      _
    $region3: #{decoder_layer.1} parent=1 // loop_header
      %s29 = sphi 0, %s33
      %p30 = scmp.ge.s32.totalorder %s29, 4
      %s39 = sphi 0, %s41
      %s42 = sphi 0, %s39
      %s43 = sphi 0, %s42
      %s59 = sphi 0, %s43
      %s65 = sphi 0, %s67
      %s68 = sphi 0, %s65
      %s69 = sphi 0, %s68
      %s85 = sphi 0, %s69
      %s91 = sphi 0, %s93
      %s94 = sphi 0, %s91
      %s95 = sphi 0, %s94
      %s111 = sphi 0, %s95
      %s117 = sphi 0, %s119
      %s120 = sphi 0, %s117
      %s121 = sphi 0, %s120
      %s137 = sphi 0, %s121
      %s141 = sphi 0, %s141
      %s143 = sphi 0, %s141
      %s144 = sphi 0, %s143
      %s158 = sphi 0, %s144
      %s162 = sphi 0, %s162
      %s164 = sphi 0, %s162
      %s165 = sphi 0, %s164
      %s179 = sphi 0, %s165
      %s183 = sphi 0, %s183
      %s185 = sphi 0, %s183
      %s186 = sphi 0, %s185
      %s200 = sphi 0, %s186
      %s204 = sphi 0, %s204
      %s206 = sphi 0, %s204
      %s207 = sphi 0, %s206
      %s221 = sphi 0, %s207
      %s225 = sphi 0, %s225
      %s227 = sphi 0, %s225
      %s228 = sphi 0, %s227
      %s242 = sphi 0, %s228
      %s246 = sphi 0, %s246
      %s248 = sphi 0, %s246
      %s249 = sphi 0, %s248
      %s263 = sphi 0, %s249
      %s267 = sphi 0, %s267
      %s269 = sphi 0, %s267
      %s270 = sphi 0, %s269
      %s284 = sphi 0, %s270
      %s288 = sphi 0, %s288
      %s290 = sphi 0, %s288
      %s291 = sphi 0, %s290
      %s305 = sphi 0, %s291
      %s309 = sphi 0, %s309
      %s311 = sphi 0, %s309
      %s312 = sphi 0, %s311
      %s326 = sphi 0, %s312
      %s330 = sphi 0, %s330
      %s332 = sphi 0, %s330
      %s333 = sphi 0, %s332
      %s347 = sphi 0, %s333
      %s353 = sphi 0, %s355
      %s356 = sphi 0, %s353
      %s357 = sphi 0, %s356
      %s373 = sphi 0, %s357
      %s379 = sphi 0, %s381
      %s382 = sphi 0, %s379
      %s383 = sphi 0, %s382
      %s399 = sphi 0, %s383
      %s405 = sphi 0, %s407
      %s408 = sphi 0, %s405
      %s409 = sphi 0, %s408
      %s425 = sphi 0, %s409
    $region4: #{decoder_layer.1} parent=1 // loop_header_branch
      %32 = sbr.rel (%p30) target = $region8
    $region5: #{decoder_layer.1} parent=1 // loop_body
      %s34 = ssub.s32 %s29, 1
      %s35 = ssub.s32 %s29, 2
      %s36 = sadd.s32 %s29, 1
      %s37 = ssub.s32 %s29, %s36
      %p38 = scmp.eq.s32.totalorder %s37, 0
      %s40 = sadd.s32 %s39, 1
      %s41 = scalar_select %p38, %s39, %s40
      %p44 = pneg %p38
      %p45 = scmp.eq.s32.totalorder %s29, 1
      %p46 = por %p44, %p45
      %p47 = scmp.ne.s32.totalorder %s39, %s42
      %p48 = scmp.eq.s32.totalorder %s29, 0
      %p49 = por %p47, %p48
      %p50 = scmp.ne.s32.totalorder %s39, %s42
      %p51 = scmp.eq.s32.totalorder %s34, 1
      %p52 = por %p50, %p51
      %p53 = scmp.ne.s32.totalorder %s42, %s43
      %p54 = scmp.eq.s32.totalorder %s34, 0
      %p55 = por %p53, %p54
      %p56 = scmp.ne.s32.totalorder %s42, %s43
      %p57 = scmp.eq.s32.totalorder %s35, 1
      %p58 = por %p56, %p57
      %p60 = scmp.ne.s32.totalorder %s43, %s59
      %p61 = scmp.eq.s32.totalorder %s35, 0
      %p62 = por %p60, %p61
      %s63 = ssub.s32 %s29, %s36
      %p64 = scmp.eq.s32.totalorder %s63, 0
      %s66 = sadd.s32 %s65, 1
      %s67 = scalar_select %p64, %s65, %s66
      %p70 = pneg %p64
      %p71 = scmp.eq.s32.totalorder %s29, 1
      %p72 = por %p70, %p71
      %p73 = scmp.ne.s32.totalorder %s65, %s68
      %p74 = scmp.eq.s32.totalorder %s29, 0
      %p75 = por %p73, %p74
      %p76 = scmp.ne.s32.totalorder %s65, %s68
      %p77 = scmp.eq.s32.totalorder %s34, 1
      %p78 = por %p76, %p77
      %p79 = scmp.ne.s32.totalorder %s68, %s69
      %p80 = scmp.eq.s32.totalorder %s34, 0
      %p81 = por %p79, %p80
      %p82 = scmp.ne.s32.totalorder %s68, %s69
      %p83 = scmp.eq.s32.totalorder %s35, 1
      %p84 = por %p82, %p83
      %p86 = scmp.ne.s32.totalorder %s69, %s85
      %p87 = scmp.eq.s32.totalorder %s35, 0
      %p88 = por %p86, %p87
      %s89 = ssub.s32 %s29, %s36
      %p90 = scmp.eq.s32.totalorder %s89, 0
      %s92 = sadd.s32 %s91, 1
      %s93 = scalar_select %p90, %s91, %s92
      %p96 = pneg %p90
      %p97 = scmp.eq.s32.totalorder %s29, 1
      %p98 = por %p96, %p97
      %p99 = scmp.ne.s32.totalorder %s91, %s94
      %p100 = scmp.eq.s32.totalorder %s29, 0
      %p101 = por %p99, %p100
      %p102 = scmp.ne.s32.totalorder %s91, %s94
      %p103 = scmp.eq.s32.totalorder %s34, 1
      %p104 = por %p102, %p103
      %p105 = scmp.ne.s32.totalorder %s94, %s95
      %p106 = scmp.eq.s32.totalorder %s34, 0
      %p107 = por %p105, %p106
      %p108 = scmp.ne.s32.totalorder %s94, %s95
      %p109 = scmp.eq.s32.totalorder %s35, 1
      %p110 = por %p108, %p109
      %p112 = scmp.ne.s32.totalorder %s95, %s111
      %p113 = scmp.eq.s32.totalorder %s35, 0
      %p114 = por %p112, %p113
      %s115 = ssub.s32 %s29, %s36
      %p116 = scmp.eq.s32.totalorder %s115, 0
      %s118 = sadd.s32 %s117, 1
      %s119 = scalar_select %p116, %s117, %s118
      %p122 = pneg %p116
      %p123 = scmp.eq.s32.totalorder %s29, 1
      %p124 = por %p122, %p123
      %p125 = scmp.ne.s32.totalorder %s117, %s120
      %p126 = scmp.eq.s32.totalorder %s29, 0
      %p127 = por %p125, %p126
      %p128 = scmp.ne.s32.totalorder %s117, %s120
      %p129 = scmp.eq.s32.totalorder %s34, 1
      %p130 = por %p128, %p129
      %p131 = scmp.ne.s32.totalorder %s120, %s121
      %p132 = scmp.eq.s32.totalorder %s34, 0
      %p133 = por %p131, %p132
      %p134 = scmp.ne.s32.totalorder %s120, %s121
      %p135 = scmp.eq.s32.totalorder %s35, 1
      %p136 = por %p134, %p135
      %p138 = scmp.ne.s32.totalorder %s121, %s137
      %p139 = scmp.eq.s32.totalorder %s35, 0
      %p140 = por %p138, %p139
      %s142 = sadd.s32 %s141, 1
      %p145 = scmp.eq.s32.totalorder %s29, 1
      %p146 = scmp.ne.s32.totalorder %s141, %s143
      %p147 = scmp.eq.s32.totalorder %s29, 0
      %p148 = por %p146, %p147
      %p149 = scmp.ne.s32.totalorder %s141, %s143
      %p150 = scmp.eq.s32.totalorder %s34, 1
      %p151 = por %p149, %p150
      %p152 = scmp.ne.s32.totalorder %s143, %s144
      %p153 = scmp.eq.s32.totalorder %s34, 0
      %p154 = por %p152, %p153
      %p155 = scmp.ne.s32.totalorder %s143, %s144
      %p156 = scmp.eq.s32.totalorder %s35, 1
      %p157 = por %p155, %p156
      %p159 = scmp.ne.s32.totalorder %s144, %s158
      %p160 = scmp.eq.s32.totalorder %s35, 0
      %p161 = por %p159, %p160
      %s163 = sadd.s32 %s162, 1
      %p166 = scmp.eq.s32.totalorder %s29, 1
      %p167 = scmp.ne.s32.totalorder %s162, %s164
      %p168 = scmp.eq.s32.totalorder %s29, 0
      %p169 = por %p167, %p168
      %p170 = scmp.ne.s32.totalorder %s162, %s164
      %p171 = scmp.eq.s32.totalorder %s34, 1
      %p172 = por %p170, %p171
      %p173 = scmp.ne.s32.totalorder %s164, %s165
      %p174 = scmp.eq.s32.totalorder %s34, 0
      %p175 = por %p173, %p174
      %p176 = scmp.ne.s32.totalorder %s164, %s165
      %p177 = scmp.eq.s32.totalorder %s35, 1
      %p178 = por %p176, %p177
      %p180 = scmp.ne.s32.totalorder %s165, %s179
      %p181 = scmp.eq.s32.totalorder %s35, 0
      %p182 = por %p180, %p181
      %s184 = sadd.s32 %s183, 1
      %p187 = scmp.eq.s32.totalorder %s29, 1
      %p188 = scmp.ne.s32.totalorder %s183, %s185
      %p189 = scmp.eq.s32.totalorder %s29, 0
      %p190 = por %p188, %p189
      %p191 = scmp.ne.s32.totalorder %s183, %s185
      %p192 = scmp.eq.s32.totalorder %s34, 1
      %p193 = por %p191, %p192
      %p194 = scmp.ne.s32.totalorder %s185, %s186
      %p195 = scmp.eq.s32.totalorder %s34, 0
      %p196 = por %p194, %p195
      %p197 = scmp.ne.s32.totalorder %s185, %s186
      %p198 = scmp.eq.s32.totalorder %s35, 1
      %p199 = por %p197, %p198
      %p201 = scmp.ne.s32.totalorder %s186, %s200
      %p202 = scmp.eq.s32.totalorder %s35, 0
      %p203 = por %p201, %p202
      %s205 = sadd.s32 %s204, 1
      %p208 = scmp.eq.s32.totalorder %s29, 1
      %p209 = scmp.ne.s32.totalorder %s204, %s206
      %p210 = scmp.eq.s32.totalorder %s29, 0
      %p211 = por %p209, %p210
      %p212 = scmp.ne.s32.totalorder %s204, %s206
      %p213 = scmp.eq.s32.totalorder %s34, 1
      %p214 = por %p212, %p213
      %p215 = scmp.ne.s32.totalorder %s206, %s207
      %p216 = scmp.eq.s32.totalorder %s34, 0
      %p217 = por %p215, %p216
      %p218 = scmp.ne.s32.totalorder %s206, %s207
      %p219 = scmp.eq.s32.totalorder %s35, 1
      %p220 = por %p218, %p219
      %p222 = scmp.ne.s32.totalorder %s207, %s221
      %p223 = scmp.eq.s32.totalorder %s35, 0
      %p224 = por %p222, %p223
      %s226 = sadd.s32 %s225, 1
      %p229 = scmp.eq.s32.totalorder %s29, 1
      %p230 = scmp.ne.s32.totalorder %s225, %s227
      %p231 = scmp.eq.s32.totalorder %s29, 0
      %p232 = por %p230, %p231
      %p233 = scmp.ne.s32.totalorder %s225, %s227
      %p234 = scmp.eq.s32.totalorder %s34, 1
      %p235 = por %p233, %p234
      %p236 = scmp.ne.s32.totalorder %s227, %s228
      %p237 = scmp.eq.s32.totalorder %s34, 0
      %p238 = por %p236, %p237
      %p239 = scmp.ne.s32.totalorder %s227, %s228
      %p240 = scmp.eq.s32.totalorder %s35, 1
      %p241 = por %p239, %p240
      %p243 = scmp.ne.s32.totalorder %s228, %s242
      %p244 = scmp.eq.s32.totalorder %s35, 0
      %p245 = por %p243, %p244
      %s247 = sadd.s32 %s246, 1
      %p250 = scmp.eq.s32.totalorder %s29, 1
      %p251 = scmp.ne.s32.totalorder %s246, %s248
      %p252 = scmp.eq.s32.totalorder %s29, 0
      %p253 = por %p251, %p252
      %p254 = scmp.ne.s32.totalorder %s246, %s248
      %p255 = scmp.eq.s32.totalorder %s34, 1
      %p256 = por %p254, %p255
      %p257 = scmp.ne.s32.totalorder %s248, %s249
      %p258 = scmp.eq.s32.totalorder %s34, 0
      %p259 = por %p257, %p258
      %p260 = scmp.ne.s32.totalorder %s248, %s249
      %p261 = scmp.eq.s32.totalorder %s35, 1
      %p262 = por %p260, %p261
      %p264 = scmp.ne.s32.totalorder %s249, %s263
      %p265 = scmp.eq.s32.totalorder %s35, 0
      %p266 = por %p264, %p265
      %s268 = sadd.s32 %s267, 1
      %p271 = scmp.eq.s32.totalorder %s29, 1
      %p272 = scmp.ne.s32.totalorder %s267, %s269
      %p273 = scmp.eq.s32.totalorder %s29, 0
      %p274 = por %p272, %p273
      %p275 = scmp.ne.s32.totalorder %s267, %s269
      %p276 = scmp.eq.s32.totalorder %s34, 1
      %p277 = por %p275, %p276
      %p278 = scmp.ne.s32.totalorder %s269, %s270
      %p279 = scmp.eq.s32.totalorder %s34, 0
      %p280 = por %p278, %p279
      %p281 = scmp.ne.s32.totalorder %s269, %s270
      %p282 = scmp.eq.s32.totalorder %s35, 1
      %p283 = por %p281, %p282
      %p285 = scmp.ne.s32.totalorder %s270, %s284
      %p286 = scmp.eq.s32.totalorder %s35, 0
      %p287 = por %p285, %p286
      %s289 = sadd.s32 %s288, 1
      %p292 = scmp.eq.s32.totalorder %s29, 1
      %p293 = scmp.ne.s32.totalorder %s288, %s290
      %p294 = scmp.eq.s32.totalorder %s29, 0
      %p295 = por %p293, %p294
      %p296 = scmp.ne.s32.totalorder %s288, %s290
      %p297 = scmp.eq.s32.totalorder %s34, 1
      %p298 = por %p296, %p297
      %p299 = scmp.ne.s32.totalorder %s290, %s291
      %p300 = scmp.eq.s32.totalorder %s34, 0
      %p301 = por %p299, %p300
      %p302 = scmp.ne.s32.totalorder %s290, %s291
      %p303 = scmp.eq.s32.totalorder %s35, 1
      %p304 = por %p302, %p303
      %p306 = scmp.ne.s32.totalorder %s291, %s305
      %p307 = scmp.eq.s32.totalorder %s35, 0
      %p308 = por %p306, %p307
      %s310 = sadd.s32 %s309, 1
      %p313 = scmp.eq.s32.totalorder %s29, 1
      %p314 = scmp.ne.s32.totalorder %s309, %s311
      %p315 = scmp.eq.s32.totalorder %s29, 0
      %p316 = por %p314, %p315
      %p317 = scmp.ne.s32.totalorder %s309, %s311
      %p318 = scmp.eq.s32.totalorder %s34, 1
      %p319 = por %p317, %p318
      %p320 = scmp.ne.s32.totalorder %s311, %s312
      %p321 = scmp.eq.s32.totalorder %s34, 0
      %p322 = por %p320, %p321
      %p323 = scmp.ne.s32.totalorder %s311, %s312
      %p324 = scmp.eq.s32.totalorder %s35, 1
      %p325 = por %p323, %p324
      %p327 = scmp.ne.s32.totalorder %s312, %s326
      %p328 = scmp.eq.s32.totalorder %s35, 0
      %p329 = por %p327, %p328
      %s331 = sadd.s32 %s330, 1
      %p334 = scmp.eq.s32.totalorder %s29, 1
      %p335 = scmp.ne.s32.totalorder %s330, %s332
      %p336 = scmp.eq.s32.totalorder %s29, 0
      %p337 = por %p335, %p336
      %p338 = scmp.ne.s32.totalorder %s330, %s332
      %p339 = scmp.eq.s32.totalorder %s34, 1
      %p340 = por %p338, %p339
      %p341 = scmp.ne.s32.totalorder %s332, %s333
      %p342 = scmp.eq.s32.totalorder %s34, 0
      %p343 = por %p341, %p342
      %p344 = scmp.ne.s32.totalorder %s332, %s333
      %p345 = scmp.eq.s32.totalorder %s35, 1
      %p346 = por %p344, %p345
      %p348 = scmp.ne.s32.totalorder %s333, %s347
      %p349 = scmp.eq.s32.totalorder %s35, 0
      %p350 = por %p348, %p349
      %s351 = ssub.s32 %s29, %s36
      %p352 = scmp.eq.s32.totalorder %s351, 0
      %s354 = sadd.s32 %s353, 1
      %s355 = scalar_select %p352, %s353, %s354
      %p358 = pneg %p352
      %p359 = scmp.eq.s32.totalorder %s29, 1
      %p360 = por %p358, %p359
      %p361 = scmp.ne.s32.totalorder %s353, %s356
      %p362 = scmp.eq.s32.totalorder %s29, 0
      %p363 = por %p361, %p362
      %p364 = scmp.ne.s32.totalorder %s353, %s356
      %p365 = scmp.eq.s32.totalorder %s34, 1
      %p366 = por %p364, %p365
      %p367 = scmp.ne.s32.totalorder %s356, %s357
      %p368 = scmp.eq.s32.totalorder %s34, 0
      %p369 = por %p367, %p368
      %p370 = scmp.ne.s32.totalorder %s356, %s357
      %p371 = scmp.eq.s32.totalorder %s35, 1
      %p372 = por %p370, %p371
      %p374 = scmp.ne.s32.totalorder %s357, %s373
      %p375 = scmp.eq.s32.totalorder %s35, 0
      %p376 = por %p374, %p375
      %s377 = ssub.s32 %s29, %s36
      %p378 = scmp.eq.s32.totalorder %s377, 0
      %s380 = sadd.s32 %s379, 1
      %s381 = scalar_select %p378, %s379, %s380
      %p384 = pneg %p378
      %p385 = scmp.eq.s32.totalorder %s29, 1
      %p386 = por %p384, %p385
      %p387 = scmp.ne.s32.totalorder %s379, %s382
      %p388 = scmp.eq.s32.totalorder %s29, 0
      %p389 = por %p387, %p388
      %p390 = scmp.ne.s32.totalorder %s379, %s382
      %p391 = scmp.eq.s32.totalorder %s34, 1
      %p392 = por %p390, %p391
      %p393 = scmp.ne.s32.totalorder %s382, %s383
      %p394 = scmp.eq.s32.totalorder %s34, 0
      %p395 = por %p393, %p394
      %p396 = scmp.ne.s32.totalorder %s382, %s383
      %p397 = scmp.eq.s32.totalorder %s35, 1
      %p398 = por %p396, %p397
      %p400 = scmp.ne.s32.totalorder %s383, %s399
      %p401 = scmp.eq.s32.totalorder %s35, 0
      %p402 = por %p400, %p401
      %s403 = ssub.s32 %s29, %s36
      %p404 = scmp.eq.s32.totalorder %s403, 0
      %s406 = sadd.s32 %s405, 1
      %s407 = scalar_select %p404, %s405, %s406
      %p410 = pneg %p404
      %p411 = scmp.eq.s32.totalorder %s29, 1
      %p412 = por %p410, %p411
      %p413 = scmp.ne.s32.totalorder %s405, %s408
      %p414 = scmp.eq.s32.totalorder %s29, 0
      %p415 = por %p413, %p414
      %p416 = scmp.ne.s32.totalorder %s405, %s408
      %p417 = scmp.eq.s32.totalorder %s34, 1
      %p418 = por %p416, %p417
      %p419 = scmp.ne.s32.totalorder %s408, %s409
      %p420 = scmp.eq.s32.totalorder %s34, 0
      %p421 = por %p419, %p420
      %p422 = scmp.ne.s32.totalorder %s408, %s409
      %p423 = scmp.eq.s32.totalorder %s35, 1
      %p424 = por %p422, %p423
      %p426 = scmp.ne.s32.totalorder %s409, %s425
      %p427 = scmp.eq.s32.totalorder %s35, 0
      %p428 = por %p426, %p427
      %p429 = scmp.le.s32.totalorder 1, %s29
      %p430 = scmp.lt.s32.totalorder %s29, 3
      %p431 = pnand %p429, %p430
      %p432 = pneg %p431
      // Predicated region
      $region9: #{decoder_layer.1} parent=5 // pred_check
        _
      $region10: #{decoder_layer.1} parent=5 // pred_check_branch
        %434 = sbr.rel (%p431) target = $region12
      $region11: #{decoder_layer.1} parent=5 // pred_region
        %s435 = ssub.s32 %s29, 1
        // Predicated region
        $region13: #{decoder_layer.1} parent=11 // pred_check
          %p436 = pneg %p154
        $region14: #{decoder_layer.1} parent=11 // pred_check_branch
          %438 = sbr.rel (%p436) target = $region16
        $region15: #{decoder_layer.1} parent=11 // pred_region
          _
        $region16: #{decoder_layer.1} parent=11 // pred_fallthru
          _
        // Predicated region
        $region17: #{decoder_layer.1} parent=11 // pred_check
          %p439 = pneg %p175
        $region18: #{decoder_layer.1} parent=11 // pred_check_branch
          %441 = sbr.rel (%p439) target = $region20
        $region19: #{decoder_layer.1} parent=11 // pred_region
          _
        $region20: #{decoder_layer.1} parent=11 // pred_fallthru
          _
        // Predicated region
        $region21: #{decoder_layer.1} parent=11 // pred_check
          %p442 = pneg %p196
        $region22: #{decoder_layer.1} parent=11 // pred_check_branch
          %444 = sbr.rel (%p442) target = $region24
        $region23: #{decoder_layer.1} parent=11 // pred_region
          _
        $region24: #{decoder_layer.1} parent=11 // pred_fallthru
          _
        // Predicated region
        $region25: #{decoder_layer.1} parent=11 // pred_check
          %p445 = pneg %p217
        $region26: #{decoder_layer.1} parent=11 // pred_check_branch
          %447 = sbr.rel (%p445) target = $region28
        $region27: #{decoder_layer.1} parent=11 // pred_region
          _
        $region28: #{decoder_layer.1} parent=11 // pred_fallthru
          _
        // Predicated region
        $region29: #{decoder_layer.1} parent=11 // pred_check
          %p448 = pneg %p238
        $region30: #{decoder_layer.1} parent=11 // pred_check_branch
          %450 = sbr.rel (%p448) target = $region32
        $region31: #{decoder_layer.1} parent=11 // pred_region
          _
        $region32: #{decoder_layer.1} parent=11 // pred_fallthru
          _
        // Predicated region
        $region33: #{decoder_layer.1} parent=11 // pred_check
          %p451 = pneg %p259
        $region34: #{decoder_layer.1} parent=11 // pred_check_branch
          %453 = sbr.rel (%p451) target = $region36
        $region35: #{decoder_layer.1} parent=11 // pred_region
          _
        $region36: #{decoder_layer.1} parent=11 // pred_fallthru
          _
        // Predicated region
        $region37: #{decoder_layer.1} parent=11 // pred_check
          %p454 = pneg %p280
        $region38: #{decoder_layer.1} parent=11 // pred_check_branch
          %456 = sbr.rel (%p454) target = $region40
        $region39: #{decoder_layer.1} parent=11 // pred_region
          _
        $region40: #{decoder_layer.1} parent=11 // pred_fallthru
          _
        // Predicated region
        $region41: #{decoder_layer.1} parent=11 // pred_check
          %p457 = pneg %p301
        $region42: #{decoder_layer.1} parent=11 // pred_check_branch
          %459 = sbr.rel (%p457) target = $region44
        $region43: #{decoder_layer.1} parent=11 // pred_region
          _
        $region44: #{decoder_layer.1} parent=11 // pred_fallthru
          _
        // Predicated region
        $region45: #{decoder_layer.1} parent=11 // pred_check
          %p460 = pneg %p322
        $region46: #{decoder_layer.1} parent=11 // pred_check_branch
          %462 = sbr.rel (%p460) target = $region48
        $region47: #{decoder_layer.1} parent=11 // pred_region
          _
        $region48: #{decoder_layer.1} parent=11 // pred_fallthru
          _
        // Predicated region
        $region49: #{decoder_layer.1} parent=11 // pred_check
          %p463 = pneg %p343
        $region50: #{decoder_layer.1} parent=11 // pred_check_branch
          %465 = sbr.rel (%p463) target = $region52
        $region51: #{decoder_layer.1} parent=11 // pred_region
          _
        $region52: #{decoder_layer.1} parent=11 // pred_fallthru
          _
      $region12: #{decoder_layer.1} parent=5 // pred_fallthru
        _
      %p466 = scmp.lt.s32.totalorder %s29, 2
      // Predicated region
      $region53: #{decoder_layer.1} parent=5 // pred_check
        %p467 = pneg %p466
      $region54: #{decoder_layer.1} parent=5 // pred_check_branch
        %469 = sbr.rel (%p467) target = $region56
      $region55: #{decoder_layer.1} parent=5 // pred_region
        // Predicated region
        $region57: #{decoder_layer.1} parent=55 // pred_check
          %p470 = pneg %p49
        $region58: #{decoder_layer.1} parent=55 // pred_check_branch
          %472 = sbr.rel (%p470) target = $region60
        $region59: #{decoder_layer.1} parent=55 // pred_region
          %p473 = scmp.lt.s32.totalorder %s29, 1
          %s474 = scalar_select %p473, %s29, 1
          %s475 = smul.addr %s474, 2
          %s476 = smul.addr %s475, 8
          %s477 = scalar_lea.vmem %s0, %s476
        $region60: #{decoder_layer.1} parent=55 // pred_fallthru
          _
        // Predicated region
        $region61: #{decoder_layer.1} parent=55 // pred_check
          %p478 = pneg %p75
        $region62: #{decoder_layer.1} parent=55 // pred_check_branch
          %480 = sbr.rel (%p478) target = $region64
        $region63: #{decoder_layer.1} parent=55 // pred_region
          %p481 = scmp.lt.s32.totalorder %s29, 1
          %s482 = scalar_select %p481, %s29, 1
          %s483 = smul.addr %s482, 4
          %s484 = smul.addr %s483, 8
          %s485 = scalar_lea.vmem %s1, %s484
        $region64: #{decoder_layer.1} parent=55 // pred_fallthru
          _
        // Predicated region
        $region65: #{decoder_layer.1} parent=55 // pred_check
          %p486 = pneg %p101
        $region66: #{decoder_layer.1} parent=55 // pred_check_branch
          %488 = sbr.rel (%p486) target = $region68
        $region67: #{decoder_layer.1} parent=55 // pred_region
          %p489 = scmp.lt.s32.totalorder %s29, 1
          %s490 = scalar_select %p489, %s29, 1
          %s491 = smul.addr %s490, 2
          %s492 = smul.addr %s491, 8
          %s493 = scalar_lea.vmem %s2, %s492
        $region68: #{decoder_layer.1} parent=55 // pred_fallthru
          _
        // Predicated region
        $region69: #{decoder_layer.1} parent=55 // pred_check
          %p494 = pneg %p127
        $region70: #{decoder_layer.1} parent=55 // pred_check_branch
          %496 = sbr.rel (%p494) target = $region72
        $region71: #{decoder_layer.1} parent=55 // pred_region
          %p497 = scmp.lt.s32.totalorder %s29, 1
          %s498 = scalar_select %p497, %s29, 1
          %s499 = smul.addr %s498, 2
          %s500 = smul.addr %s499, 8
          %s501 = scalar_lea.vmem %s3, %s500
        $region72: #{decoder_layer.1} parent=55 // pred_fallthru
          _
      $region56: #{decoder_layer.1} parent=5 // pred_fallthru
        _
      %p502 = scmp.le.s32.totalorder 1, %s29
      %p503 = scmp.lt.s32.totalorder %s29, 3
      %p504 = pnand %p502, %p503
      %p505 = pneg %p504
      // Predicated region
      $region73: #{decoder_layer.1} parent=5 // pred_check
        _
      $region74: #{decoder_layer.1} parent=5 // pred_check_branch
        %507 = sbr.rel (%p504) target = $region76
      $region75: #{decoder_layer.1} parent=5 // pred_region
        %s508 = ssub.s32 %s29, 1
        %p509 = scmp.lt.s32.totalorder %s34, 1
        %s510 = scalar_select %p509, %s34, 1
        %s511 = smul.addr %s510, 2
        %s512 = smul.addr %s511, 8
        %s513 = scalar_lea.vmem %s0, %s512
        %p514 = pneg %p55
        %p515 = pneg %p52
        %p516 = scmp.lt.s32.totalorder %s34, 1
        %s517 = scalar_select %p516, %s34, 1
        %s518 = smul.addr %s517, 4
        %s519 = smul.addr %s518, 8
        %s520 = scalar_lea.vmem %s1, %s519
        %p521 = pneg %p81
        %p522 = pneg %p78
        %p523 = scmp.lt.s32.totalorder %s34, 1
        %s524 = scalar_select %p523, %s34, 1
        %s525 = smul.addr %s524, 2
        %s526 = smul.addr %s525, 8
        %s527 = scalar_lea.vmem %s2, %s526
        %p528 = pneg %p107
        %p529 = pneg %p104
        %p530 = scmp.lt.s32.totalorder %s34, 1
        %s531 = scalar_select %p530, %s34, 1
        %s532 = smul.addr %s531, 2
        %s533 = smul.addr %s532, 8
        %s534 = scalar_lea.vmem %s3, %s533
        %p535 = pneg %p133
        %p536 = pneg %p130
        %p537 = pneg %p154
        %p538 = pneg %p151
        %p539 = pneg %p175
        %p540 = pneg %p172
        %p541 = pneg %p196
        %p542 = pneg %p193
        %p543 = pneg %p217
        %p544 = pneg %p214
        %p545 = pneg %p238
        %p546 = pneg %p235
        %p547 = pneg %p259
        %p548 = pneg %p256
        %p549 = pneg %p280
        %p550 = pneg %p277
        %p551 = pneg %p301
        %p552 = pneg %p298
        %p553 = pneg %p322
        %p554 = pneg %p319
        %p555 = pneg %p343
        %p556 = pneg %p340
        %p557 = pneg %p369
        %p558 = pneg %p366
        %s559 = sand.u32 %s356, 1
        %s560 = scalar_lea.sflag [#allocation3], %s559
        %s561 = sand.u32 %s356, 1
        %s562 = smul.addr %s561, 16
        %s563 = scalar_lea.vmem [#allocation2], %s562
        %p564 = pneg %p395
        %p565 = pneg %p392
        %s566 = sand.u32 %s34, 1
        %s567 = scalar_lea.sflag [#allocation5], %s566
        %s568 = sand.u32 %s382, 1
        %s569 = smul.addr %s568, 128
        %s570 = scalar_lea.vmem [#allocation4], %s569
        %p571 = pneg %p421
        %p572 = pneg %p418
        %s573 = sand.u32 %s34, 1
        %s574 = scalar_lea.sflag [#allocation5], %s573
        %s575 = sand.u32 %s408, 1
        %s576 = smul.addr %s575, 128
        %s577 = scalar_lea.vmem [#allocation6], %s576
        %p578 = scmp.lt.s32.totalorder %s34, 1
        %s579 = scalar_select %p578, %s34, 1
        %s580 = smul.addr %s579, 2
        %s581 = smul.addr %s580, 8
        %s582 = scalar_lea.vmem %s0, %s581
        %p583 = scmp.lt.s32.totalorder %s34, 1
        %s584 = scalar_select %p583, %s34, 1
        %s585 = smul.addr %s584, 4
        %s586 = smul.addr %s585, 8
        %s587 = scalar_lea.vmem %s1, %s586
        %p588 = scmp.lt.s32.totalorder %s34, 1
        %s589 = scalar_select %p588, %s34, 1
        %s590 = smul.addr %s589, 2
        %s591 = smul.addr %s590, 8
        %s592 = scalar_lea.vmem %s2, %s591
        %p593 = scmp.lt.s32.totalorder %s34, 1
        %s594 = scalar_select %p593, %s34, 1
        %s595 = smul.addr %s594, 2
        %s596 = smul.addr %s595, 8
        %s597 = scalar_lea.vmem %s3, %s596
        %v599 = vld [vmem:[%s582] sm:$0xff]
        %v600 = vld [vmem:[%s582 + $0x8] sm:$0xff]
        %v601 = vld [vmem:[%s587] sm:$0xff]
        %v602 = vld [vmem:[%s587 + $0x8] sm:$0xff]
        %v603 = vld [vmem:[%s587 + $0x10] sm:$0xff]
        %v604 = vld [vmem:[%s587 + $0x18] sm:$0xff]
        %v605 = vld [vmem:[%s592] sm:$0xff]
        %v606 = vld [vmem:[%s592 + $0x8] sm:$0xff]
        %v607 = vld [vmem:[%s4] sm:$0xf]
        %v608 = vld [vmem:[%s4 + $0x4] sm:$0xf]
        %v609 = vld [vmem:[%s4 + $0x8] sm:$0xf]
        %v610 = vld [vmem:[%s4 + $0xc] sm:$0xf]
        %v611 = vld [vmem:[%s4 + $0x10] sm:$0xf]
        %v612 = vld [vmem:[%s4 + $0x14] sm:$0xf]
        %v613 = vld [vmem:[%s4 + $0x18] sm:$0xf]
        %v614 = vld [vmem:[%s4 + $0x1c] sm:$0xf]
        %v615 = vld [vmem:[%s4 + $0x20] sm:$0xf]
        %v616 = vld [vmem:[%s4 + $0x24] sm:$0xf]
        %v617 = vld [vmem:[%s4 + $0x28] sm:$0xf]
        %v618 = vld [vmem:[%s4 + $0x2c] sm:$0xf]
        %v619 = vld [vmem:[%s4 + $0x30] sm:$0xf]
        %v620 = vld [vmem:[%s4 + $0x34] sm:$0xf]
        %v621 = vld [vmem:[%s4 + $0x38] sm:$0xf]
        %v622 = vld [vmem:[%s4 + $0x3c] sm:$0xf]
        %v623 = vld [vmem:[%s4 + $0x40] sm:$0xf]
        %v624 = vld [vmem:[%s4 + $0x44] sm:$0xf]
        %v625 = vld [vmem:[%s4 + $0x48] sm:$0xf]
        %v626 = vld [vmem:[%s4 + $0x4c] sm:$0xf]
        %v627 = vld [vmem:[%s4 + $0x50] sm:$0xf]
        %v628 = vld [vmem:[%s4 + $0x54] sm:$0xf]
        %v629 = vld [vmem:[%s4 + $0x58] sm:$0xf]
        %v630 = vld [vmem:[%s4 + $0x5c] sm:$0xf]
        %v631 = vld [vmem:[%s4 + $0x60] sm:$0xf]
        %v632 = vld [vmem:[%s4 + $0x64] sm:$0xf]
        %v633 = vld [vmem:[%s4 + $0x68] sm:$0xf]
        %v634 = vld [vmem:[%s4 + $0x6c] sm:$0xf]
        %v635 = vld [vmem:[%s4 + $0x70] sm:$0xf]
        %v636 = vld [vmem:[%s4 + $0x74] sm:$0xf]
        %v637 = vld [vmem:[%s4 + $0x78] sm:$0xf]
        %v638 = vld [vmem:[%s4 + $0x7c] sm:$0xf]
        %v639 = vld [vmem:[%s4 + $0x80] sm:$0xf]
        %v640 = vld [vmem:[%s4 + $0x84] sm:$0xf]
        %v641 = vld [vmem:[%s4 + $0x88] sm:$0xf]
        %v642 = vld [vmem:[%s4 + $0x8c] sm:$0xf]
        %v643 = vld [vmem:[%s4 + $0x90] sm:$0xf]
        %v644 = vld [vmem:[%s4 + $0x94] sm:$0xf]
        %v645 = vld [vmem:[%s4 + $0x98] sm:$0xf]
        %v646 = vld [vmem:[%s4 + $0x9c] sm:$0xf]
        %v647 = vld [vmem:[%s4 + $0xa0] sm:$0xf]
        %v648 = vld [vmem:[%s4 + $0xa4] sm:$0xf]
        %v649 = vld [vmem:[%s4 + $0xa8] sm:$0xf]
        %v650 = vld [vmem:[%s4 + $0xac] sm:$0xf]
        %v651 = vld [vmem:[%s4 + $0xb0] sm:$0xf]
        %v652 = vld [vmem:[%s4 + $0xb4] sm:$0xf]
        %v653 = vld [vmem:[%s4 + $0xb8] sm:$0xf]
        %v654 = vld [vmem:[%s4 + $0xbc] sm:$0xf]
        %v655 = vld [vmem:[%s4 + $0xc0] sm:$0xf]
        %v656 = vld [vmem:[%s4 + $0xc4] sm:$0xf]
        %v657 = vld [vmem:[%s4 + $0xc8] sm:$0xf]
        %v658 = vld [vmem:[%s4 + $0xcc] sm:$0xf]
        %v659 = vld [vmem:[%s4 + $0xd0] sm:$0xf]
        %v660 = vld [vmem:[%s4 + $0xd4] sm:$0xf]
        %v661 = vld [vmem:[%s4 + $0xd8] sm:$0xf]
        %v662 = vld [vmem:[%s4 + $0xdc] sm:$0xf]
        %v663 = vld [vmem:[%s4 + $0xe0] sm:$0xf]
        %v664 = vld [vmem:[%s4 + $0xe4] sm:$0xf]
        %v665 = vld [vmem:[%s4 + $0xe8] sm:$0xf]
        %v666 = vld [vmem:[%s4 + $0xec] sm:$0xf]
        %v667 = vld [vmem:[%s4 + $0xf0] sm:$0xf]
        %v668 = vld [vmem:[%s4 + $0xf4] sm:$0xf]
        %v669 = vld [vmem:[%s4 + $0xf8] sm:$0xf]
        %v670 = vld [vmem:[%s4 + $0xfc] sm:$0xf]
        %v671 = vld [vmem:[%s5] sm:$0xf]
        %v672 = vld [vmem:[%s5 + $0x4] sm:$0xf]
        %v673 = vld [vmem:[%s5 + $0x8] sm:$0xf]
        %v674 = vld [vmem:[%s5 + $0xc] sm:$0xf]
        %v675 = vld [vmem:[%s5 + $0x10] sm:$0xf]
        %v676 = vld [vmem:[%s5 + $0x14] sm:$0xf]
        %v677 = vld [vmem:[%s5 + $0x18] sm:$0xf]
        %v678 = vld [vmem:[%s5 + $0x1c] sm:$0xf]
        %v679 = vld [vmem:[%s5 + $0x20] sm:$0xf]
        %v680 = vld [vmem:[%s5 + $0x24] sm:$0xf]
        %v681 = vld [vmem:[%s5 + $0x28] sm:$0xf]
        %v682 = vld [vmem:[%s5 + $0x2c] sm:$0xf]
        %v683 = vld [vmem:[%s5 + $0x30] sm:$0xf]
        %v684 = vld [vmem:[%s5 + $0x34] sm:$0xf]
        %v685 = vld [vmem:[%s5 + $0x38] sm:$0xf]
        %v686 = vld [vmem:[%s5 + $0x3c] sm:$0xf]
        %v687 = vld [vmem:[%s5 + $0x40] sm:$0xf]
        %v688 = vld [vmem:[%s5 + $0x44] sm:$0xf]
        %v689 = vld [vmem:[%s5 + $0x48] sm:$0xf]
        %v690 = vld [vmem:[%s5 + $0x4c] sm:$0xf]
        %v691 = vld [vmem:[%s5 + $0x50] sm:$0xf]
        %v692 = vld [vmem:[%s5 + $0x54] sm:$0xf]
        %v693 = vld [vmem:[%s5 + $0x58] sm:$0xf]
        %v694 = vld [vmem:[%s5 + $0x5c] sm:$0xf]
        %v695 = vld [vmem:[%s5 + $0x60] sm:$0xf]
        %v696 = vld [vmem:[%s5 + $0x64] sm:$0xf]
        %v697 = vld [vmem:[%s5 + $0x68] sm:$0xf]
        %v698 = vld [vmem:[%s5 + $0x6c] sm:$0xf]
        %v699 = vld [vmem:[%s5 + $0x70] sm:$0xf]
        %v700 = vld [vmem:[%s5 + $0x74] sm:$0xf]
        %v701 = vld [vmem:[%s5 + $0x78] sm:$0xf]
        %v702 = vld [vmem:[%s5 + $0x7c] sm:$0xf]
        %v703 = vld [vmem:[%s5 + $0x80] sm:$0xf]
        %v704 = vld [vmem:[%s5 + $0x84] sm:$0xf]
        %v705 = vld [vmem:[%s5 + $0x88] sm:$0xf]
        %v706 = vld [vmem:[%s5 + $0x8c] sm:$0xf]
        %v707 = vld [vmem:[%s5 + $0x90] sm:$0xf]
        %v708 = vld [vmem:[%s5 + $0x94] sm:$0xf]
        %v709 = vld [vmem:[%s5 + $0x98] sm:$0xf]
        %v710 = vld [vmem:[%s5 + $0x9c] sm:$0xf]
        %v711 = vld [vmem:[%s5 + $0xa0] sm:$0xf]
        %v712 = vld [vmem:[%s5 + $0xa4] sm:$0xf]
        %v713 = vld [vmem:[%s5 + $0xa8] sm:$0xf]
        %v714 = vld [vmem:[%s5 + $0xac] sm:$0xf]
        %v715 = vld [vmem:[%s5 + $0xb0] sm:$0xf]
        %v716 = vld [vmem:[%s5 + $0xb4] sm:$0xf]
        %v717 = vld [vmem:[%s5 + $0xb8] sm:$0xf]
        %v718 = vld [vmem:[%s5 + $0xbc] sm:$0xf]
        %v719 = vld [vmem:[%s5 + $0xc0] sm:$0xf]
        %v720 = vld [vmem:[%s5 + $0xc4] sm:$0xf]
        %v721 = vld [vmem:[%s5 + $0xc8] sm:$0xf]
        %v722 = vld [vmem:[%s5 + $0xcc] sm:$0xf]
        %v723 = vld [vmem:[%s5 + $0xd0] sm:$0xf]
        %v724 = vld [vmem:[%s5 + $0xd4] sm:$0xf]
        %v725 = vld [vmem:[%s5 + $0xd8] sm:$0xf]
        %v726 = vld [vmem:[%s5 + $0xdc] sm:$0xf]
        %v727 = vld [vmem:[%s5 + $0xe0] sm:$0xf]
        %v728 = vld [vmem:[%s5 + $0xe4] sm:$0xf]
        %v729 = vld [vmem:[%s5 + $0xe8] sm:$0xf]
        %v730 = vld [vmem:[%s5 + $0xec] sm:$0xf]
        %v731 = vld [vmem:[%s5 + $0xf0] sm:$0xf]
        %v732 = vld [vmem:[%s5 + $0xf4] sm:$0xf]
        %v733 = vld [vmem:[%s5 + $0xf8] sm:$0xf]
        %v734 = vld [vmem:[%s5 + $0xfc] sm:$0xf]
        %v735 = vld [vmem:[%s6] sm:$0xf]
        %v736 = vld [vmem:[%s6 + $0x4] sm:$0xf]
        %v737 = vld [vmem:[%s6 + $0x8] sm:$0xf]
        %v738 = vld [vmem:[%s6 + $0xc] sm:$0xf]
        %v739 = vld [vmem:[%s6 + $0x10] sm:$0xf]
        %v740 = vld [vmem:[%s6 + $0x14] sm:$0xf]
        %v741 = vld [vmem:[%s6 + $0x18] sm:$0xf]
        %v742 = vld [vmem:[%s6 + $0x1c] sm:$0xf]
        %v743 = vld [vmem:[%s6 + $0x20] sm:$0xf]
        %v744 = vld [vmem:[%s6 + $0x24] sm:$0xf]
        %v745 = vld [vmem:[%s6 + $0x28] sm:$0xf]
        %v746 = vld [vmem:[%s6 + $0x2c] sm:$0xf]
        %v747 = vld [vmem:[%s6 + $0x30] sm:$0xf]
        %v748 = vld [vmem:[%s6 + $0x34] sm:$0xf]
        %v749 = vld [vmem:[%s6 + $0x38] sm:$0xf]
        %v750 = vld [vmem:[%s6 + $0x3c] sm:$0xf]
        %v751 = vld [vmem:[%s6 + $0x40] sm:$0xf]
        %v752 = vld [vmem:[%s6 + $0x44] sm:$0xf]
        %v753 = vld [vmem:[%s6 + $0x48] sm:$0xf]
        %v754 = vld [vmem:[%s6 + $0x4c] sm:$0xf]
        %v755 = vld [vmem:[%s6 + $0x50] sm:$0xf]
        %v756 = vld [vmem:[%s6 + $0x54] sm:$0xf]
        %v757 = vld [vmem:[%s6 + $0x58] sm:$0xf]
        %v758 = vld [vmem:[%s6 + $0x5c] sm:$0xf]
        %v759 = vld [vmem:[%s6 + $0x60] sm:$0xf]
        %v760 = vld [vmem:[%s6 + $0x64] sm:$0xf]
        %v761 = vld [vmem:[%s6 + $0x68] sm:$0xf]
        %v762 = vld [vmem:[%s6 + $0x6c] sm:$0xf]
        %v763 = vld [vmem:[%s6 + $0x70] sm:$0xf]
        %v764 = vld [vmem:[%s6 + $0x74] sm:$0xf]
        %v765 = vld [vmem:[%s6 + $0x78] sm:$0xf]
        %v766 = vld [vmem:[%s6 + $0x7c] sm:$0xf]
        %v767 = vld [vmem:[%s6 + $0x80] sm:$0xf]
        %v768 = vld [vmem:[%s6 + $0x84] sm:$0xf]
        %v769 = vld [vmem:[%s6 + $0x88] sm:$0xf]
        %v770 = vld [vmem:[%s6 + $0x8c] sm:$0xf]
        %v771 = vld [vmem:[%s6 + $0x90] sm:$0xf]
        %v772 = vld [vmem:[%s6 + $0x94] sm:$0xf]
        %v773 = vld [vmem:[%s6 + $0x98] sm:$0xf]
        %v774 = vld [vmem:[%s6 + $0x9c] sm:$0xf]
        %v775 = vld [vmem:[%s6 + $0xa0] sm:$0xf]
        %v776 = vld [vmem:[%s6 + $0xa4] sm:$0xf]
        %v777 = vld [vmem:[%s6 + $0xa8] sm:$0xf]
        %v778 = vld [vmem:[%s6 + $0xac] sm:$0xf]
        %v779 = vld [vmem:[%s6 + $0xb0] sm:$0xf]
        %v780 = vld [vmem:[%s6 + $0xb4] sm:$0xf]
        %v781 = vld [vmem:[%s6 + $0xb8] sm:$0xf]
        %v782 = vld [vmem:[%s6 + $0xbc] sm:$0xf]
        %v783 = vld [vmem:[%s6 + $0xc0] sm:$0xf]
        %v784 = vld [vmem:[%s6 + $0xc4] sm:$0xf]
        %v785 = vld [vmem:[%s6 + $0xc8] sm:$0xf]
        %v786 = vld [vmem:[%s6 + $0xcc] sm:$0xf]
        %v787 = vld [vmem:[%s6 + $0xd0] sm:$0xf]
        %v788 = vld [vmem:[%s6 + $0xd4] sm:$0xf]
        %v789 = vld [vmem:[%s6 + $0xd8] sm:$0xf]
        %v790 = vld [vmem:[%s6 + $0xdc] sm:$0xf]
        %v791 = vld [vmem:[%s6 + $0xe0] sm:$0xf]
        %v792 = vld [vmem:[%s6 + $0xe4] sm:$0xf]
        %v793 = vld [vmem:[%s6 + $0xe8] sm:$0xf]
        %v794 = vld [vmem:[%s6 + $0xec] sm:$0xf]
        %v795 = vld [vmem:[%s6 + $0xf0] sm:$0xf]
        %v796 = vld [vmem:[%s6 + $0xf4] sm:$0xf]
        %v797 = vld [vmem:[%s6 + $0xf8] sm:$0xf]
        %v798 = vld [vmem:[%s6 + $0xfc] sm:$0xf]
        %v799 = vld [vmem:[%s7] sm:$0xf]
        %v800 = vld [vmem:[%s7 + $0x4] sm:$0xf]
        %v801 = vld [vmem:[%s7 + $0x8] sm:$0xf]
        %v802 = vld [vmem:[%s7 + $0xc] sm:$0xf]
        %v803 = vld [vmem:[%s7 + $0x10] sm:$0xf]
        %v804 = vld [vmem:[%s7 + $0x14] sm:$0xf]
        %v805 = vld [vmem:[%s7 + $0x18] sm:$0xf]
        %v806 = vld [vmem:[%s7 + $0x1c] sm:$0xf]
        %v807 = vld [vmem:[%s7 + $0x20] sm:$0xf]
        %v808 = vld [vmem:[%s7 + $0x24] sm:$0xf]
        %v809 = vld [vmem:[%s7 + $0x28] sm:$0xf]
        %v810 = vld [vmem:[%s7 + $0x2c] sm:$0xf]
        %v811 = vld [vmem:[%s7 + $0x30] sm:$0xf]
        %v812 = vld [vmem:[%s7 + $0x34] sm:$0xf]
        %v813 = vld [vmem:[%s7 + $0x38] sm:$0xf]
        %v814 = vld [vmem:[%s7 + $0x3c] sm:$0xf]
        %v815 = vld [vmem:[%s7 + $0x40] sm:$0xf]
        %v816 = vld [vmem:[%s7 + $0x44] sm:$0xf]
        %v817 = vld [vmem:[%s7 + $0x48] sm:$0xf]
        %v818 = vld [vmem:[%s7 + $0x4c] sm:$0xf]
        %v819 = vld [vmem:[%s7 + $0x50] sm:$0xf]
        %v820 = vld [vmem:[%s7 + $0x54] sm:$0xf]
        %v821 = vld [vmem:[%s7 + $0x58] sm:$0xf]
        %v822 = vld [vmem:[%s7 + $0x5c] sm:$0xf]
        %v823 = vld [vmem:[%s7 + $0x60] sm:$0xf]
        %v824 = vld [vmem:[%s7 + $0x64] sm:$0xf]
        %v825 = vld [vmem:[%s7 + $0x68] sm:$0xf]
        %v826 = vld [vmem:[%s7 + $0x6c] sm:$0xf]
        %v827 = vld [vmem:[%s7 + $0x70] sm:$0xf]
        %v828 = vld [vmem:[%s7 + $0x74] sm:$0xf]
        %v829 = vld [vmem:[%s7 + $0x78] sm:$0xf]
        %v830 = vld [vmem:[%s7 + $0x7c] sm:$0xf]
        %v831 = vld [vmem:[%s7 + $0x80] sm:$0xf]
        %v832 = vld [vmem:[%s7 + $0x84] sm:$0xf]
        %v833 = vld [vmem:[%s7 + $0x88] sm:$0xf]
        %v834 = vld [vmem:[%s7 + $0x8c] sm:$0xf]
        %v835 = vld [vmem:[%s7 + $0x90] sm:$0xf]
        %v836 = vld [vmem:[%s7 + $0x94] sm:$0xf]
        %v837 = vld [vmem:[%s7 + $0x98] sm:$0xf]
        %v838 = vld [vmem:[%s7 + $0x9c] sm:$0xf]
        %v839 = vld [vmem:[%s7 + $0xa0] sm:$0xf]
        %v840 = vld [vmem:[%s7 + $0xa4] sm:$0xf]
        %v841 = vld [vmem:[%s7 + $0xa8] sm:$0xf]
        %v842 = vld [vmem:[%s7 + $0xac] sm:$0xf]
        %v843 = vld [vmem:[%s7 + $0xb0] sm:$0xf]
        %v844 = vld [vmem:[%s7 + $0xb4] sm:$0xf]
        %v845 = vld [vmem:[%s7 + $0xb8] sm:$0xf]
        %v846 = vld [vmem:[%s7 + $0xbc] sm:$0xf]
        %v847 = vld [vmem:[%s7 + $0xc0] sm:$0xf]
        %v848 = vld [vmem:[%s7 + $0xc4] sm:$0xf]
        %v849 = vld [vmem:[%s7 + $0xc8] sm:$0xf]
        %v850 = vld [vmem:[%s7 + $0xcc] sm:$0xf]
        %v851 = vld [vmem:[%s7 + $0xd0] sm:$0xf]
        %v852 = vld [vmem:[%s7 + $0xd4] sm:$0xf]
        %v853 = vld [vmem:[%s7 + $0xd8] sm:$0xf]
        %v854 = vld [vmem:[%s7 + $0xdc] sm:$0xf]
        %v855 = vld [vmem:[%s7 + $0xe0] sm:$0xf]
        %v856 = vld [vmem:[%s7 + $0xe4] sm:$0xf]
        %v857 = vld [vmem:[%s7 + $0xe8] sm:$0xf]
        %v858 = vld [vmem:[%s7 + $0xec] sm:$0xf]
        %v859 = vld [vmem:[%s7 + $0xf0] sm:$0xf]
        %v860 = vld [vmem:[%s7 + $0xf4] sm:$0xf]
        %v861 = vld [vmem:[%s7 + $0xf8] sm:$0xf]
        %v862 = vld [vmem:[%s7 + $0xfc] sm:$0xf]
        %v863 = vpack.c.bf16 %v599, %v599
        %v864 = vpack.c.bf16 %v600, %v600
        %v867 = vunpack.c.l.b16 %v863
        %v868 = vunpack.c.l.b16 %v864
        %v869 = vpack.c.b16 %v868, %v867
        %v879 = vunpack.c.l.b16 %v607
        %v880 = vunpack.c.l.b16 %v608
        %v881 = vunpack.c.l.b16 %v609
        %v882 = vunpack.c.l.b16 %v610
        %v883 = vunpack.c.l.b16 %v611
        %v884 = vunpack.c.l.b16 %v612
        %v885 = vunpack.c.l.b16 %v613
        %v886 = vunpack.c.l.b16 %v614
        %v887 = vpack.c.b16 %v880, %v879
        %v888 = vpack.c.b16 %v882, %v881
        %v889 = vpack.c.b16 %v884, %v883
        %v890 = vpack.c.b16 %v886, %v885
        %895 = vmatpush.bf16.xpose.msra.mxu0 0
        %896 = vmatpush.bf16.xpose.msra.mxu0 0
        %897 = vmatpush.bf16.xpose.msra.mxu0 0
        %898 = vmatpush.bf16.xpose.msra.mxu0 0
        %899 = vmatpush.bf16.xpose.msra.mxu0 %v890
        %900 = vmatpush.bf16.xpose.msra.mxu0 %v889
        %901 = vmatpush.bf16.xpose.msra.mxu0 %v888
        %902 = vmatpush.bf16.xpose.msra.mxu0 %v887
        %903 = vmatmul.bf16.gmra.mxu0 %v869
        %v904 = vpop.f32.mrf.mxu0
        %v905 = vadd.f32 0.0, %v904
        %v906 = vpop.f32.mrf.mxu0
        %v907 = vadd.f32 0.0, %v906
        %908 = vdwg.mxu0
        %v917 = vunpack.c.l.b16 %v615
        %v918 = vunpack.c.l.b16 %v616
        %v919 = vunpack.c.l.b16 %v617
        %v920 = vunpack.c.l.b16 %v618
        %v921 = vunpack.c.l.b16 %v619
        %v922 = vunpack.c.l.b16 %v620
        %v923 = vunpack.c.l.b16 %v621
        %v924 = vunpack.c.l.b16 %v622
        %v925 = vpack.c.b16 %v918, %v917
        %v926 = vpack.c.b16 %v920, %v919
        %v927 = vpack.c.b16 %v922, %v921
        %v928 = vpack.c.b16 %v924, %v923
        %933 = vmatpush.bf16.xpose.msra.mxu0 0
        %934 = vmatpush.bf16.xpose.msra.mxu0 0
        %935 = vmatpush.bf16.xpose.msra.mxu0 0
        %936 = vmatpush.bf16.xpose.msra.mxu0 0
        %937 = vmatpush.bf16.xpose.msra.mxu0 %v928
        %938 = vmatpush.bf16.xpose.msra.mxu0 %v927
        %939 = vmatpush.bf16.xpose.msra.mxu0 %v926
        %940 = vmatpush.bf16.xpose.msra.mxu0 %v925
        %941 = vmatmul.bf16.gmra.mxu0 %v869
        %v942 = vpop.f32.mrf.mxu0
        %v943 = vadd.f32 0.0, %v942
        %v944 = vpop.f32.mrf.mxu0
        %v945 = vadd.f32 0.0, %v944
        %946 = vdwg.mxu0
        %v955 = vunpack.c.l.b16 %v623
        %v956 = vunpack.c.l.b16 %v624
        %v957 = vunpack.c.l.b16 %v625
        %v958 = vunpack.c.l.b16 %v626
        %v959 = vunpack.c.l.b16 %v627
        %v960 = vunpack.c.l.b16 %v628
        %v961 = vunpack.c.l.b16 %v629
        %v962 = vunpack.c.l.b16 %v630
        %v963 = vpack.c.b16 %v956, %v955
        %v964 = vpack.c.b16 %v958, %v957
        %v965 = vpack.c.b16 %v960, %v959
        %v966 = vpack.c.b16 %v962, %v961
        %971 = vmatpush.bf16.xpose.msra.mxu0 0
        %972 = vmatpush.bf16.xpose.msra.mxu0 0
        %973 = vmatpush.bf16.xpose.msra.mxu0 0
        %974 = vmatpush.bf16.xpose.msra.mxu0 0
        %975 = vmatpush.bf16.xpose.msra.mxu0 %v966
        %976 = vmatpush.bf16.xpose.msra.mxu0 %v965
        %977 = vmatpush.bf16.xpose.msra.mxu0 %v964
        %978 = vmatpush.bf16.xpose.msra.mxu0 %v963
        %979 = vmatmul.bf16.gmra.mxu0 %v869
        %v980 = vpop.f32.mrf.mxu0
        %v981 = vadd.f32 0.0, %v980
        %v982 = vpop.f32.mrf.mxu0
        %v983 = vadd.f32 0.0, %v982
        %984 = vdwg.mxu0
        %v993 = vunpack.c.l.b16 %v631
        %v994 = vunpack.c.l.b16 %v632
        %v995 = vunpack.c.l.b16 %v633
        %v996 = vunpack.c.l.b16 %v634
        %v997 = vunpack.c.l.b16 %v635
        %v998 = vunpack.c.l.b16 %v636
        %v999 = vunpack.c.l.b16 %v637
        %v1000 = vunpack.c.l.b16 %v638
        %v1001 = vpack.c.b16 %v994, %v993
        %v1002 = vpack.c.b16 %v996, %v995
        %v1003 = vpack.c.b16 %v998, %v997
        %v1004 = vpack.c.b16 %v1000, %v999
        %1009 = vmatpush.bf16.xpose.msra.mxu0 0
        %1010 = vmatpush.bf16.xpose.msra.mxu0 0
        %1011 = vmatpush.bf16.xpose.msra.mxu0 0
        %1012 = vmatpush.bf16.xpose.msra.mxu0 0
        %1013 = vmatpush.bf16.xpose.msra.mxu0 %v1004
        %1014 = vmatpush.bf16.xpose.msra.mxu0 %v1003
        %1015 = vmatpush.bf16.xpose.msra.mxu0 %v1002
        %1016 = vmatpush.bf16.xpose.msra.mxu0 %v1001
        %1017 = vmatmul.bf16.gmra.mxu0 %v869
        %v1018 = vpop.f32.mrf.mxu0
        %v1019 = vadd.f32 0.0, %v1018
        %v1020 = vpop.f32.mrf.mxu0
        %v1021 = vadd.f32 0.0, %v1020
        %1022 = vdwg.mxu0
        %v1031 = vunpack.c.l.b16 %v639
        %v1032 = vunpack.c.l.b16 %v640
        %v1033 = vunpack.c.l.b16 %v641
        %v1034 = vunpack.c.l.b16 %v642
        %v1035 = vunpack.c.l.b16 %v643
        %v1036 = vunpack.c.l.b16 %v644
        %v1037 = vunpack.c.l.b16 %v645
        %v1038 = vunpack.c.l.b16 %v646
        %v1039 = vpack.c.b16 %v1032, %v1031
        %v1040 = vpack.c.b16 %v1034, %v1033
        %v1041 = vpack.c.b16 %v1036, %v1035
        %v1042 = vpack.c.b16 %v1038, %v1037
        %1047 = vmatpush.bf16.xpose.msra.mxu0 0
        %1048 = vmatpush.bf16.xpose.msra.mxu0 0
        %1049 = vmatpush.bf16.xpose.msra.mxu0 0
        %1050 = vmatpush.bf16.xpose.msra.mxu0 0
        %1051 = vmatpush.bf16.xpose.msra.mxu0 %v1042
        %1052 = vmatpush.bf16.xpose.msra.mxu0 %v1041
        %1053 = vmatpush.bf16.xpose.msra.mxu0 %v1040
        %1054 = vmatpush.bf16.xpose.msra.mxu0 %v1039
        %1055 = vmatmul.bf16.gmra.mxu0 %v869
        %v1056 = vpop.f32.mrf.mxu0
        %v1057 = vadd.f32 0.0, %v1056
        %v1058 = vpop.f32.mrf.mxu0
        %v1059 = vadd.f32 0.0, %v1058
        %1060 = vdwg.mxu0
        %v1069 = vunpack.c.l.b16 %v647
        %v1070 = vunpack.c.l.b16 %v648
        %v1071 = vunpack.c.l.b16 %v649
        %v1072 = vunpack.c.l.b16 %v650
        %v1073 = vunpack.c.l.b16 %v651
        %v1074 = vunpack.c.l.b16 %v652
        %v1075 = vunpack.c.l.b16 %v653
        %v1076 = vunpack.c.l.b16 %v654
        %v1077 = vpack.c.b16 %v1070, %v1069
        %v1078 = vpack.c.b16 %v1072, %v1071
        %v1079 = vpack.c.b16 %v1074, %v1073
        %v1080 = vpack.c.b16 %v1076, %v1075
        %1085 = vmatpush.bf16.xpose.msra.mxu0 0
        %1086 = vmatpush.bf16.xpose.msra.mxu0 0
        %1087 = vmatpush.bf16.xpose.msra.mxu0 0
        %1088 = vmatpush.bf16.xpose.msra.mxu0 0
        %1089 = vmatpush.bf16.xpose.msra.mxu0 %v1080
        %1090 = vmatpush.bf16.xpose.msra.mxu0 %v1079
        %1091 = vmatpush.bf16.xpose.msra.mxu0 %v1078
        %1092 = vmatpush.bf16.xpose.msra.mxu0 %v1077
        %1093 = vmatmul.bf16.gmra.mxu0 %v869
        %v1094 = vpop.f32.mrf.mxu0
        %v1095 = vadd.f32 0.0, %v1094
        %v1096 = vpop.f32.mrf.mxu0
        %v1097 = vadd.f32 0.0, %v1096
        %1098 = vdwg.mxu0
        %v1107 = vunpack.c.l.b16 %v655
        %v1108 = vunpack.c.l.b16 %v656
        %v1109 = vunpack.c.l.b16 %v657
        %v1110 = vunpack.c.l.b16 %v658
        %v1111 = vunpack.c.l.b16 %v659
        %v1112 = vunpack.c.l.b16 %v660
        %v1113 = vunpack.c.l.b16 %v661
        %v1114 = vunpack.c.l.b16 %v662
        %v1115 = vpack.c.b16 %v1108, %v1107
        %v1116 = vpack.c.b16 %v1110, %v1109
        %v1117 = vpack.c.b16 %v1112, %v1111
        %v1118 = vpack.c.b16 %v1114, %v1113
        %1123 = vmatpush.bf16.xpose.msra.mxu0 0
        %1124 = vmatpush.bf16.xpose.msra.mxu0 0
        %1125 = vmatpush.bf16.xpose.msra.mxu0 0
        %1126 = vmatpush.bf16.xpose.msra.mxu0 0
        %1127 = vmatpush.bf16.xpose.msra.mxu0 %v1118
        %1128 = vmatpush.bf16.xpose.msra.mxu0 %v1117
        %1129 = vmatpush.bf16.xpose.msra.mxu0 %v1116
        %1130 = vmatpush.bf16.xpose.msra.mxu0 %v1115
        %1131 = vmatmul.bf16.gmra.mxu0 %v869
        %v1132 = vpop.f32.mrf.mxu0
        %v1133 = vadd.f32 0.0, %v1132
        %v1134 = vpop.f32.mrf.mxu0
        %v1135 = vadd.f32 0.0, %v1134
        %1136 = vdwg.mxu0
        %v1145 = vunpack.c.l.b16 %v663
        %v1146 = vunpack.c.l.b16 %v664
        %v1147 = vunpack.c.l.b16 %v665
        %v1148 = vunpack.c.l.b16 %v666
        %v1149 = vunpack.c.l.b16 %v667
        %v1150 = vunpack.c.l.b16 %v668
        %v1151 = vunpack.c.l.b16 %v669
        %v1152 = vunpack.c.l.b16 %v670
        %v1153 = vpack.c.b16 %v1146, %v1145
        %v1154 = vpack.c.b16 %v1148, %v1147
        %v1155 = vpack.c.b16 %v1150, %v1149
        %v1156 = vpack.c.b16 %v1152, %v1151
        %1161 = vmatpush.bf16.xpose.msra.mxu0 0
        %1162 = vmatpush.bf16.xpose.msra.mxu0 0
        %1163 = vmatpush.bf16.xpose.msra.mxu0 0
        %1164 = vmatpush.bf16.xpose.msra.mxu0 0
        %1165 = vmatpush.bf16.xpose.msra.mxu0 %v1156
        %1166 = vmatpush.bf16.xpose.msra.mxu0 %v1155
        %1167 = vmatpush.bf16.xpose.msra.mxu0 %v1154
        %1168 = vmatpush.bf16.xpose.msra.mxu0 %v1153
        %1169 = vmatmul.bf16.gmra.mxu0 %v869
        %v1170 = vpop.f32.mrf.mxu0
        %v1171 = vadd.f32 0.0, %v1170
        %v1172 = vpop.f32.mrf.mxu0
        %v1173 = vadd.f32 0.0, %v1172
        %1174 = vdwg.mxu0
        %v1183 = vunpack.c.l.b16 %v671
        %v1184 = vunpack.c.l.b16 %v672
        %v1185 = vunpack.c.l.b16 %v673
        %v1186 = vunpack.c.l.b16 %v674
        %v1187 = vunpack.c.l.b16 %v675
        %v1188 = vunpack.c.l.b16 %v676
        %v1189 = vunpack.c.l.b16 %v677
        %v1190 = vunpack.c.l.b16 %v678
        %v1191 = vpack.c.b16 %v1184, %v1183
        %v1192 = vpack.c.b16 %v1186, %v1185
        %v1193 = vpack.c.b16 %v1188, %v1187
        %v1194 = vpack.c.b16 %v1190, %v1189
        %1199 = vmatpush.bf16.xpose.msra.mxu0 0
        %1200 = vmatpush.bf16.xpose.msra.mxu0 0
        %1201 = vmatpush.bf16.xpose.msra.mxu0 0
        %1202 = vmatpush.bf16.xpose.msra.mxu0 0
        %1203 = vmatpush.bf16.xpose.msra.mxu0 %v1194
        %1204 = vmatpush.bf16.xpose.msra.mxu0 %v1193
        %1205 = vmatpush.bf16.xpose.msra.mxu0 %v1192
        %1206 = vmatpush.bf16.xpose.msra.mxu0 %v1191
        %1207 = vmatmul.bf16.gmra.mxu0 %v869
        %v1208 = vpop.f32.mrf.mxu0
        %v1209 = vadd.f32 0.0, %v1208
        %v1210 = vpop.f32.mrf.mxu0
        %v1211 = vadd.f32 0.0, %v1210
        %1212 = vdwg.mxu0
        %v1221 = vunpack.c.l.b16 %v679
        %v1222 = vunpack.c.l.b16 %v680
        %v1223 = vunpack.c.l.b16 %v681
        %v1224 = vunpack.c.l.b16 %v682
        %v1225 = vunpack.c.l.b16 %v683
        %v1226 = vunpack.c.l.b16 %v684
        %v1227 = vunpack.c.l.b16 %v685
        %v1228 = vunpack.c.l.b16 %v686
        %v1229 = vpack.c.b16 %v1222, %v1221
        %v1230 = vpack.c.b16 %v1224, %v1223
        %v1231 = vpack.c.b16 %v1226, %v1225
        %v1232 = vpack.c.b16 %v1228, %v1227
        %1237 = vmatpush.bf16.xpose.msra.mxu0 0
        %1238 = vmatpush.bf16.xpose.msra.mxu0 0
        %1239 = vmatpush.bf16.xpose.msra.mxu0 0
        %1240 = vmatpush.bf16.xpose.msra.mxu0 0
        %1241 = vmatpush.bf16.xpose.msra.mxu0 %v1232
        %1242 = vmatpush.bf16.xpose.msra.mxu0 %v1231
        %1243 = vmatpush.bf16.xpose.msra.mxu0 %v1230
        %1244 = vmatpush.bf16.xpose.msra.mxu0 %v1229
        %1245 = vmatmul.bf16.gmra.mxu0 %v869
        %v1246 = vpop.f32.mrf.mxu0
        %v1247 = vadd.f32 0.0, %v1246
        %v1248 = vpop.f32.mrf.mxu0
        %v1249 = vadd.f32 0.0, %v1248
        %1250 = vdwg.mxu0
        %v1259 = vunpack.c.l.b16 %v687
        %v1260 = vunpack.c.l.b16 %v688
        %v1261 = vunpack.c.l.b16 %v689
        %v1262 = vunpack.c.l.b16 %v690
        %v1263 = vunpack.c.l.b16 %v691
        %v1264 = vunpack.c.l.b16 %v692
        %v1265 = vunpack.c.l.b16 %v693
        %v1266 = vunpack.c.l.b16 %v694
        %v1267 = vpack.c.b16 %v1260, %v1259
        %v1268 = vpack.c.b16 %v1262, %v1261
        %v1269 = vpack.c.b16 %v1264, %v1263
        %v1270 = vpack.c.b16 %v1266, %v1265
        %1275 = vmatpush.bf16.xpose.msra.mxu0 0
        %1276 = vmatpush.bf16.xpose.msra.mxu0 0
        %1277 = vmatpush.bf16.xpose.msra.mxu0 0
        %1278 = vmatpush.bf16.xpose.msra.mxu0 0
        %1279 = vmatpush.bf16.xpose.msra.mxu0 %v1270
        %1280 = vmatpush.bf16.xpose.msra.mxu0 %v1269
        %1281 = vmatpush.bf16.xpose.msra.mxu0 %v1268
        %1282 = vmatpush.bf16.xpose.msra.mxu0 %v1267
        %1283 = vmatmul.bf16.gmra.mxu0 %v869
        %v1284 = vpop.f32.mrf.mxu0
        %v1285 = vadd.f32 0.0, %v1284
        %v1286 = vpop.f32.mrf.mxu0
        %v1287 = vadd.f32 0.0, %v1286
        %1288 = vdwg.mxu0
        %v1297 = vunpack.c.l.b16 %v695
        %v1298 = vunpack.c.l.b16 %v696
        %v1299 = vunpack.c.l.b16 %v697
        %v1300 = vunpack.c.l.b16 %v698
        %v1301 = vunpack.c.l.b16 %v699
        %v1302 = vunpack.c.l.b16 %v700
        %v1303 = vunpack.c.l.b16 %v701
        %v1304 = vunpack.c.l.b16 %v702
        %v1305 = vpack.c.b16 %v1298, %v1297
        %v1306 = vpack.c.b16 %v1300, %v1299
        %v1307 = vpack.c.b16 %v1302, %v1301
        %v1308 = vpack.c.b16 %v1304, %v1303
        %1313 = vmatpush.bf16.xpose.msra.mxu0 0
        %1314 = vmatpush.bf16.xpose.msra.mxu0 0
        %1315 = vmatpush.bf16.xpose.msra.mxu0 0
        %1316 = vmatpush.bf16.xpose.msra.mxu0 0
        %1317 = vmatpush.bf16.xpose.msra.mxu0 %v1308
        %1318 = vmatpush.bf16.xpose.msra.mxu0 %v1307
        %1319 = vmatpush.bf16.xpose.msra.mxu0 %v1306
        %1320 = vmatpush.bf16.xpose.msra.mxu0 %v1305
        %1321 = vmatmul.bf16.gmra.mxu0 %v869
        %v1322 = vpop.f32.mrf.mxu0
        %v1323 = vadd.f32 0.0, %v1322
        %v1324 = vpop.f32.mrf.mxu0
        %v1325 = vadd.f32 0.0, %v1324
        %1326 = vdwg.mxu0
        %v1335 = vunpack.c.l.b16 %v703
        %v1336 = vunpack.c.l.b16 %v704
        %v1337 = vunpack.c.l.b16 %v705
        %v1338 = vunpack.c.l.b16 %v706
        %v1339 = vunpack.c.l.b16 %v707
        %v1340 = vunpack.c.l.b16 %v708
        %v1341 = vunpack.c.l.b16 %v709
        %v1342 = vunpack.c.l.b16 %v710
        %v1343 = vpack.c.b16 %v1336, %v1335
        %v1344 = vpack.c.b16 %v1338, %v1337
        %v1345 = vpack.c.b16 %v1340, %v1339
        %v1346 = vpack.c.b16 %v1342, %v1341
        %1351 = vmatpush.bf16.xpose.msra.mxu0 0
        %1352 = vmatpush.bf16.xpose.msra.mxu0 0
        %1353 = vmatpush.bf16.xpose.msra.mxu0 0
        %1354 = vmatpush.bf16.xpose.msra.mxu0 0
        %1355 = vmatpush.bf16.xpose.msra.mxu0 %v1346
        %1356 = vmatpush.bf16.xpose.msra.mxu0 %v1345
        %1357 = vmatpush.bf16.xpose.msra.mxu0 %v1344
        %1358 = vmatpush.bf16.xpose.msra.mxu0 %v1343
        %1359 = vmatmul.bf16.gmra.mxu0 %v869
        %v1360 = vpop.f32.mrf.mxu0
        %v1361 = vadd.f32 0.0, %v1360
        %v1362 = vpop.f32.mrf.mxu0
        %v1363 = vadd.f32 0.0, %v1362
        %1364 = vdwg.mxu0
        %v1373 = vunpack.c.l.b16 %v711
        %v1374 = vunpack.c.l.b16 %v712
        %v1375 = vunpack.c.l.b16 %v713
        %v1376 = vunpack.c.l.b16 %v714
        %v1377 = vunpack.c.l.b16 %v715
        %v1378 = vunpack.c.l.b16 %v716
        %v1379 = vunpack.c.l.b16 %v717
        %v1380 = vunpack.c.l.b16 %v718
        %v1381 = vpack.c.b16 %v1374, %v1373
        %v1382 = vpack.c.b16 %v1376, %v1375
        %v1383 = vpack.c.b16 %v1378, %v1377
        %v1384 = vpack.c.b16 %v1380, %v1379
        %1389 = vmatpush.bf16.xpose.msra.mxu0 0
        %1390 = vmatpush.bf16.xpose.msra.mxu0 0
        %1391 = vmatpush.bf16.xpose.msra.mxu0 0
        %1392 = vmatpush.bf16.xpose.msra.mxu0 0
        %1393 = vmatpush.bf16.xpose.msra.mxu0 %v1384
        %1394 = vmatpush.bf16.xpose.msra.mxu0 %v1383
        %1395 = vmatpush.bf16.xpose.msra.mxu0 %v1382
        %1396 = vmatpush.bf16.xpose.msra.mxu0 %v1381
        %1397 = vmatmul.bf16.gmra.mxu0 %v869
        %v1398 = vpop.f32.mrf.mxu0
        %v1399 = vadd.f32 0.0, %v1398
        %v1400 = vpop.f32.mrf.mxu0
        %v1401 = vadd.f32 0.0, %v1400
        %1402 = vdwg.mxu0
        %v1411 = vunpack.c.l.b16 %v719
        %v1412 = vunpack.c.l.b16 %v720
        %v1413 = vunpack.c.l.b16 %v721
        %v1414 = vunpack.c.l.b16 %v722
        %v1415 = vunpack.c.l.b16 %v723
        %v1416 = vunpack.c.l.b16 %v724
        %v1417 = vunpack.c.l.b16 %v725
        %v1418 = vunpack.c.l.b16 %v726
        %v1419 = vpack.c.b16 %v1412, %v1411
        %v1420 = vpack.c.b16 %v1414, %v1413
        %v1421 = vpack.c.b16 %v1416, %v1415
        %v1422 = vpack.c.b16 %v1418, %v1417
        %1427 = vmatpush.bf16.xpose.msra.mxu0 0
        %1428 = vmatpush.bf16.xpose.msra.mxu0 0
        %1429 = vmatpush.bf16.xpose.msra.mxu0 0
        %1430 = vmatpush.bf16.xpose.msra.mxu0 0
        %1431 = vmatpush.bf16.xpose.msra.mxu0 %v1422
        %1432 = vmatpush.bf16.xpose.msra.mxu0 %v1421
        %1433 = vmatpush.bf16.xpose.msra.mxu0 %v1420
        %1434 = vmatpush.bf16.xpose.msra.mxu0 %v1419
        %1435 = vmatmul.bf16.gmra.mxu0 %v869
        %v1436 = vpop.f32.mrf.mxu0
        %v1437 = vadd.f32 0.0, %v1436
        %v1438 = vpop.f32.mrf.mxu0
        %v1439 = vadd.f32 0.0, %v1438
        %1440 = vdwg.mxu0
        %v1449 = vunpack.c.l.b16 %v727
        %v1450 = vunpack.c.l.b16 %v728
        %v1451 = vunpack.c.l.b16 %v729
        %v1452 = vunpack.c.l.b16 %v730
        %v1453 = vunpack.c.l.b16 %v731
        %v1454 = vunpack.c.l.b16 %v732
        %v1455 = vunpack.c.l.b16 %v733
        %v1456 = vunpack.c.l.b16 %v734
        %v1457 = vpack.c.b16 %v1450, %v1449
        %v1458 = vpack.c.b16 %v1452, %v1451
        %v1459 = vpack.c.b16 %v1454, %v1453
        %v1460 = vpack.c.b16 %v1456, %v1455
        %1465 = vmatpush.bf16.xpose.msra.mxu0 0
        %1466 = vmatpush.bf16.xpose.msra.mxu0 0
        %1467 = vmatpush.bf16.xpose.msra.mxu0 0
        %1468 = vmatpush.bf16.xpose.msra.mxu0 0
        %1469 = vmatpush.bf16.xpose.msra.mxu0 %v1460
        %1470 = vmatpush.bf16.xpose.msra.mxu0 %v1459
        %1471 = vmatpush.bf16.xpose.msra.mxu0 %v1458
        %1472 = vmatpush.bf16.xpose.msra.mxu0 %v1457
        %1473 = vmatmul.bf16.gmra.mxu0 %v869
        %v1474 = vpop.f32.mrf.mxu0
        %v1475 = vadd.f32 0.0, %v1474
        %v1476 = vpop.f32.mrf.mxu0
        %v1477 = vadd.f32 0.0, %v1476
        %1478 = vdwg.mxu0
        %v1487 = vunpack.c.l.b16 %v735
        %v1488 = vunpack.c.l.b16 %v736
        %v1489 = vunpack.c.l.b16 %v737
        %v1490 = vunpack.c.l.b16 %v738
        %v1491 = vunpack.c.l.b16 %v739
        %v1492 = vunpack.c.l.b16 %v740
        %v1493 = vunpack.c.l.b16 %v741
        %v1494 = vunpack.c.l.b16 %v742
        %v1495 = vpack.c.b16 %v1488, %v1487
        %v1496 = vpack.c.b16 %v1490, %v1489
        %v1497 = vpack.c.b16 %v1492, %v1491
        %v1498 = vpack.c.b16 %v1494, %v1493
        %1503 = vmatpush.bf16.xpose.msra.mxu0 0
        %1504 = vmatpush.bf16.xpose.msra.mxu0 0
        %1505 = vmatpush.bf16.xpose.msra.mxu0 0
        %1506 = vmatpush.bf16.xpose.msra.mxu0 0
        %1507 = vmatpush.bf16.xpose.msra.mxu0 %v1498
        %1508 = vmatpush.bf16.xpose.msra.mxu0 %v1497
        %1509 = vmatpush.bf16.xpose.msra.mxu0 %v1496
        %1510 = vmatpush.bf16.xpose.msra.mxu0 %v1495
        %1511 = vmatmul.bf16.gmra.mxu0 %v869
        %v1512 = vpop.f32.mrf.mxu0
        %v1513 = vadd.f32 0.0, %v1512
        %v1514 = vpop.f32.mrf.mxu0
        %v1515 = vadd.f32 0.0, %v1514
        %1516 = vdwg.mxu0
        %v1525 = vunpack.c.l.b16 %v743
        %v1526 = vunpack.c.l.b16 %v744
        %v1527 = vunpack.c.l.b16 %v745
        %v1528 = vunpack.c.l.b16 %v746
        %v1529 = vunpack.c.l.b16 %v747
        %v1530 = vunpack.c.l.b16 %v748
        %v1531 = vunpack.c.l.b16 %v749
        %v1532 = vunpack.c.l.b16 %v750
        %v1533 = vpack.c.b16 %v1526, %v1525
        %v1534 = vpack.c.b16 %v1528, %v1527
        %v1535 = vpack.c.b16 %v1530, %v1529
        %v1536 = vpack.c.b16 %v1532, %v1531
        %1541 = vmatpush.bf16.xpose.msra.mxu0 0
        %1542 = vmatpush.bf16.xpose.msra.mxu0 0
        %1543 = vmatpush.bf16.xpose.msra.mxu0 0
        %1544 = vmatpush.bf16.xpose.msra.mxu0 0
        %1545 = vmatpush.bf16.xpose.msra.mxu0 %v1536
        %1546 = vmatpush.bf16.xpose.msra.mxu0 %v1535
        %1547 = vmatpush.bf16.xpose.msra.mxu0 %v1534
        %1548 = vmatpush.bf16.xpose.msra.mxu0 %v1533
        %1549 = vmatmul.bf16.gmra.mxu0 %v869
        %v1550 = vpop.f32.mrf.mxu0
        %v1551 = vadd.f32 0.0, %v1550
        %v1552 = vpop.f32.mrf.mxu0
        %v1553 = vadd.f32 0.0, %v1552
        %1554 = vdwg.mxu0
        %v1563 = vunpack.c.l.b16 %v751
        %v1564 = vunpack.c.l.b16 %v752
        %v1565 = vunpack.c.l.b16 %v753
        %v1566 = vunpack.c.l.b16 %v754
        %v1567 = vunpack.c.l.b16 %v755
        %v1568 = vunpack.c.l.b16 %v756
        %v1569 = vunpack.c.l.b16 %v757
        %v1570 = vunpack.c.l.b16 %v758
        %v1571 = vpack.c.b16 %v1564, %v1563
        %v1572 = vpack.c.b16 %v1566, %v1565
        %v1573 = vpack.c.b16 %v1568, %v1567
        %v1574 = vpack.c.b16 %v1570, %v1569
        %1579 = vmatpush.bf16.xpose.msra.mxu0 0
        %1580 = vmatpush.bf16.xpose.msra.mxu0 0
        %1581 = vmatpush.bf16.xpose.msra.mxu0 0
        %1582 = vmatpush.bf16.xpose.msra.mxu0 0
        %1583 = vmatpush.bf16.xpose.msra.mxu0 %v1574
        %1584 = vmatpush.bf16.xpose.msra.mxu0 %v1573
        %1585 = vmatpush.bf16.xpose.msra.mxu0 %v1572
        %1586 = vmatpush.bf16.xpose.msra.mxu0 %v1571
        %1587 = vmatmul.bf16.gmra.mxu0 %v869
        %v1588 = vpop.f32.mrf.mxu0
        %v1589 = vadd.f32 0.0, %v1588
        %v1590 = vpop.f32.mrf.mxu0
        %v1591 = vadd.f32 0.0, %v1590
        %1592 = vdwg.mxu0
        %v1601 = vunpack.c.l.b16 %v759
        %v1602 = vunpack.c.l.b16 %v760
        %v1603 = vunpack.c.l.b16 %v761
        %v1604 = vunpack.c.l.b16 %v762
        %v1605 = vunpack.c.l.b16 %v763
        %v1606 = vunpack.c.l.b16 %v764
        %v1607 = vunpack.c.l.b16 %v765
        %v1608 = vunpack.c.l.b16 %v766
        %v1609 = vpack.c.b16 %v1602, %v1601
        %v1610 = vpack.c.b16 %v1604, %v1603
        %v1611 = vpack.c.b16 %v1606, %v1605
        %v1612 = vpack.c.b16 %v1608, %v1607
        %1617 = vmatpush.bf16.xpose.msra.mxu0 0
        %1618 = vmatpush.bf16.xpose.msra.mxu0 0
        %1619 = vmatpush.bf16.xpose.msra.mxu0 0
        %1620 = vmatpush.bf16.xpose.msra.mxu0 0
        %1621 = vmatpush.bf16.xpose.msra.mxu0 %v1612
        %1622 = vmatpush.bf16.xpose.msra.mxu0 %v1611
        %1623 = vmatpush.bf16.xpose.msra.mxu0 %v1610
        %1624 = vmatpush.bf16.xpose.msra.mxu0 %v1609
        %1625 = vmatmul.bf16.gmra.mxu0 %v869
        %v1626 = vpop.f32.mrf.mxu0
        %v1627 = vadd.f32 0.0, %v1626
        %v1628 = vpop.f32.mrf.mxu0
        %v1629 = vadd.f32 0.0, %v1628
        %1630 = vdwg.mxu0
        %v1639 = vunpack.c.l.b16 %v767
        %v1640 = vunpack.c.l.b16 %v768
        %v1641 = vunpack.c.l.b16 %v769
        %v1642 = vunpack.c.l.b16 %v770
        %v1643 = vunpack.c.l.b16 %v771
        %v1644 = vunpack.c.l.b16 %v772
        %v1645 = vunpack.c.l.b16 %v773
        %v1646 = vunpack.c.l.b16 %v774
        %v1647 = vpack.c.b16 %v1640, %v1639
        %v1648 = vpack.c.b16 %v1642, %v1641
        %v1649 = vpack.c.b16 %v1644, %v1643
        %v1650 = vpack.c.b16 %v1646, %v1645
        %1655 = vmatpush.bf16.xpose.msra.mxu0 0
        %1656 = vmatpush.bf16.xpose.msra.mxu0 0
        %1657 = vmatpush.bf16.xpose.msra.mxu0 0
        %1658 = vmatpush.bf16.xpose.msra.mxu0 0
        %1659 = vmatpush.bf16.xpose.msra.mxu0 %v1650
        %1660 = vmatpush.bf16.xpose.msra.mxu0 %v1649
        %1661 = vmatpush.bf16.xpose.msra.mxu0 %v1648
        %1662 = vmatpush.bf16.xpose.msra.mxu0 %v1647
        %1663 = vmatmul.bf16.gmra.mxu0 %v869
        %v1664 = vpop.f32.mrf.mxu0
        %v1665 = vadd.f32 0.0, %v1664
        %v1666 = vpop.f32.mrf.mxu0
        %v1667 = vadd.f32 0.0, %v1666
        %1668 = vdwg.mxu0
        %v1677 = vunpack.c.l.b16 %v775
        %v1678 = vunpack.c.l.b16 %v776
        %v1679 = vunpack.c.l.b16 %v777
        %v1680 = vunpack.c.l.b16 %v778
        %v1681 = vunpack.c.l.b16 %v779
        %v1682 = vunpack.c.l.b16 %v780
        %v1683 = vunpack.c.l.b16 %v781
        %v1684 = vunpack.c.l.b16 %v782
        %v1685 = vpack.c.b16 %v1678, %v1677
        %v1686 = vpack.c.b16 %v1680, %v1679
        %v1687 = vpack.c.b16 %v1682, %v1681
        %v1688 = vpack.c.b16 %v1684, %v1683
        %1693 = vmatpush.bf16.xpose.msra.mxu0 0
        %1694 = vmatpush.bf16.xpose.msra.mxu0 0
        %1695 = vmatpush.bf16.xpose.msra.mxu0 0
        %1696 = vmatpush.bf16.xpose.msra.mxu0 0
        %1697 = vmatpush.bf16.xpose.msra.mxu0 %v1688
        %1698 = vmatpush.bf16.xpose.msra.mxu0 %v1687
        %1699 = vmatpush.bf16.xpose.msra.mxu0 %v1686
        %1700 = vmatpush.bf16.xpose.msra.mxu0 %v1685
        %1701 = vmatmul.bf16.gmra.mxu0 %v869
        %v1702 = vpop.f32.mrf.mxu0
        %v1703 = vadd.f32 0.0, %v1702
        %v1704 = vpop.f32.mrf.mxu0
        %v1705 = vadd.f32 0.0, %v1704
        %1706 = vdwg.mxu0
        %v1715 = vunpack.c.l.b16 %v783
        %v1716 = vunpack.c.l.b16 %v784
        %v1717 = vunpack.c.l.b16 %v785
        %v1718 = vunpack.c.l.b16 %v786
        %v1719 = vunpack.c.l.b16 %v787
        %v1720 = vunpack.c.l.b16 %v788
        %v1721 = vunpack.c.l.b16 %v789
        %v1722 = vunpack.c.l.b16 %v790
        %v1723 = vpack.c.b16 %v1716, %v1715
        %v1724 = vpack.c.b16 %v1718, %v1717
        %v1725 = vpack.c.b16 %v1720, %v1719
        %v1726 = vpack.c.b16 %v1722, %v1721
        %1731 = vmatpush.bf16.xpose.msra.mxu0 0
        %1732 = vmatpush.bf16.xpose.msra.mxu0 0
        %1733 = vmatpush.bf16.xpose.msra.mxu0 0
        %1734 = vmatpush.bf16.xpose.msra.mxu0 0
        %1735 = vmatpush.bf16.xpose.msra.mxu0 %v1726
        %1736 = vmatpush.bf16.xpose.msra.mxu0 %v1725
        %1737 = vmatpush.bf16.xpose.msra.mxu0 %v1724
        %1738 = vmatpush.bf16.xpose.msra.mxu0 %v1723
        %1739 = vmatmul.bf16.gmra.mxu0 %v869
        %v1740 = vpop.f32.mrf.mxu0
        %v1741 = vadd.f32 0.0, %v1740
        %v1742 = vpop.f32.mrf.mxu0
        %v1743 = vadd.f32 0.0, %v1742
        %1744 = vdwg.mxu0
        %v1753 = vunpack.c.l.b16 %v791
        %v1754 = vunpack.c.l.b16 %v792
        %v1755 = vunpack.c.l.b16 %v793
        %v1756 = vunpack.c.l.b16 %v794
        %v1757 = vunpack.c.l.b16 %v795
        %v1758 = vunpack.c.l.b16 %v796
        %v1759 = vunpack.c.l.b16 %v797
        %v1760 = vunpack.c.l.b16 %v798
        %v1761 = vpack.c.b16 %v1754, %v1753
        %v1762 = vpack.c.b16 %v1756, %v1755
        %v1763 = vpack.c.b16 %v1758, %v1757
        %v1764 = vpack.c.b16 %v1760, %v1759
        %1769 = vmatpush.bf16.xpose.msra.mxu0 0
        %1770 = vmatpush.bf16.xpose.msra.mxu0 0
        %1771 = vmatpush.bf16.xpose.msra.mxu0 0
        %1772 = vmatpush.bf16.xpose.msra.mxu0 0
        %1773 = vmatpush.bf16.xpose.msra.mxu0 %v1764
        %1774 = vmatpush.bf16.xpose.msra.mxu0 %v1763
        %1775 = vmatpush.bf16.xpose.msra.mxu0 %v1762
        %1776 = vmatpush.bf16.xpose.msra.mxu0 %v1761
        %1777 = vmatmul.bf16.gmra.mxu0 %v869
        %v1778 = vpop.f32.mrf.mxu0
        %v1779 = vadd.f32 0.0, %v1778
        %v1780 = vpop.f32.mrf.mxu0
        %v1781 = vadd.f32 0.0, %v1780
        %1782 = vdwg.mxu0
        %v1783 = vpack.c.bf16 %v905, %v905
        %v1784 = vpack.c.bf16 %v907, %v907
        %v1785 = vpack.c.bf16 %v943, %v943
        %v1786 = vpack.c.bf16 %v945, %v945
        %v1787 = vpack.c.bf16 %v981, %v981
        %v1788 = vpack.c.bf16 %v983, %v983
        %v1789 = vpack.c.bf16 %v1019, %v1019
        %v1790 = vpack.c.bf16 %v1021, %v1021
        %v1791 = vpack.c.bf16 %v1057, %v1057
        %v1792 = vpack.c.bf16 %v1059, %v1059
        %v1793 = vpack.c.bf16 %v1095, %v1095
        %v1794 = vpack.c.bf16 %v1097, %v1097
        %v1795 = vpack.c.bf16 %v1133, %v1133
        %v1796 = vpack.c.bf16 %v1135, %v1135
        %v1797 = vpack.c.bf16 %v1171, %v1171
        %v1798 = vpack.c.bf16 %v1173, %v1173
        %v1799 = vpack.c.bf16 %v1209, %v1209
        %v1800 = vpack.c.bf16 %v1211, %v1211
        %v1801 = vpack.c.bf16 %v1247, %v1247
        %v1802 = vpack.c.bf16 %v1249, %v1249
        %v1803 = vpack.c.bf16 %v1285, %v1285
        %v1804 = vpack.c.bf16 %v1287, %v1287
        %v1805 = vpack.c.bf16 %v1323, %v1323
        %v1806 = vpack.c.bf16 %v1325, %v1325
        %v1807 = vpack.c.bf16 %v1361, %v1361
        %v1808 = vpack.c.bf16 %v1363, %v1363
        %v1809 = vpack.c.bf16 %v1399, %v1399
        %v1810 = vpack.c.bf16 %v1401, %v1401
        %v1811 = vpack.c.bf16 %v1437, %v1437
        %v1812 = vpack.c.bf16 %v1439, %v1439
        %v1813 = vpack.c.bf16 %v1475, %v1475
        %v1814 = vpack.c.bf16 %v1477, %v1477
        %v1817 = vunpack.c.l.b16 %v1783
        %v1818 = vunpack.c.l.b16 %v1784
        %v1819 = vpack.c.b16 %v1818, %v1817
        %v1822 = vunpack.c.l.b16 %v1799
        %v1823 = vunpack.c.l.b16 %v1800
        %v1824 = vpack.c.b16 %v1823, %v1822
        %vm1825 = vcmask 523264
        %v1827 = vsel %vm1825, %v1819, 0
        %v1830 = vsel %vm1825, %v1824, 0
        %1832 = vmatpush.bf16.xpose.msra.mxu0 0
        %1833 = vmatpush.bf16.xpose.msra.mxu0 0
        %1834 = vmatpush.bf16.xpose.msra.mxu0 0
        %1835 = vmatpush.bf16.xpose.msra.mxu0 0
        %1836 = vmatpush.bf16.xpose.msra.mxu0 0
        %1837 = vmatpush.bf16.xpose.msra.mxu0 0
        %1838 = vmatpush.bf16.xpose.msra.mxu0 0
        %1839 = vmatpush.bf16.xpose.msra.mxu0 %v1830
        %1840 = vmatmul.bf16.gmra.mxu0 %v1827
        %v1841 = vpop.f32.mrf.mxu0
        %v1842 = vadd.f32 %v605, %v1841
        %v1843 = vpop.f32.mrf.mxu0
        %v1844 = vadd.f32 %v606, %v1843
        %1845 = vdwg.mxu0
        %v1848 = vunpack.c.l.b16 %v1785
        %v1849 = vunpack.c.l.b16 %v1786
        %v1850 = vpack.c.b16 %v1849, %v1848
        %v1853 = vunpack.c.l.b16 %v1801
        %v1854 = vunpack.c.l.b16 %v1802
        %v1855 = vpack.c.b16 %v1854, %v1853
        %v1857 = vsel %vm1825, %v1850, 0
        %v1860 = vsel %vm1825, %v1855, 0
        %1862 = vmatpush.bf16.xpose.msra.mxu0 0
        %1863 = vmatpush.bf16.xpose.msra.mxu0 0
        %1864 = vmatpush.bf16.xpose.msra.mxu0 0
        %1865 = vmatpush.bf16.xpose.msra.mxu0 0
        %1866 = vmatpush.bf16.xpose.msra.mxu0 0
        %1867 = vmatpush.bf16.xpose.msra.mxu0 0
        %1868 = vmatpush.bf16.xpose.msra.mxu0 0
        %1869 = vmatpush.bf16.xpose.msra.mxu0 %v1860
        %1870 = vmatmul.bf16.gmra.mxu0 %v1857
        %v1871 = vpop.f32.mrf.mxu0
        %v1872 = vadd.f32 %v605, %v1871
        %v1873 = vpop.f32.mrf.mxu0
        %v1874 = vadd.f32 %v606, %v1873
        %1875 = vdwg.mxu0
        %v1878 = vunpack.c.l.b16 %v1787
        %v1879 = vunpack.c.l.b16 %v1788
        %v1880 = vpack.c.b16 %v1879, %v1878
        %v1883 = vunpack.c.l.b16 %v1803
        %v1884 = vunpack.c.l.b16 %v1804
        %v1885 = vpack.c.b16 %v1884, %v1883
        %v1887 = vsel %vm1825, %v1880, 0
        %v1890 = vsel %vm1825, %v1885, 0
        %1892 = vmatpush.bf16.xpose.msra.mxu0 0
        %1893 = vmatpush.bf16.xpose.msra.mxu0 0
        %1894 = vmatpush.bf16.xpose.msra.mxu0 0
        %1895 = vmatpush.bf16.xpose.msra.mxu0 0
        %1896 = vmatpush.bf16.xpose.msra.mxu0 0
        %1897 = vmatpush.bf16.xpose.msra.mxu0 0
        %1898 = vmatpush.bf16.xpose.msra.mxu0 0
        %1899 = vmatpush.bf16.xpose.msra.mxu0 %v1890
        %1900 = vmatmul.bf16.gmra.mxu0 %v1887
        %v1901 = vpop.f32.mrf.mxu0
        %v1902 = vadd.f32 %v605, %v1901
        %v1903 = vpop.f32.mrf.mxu0
        %v1904 = vadd.f32 %v606, %v1903
        %1905 = vdwg.mxu0
        %v1908 = vunpack.c.l.b16 %v1789
        %v1909 = vunpack.c.l.b16 %v1790
        %v1910 = vpack.c.b16 %v1909, %v1908
        %v1913 = vunpack.c.l.b16 %v1805
        %v1914 = vunpack.c.l.b16 %v1806
        %v1915 = vpack.c.b16 %v1914, %v1913
        %v1917 = vsel %vm1825, %v1910, 0
        %v1920 = vsel %vm1825, %v1915, 0
        %1922 = vmatpush.bf16.xpose.msra.mxu0 0
        %1923 = vmatpush.bf16.xpose.msra.mxu0 0
        %1924 = vmatpush.bf16.xpose.msra.mxu0 0
        %1925 = vmatpush.bf16.xpose.msra.mxu0 0
        %1926 = vmatpush.bf16.xpose.msra.mxu0 0
        %1927 = vmatpush.bf16.xpose.msra.mxu0 0
        %1928 = vmatpush.bf16.xpose.msra.mxu0 0
        %1929 = vmatpush.bf16.xpose.msra.mxu0 %v1920
        %1930 = vmatmul.bf16.gmra.mxu0 %v1917
        %v1931 = vpop.f32.mrf.mxu0
        %v1932 = vadd.f32 %v605, %v1931
        %v1933 = vpop.f32.mrf.mxu0
        %v1934 = vadd.f32 %v606, %v1933
        %1935 = vdwg.mxu0
        %v1938 = vunpack.c.l.b16 %v1791
        %v1939 = vunpack.c.l.b16 %v1792
        %v1940 = vpack.c.b16 %v1939, %v1938
        %v1943 = vunpack.c.l.b16 %v1807
        %v1944 = vunpack.c.l.b16 %v1808
        %v1945 = vpack.c.b16 %v1944, %v1943
        %v1947 = vsel %vm1825, %v1940, 0
        %v1950 = vsel %vm1825, %v1945, 0
        %1952 = vmatpush.bf16.xpose.msra.mxu0 0
        %1953 = vmatpush.bf16.xpose.msra.mxu0 0
        %1954 = vmatpush.bf16.xpose.msra.mxu0 0
        %1955 = vmatpush.bf16.xpose.msra.mxu0 0
        %1956 = vmatpush.bf16.xpose.msra.mxu0 0
        %1957 = vmatpush.bf16.xpose.msra.mxu0 0
        %1958 = vmatpush.bf16.xpose.msra.mxu0 0
        %1959 = vmatpush.bf16.xpose.msra.mxu0 %v1950
        %1960 = vmatmul.bf16.gmra.mxu0 %v1947
        %v1961 = vpop.f32.mrf.mxu0
        %v1962 = vadd.f32 %v605, %v1961
        %v1963 = vpop.f32.mrf.mxu0
        %v1964 = vadd.f32 %v606, %v1963
        %1965 = vdwg.mxu0
        %v1968 = vunpack.c.l.b16 %v1793
        %v1969 = vunpack.c.l.b16 %v1794
        %v1970 = vpack.c.b16 %v1969, %v1968
        %v1973 = vunpack.c.l.b16 %v1809
        %v1974 = vunpack.c.l.b16 %v1810
        %v1975 = vpack.c.b16 %v1974, %v1973
        %v1977 = vsel %vm1825, %v1970, 0
        %v1980 = vsel %vm1825, %v1975, 0
        %1982 = vmatpush.bf16.xpose.msra.mxu0 0
        %1983 = vmatpush.bf16.xpose.msra.mxu0 0
        %1984 = vmatpush.bf16.xpose.msra.mxu0 0
        %1985 = vmatpush.bf16.xpose.msra.mxu0 0
        %1986 = vmatpush.bf16.xpose.msra.mxu0 0
        %1987 = vmatpush.bf16.xpose.msra.mxu0 0
        %1988 = vmatpush.bf16.xpose.msra.mxu0 0
        %1989 = vmatpush.bf16.xpose.msra.mxu0 %v1980
        %1990 = vmatmul.bf16.gmra.mxu0 %v1977
        %v1991 = vpop.f32.mrf.mxu0
        %v1992 = vadd.f32 %v605, %v1991
        %v1993 = vpop.f32.mrf.mxu0
        %v1994 = vadd.f32 %v606, %v1993
        %1995 = vdwg.mxu0
        %v1998 = vunpack.c.l.b16 %v1795
        %v1999 = vunpack.c.l.b16 %v1796
        %v2000 = vpack.c.b16 %v1999, %v1998
        %v2003 = vunpack.c.l.b16 %v1811
        %v2004 = vunpack.c.l.b16 %v1812
        %v2005 = vpack.c.b16 %v2004, %v2003
        %v2007 = vsel %vm1825, %v2000, 0
        %v2010 = vsel %vm1825, %v2005, 0
        %2012 = vmatpush.bf16.xpose.msra.mxu0 0
        %2013 = vmatpush.bf16.xpose.msra.mxu0 0
        %2014 = vmatpush.bf16.xpose.msra.mxu0 0
        %2015 = vmatpush.bf16.xpose.msra.mxu0 0
        %2016 = vmatpush.bf16.xpose.msra.mxu0 0
        %2017 = vmatpush.bf16.xpose.msra.mxu0 0
        %2018 = vmatpush.bf16.xpose.msra.mxu0 0
        %2019 = vmatpush.bf16.xpose.msra.mxu0 %v2010
        %2020 = vmatmul.bf16.gmra.mxu0 %v2007
        %v2021 = vpop.f32.mrf.mxu0
        %v2022 = vadd.f32 %v605, %v2021
        %v2023 = vpop.f32.mrf.mxu0
        %v2024 = vadd.f32 %v606, %v2023
        %2025 = vdwg.mxu0
        %v2028 = vunpack.c.l.b16 %v1797
        %v2029 = vunpack.c.l.b16 %v1798
        %v2030 = vpack.c.b16 %v2029, %v2028
        %v2033 = vunpack.c.l.b16 %v1813
        %v2034 = vunpack.c.l.b16 %v1814
        %v2035 = vpack.c.b16 %v2034, %v2033
        %v2037 = vsel %vm1825, %v2030, 0
        %v2040 = vsel %vm1825, %v2035, 0
        %2042 = vmatpush.bf16.xpose.msra.mxu0 0
        %2043 = vmatpush.bf16.xpose.msra.mxu0 0
        %2044 = vmatpush.bf16.xpose.msra.mxu0 0
        %2045 = vmatpush.bf16.xpose.msra.mxu0 0
        %2046 = vmatpush.bf16.xpose.msra.mxu0 0
        %2047 = vmatpush.bf16.xpose.msra.mxu0 0
        %2048 = vmatpush.bf16.xpose.msra.mxu0 0
        %2049 = vmatpush.bf16.xpose.msra.mxu0 %v2040
        %2050 = vmatmul.bf16.gmra.mxu0 %v2037
        %v2051 = vpop.f32.mrf.mxu0
        %v2052 = vadd.f32 %v605, %v2051
        %v2053 = vpop.f32.mrf.mxu0
        %v2054 = vadd.f32 %v606, %v2053
        %2055 = vdwg.mxu0
        %vm2056 = vcmask 130048
        %v2057 = vsel %vm2056, %v1842, -inf
        %2058 = vmax.xlane.f32.xlu0 %v2057
        %v2059 = vpop.xlane.xlu0 %2058
        %v2060 = vsel %vm2056, %v1844, -inf
        %2061 = vmax.xlane.f32.xlu0 %v2060
        %v2062 = vpop.xlane.xlu0 %2061
        %v2063 = vsel %vm2056, %v1872, -inf
        %2064 = vmax.xlane.f32.xlu0 %v2063
        %v2065 = vpop.xlane.xlu0 %2064
        %v2066 = vsel %vm2056, %v1874, -inf
        %2067 = vmax.xlane.f32.xlu0 %v2066
        %v2068 = vpop.xlane.xlu0 %2067
        %v2069 = vsel %vm2056, %v1902, -inf
        %2070 = vmax.xlane.f32.xlu0 %v2069
        %v2071 = vpop.xlane.xlu0 %2070
        %v2072 = vsel %vm2056, %v1904, -inf
        %2073 = vmax.xlane.f32.xlu0 %v2072
        %v2074 = vpop.xlane.xlu0 %2073
        %v2075 = vsel %vm2056, %v1932, -inf
        %2076 = vmax.xlane.f32.xlu0 %v2075
        %v2077 = vpop.xlane.xlu0 %2076
        %v2078 = vsel %vm2056, %v1934, -inf
        %2079 = vmax.xlane.f32.xlu0 %v2078
        %v2080 = vpop.xlane.xlu0 %2079
        %v2081 = vsel %vm2056, %v1962, -inf
        %2082 = vmax.xlane.f32.xlu0 %v2081
        %v2083 = vpop.xlane.xlu0 %2082
        %v2084 = vsel %vm2056, %v1964, -inf
        %2085 = vmax.xlane.f32.xlu0 %v2084
        %v2086 = vpop.xlane.xlu0 %2085
        %v2087 = vsel %vm2056, %v1992, -inf
        %2088 = vmax.xlane.f32.xlu0 %v2087
        %v2089 = vpop.xlane.xlu0 %2088
        %v2090 = vsel %vm2056, %v1994, -inf
        %2091 = vmax.xlane.f32.xlu0 %v2090
        %v2092 = vpop.xlane.xlu0 %2091
        %v2093 = vsel %vm2056, %v2022, -inf
        %2094 = vmax.xlane.f32.xlu0 %v2093
        %v2095 = vpop.xlane.xlu0 %2094
        %v2096 = vsel %vm2056, %v2024, -inf
        %2097 = vmax.xlane.f32.xlu0 %v2096
        %v2098 = vpop.xlane.xlu0 %2097
        %v2099 = vsel %vm2056, %v2052, -inf
        %2100 = vmax.xlane.f32.xlu0 %v2099
        %v2101 = vpop.xlane.xlu0 %2100
        %v2102 = vsel %vm2056, %v2054, -inf
        %2103 = vmax.xlane.f32.xlu0 %v2102
        %v2104 = vpop.xlane.xlu0 %2103
        %v2105 = vsub.f32 %v1842, %v2059
        %v2106 = vsub.f32 %v1844, %v2062
        %v2107 = vsub.f32 %v1872, %v2065
        %v2108 = vsub.f32 %v1874, %v2068
        %v2109 = vsub.f32 %v1902, %v2071
        %v2110 = vsub.f32 %v1904, %v2074
        %v2111 = vsub.f32 %v1932, %v2077
        %v2112 = vsub.f32 %v1934, %v2080
        %v2113 = vsub.f32 %v1962, %v2083
        %v2114 = vsub.f32 %v1964, %v2086
        %v2115 = vsub.f32 %v1992, %v2089
        %v2116 = vsub.f32 %v1994, %v2092
        %v2117 = vsub.f32 %v2022, %v2095
        %v2118 = vsub.f32 %v2024, %v2098
        %v2119 = vsub.f32 %v2052, %v2101
        %v2120 = vsub.f32 %v2054, %v2104
        %v2121 = vmul.f32 %v2105, 1.442695
        %v2122 = vpow.pop %v2121
        %v2123 = vmul.f32 %v2106, 1.442695
        %v2124 = vpow.pop %v2123
        %v2125 = vmul.f32 %v2107, 1.442695
        %v2126 = vpow.pop %v2125
        %v2127 = vmul.f32 %v2108, 1.442695
        %v2128 = vpow.pop %v2127
        %v2129 = vmul.f32 %v2109, 1.442695
        %v2130 = vpow.pop %v2129
        %v2131 = vmul.f32 %v2110, 1.442695
        %v2132 = vpow.pop %v2131
        %v2133 = vmul.f32 %v2111, 1.442695
        %v2134 = vpow.pop %v2133
        %v2135 = vmul.f32 %v2112, 1.442695
        %v2136 = vpow.pop %v2135
        %v2137 = vmul.f32 %v2113, 1.442695
        %v2138 = vpow.pop %v2137
        %v2139 = vmul.f32 %v2114, 1.442695
        %v2140 = vpow.pop %v2139
        %v2141 = vmul.f32 %v2115, 1.442695
        %v2142 = vpow.pop %v2141
        %v2143 = vmul.f32 %v2116, 1.442695
        %v2144 = vpow.pop %v2143
        %v2145 = vmul.f32 %v2117, 1.442695
        %v2146 = vpow.pop %v2145
        %v2147 = vmul.f32 %v2118, 1.442695
        %v2148 = vpow.pop %v2147
        %v2149 = vmul.f32 %v2119, 1.442695
        %v2150 = vpow.pop %v2149
        %v2151 = vmul.f32 %v2120, 1.442695
        %v2152 = vpow.pop %v2151
        %v2153 = vsel %vm2056, %v2122, 0.0
        %2154 = vadd.xlane.f32.xlu0 %v2153
        %v2155 = vpop.xlane.xlu0 %2154
        %v2156 = vsel %vm2056, %v2124, 0.0
        %2157 = vadd.xlane.f32.xlu0 %v2156
        %v2158 = vpop.xlane.xlu0 %2157
        %v2159 = vsel %vm2056, %v2126, 0.0
        %2160 = vadd.xlane.f32.xlu0 %v2159
        %v2161 = vpop.xlane.xlu0 %2160
        %v2162 = vsel %vm2056, %v2128, 0.0
        %2163 = vadd.xlane.f32.xlu0 %v2162
        %v2164 = vpop.xlane.xlu0 %2163
        %v2165 = vsel %vm2056, %v2130, 0.0
        %2166 = vadd.xlane.f32.xlu0 %v2165
        %v2167 = vpop.xlane.xlu0 %2166
        %v2168 = vsel %vm2056, %v2132, 0.0
        %2169 = vadd.xlane.f32.xlu0 %v2168
        %v2170 = vpop.xlane.xlu0 %2169
        %v2171 = vsel %vm2056, %v2134, 0.0
        %2172 = vadd.xlane.f32.xlu0 %v2171
        %v2173 = vpop.xlane.xlu0 %2172
        %v2174 = vsel %vm2056, %v2136, 0.0
        %2175 = vadd.xlane.f32.xlu0 %v2174
        %v2176 = vpop.xlane.xlu0 %2175
        %v2177 = vsel %vm2056, %v2138, 0.0
        %2178 = vadd.xlane.f32.xlu0 %v2177
        %v2179 = vpop.xlane.xlu0 %2178
        %v2180 = vsel %vm2056, %v2140, 0.0
        %2181 = vadd.xlane.f32.xlu0 %v2180
        %v2182 = vpop.xlane.xlu0 %2181
        %v2183 = vsel %vm2056, %v2142, 0.0
        %2184 = vadd.xlane.f32.xlu0 %v2183
        %v2185 = vpop.xlane.xlu0 %2184
        %v2186 = vsel %vm2056, %v2144, 0.0
        %2187 = vadd.xlane.f32.xlu0 %v2186
        %v2188 = vpop.xlane.xlu0 %2187
        %v2189 = vsel %vm2056, %v2146, 0.0
        %2190 = vadd.xlane.f32.xlu0 %v2189
        %v2191 = vpop.xlane.xlu0 %2190
        %v2192 = vsel %vm2056, %v2148, 0.0
        %2193 = vadd.xlane.f32.xlu0 %v2192
        %v2194 = vpop.xlane.xlu0 %2193
        %v2195 = vsel %vm2056, %v2150, 0.0
        %2196 = vadd.xlane.f32.xlu0 %v2195
        %v2197 = vpop.xlane.xlu0 %2196
        %v2198 = vsel %vm2056, %v2152, 0.0
        %2199 = vadd.xlane.f32.xlu0 %v2198
        %v2200 = vpop.xlane.xlu0 %2199
        %v2201 = vrcp.pop %v2155
        %v2202 = vrcp.pop %v2158
        %v2203 = vrcp.pop %v2161
        %v2204 = vrcp.pop %v2164
        %v2205 = vrcp.pop %v2167
        %v2206 = vrcp.pop %v2170
        %v2207 = vrcp.pop %v2173
        %v2208 = vrcp.pop %v2176
        %v2209 = vrcp.pop %v2179
        %v2210 = vrcp.pop %v2182
        %v2211 = vrcp.pop %v2185
        %v2212 = vrcp.pop %v2188
        %v2213 = vrcp.pop %v2191
        %v2214 = vrcp.pop %v2194
        %v2215 = vrcp.pop %v2197
        %v2216 = vrcp.pop %v2200
        %v2217 = vmul.f32 %v2122, %v2201
        %v2218 = vmul.f32 %v2124, %v2202
        %v2219 = vmul.f32 %v2126, %v2203
        %v2220 = vmul.f32 %v2128, %v2204
        %v2221 = vmul.f32 %v2130, %v2205
        %v2222 = vmul.f32 %v2132, %v2206
        %v2223 = vmul.f32 %v2134, %v2207
        %v2224 = vmul.f32 %v2136, %v2208
        %v2225 = vmul.f32 %v2138, %v2209
        %v2226 = vmul.f32 %v2140, %v2210
        %v2227 = vmul.f32 %v2142, %v2211
        %v2228 = vmul.f32 %v2144, %v2212
        %v2229 = vmul.f32 %v2146, %v2213
        %v2230 = vmul.f32 %v2148, %v2214
        %v2231 = vmul.f32 %v2150, %v2215
        %v2232 = vmul.f32 %v2152, %v2216
        %v2233 = vpack.c.bf16 %v2217, %v2217
        %v2234 = vpack.c.bf16 %v2218, %v2218
        %v2235 = vpack.c.bf16 %v2219, %v2219
        %v2236 = vpack.c.bf16 %v2220, %v2220
        %v2237 = vpack.c.bf16 %v2221, %v2221
        %v2238 = vpack.c.bf16 %v2222, %v2222
        %v2239 = vpack.c.bf16 %v2223, %v2223
        %v2240 = vpack.c.bf16 %v2224, %v2224
        %v2241 = vpack.c.bf16 %v2225, %v2225
        %v2242 = vpack.c.bf16 %v2226, %v2226
        %v2243 = vpack.c.bf16 %v2227, %v2227
        %v2244 = vpack.c.bf16 %v2228, %v2228
        %v2245 = vpack.c.bf16 %v2229, %v2229
        %v2246 = vpack.c.bf16 %v2230, %v2230
        %v2247 = vpack.c.bf16 %v2231, %v2231
        %v2248 = vpack.c.bf16 %v2232, %v2232
        %v2249 = vpack.c.bf16 %v1513, %v1513
        %v2250 = vpack.c.bf16 %v1515, %v1515
        %v2251 = vpack.c.bf16 %v1551, %v1551
        %v2252 = vpack.c.bf16 %v1553, %v1553
        %v2253 = vpack.c.bf16 %v1589, %v1589
        %v2254 = vpack.c.bf16 %v1591, %v1591
        %v2255 = vpack.c.bf16 %v1627, %v1627
        %v2256 = vpack.c.bf16 %v1629, %v1629
        %v2257 = vpack.c.bf16 %v1665, %v1665
        %v2258 = vpack.c.bf16 %v1667, %v1667
        %v2259 = vpack.c.bf16 %v1703, %v1703
        %v2260 = vpack.c.bf16 %v1705, %v1705
        %v2261 = vpack.c.bf16 %v1741, %v1741
        %v2262 = vpack.c.bf16 %v1743, %v1743
        %v2263 = vpack.c.bf16 %v1779, %v1779
        %v2264 = vpack.c.bf16 %v1781, %v1781
        %v2267 = vunpack.c.l.b16 %v2233
        %v2268 = vunpack.c.l.b16 %v2234
        %v2269 = vpack.c.b16 %v2268, %v2267
        %v2272 = vunpack.c.l.b16 %v2249
        %v2273 = vunpack.c.l.b16 %v2250
        %v2274 = vpack.c.b16 %v2273, %v2272
        %v2277 = vsel %vm2056, %v2269, 0
        %2279 = vmatpush.bf16.msra.mxu0 0
        %2280 = vmatpush.bf16.msra.mxu0 0
        %2281 = vmatpush.bf16.msra.mxu0 0
        %2282 = vmatpush.bf16.msra.mxu0 0
        %2283 = vmatpush.bf16.msra.mxu0 0
        %2284 = vmatpush.bf16.msra.mxu0 0
        %2285 = vmatpush.bf16.msra.mxu0 0
        %2286 = vmatpush.bf16.msra.mxu0 %v2274
        %2287 = vmatmul.bf16.gmra.mxu0 %v2277
        %v2288 = vpop.f32.mrf.mxu0
        %v2289 = vadd.f32 0.0, %v2288
        %v2290 = vpop.f32.mrf.mxu0
        %v2291 = vadd.f32 0.0, %v2290
        %2292 = vdwg.mxu0
        %v2295 = vunpack.c.l.b16 %v2235
        %v2296 = vunpack.c.l.b16 %v2236
        %v2297 = vpack.c.b16 %v2296, %v2295
        %v2300 = vunpack.c.l.b16 %v2251
        %v2301 = vunpack.c.l.b16 %v2252
        %v2302 = vpack.c.b16 %v2301, %v2300
        %v2305 = vsel %vm2056, %v2297, 0
        %2307 = vmatpush.bf16.msra.mxu0 0
        %2308 = vmatpush.bf16.msra.mxu0 0
        %2309 = vmatpush.bf16.msra.mxu0 0
        %2310 = vmatpush.bf16.msra.mxu0 0
        %2311 = vmatpush.bf16.msra.mxu0 0
        %2312 = vmatpush.bf16.msra.mxu0 0
        %2313 = vmatpush.bf16.msra.mxu0 0
        %2314 = vmatpush.bf16.msra.mxu0 %v2302
        %2315 = vmatmul.bf16.gmra.mxu0 %v2305
        %v2316 = vpop.f32.mrf.mxu0
        %v2317 = vadd.f32 0.0, %v2316
        %v2318 = vpop.f32.mrf.mxu0
        %v2319 = vadd.f32 0.0, %v2318
        %2320 = vdwg.mxu0
        %v2323 = vunpack.c.l.b16 %v2237
        %v2324 = vunpack.c.l.b16 %v2238
        %v2325 = vpack.c.b16 %v2324, %v2323
        %v2328 = vunpack.c.l.b16 %v2253
        %v2329 = vunpack.c.l.b16 %v2254
        %v2330 = vpack.c.b16 %v2329, %v2328
        %v2333 = vsel %vm2056, %v2325, 0
        %2335 = vmatpush.bf16.msra.mxu0 0
        %2336 = vmatpush.bf16.msra.mxu0 0
        %2337 = vmatpush.bf16.msra.mxu0 0
        %2338 = vmatpush.bf16.msra.mxu0 0
        %2339 = vmatpush.bf16.msra.mxu0 0
        %2340 = vmatpush.bf16.msra.mxu0 0
        %2341 = vmatpush.bf16.msra.mxu0 0
        %2342 = vmatpush.bf16.msra.mxu0 %v2330
        %2343 = vmatmul.bf16.gmra.mxu0 %v2333
        %v2344 = vpop.f32.mrf.mxu0
        %v2345 = vadd.f32 0.0, %v2344
        %v2346 = vpop.f32.mrf.mxu0
        %v2347 = vadd.f32 0.0, %v2346
        %2348 = vdwg.mxu0
        %v2351 = vunpack.c.l.b16 %v2239
        %v2352 = vunpack.c.l.b16 %v2240
        %v2353 = vpack.c.b16 %v2352, %v2351
        %v2356 = vunpack.c.l.b16 %v2255
        %v2357 = vunpack.c.l.b16 %v2256
        %v2358 = vpack.c.b16 %v2357, %v2356
        %v2361 = vsel %vm2056, %v2353, 0
        %2363 = vmatpush.bf16.msra.mxu0 0
        %2364 = vmatpush.bf16.msra.mxu0 0
        %2365 = vmatpush.bf16.msra.mxu0 0
        %2366 = vmatpush.bf16.msra.mxu0 0
        %2367 = vmatpush.bf16.msra.mxu0 0
        %2368 = vmatpush.bf16.msra.mxu0 0
        %2369 = vmatpush.bf16.msra.mxu0 0
        %2370 = vmatpush.bf16.msra.mxu0 %v2358
        %2371 = vmatmul.bf16.gmra.mxu0 %v2361
        %v2372 = vpop.f32.mrf.mxu0
        %v2373 = vadd.f32 0.0, %v2372
        %v2374 = vpop.f32.mrf.mxu0
        %v2375 = vadd.f32 0.0, %v2374
        %2376 = vdwg.mxu0
        %v2379 = vunpack.c.l.b16 %v2241
        %v2380 = vunpack.c.l.b16 %v2242
        %v2381 = vpack.c.b16 %v2380, %v2379
        %v2384 = vunpack.c.l.b16 %v2257
        %v2385 = vunpack.c.l.b16 %v2258
        %v2386 = vpack.c.b16 %v2385, %v2384
        %v2389 = vsel %vm2056, %v2381, 0
        %2391 = vmatpush.bf16.msra.mxu0 0
        %2392 = vmatpush.bf16.msra.mxu0 0
        %2393 = vmatpush.bf16.msra.mxu0 0
        %2394 = vmatpush.bf16.msra.mxu0 0
        %2395 = vmatpush.bf16.msra.mxu0 0
        %2396 = vmatpush.bf16.msra.mxu0 0
        %2397 = vmatpush.bf16.msra.mxu0 0
        %2398 = vmatpush.bf16.msra.mxu0 %v2386
        %2399 = vmatmul.bf16.gmra.mxu0 %v2389
        %v2400 = vpop.f32.mrf.mxu0
        %v2401 = vadd.f32 0.0, %v2400
        %v2402 = vpop.f32.mrf.mxu0
        %v2403 = vadd.f32 0.0, %v2402
        %2404 = vdwg.mxu0
        %v2407 = vunpack.c.l.b16 %v2243
        %v2408 = vunpack.c.l.b16 %v2244
        %v2409 = vpack.c.b16 %v2408, %v2407
        %v2412 = vunpack.c.l.b16 %v2259
        %v2413 = vunpack.c.l.b16 %v2260
        %v2414 = vpack.c.b16 %v2413, %v2412
        %v2417 = vsel %vm2056, %v2409, 0
        %2419 = vmatpush.bf16.msra.mxu0 0
        %2420 = vmatpush.bf16.msra.mxu0 0
        %2421 = vmatpush.bf16.msra.mxu0 0
        %2422 = vmatpush.bf16.msra.mxu0 0
        %2423 = vmatpush.bf16.msra.mxu0 0
        %2424 = vmatpush.bf16.msra.mxu0 0
        %2425 = vmatpush.bf16.msra.mxu0 0
        %2426 = vmatpush.bf16.msra.mxu0 %v2414
        %2427 = vmatmul.bf16.gmra.mxu0 %v2417
        %v2428 = vpop.f32.mrf.mxu0
        %v2429 = vadd.f32 0.0, %v2428
        %v2430 = vpop.f32.mrf.mxu0
        %v2431 = vadd.f32 0.0, %v2430
        %2432 = vdwg.mxu0
        %v2435 = vunpack.c.l.b16 %v2245
        %v2436 = vunpack.c.l.b16 %v2246
        %v2437 = vpack.c.b16 %v2436, %v2435
        %v2440 = vunpack.c.l.b16 %v2261
        %v2441 = vunpack.c.l.b16 %v2262
        %v2442 = vpack.c.b16 %v2441, %v2440
        %v2445 = vsel %vm2056, %v2437, 0
        %2447 = vmatpush.bf16.msra.mxu0 0
        %2448 = vmatpush.bf16.msra.mxu0 0
        %2449 = vmatpush.bf16.msra.mxu0 0
        %2450 = vmatpush.bf16.msra.mxu0 0
        %2451 = vmatpush.bf16.msra.mxu0 0
        %2452 = vmatpush.bf16.msra.mxu0 0
        %2453 = vmatpush.bf16.msra.mxu0 0
        %2454 = vmatpush.bf16.msra.mxu0 %v2442
        %2455 = vmatmul.bf16.gmra.mxu0 %v2445
        %v2456 = vpop.f32.mrf.mxu0
        %v2457 = vadd.f32 0.0, %v2456
        %v2458 = vpop.f32.mrf.mxu0
        %v2459 = vadd.f32 0.0, %v2458
        %2460 = vdwg.mxu0
        %v2463 = vunpack.c.l.b16 %v2247
        %v2464 = vunpack.c.l.b16 %v2248
        %v2465 = vpack.c.b16 %v2464, %v2463
        %v2468 = vunpack.c.l.b16 %v2263
        %v2469 = vunpack.c.l.b16 %v2264
        %v2470 = vpack.c.b16 %v2469, %v2468
        %v2473 = vsel %vm2056, %v2465, 0
        %2475 = vmatpush.bf16.msra.mxu0 0
        %2476 = vmatpush.bf16.msra.mxu0 0
        %2477 = vmatpush.bf16.msra.mxu0 0
        %2478 = vmatpush.bf16.msra.mxu0 0
        %2479 = vmatpush.bf16.msra.mxu0 0
        %2480 = vmatpush.bf16.msra.mxu0 0
        %2481 = vmatpush.bf16.msra.mxu0 0
        %2482 = vmatpush.bf16.msra.mxu0 %v2470
        %2483 = vmatmul.bf16.gmra.mxu0 %v2473
        %v2484 = vpop.f32.mrf.mxu0
        %v2485 = vadd.f32 0.0, %v2484
        %v2486 = vpop.f32.mrf.mxu0
        %v2487 = vadd.f32 0.0, %v2486
        %2488 = vdwg.mxu0
        %v2489 = vpack.c.bf16 %v2289, %v2289
        %v2490 = vpack.c.bf16 %v2291, %v2291
        %v2491 = vpack.c.bf16 %v2317, %v2317
        %v2492 = vpack.c.bf16 %v2319, %v2319
        %v2493 = vpack.c.bf16 %v2345, %v2345
        %v2494 = vpack.c.bf16 %v2347, %v2347
        %v2495 = vpack.c.bf16 %v2373, %v2373
        %v2496 = vpack.c.bf16 %v2375, %v2375
        %v2497 = vpack.c.bf16 %v2401, %v2401
        %v2498 = vpack.c.bf16 %v2403, %v2403
        %v2499 = vpack.c.bf16 %v2429, %v2429
        %v2500 = vpack.c.bf16 %v2431, %v2431
        %v2501 = vpack.c.bf16 %v2457, %v2457
        %v2502 = vpack.c.bf16 %v2459, %v2459
        %v2503 = vpack.c.bf16 %v2485, %v2485
        %v2504 = vpack.c.bf16 %v2487, %v2487
        %v2507 = vunpack.c.l.b16 %v2489
        %v2508 = vunpack.c.l.b16 %v2490
        %v2509 = vpack.c.b16 %v2508, %v2507
        %v2518 = vunpack.c.l.b16 %v799
        %v2519 = vunpack.c.l.b16 %v800
        %v2520 = vunpack.c.l.b16 %v801
        %v2521 = vunpack.c.l.b16 %v802
        %v2522 = vunpack.c.l.b16 %v803
        %v2523 = vunpack.c.l.b16 %v804
        %v2524 = vunpack.c.l.b16 %v805
        %v2525 = vunpack.c.l.b16 %v806
        %v2526 = vpack.c.b16 %v2519, %v2518
        %v2527 = vpack.c.b16 %v2521, %v2520
        %v2528 = vpack.c.b16 %v2523, %v2522
        %v2529 = vpack.c.b16 %v2525, %v2524
        %v2535 = vsel %vm1825, %v2509, 0
        %2537 = vmatpush.bf16.msra.mxu0 0
        %2538 = vmatpush.bf16.msra.mxu0 0
        %2539 = vmatpush.bf16.msra.mxu0 0
        %2540 = vmatpush.bf16.msra.mxu0 0
        %2541 = vmatpush.bf16.msra.mxu0 %v2529
        %2542 = vmatpush.bf16.msra.mxu0 %v2528
        %2543 = vmatpush.bf16.msra.mxu0 %v2527
        %2544 = vmatpush.bf16.msra.mxu0 %v2526
        %2545 = vmatmul.bf16.gmra.mxu0 %v2535
        %v2546 = vpop.f32.mrf.mxu0
        %v2547 = vadd.f32 0.0, %v2546
        %v2548 = vpop.f32.mrf.mxu0
        %v2549 = vadd.f32 0.0, %v2548
        %2550 = vdwg.mxu0
        %v2553 = vunpack.c.l.b16 %v2491
        %v2554 = vunpack.c.l.b16 %v2492
        %v2555 = vpack.c.b16 %v2554, %v2553
        %v2564 = vunpack.c.l.b16 %v807
        %v2565 = vunpack.c.l.b16 %v808
        %v2566 = vunpack.c.l.b16 %v809
        %v2567 = vunpack.c.l.b16 %v810
        %v2568 = vunpack.c.l.b16 %v811
        %v2569 = vunpack.c.l.b16 %v812
        %v2570 = vunpack.c.l.b16 %v813
        %v2571 = vunpack.c.l.b16 %v814
        %v2572 = vpack.c.b16 %v2565, %v2564
        %v2573 = vpack.c.b16 %v2567, %v2566
        %v2574 = vpack.c.b16 %v2569, %v2568
        %v2575 = vpack.c.b16 %v2571, %v2570
        %v2581 = vsel %vm1825, %v2555, 0
        %2583 = vmatpush.bf16.msra.mxu0 0
        %2584 = vmatpush.bf16.msra.mxu0 0
        %2585 = vmatpush.bf16.msra.mxu0 0
        %2586 = vmatpush.bf16.msra.mxu0 0
        %2587 = vmatpush.bf16.msra.mxu0 %v2575
        %2588 = vmatpush.bf16.msra.mxu0 %v2574
        %2589 = vmatpush.bf16.msra.mxu0 %v2573
        %2590 = vmatpush.bf16.msra.mxu0 %v2572
        %2591 = vmatmul.bf16.gmra.mxu0 %v2581
        %v2592 = vpop.f32.mrf.mxu0
        %v2593 = vadd.f32 0.0, %v2592
        %v2594 = vpop.f32.mrf.mxu0
        %v2595 = vadd.f32 0.0, %v2594
        %2596 = vdwg.mxu0
        %v2599 = vunpack.c.l.b16 %v2493
        %v2600 = vunpack.c.l.b16 %v2494
        %v2601 = vpack.c.b16 %v2600, %v2599
        %v2610 = vunpack.c.l.b16 %v815
        %v2611 = vunpack.c.l.b16 %v816
        %v2612 = vunpack.c.l.b16 %v817
        %v2613 = vunpack.c.l.b16 %v818
        %v2614 = vunpack.c.l.b16 %v819
        %v2615 = vunpack.c.l.b16 %v820
        %v2616 = vunpack.c.l.b16 %v821
        %v2617 = vunpack.c.l.b16 %v822
        %v2618 = vpack.c.b16 %v2611, %v2610
        %v2619 = vpack.c.b16 %v2613, %v2612
        %v2620 = vpack.c.b16 %v2615, %v2614
        %v2621 = vpack.c.b16 %v2617, %v2616
        %v2627 = vsel %vm1825, %v2601, 0
        %2629 = vmatpush.bf16.msra.mxu0 0
        %2630 = vmatpush.bf16.msra.mxu0 0
        %2631 = vmatpush.bf16.msra.mxu0 0
        %2632 = vmatpush.bf16.msra.mxu0 0
        %2633 = vmatpush.bf16.msra.mxu0 %v2621
        %2634 = vmatpush.bf16.msra.mxu0 %v2620
        %2635 = vmatpush.bf16.msra.mxu0 %v2619
        %2636 = vmatpush.bf16.msra.mxu0 %v2618
        %2637 = vmatmul.bf16.gmra.mxu0 %v2627
        %v2638 = vpop.f32.mrf.mxu0
        %v2639 = vadd.f32 0.0, %v2638
        %v2640 = vpop.f32.mrf.mxu0
        %v2641 = vadd.f32 0.0, %v2640
        %2642 = vdwg.mxu0
        %v2645 = vunpack.c.l.b16 %v2495
        %v2646 = vunpack.c.l.b16 %v2496
        %v2647 = vpack.c.b16 %v2646, %v2645
        %v2656 = vunpack.c.l.b16 %v823
        %v2657 = vunpack.c.l.b16 %v824
        %v2658 = vunpack.c.l.b16 %v825
        %v2659 = vunpack.c.l.b16 %v826
        %v2660 = vunpack.c.l.b16 %v827
        %v2661 = vunpack.c.l.b16 %v828
        %v2662 = vunpack.c.l.b16 %v829
        %v2663 = vunpack.c.l.b16 %v830
        %v2664 = vpack.c.b16 %v2657, %v2656
        %v2665 = vpack.c.b16 %v2659, %v2658
        %v2666 = vpack.c.b16 %v2661, %v2660
        %v2667 = vpack.c.b16 %v2663, %v2662
        %v2673 = vsel %vm1825, %v2647, 0
        %2675 = vmatpush.bf16.msra.mxu0 0
        %2676 = vmatpush.bf16.msra.mxu0 0
        %2677 = vmatpush.bf16.msra.mxu0 0
        %2678 = vmatpush.bf16.msra.mxu0 0
        %2679 = vmatpush.bf16.msra.mxu0 %v2667
        %2680 = vmatpush.bf16.msra.mxu0 %v2666
        %2681 = vmatpush.bf16.msra.mxu0 %v2665
        %2682 = vmatpush.bf16.msra.mxu0 %v2664
        %2683 = vmatmul.bf16.gmra.mxu0 %v2673
        %v2684 = vpop.f32.mrf.mxu0
        %v2685 = vadd.f32 0.0, %v2684
        %v2686 = vpop.f32.mrf.mxu0
        %v2687 = vadd.f32 0.0, %v2686
        %2688 = vdwg.mxu0
        %v2691 = vunpack.c.l.b16 %v2497
        %v2692 = vunpack.c.l.b16 %v2498
        %v2693 = vpack.c.b16 %v2692, %v2691
        %v2702 = vunpack.c.l.b16 %v831
        %v2703 = vunpack.c.l.b16 %v832
        %v2704 = vunpack.c.l.b16 %v833
        %v2705 = vunpack.c.l.b16 %v834
        %v2706 = vunpack.c.l.b16 %v835
        %v2707 = vunpack.c.l.b16 %v836
        %v2708 = vunpack.c.l.b16 %v837
        %v2709 = vunpack.c.l.b16 %v838
        %v2710 = vpack.c.b16 %v2703, %v2702
        %v2711 = vpack.c.b16 %v2705, %v2704
        %v2712 = vpack.c.b16 %v2707, %v2706
        %v2713 = vpack.c.b16 %v2709, %v2708
        %v2719 = vsel %vm1825, %v2693, 0
        %2721 = vmatpush.bf16.msra.mxu0 0
        %2722 = vmatpush.bf16.msra.mxu0 0
        %2723 = vmatpush.bf16.msra.mxu0 0
        %2724 = vmatpush.bf16.msra.mxu0 0
        %2725 = vmatpush.bf16.msra.mxu0 %v2713
        %2726 = vmatpush.bf16.msra.mxu0 %v2712
        %2727 = vmatpush.bf16.msra.mxu0 %v2711
        %2728 = vmatpush.bf16.msra.mxu0 %v2710
        %2729 = vmatmul.bf16.gmra.mxu0 %v2719
        %v2730 = vpop.f32.mrf.mxu0
        %v2731 = vadd.f32 0.0, %v2730
        %v2732 = vpop.f32.mrf.mxu0
        %v2733 = vadd.f32 0.0, %v2732
        %2734 = vdwg.mxu0
        %v2737 = vunpack.c.l.b16 %v2499
        %v2738 = vunpack.c.l.b16 %v2500
        %v2739 = vpack.c.b16 %v2738, %v2737
        %v2748 = vunpack.c.l.b16 %v839
        %v2749 = vunpack.c.l.b16 %v840
        %v2750 = vunpack.c.l.b16 %v841
        %v2751 = vunpack.c.l.b16 %v842
        %v2752 = vunpack.c.l.b16 %v843
        %v2753 = vunpack.c.l.b16 %v844
        %v2754 = vunpack.c.l.b16 %v845
        %v2755 = vunpack.c.l.b16 %v846
        %v2756 = vpack.c.b16 %v2749, %v2748
        %v2757 = vpack.c.b16 %v2751, %v2750
        %v2758 = vpack.c.b16 %v2753, %v2752
        %v2759 = vpack.c.b16 %v2755, %v2754
        %v2765 = vsel %vm1825, %v2739, 0
        %2767 = vmatpush.bf16.msra.mxu0 0
        %2768 = vmatpush.bf16.msra.mxu0 0
        %2769 = vmatpush.bf16.msra.mxu0 0
        %2770 = vmatpush.bf16.msra.mxu0 0
        %2771 = vmatpush.bf16.msra.mxu0 %v2759
        %2772 = vmatpush.bf16.msra.mxu0 %v2758
        %2773 = vmatpush.bf16.msra.mxu0 %v2757
        %2774 = vmatpush.bf16.msra.mxu0 %v2756
        %2775 = vmatmul.bf16.gmra.mxu0 %v2765
        %v2776 = vpop.f32.mrf.mxu0
        %v2777 = vadd.f32 0.0, %v2776
        %v2778 = vpop.f32.mrf.mxu0
        %v2779 = vadd.f32 0.0, %v2778
        %2780 = vdwg.mxu0
        %v2783 = vunpack.c.l.b16 %v2501
        %v2784 = vunpack.c.l.b16 %v2502
        %v2785 = vpack.c.b16 %v2784, %v2783
        %v2794 = vunpack.c.l.b16 %v847
        %v2795 = vunpack.c.l.b16 %v848
        %v2796 = vunpack.c.l.b16 %v849
        %v2797 = vunpack.c.l.b16 %v850
        %v2798 = vunpack.c.l.b16 %v851
        %v2799 = vunpack.c.l.b16 %v852
        %v2800 = vunpack.c.l.b16 %v853
        %v2801 = vunpack.c.l.b16 %v854
        %v2802 = vpack.c.b16 %v2795, %v2794
        %v2803 = vpack.c.b16 %v2797, %v2796
        %v2804 = vpack.c.b16 %v2799, %v2798
        %v2805 = vpack.c.b16 %v2801, %v2800
        %v2811 = vsel %vm1825, %v2785, 0
        %2813 = vmatpush.bf16.msra.mxu0 0
        %2814 = vmatpush.bf16.msra.mxu0 0
        %2815 = vmatpush.bf16.msra.mxu0 0
        %2816 = vmatpush.bf16.msra.mxu0 0
        %2817 = vmatpush.bf16.msra.mxu0 %v2805
        %2818 = vmatpush.bf16.msra.mxu0 %v2804
        %2819 = vmatpush.bf16.msra.mxu0 %v2803
        %2820 = vmatpush.bf16.msra.mxu0 %v2802
        %2821 = vmatmul.bf16.gmra.mxu0 %v2811
        %v2822 = vpop.f32.mrf.mxu0
        %v2823 = vadd.f32 0.0, %v2822
        %v2824 = vpop.f32.mrf.mxu0
        %v2825 = vadd.f32 0.0, %v2824
        %2826 = vdwg.mxu0
        %v2829 = vunpack.c.l.b16 %v2503
        %v2830 = vunpack.c.l.b16 %v2504
        %v2831 = vpack.c.b16 %v2830, %v2829
        %v2840 = vunpack.c.l.b16 %v855
        %v2841 = vunpack.c.l.b16 %v856
        %v2842 = vunpack.c.l.b16 %v857
        %v2843 = vunpack.c.l.b16 %v858
        %v2844 = vunpack.c.l.b16 %v859
        %v2845 = vunpack.c.l.b16 %v860
        %v2846 = vunpack.c.l.b16 %v861
        %v2847 = vunpack.c.l.b16 %v862
        %v2848 = vpack.c.b16 %v2841, %v2840
        %v2849 = vpack.c.b16 %v2843, %v2842
        %v2850 = vpack.c.b16 %v2845, %v2844
        %v2851 = vpack.c.b16 %v2847, %v2846
        %v2857 = vsel %vm1825, %v2831, 0
        %2859 = vmatpush.bf16.msra.mxu0 0
        %2860 = vmatpush.bf16.msra.mxu0 0
        %2861 = vmatpush.bf16.msra.mxu0 0
        %2862 = vmatpush.bf16.msra.mxu0 0
        %2863 = vmatpush.bf16.msra.mxu0 %v2851
        %2864 = vmatpush.bf16.msra.mxu0 %v2850
        %2865 = vmatpush.bf16.msra.mxu0 %v2849
        %2866 = vmatpush.bf16.msra.mxu0 %v2848
        %2867 = vmatmul.bf16.gmra.mxu0 %v2857
        %v2868 = vpop.f32.mrf.mxu0
        %v2869 = vadd.f32 0.0, %v2868
        %v2870 = vpop.f32.mrf.mxu0
        %v2871 = vadd.f32 0.0, %v2870
        %2872 = vdwg.mxu0
        %v2873 = vadd.f32 %v2547, %v2593
        %v2874 = vadd.f32 %v2873, %v2639
        %v2875 = vadd.f32 %v2874, %v2685
        %v2876 = vadd.f32 %v2875, %v2731
        %v2877 = vadd.f32 %v2876, %v2777
        %v2878 = vadd.f32 %v2877, %v2823
        %v2879 = vadd.f32 %v2878, %v2869
        %v2880 = vadd.f32 %v2549, %v2595
        %v2881 = vadd.f32 %v2880, %v2641
        %v2882 = vadd.f32 %v2881, %v2687
        %v2883 = vadd.f32 %v2882, %v2733
        %v2884 = vadd.f32 %v2883, %v2779
        %v2885 = vadd.f32 %v2884, %v2825
        %v2886 = vadd.f32 %v2885, %v2871
        %v2887 = vadd.f32 %v2879, %v599
        %v2888 = vadd.f32 %v2886, %v600
        %2889 = vadd.xlane.f32.xlu0 %v2887
        %v2890 = vpop.xlane.xlu0 %2889
        %2891 = vadd.xlane.f32.xlu0 %v2888
        %v2892 = vpop.xlane.xlu0 %2891
        %v2893 = vrcp.pop 128.0
        %v2894 = vmul.f32 128.0, %v2893
        %v2895 = vsub.f32 1.0, %v2894
        %v2896 = vmul.f32 %v2893, %v2895
        %v2897 = vadd.f32 %v2893, %v2896
        %vm2898 = vweird.f32 %v2893
        %v2899 = vsel %vm2898, %v2893, %v2897
        %v2900 = vmul.f32 %v2890, %v2899
        %v2901 = vmul.f32 %v2892, %v2899
        %v2902 = vsub.f32 %v2887, %v2900
        %v2903 = vsub.f32 %v2888, %v2901
        %v2904 = vmul.f32 %v2902, %v2902
        %v2905 = vmul.f32 %v2903, %v2903
        %2906 = vadd.xlane.f32.xlu0 %v2904
        %v2907 = vpop.xlane.xlu0 %2906
        %2908 = vadd.xlane.f32.xlu0 %v2905
        %v2909 = vpop.xlane.xlu0 %2908
        %v2910 = vmul.f32 %v2907, %v2899
        %v2911 = vmul.f32 %v2909, %v2899
        %v2912 = vadd.f32 %v2910, 1e-05
        %v2913 = vadd.f32 %v2911, 1e-05
        %v2914 = vrsqrt.pop %v2912
        %v2915 = vmul.f32 %v2914, %v2912
        %v2916 = vmul.f32 %v2915, %v2914
        %v2917 = vmul.f32 0.5, %v2916
        %v2918 = vsub.f32 1.5, %v2917
        %v2919 = vmul.f32 %v2914, %v2918
        %vm2920 = vweird.f32 %v2912
        %vm2921 = vweird.f32 %v2914
        %vm2922 = vmor %vm2920, %vm2921
        %v2923 = vsel %vm2922, %v2914, %v2919
        %v2924 = vrsqrt.pop %v2913
        %v2925 = vmul.f32 %v2924, %v2913
        %v2926 = vmul.f32 %v2925, %v2924
        %v2927 = vmul.f32 0.5, %v2926
        %v2928 = vsub.f32 1.5, %v2927
        %v2929 = vmul.f32 %v2924, %v2928
        %vm2930 = vweird.f32 %v2913
        %vm2931 = vweird.f32 %v2924
        %vm2932 = vmor %vm2930, %vm2931
        %v2933 = vsel %vm2932, %v2924, %v2929
        %v2934 = vmul.f32 %v2902, %v2923
        %v2935 = vmul.f32 %v2903, %v2933
        %2936 = vst.msk [vmem:[%s570] sm:$0xff] %vm2056, %v2217
        %2937 = vst.msk [vmem:[%s570 + $0x8] sm:$0xff] %vm2056, %v2218
        %2938 = vst.msk [vmem:[%s570 + $0x10] sm:$0xff] %vm2056, %v2219
        %2939 = vst.msk [vmem:[%s570 + $0x18] sm:$0xff] %vm2056, %v2220
        %2940 = vst.msk [vmem:[%s570 + $0x20] sm:$0xff] %vm2056, %v2221
        %2941 = vst.msk [vmem:[%s570 + $0x28] sm:$0xff] %vm2056, %v2222
        %2942 = vst.msk [vmem:[%s570 + $0x30] sm:$0xff] %vm2056, %v2223
        %2943 = vst.msk [vmem:[%s570 + $0x38] sm:$0xff] %vm2056, %v2224
        %2944 = vst.msk [vmem:[%s570 + $0x40] sm:$0xff] %vm2056, %v2225
        %2945 = vst.msk [vmem:[%s570 + $0x48] sm:$0xff] %vm2056, %v2226
        %2946 = vst.msk [vmem:[%s570 + $0x50] sm:$0xff] %vm2056, %v2227
        %2947 = vst.msk [vmem:[%s570 + $0x58] sm:$0xff] %vm2056, %v2228
        %2948 = vst.msk [vmem:[%s570 + $0x60] sm:$0xff] %vm2056, %v2229
        %2949 = vst.msk [vmem:[%s570 + $0x68] sm:$0xff] %vm2056, %v2230
        %2950 = vst.msk [vmem:[%s570 + $0x70] sm:$0xff] %vm2056, %v2231
        %2951 = vst.msk [vmem:[%s570 + $0x78] sm:$0xff] %vm2056, %v2232
        %v2952 = vld [vmem:[%s597] sm:$0xff]
        %v2953 = vld [vmem:[%s597 + $0x8] sm:$0xff]
        %v2954 = vld [vmem:[%s8] sm:$0xf]
        %v2955 = vld [vmem:[%s8 + $0x4] sm:$0xf]
        %v2956 = vld [vmem:[%s8 + $0x8] sm:$0xf]
        %v2957 = vld [vmem:[%s8 + $0xc] sm:$0xf]
        %v2958 = vld [vmem:[%s8 + $0x10] sm:$0xf]
        %v2959 = vld [vmem:[%s8 + $0x14] sm:$0xf]
        %v2960 = vld [vmem:[%s8 + $0x18] sm:$0xf]
        %v2961 = vld [vmem:[%s8 + $0x1c] sm:$0xf]
        %v2962 = vld [vmem:[%s8 + $0x20] sm:$0xf]
        %v2963 = vld [vmem:[%s8 + $0x24] sm:$0xf]
        %v2964 = vld [vmem:[%s8 + $0x28] sm:$0xf]
        %v2965 = vld [vmem:[%s8 + $0x2c] sm:$0xf]
        %v2966 = vld [vmem:[%s8 + $0x30] sm:$0xf]
        %v2967 = vld [vmem:[%s8 + $0x34] sm:$0xf]
        %v2968 = vld [vmem:[%s8 + $0x38] sm:$0xf]
        %v2969 = vld [vmem:[%s8 + $0x3c] sm:$0xf]
        %v2970 = vld [vmem:[%s8 + $0x40] sm:$0xf]
        %v2971 = vld [vmem:[%s8 + $0x44] sm:$0xf]
        %v2972 = vld [vmem:[%s8 + $0x48] sm:$0xf]
        %v2973 = vld [vmem:[%s8 + $0x4c] sm:$0xf]
        %v2974 = vld [vmem:[%s8 + $0x50] sm:$0xf]
        %v2975 = vld [vmem:[%s8 + $0x54] sm:$0xf]
        %v2976 = vld [vmem:[%s8 + $0x58] sm:$0xf]
        %v2977 = vld [vmem:[%s8 + $0x5c] sm:$0xf]
        %v2978 = vld [vmem:[%s8 + $0x60] sm:$0xf]
        %v2979 = vld [vmem:[%s8 + $0x64] sm:$0xf]
        %v2980 = vld [vmem:[%s8 + $0x68] sm:$0xf]
        %v2981 = vld [vmem:[%s8 + $0x6c] sm:$0xf]
        %v2982 = vld [vmem:[%s8 + $0x70] sm:$0xf]
        %v2983 = vld [vmem:[%s8 + $0x74] sm:$0xf]
        %v2984 = vld [vmem:[%s8 + $0x78] sm:$0xf]
        %v2985 = vld [vmem:[%s8 + $0x7c] sm:$0xf]
        %v2986 = vld [vmem:[%s8 + $0x80] sm:$0xf]
        %v2987 = vld [vmem:[%s8 + $0x84] sm:$0xf]
        %v2988 = vld [vmem:[%s8 + $0x88] sm:$0xf]
        %v2989 = vld [vmem:[%s8 + $0x8c] sm:$0xf]
        %v2990 = vld [vmem:[%s8 + $0x90] sm:$0xf]
        %v2991 = vld [vmem:[%s8 + $0x94] sm:$0xf]
        %v2992 = vld [vmem:[%s8 + $0x98] sm:$0xf]
        %v2993 = vld [vmem:[%s8 + $0x9c] sm:$0xf]
        %v2994 = vld [vmem:[%s8 + $0xa0] sm:$0xf]
        %v2995 = vld [vmem:[%s8 + $0xa4] sm:$0xf]
        %v2996 = vld [vmem:[%s8 + $0xa8] sm:$0xf]
        %v2997 = vld [vmem:[%s8 + $0xac] sm:$0xf]
        %v2998 = vld [vmem:[%s8 + $0xb0] sm:$0xf]
        %v2999 = vld [vmem:[%s8 + $0xb4] sm:$0xf]
        %v3000 = vld [vmem:[%s8 + $0xb8] sm:$0xf]
        %v3001 = vld [vmem:[%s8 + $0xbc] sm:$0xf]
        %v3002 = vld [vmem:[%s8 + $0xc0] sm:$0xf]
        %v3003 = vld [vmem:[%s8 + $0xc4] sm:$0xf]
        %v3004 = vld [vmem:[%s8 + $0xc8] sm:$0xf]
        %v3005 = vld [vmem:[%s8 + $0xcc] sm:$0xf]
        %v3006 = vld [vmem:[%s8 + $0xd0] sm:$0xf]
        %v3007 = vld [vmem:[%s8 + $0xd4] sm:$0xf]
        %v3008 = vld [vmem:[%s8 + $0xd8] sm:$0xf]
        %v3009 = vld [vmem:[%s8 + $0xdc] sm:$0xf]
        %v3010 = vld [vmem:[%s8 + $0xe0] sm:$0xf]
        %v3011 = vld [vmem:[%s8 + $0xe4] sm:$0xf]
        %v3012 = vld [vmem:[%s8 + $0xe8] sm:$0xf]
        %v3013 = vld [vmem:[%s8 + $0xec] sm:$0xf]
        %v3014 = vld [vmem:[%s8 + $0xf0] sm:$0xf]
        %v3015 = vld [vmem:[%s8 + $0xf4] sm:$0xf]
        %v3016 = vld [vmem:[%s8 + $0xf8] sm:$0xf]
        %v3017 = vld [vmem:[%s8 + $0xfc] sm:$0xf]
        %v3018 = vld [vmem:[%s9] sm:$0xf]
        %v3019 = vld [vmem:[%s9 + $0x4] sm:$0xf]
        %v3020 = vld [vmem:[%s9 + $0x8] sm:$0xf]
        %v3021 = vld [vmem:[%s9 + $0xc] sm:$0xf]
        %v3022 = vld [vmem:[%s9 + $0x10] sm:$0xf]
        %v3023 = vld [vmem:[%s9 + $0x14] sm:$0xf]
        %v3024 = vld [vmem:[%s9 + $0x18] sm:$0xf]
        %v3025 = vld [vmem:[%s9 + $0x1c] sm:$0xf]
        %v3026 = vld [vmem:[%s9 + $0x20] sm:$0xf]
        %v3027 = vld [vmem:[%s9 + $0x24] sm:$0xf]
        %v3028 = vld [vmem:[%s9 + $0x28] sm:$0xf]
        %v3029 = vld [vmem:[%s9 + $0x2c] sm:$0xf]
        %v3030 = vld [vmem:[%s9 + $0x30] sm:$0xf]
        %v3031 = vld [vmem:[%s9 + $0x34] sm:$0xf]
        %v3032 = vld [vmem:[%s9 + $0x38] sm:$0xf]
        %v3033 = vld [vmem:[%s9 + $0x3c] sm:$0xf]
        %v3034 = vld [vmem:[%s9 + $0x40] sm:$0xf]
        %v3035 = vld [vmem:[%s9 + $0x44] sm:$0xf]
        %v3036 = vld [vmem:[%s9 + $0x48] sm:$0xf]
        %v3037 = vld [vmem:[%s9 + $0x4c] sm:$0xf]
        %v3038 = vld [vmem:[%s9 + $0x50] sm:$0xf]
        %v3039 = vld [vmem:[%s9 + $0x54] sm:$0xf]
        %v3040 = vld [vmem:[%s9 + $0x58] sm:$0xf]
        %v3041 = vld [vmem:[%s9 + $0x5c] sm:$0xf]
        %v3042 = vld [vmem:[%s9 + $0x60] sm:$0xf]
        %v3043 = vld [vmem:[%s9 + $0x64] sm:$0xf]
        %v3044 = vld [vmem:[%s9 + $0x68] sm:$0xf]
        %v3045 = vld [vmem:[%s9 + $0x6c] sm:$0xf]
        %v3046 = vld [vmem:[%s9 + $0x70] sm:$0xf]
        %v3047 = vld [vmem:[%s9 + $0x74] sm:$0xf]
        %v3048 = vld [vmem:[%s9 + $0x78] sm:$0xf]
        %v3049 = vld [vmem:[%s9 + $0x7c] sm:$0xf]
        %v3050 = vld [vmem:[%s9 + $0x80] sm:$0xf]
        %v3051 = vld [vmem:[%s9 + $0x84] sm:$0xf]
        %v3052 = vld [vmem:[%s9 + $0x88] sm:$0xf]
        %v3053 = vld [vmem:[%s9 + $0x8c] sm:$0xf]
        %v3054 = vld [vmem:[%s9 + $0x90] sm:$0xf]
        %v3055 = vld [vmem:[%s9 + $0x94] sm:$0xf]
        %v3056 = vld [vmem:[%s9 + $0x98] sm:$0xf]
        %v3057 = vld [vmem:[%s9 + $0x9c] sm:$0xf]
        %v3058 = vld [vmem:[%s9 + $0xa0] sm:$0xf]
        %v3059 = vld [vmem:[%s9 + $0xa4] sm:$0xf]
        %v3060 = vld [vmem:[%s9 + $0xa8] sm:$0xf]
        %v3061 = vld [vmem:[%s9 + $0xac] sm:$0xf]
        %v3062 = vld [vmem:[%s9 + $0xb0] sm:$0xf]
        %v3063 = vld [vmem:[%s9 + $0xb4] sm:$0xf]
        %v3064 = vld [vmem:[%s9 + $0xb8] sm:$0xf]
        %v3065 = vld [vmem:[%s9 + $0xbc] sm:$0xf]
        %v3066 = vld [vmem:[%s9 + $0xc0] sm:$0xf]
        %v3067 = vld [vmem:[%s9 + $0xc4] sm:$0xf]
        %v3068 = vld [vmem:[%s9 + $0xc8] sm:$0xf]
        %v3069 = vld [vmem:[%s9 + $0xcc] sm:$0xf]
        %v3070 = vld [vmem:[%s9 + $0xd0] sm:$0xf]
        %v3071 = vld [vmem:[%s9 + $0xd4] sm:$0xf]
        %v3072 = vld [vmem:[%s9 + $0xd8] sm:$0xf]
        %v3073 = vld [vmem:[%s9 + $0xdc] sm:$0xf]
        %v3074 = vld [vmem:[%s9 + $0xe0] sm:$0xf]
        %v3075 = vld [vmem:[%s9 + $0xe4] sm:$0xf]
        %v3076 = vld [vmem:[%s9 + $0xe8] sm:$0xf]
        %v3077 = vld [vmem:[%s9 + $0xec] sm:$0xf]
        %v3078 = vld [vmem:[%s9 + $0xf0] sm:$0xf]
        %v3079 = vld [vmem:[%s9 + $0xf4] sm:$0xf]
        %v3080 = vld [vmem:[%s9 + $0xf8] sm:$0xf]
        %v3081 = vld [vmem:[%s9 + $0xfc] sm:$0xf]
        %v3082 = vld [vmem:[%s10] sm:$0xf]
        %v3083 = vld [vmem:[%s10 + $0x4] sm:$0xf]
        %v3084 = vld [vmem:[%s10 + $0x8] sm:$0xf]
        %v3085 = vld [vmem:[%s10 + $0xc] sm:$0xf]
        %v3086 = vld [vmem:[%s10 + $0x10] sm:$0xf]
        %v3087 = vld [vmem:[%s10 + $0x14] sm:$0xf]
        %v3088 = vld [vmem:[%s10 + $0x18] sm:$0xf]
        %v3089 = vld [vmem:[%s10 + $0x1c] sm:$0xf]
        %v3090 = vld [vmem:[%s10 + $0x20] sm:$0xf]
        %v3091 = vld [vmem:[%s10 + $0x24] sm:$0xf]
        %v3092 = vld [vmem:[%s10 + $0x28] sm:$0xf]
        %v3093 = vld [vmem:[%s10 + $0x2c] sm:$0xf]
        %v3094 = vld [vmem:[%s10 + $0x30] sm:$0xf]
        %v3095 = vld [vmem:[%s10 + $0x34] sm:$0xf]
        %v3096 = vld [vmem:[%s10 + $0x38] sm:$0xf]
        %v3097 = vld [vmem:[%s10 + $0x3c] sm:$0xf]
        %v3098 = vld [vmem:[%s10 + $0x40] sm:$0xf]
        %v3099 = vld [vmem:[%s10 + $0x44] sm:$0xf]
        %v3100 = vld [vmem:[%s10 + $0x48] sm:$0xf]
        %v3101 = vld [vmem:[%s10 + $0x4c] sm:$0xf]
        %v3102 = vld [vmem:[%s10 + $0x50] sm:$0xf]
        %v3103 = vld [vmem:[%s10 + $0x54] sm:$0xf]
        %v3104 = vld [vmem:[%s10 + $0x58] sm:$0xf]
        %v3105 = vld [vmem:[%s10 + $0x5c] sm:$0xf]
        %v3106 = vld [vmem:[%s10 + $0x60] sm:$0xf]
        %v3107 = vld [vmem:[%s10 + $0x64] sm:$0xf]
        %v3108 = vld [vmem:[%s10 + $0x68] sm:$0xf]
        %v3109 = vld [vmem:[%s10 + $0x6c] sm:$0xf]
        %v3110 = vld [vmem:[%s10 + $0x70] sm:$0xf]
        %v3111 = vld [vmem:[%s10 + $0x74] sm:$0xf]
        %v3112 = vld [vmem:[%s10 + $0x78] sm:$0xf]
        %v3113 = vld [vmem:[%s10 + $0x7c] sm:$0xf]
        %v3114 = vld [vmem:[%s10 + $0x80] sm:$0xf]
        %v3115 = vld [vmem:[%s10 + $0x84] sm:$0xf]
        %v3116 = vld [vmem:[%s10 + $0x88] sm:$0xf]
        %v3117 = vld [vmem:[%s10 + $0x8c] sm:$0xf]
        %v3118 = vld [vmem:[%s10 + $0x90] sm:$0xf]
        %v3119 = vld [vmem:[%s10 + $0x94] sm:$0xf]
        %v3120 = vld [vmem:[%s10 + $0x98] sm:$0xf]
        %v3121 = vld [vmem:[%s10 + $0x9c] sm:$0xf]
        %v3122 = vld [vmem:[%s10 + $0xa0] sm:$0xf]
        %v3123 = vld [vmem:[%s10 + $0xa4] sm:$0xf]
        %v3124 = vld [vmem:[%s10 + $0xa8] sm:$0xf]
        %v3125 = vld [vmem:[%s10 + $0xac] sm:$0xf]
        %v3126 = vld [vmem:[%s10 + $0xb0] sm:$0xf]
        %v3127 = vld [vmem:[%s10 + $0xb4] sm:$0xf]
        %v3128 = vld [vmem:[%s10 + $0xb8] sm:$0xf]
        %v3129 = vld [vmem:[%s10 + $0xbc] sm:$0xf]
        %v3130 = vld [vmem:[%s10 + $0xc0] sm:$0xf]
        %v3131 = vld [vmem:[%s10 + $0xc4] sm:$0xf]
        %v3132 = vld [vmem:[%s10 + $0xc8] sm:$0xf]
        %v3133 = vld [vmem:[%s10 + $0xcc] sm:$0xf]
        %v3134 = vld [vmem:[%s10 + $0xd0] sm:$0xf]
        %v3135 = vld [vmem:[%s10 + $0xd4] sm:$0xf]
        %v3136 = vld [vmem:[%s10 + $0xd8] sm:$0xf]
        %v3137 = vld [vmem:[%s10 + $0xdc] sm:$0xf]
        %v3138 = vld [vmem:[%s10 + $0xe0] sm:$0xf]
        %v3139 = vld [vmem:[%s10 + $0xe4] sm:$0xf]
        %v3140 = vld [vmem:[%s10 + $0xe8] sm:$0xf]
        %v3141 = vld [vmem:[%s10 + $0xec] sm:$0xf]
        %v3142 = vld [vmem:[%s10 + $0xf0] sm:$0xf]
        %v3143 = vld [vmem:[%s10 + $0xf4] sm:$0xf]
        %v3144 = vld [vmem:[%s10 + $0xf8] sm:$0xf]
        %v3145 = vld [vmem:[%s10 + $0xfc] sm:$0xf]
        %v3146 = vld [vmem:[%s11] sm:$0xf]
        %v3147 = vld [vmem:[%s11 + $0x4] sm:$0xf]
        %v3148 = vld [vmem:[%s11 + $0x8] sm:$0xf]
        %v3149 = vld [vmem:[%s11 + $0xc] sm:$0xf]
        %v3150 = vld [vmem:[%s11 + $0x10] sm:$0xf]
        %v3151 = vld [vmem:[%s11 + $0x14] sm:$0xf]
        %v3152 = vld [vmem:[%s11 + $0x18] sm:$0xf]
        %v3153 = vld [vmem:[%s11 + $0x1c] sm:$0xf]
        %v3154 = vld [vmem:[%s11 + $0x20] sm:$0xf]
        %v3155 = vld [vmem:[%s11 + $0x24] sm:$0xf]
        %v3156 = vld [vmem:[%s11 + $0x28] sm:$0xf]
        %v3157 = vld [vmem:[%s11 + $0x2c] sm:$0xf]
        %v3158 = vld [vmem:[%s11 + $0x30] sm:$0xf]
        %v3159 = vld [vmem:[%s11 + $0x34] sm:$0xf]
        %v3160 = vld [vmem:[%s11 + $0x38] sm:$0xf]
        %v3161 = vld [vmem:[%s11 + $0x3c] sm:$0xf]
        %v3162 = vld [vmem:[%s11 + $0x40] sm:$0xf]
        %v3163 = vld [vmem:[%s11 + $0x44] sm:$0xf]
        %v3164 = vld [vmem:[%s11 + $0x48] sm:$0xf]
        %v3165 = vld [vmem:[%s11 + $0x4c] sm:$0xf]
        %v3166 = vld [vmem:[%s11 + $0x50] sm:$0xf]
        %v3167 = vld [vmem:[%s11 + $0x54] sm:$0xf]
        %v3168 = vld [vmem:[%s11 + $0x58] sm:$0xf]
        %v3169 = vld [vmem:[%s11 + $0x5c] sm:$0xf]
        %v3170 = vld [vmem:[%s11 + $0x60] sm:$0xf]
        %v3171 = vld [vmem:[%s11 + $0x64] sm:$0xf]
        %v3172 = vld [vmem:[%s11 + $0x68] sm:$0xf]
        %v3173 = vld [vmem:[%s11 + $0x6c] sm:$0xf]
        %v3174 = vld [vmem:[%s11 + $0x70] sm:$0xf]
        %v3175 = vld [vmem:[%s11 + $0x74] sm:$0xf]
        %v3176 = vld [vmem:[%s11 + $0x78] sm:$0xf]
        %v3177 = vld [vmem:[%s11 + $0x7c] sm:$0xf]
        %v3178 = vld [vmem:[%s11 + $0x80] sm:$0xf]
        %v3179 = vld [vmem:[%s11 + $0x84] sm:$0xf]
        %v3180 = vld [vmem:[%s11 + $0x88] sm:$0xf]
        %v3181 = vld [vmem:[%s11 + $0x8c] sm:$0xf]
        %v3182 = vld [vmem:[%s11 + $0x90] sm:$0xf]
        %v3183 = vld [vmem:[%s11 + $0x94] sm:$0xf]
        %v3184 = vld [vmem:[%s11 + $0x98] sm:$0xf]
        %v3185 = vld [vmem:[%s11 + $0x9c] sm:$0xf]
        %v3186 = vld [vmem:[%s11 + $0xa0] sm:$0xf]
        %v3187 = vld [vmem:[%s11 + $0xa4] sm:$0xf]
        %v3188 = vld [vmem:[%s11 + $0xa8] sm:$0xf]
        %v3189 = vld [vmem:[%s11 + $0xac] sm:$0xf]
        %v3190 = vld [vmem:[%s11 + $0xb0] sm:$0xf]
        %v3191 = vld [vmem:[%s11 + $0xb4] sm:$0xf]
        %v3192 = vld [vmem:[%s11 + $0xb8] sm:$0xf]
        %v3193 = vld [vmem:[%s11 + $0xbc] sm:$0xf]
        %v3194 = vld [vmem:[%s11 + $0xc0] sm:$0xf]
        %v3195 = vld [vmem:[%s11 + $0xc4] sm:$0xf]
        %v3196 = vld [vmem:[%s11 + $0xc8] sm:$0xf]
        %v3197 = vld [vmem:[%s11 + $0xcc] sm:$0xf]
        %v3198 = vld [vmem:[%s11 + $0xd0] sm:$0xf]
        %v3199 = vld [vmem:[%s11 + $0xd4] sm:$0xf]
        %v3200 = vld [vmem:[%s11 + $0xd8] sm:$0xf]
        %v3201 = vld [vmem:[%s11 + $0xdc] sm:$0xf]
        %v3202 = vld [vmem:[%s11 + $0xe0] sm:$0xf]
        %v3203 = vld [vmem:[%s11 + $0xe4] sm:$0xf]
        %v3204 = vld [vmem:[%s11 + $0xe8] sm:$0xf]
        %v3205 = vld [vmem:[%s11 + $0xec] sm:$0xf]
        %v3206 = vld [vmem:[%s11 + $0xf0] sm:$0xf]
        %v3207 = vld [vmem:[%s11 + $0xf4] sm:$0xf]
        %v3208 = vld [vmem:[%s11 + $0xf8] sm:$0xf]
        %v3209 = vld [vmem:[%s11 + $0xfc] sm:$0xf]
        %v3210 = vpack.c.bf16 %v2934, %v2934
        %v3211 = vpack.c.bf16 %v2935, %v2935
        %v3212 = vpack.c.bf16 %v601, %v601
        %v3213 = vpack.c.bf16 %v602, %v602
        %v3214 = vpack.c.bf16 %v603, %v603
        %v3215 = vpack.c.bf16 %v604, %v604
        %v3218 = vunpack.c.l.b16 %v3210
        %v3219 = vunpack.c.l.b16 %v3211
        %v3220 = vpack.c.b16 %v3219, %v3218
        %v3230 = vunpack.c.l.b16 %v2954
        %v3231 = vunpack.c.l.b16 %v2955
        %v3232 = vunpack.c.l.b16 %v2956
        %v3233 = vunpack.c.l.b16 %v2957
        %v3234 = vunpack.c.l.b16 %v2958
        %v3235 = vunpack.c.l.b16 %v2959
        %v3236 = vunpack.c.l.b16 %v2960
        %v3237 = vunpack.c.l.b16 %v2961
        %v3238 = vpack.c.b16 %v3231, %v3230
        %v3239 = vpack.c.b16 %v3233, %v3232
        %v3240 = vpack.c.b16 %v3235, %v3234
        %v3241 = vpack.c.b16 %v3237, %v3236
        %3246 = vmatpush.bf16.xpose.msra.mxu0 0
        %3247 = vmatpush.bf16.xpose.msra.mxu0 0
        %3248 = vmatpush.bf16.xpose.msra.mxu0 0
        %3249 = vmatpush.bf16.xpose.msra.mxu0 0
        %3250 = vmatpush.bf16.xpose.msra.mxu0 %v3241
        %3251 = vmatpush.bf16.xpose.msra.mxu0 %v3240
        %3252 = vmatpush.bf16.xpose.msra.mxu0 %v3239
        %3253 = vmatpush.bf16.xpose.msra.mxu0 %v3238
        %3254 = vmatmul.bf16.gmra.mxu0 %v3220
        %v3255 = vpop.f32.mrf.mxu0
        %v3256 = vadd.f32 0.0, %v3255
        %v3257 = vpop.f32.mrf.mxu0
        %v3258 = vadd.f32 0.0, %v3257
        %3259 = vdwg.mxu0
        %v3268 = vunpack.c.l.b16 %v2962
        %v3269 = vunpack.c.l.b16 %v2963
        %v3270 = vunpack.c.l.b16 %v2964
        %v3271 = vunpack.c.l.b16 %v2965
        %v3272 = vunpack.c.l.b16 %v2966
        %v3273 = vunpack.c.l.b16 %v2967
        %v3274 = vunpack.c.l.b16 %v2968
        %v3275 = vunpack.c.l.b16 %v2969
        %v3276 = vpack.c.b16 %v3269, %v3268
        %v3277 = vpack.c.b16 %v3271, %v3270
        %v3278 = vpack.c.b16 %v3273, %v3272
        %v3279 = vpack.c.b16 %v3275, %v3274
        %3284 = vmatpush.bf16.xpose.msra.mxu0 0
        %3285 = vmatpush.bf16.xpose.msra.mxu0 0
        %3286 = vmatpush.bf16.xpose.msra.mxu0 0
        %3287 = vmatpush.bf16.xpose.msra.mxu0 0
        %3288 = vmatpush.bf16.xpose.msra.mxu0 %v3279
        %3289 = vmatpush.bf16.xpose.msra.mxu0 %v3278
        %3290 = vmatpush.bf16.xpose.msra.mxu0 %v3277
        %3291 = vmatpush.bf16.xpose.msra.mxu0 %v3276
        %3292 = vmatmul.bf16.gmra.mxu0 %v3220
        %v3293 = vpop.f32.mrf.mxu0
        %v3294 = vadd.f32 0.0, %v3293
        %v3295 = vpop.f32.mrf.mxu0
        %v3296 = vadd.f32 0.0, %v3295
        %3297 = vdwg.mxu0
        %v3306 = vunpack.c.l.b16 %v2970
        %v3307 = vunpack.c.l.b16 %v2971
        %v3308 = vunpack.c.l.b16 %v2972
        %v3309 = vunpack.c.l.b16 %v2973
        %v3310 = vunpack.c.l.b16 %v2974
        %v3311 = vunpack.c.l.b16 %v2975
        %v3312 = vunpack.c.l.b16 %v2976
        %v3313 = vunpack.c.l.b16 %v2977
        %v3314 = vpack.c.b16 %v3307, %v3306
        %v3315 = vpack.c.b16 %v3309, %v3308
        %v3316 = vpack.c.b16 %v3311, %v3310
        %v3317 = vpack.c.b16 %v3313, %v3312
        %3322 = vmatpush.bf16.xpose.msra.mxu0 0
        %3323 = vmatpush.bf16.xpose.msra.mxu0 0
        %3324 = vmatpush.bf16.xpose.msra.mxu0 0
        %3325 = vmatpush.bf16.xpose.msra.mxu0 0
        %3326 = vmatpush.bf16.xpose.msra.mxu0 %v3317
        %3327 = vmatpush.bf16.xpose.msra.mxu0 %v3316
        %3328 = vmatpush.bf16.xpose.msra.mxu0 %v3315
        %3329 = vmatpush.bf16.xpose.msra.mxu0 %v3314
        %3330 = vmatmul.bf16.gmra.mxu0 %v3220
        %v3331 = vpop.f32.mrf.mxu0
        %v3332 = vadd.f32 0.0, %v3331
        %v3333 = vpop.f32.mrf.mxu0
        %v3334 = vadd.f32 0.0, %v3333
        %3335 = vdwg.mxu0
        %v3344 = vunpack.c.l.b16 %v2978
        %v3345 = vunpack.c.l.b16 %v2979
        %v3346 = vunpack.c.l.b16 %v2980
        %v3347 = vunpack.c.l.b16 %v2981
        %v3348 = vunpack.c.l.b16 %v2982
        %v3349 = vunpack.c.l.b16 %v2983
        %v3350 = vunpack.c.l.b16 %v2984
        %v3351 = vunpack.c.l.b16 %v2985
        %v3352 = vpack.c.b16 %v3345, %v3344
        %v3353 = vpack.c.b16 %v3347, %v3346
        %v3354 = vpack.c.b16 %v3349, %v3348
        %v3355 = vpack.c.b16 %v3351, %v3350
        %3360 = vmatpush.bf16.xpose.msra.mxu0 0
        %3361 = vmatpush.bf16.xpose.msra.mxu0 0
        %3362 = vmatpush.bf16.xpose.msra.mxu0 0
        %3363 = vmatpush.bf16.xpose.msra.mxu0 0
        %3364 = vmatpush.bf16.xpose.msra.mxu0 %v3355
        %3365 = vmatpush.bf16.xpose.msra.mxu0 %v3354
        %3366 = vmatpush.bf16.xpose.msra.mxu0 %v3353
        %3367 = vmatpush.bf16.xpose.msra.mxu0 %v3352
        %3368 = vmatmul.bf16.gmra.mxu0 %v3220
        %v3369 = vpop.f32.mrf.mxu0
        %v3370 = vadd.f32 0.0, %v3369
        %v3371 = vpop.f32.mrf.mxu0
        %v3372 = vadd.f32 0.0, %v3371
        %3373 = vdwg.mxu0
        %v3382 = vunpack.c.l.b16 %v2986
        %v3383 = vunpack.c.l.b16 %v2987
        %v3384 = vunpack.c.l.b16 %v2988
        %v3385 = vunpack.c.l.b16 %v2989
        %v3386 = vunpack.c.l.b16 %v2990
        %v3387 = vunpack.c.l.b16 %v2991
        %v3388 = vunpack.c.l.b16 %v2992
        %v3389 = vunpack.c.l.b16 %v2993
        %v3390 = vpack.c.b16 %v3383, %v3382
        %v3391 = vpack.c.b16 %v3385, %v3384
        %v3392 = vpack.c.b16 %v3387, %v3386
        %v3393 = vpack.c.b16 %v3389, %v3388
        %3398 = vmatpush.bf16.xpose.msra.mxu0 0
        %3399 = vmatpush.bf16.xpose.msra.mxu0 0
        %3400 = vmatpush.bf16.xpose.msra.mxu0 0
        %3401 = vmatpush.bf16.xpose.msra.mxu0 0
        %3402 = vmatpush.bf16.xpose.msra.mxu0 %v3393
        %3403 = vmatpush.bf16.xpose.msra.mxu0 %v3392
        %3404 = vmatpush.bf16.xpose.msra.mxu0 %v3391
        %3405 = vmatpush.bf16.xpose.msra.mxu0 %v3390
        %3406 = vmatmul.bf16.gmra.mxu0 %v3220
        %v3407 = vpop.f32.mrf.mxu0
        %v3408 = vadd.f32 0.0, %v3407
        %v3409 = vpop.f32.mrf.mxu0
        %v3410 = vadd.f32 0.0, %v3409
        %3411 = vdwg.mxu0
        %v3420 = vunpack.c.l.b16 %v2994
        %v3421 = vunpack.c.l.b16 %v2995
        %v3422 = vunpack.c.l.b16 %v2996
        %v3423 = vunpack.c.l.b16 %v2997
        %v3424 = vunpack.c.l.b16 %v2998
        %v3425 = vunpack.c.l.b16 %v2999
        %v3426 = vunpack.c.l.b16 %v3000
        %v3427 = vunpack.c.l.b16 %v3001
        %v3428 = vpack.c.b16 %v3421, %v3420
        %v3429 = vpack.c.b16 %v3423, %v3422
        %v3430 = vpack.c.b16 %v3425, %v3424
        %v3431 = vpack.c.b16 %v3427, %v3426
        %3436 = vmatpush.bf16.xpose.msra.mxu0 0
        %3437 = vmatpush.bf16.xpose.msra.mxu0 0
        %3438 = vmatpush.bf16.xpose.msra.mxu0 0
        %3439 = vmatpush.bf16.xpose.msra.mxu0 0
        %3440 = vmatpush.bf16.xpose.msra.mxu0 %v3431
        %3441 = vmatpush.bf16.xpose.msra.mxu0 %v3430
        %3442 = vmatpush.bf16.xpose.msra.mxu0 %v3429
        %3443 = vmatpush.bf16.xpose.msra.mxu0 %v3428
        %3444 = vmatmul.bf16.gmra.mxu0 %v3220
        %v3445 = vpop.f32.mrf.mxu0
        %v3446 = vadd.f32 0.0, %v3445
        %v3447 = vpop.f32.mrf.mxu0
        %v3448 = vadd.f32 0.0, %v3447
        %3449 = vdwg.mxu0
        %v3458 = vunpack.c.l.b16 %v3002
        %v3459 = vunpack.c.l.b16 %v3003
        %v3460 = vunpack.c.l.b16 %v3004
        %v3461 = vunpack.c.l.b16 %v3005
        %v3462 = vunpack.c.l.b16 %v3006
        %v3463 = vunpack.c.l.b16 %v3007
        %v3464 = vunpack.c.l.b16 %v3008
        %v3465 = vunpack.c.l.b16 %v3009
        %v3466 = vpack.c.b16 %v3459, %v3458
        %v3467 = vpack.c.b16 %v3461, %v3460
        %v3468 = vpack.c.b16 %v3463, %v3462
        %v3469 = vpack.c.b16 %v3465, %v3464
        %3474 = vmatpush.bf16.xpose.msra.mxu0 0
        %3475 = vmatpush.bf16.xpose.msra.mxu0 0
        %3476 = vmatpush.bf16.xpose.msra.mxu0 0
        %3477 = vmatpush.bf16.xpose.msra.mxu0 0
        %3478 = vmatpush.bf16.xpose.msra.mxu0 %v3469
        %3479 = vmatpush.bf16.xpose.msra.mxu0 %v3468
        %3480 = vmatpush.bf16.xpose.msra.mxu0 %v3467
        %3481 = vmatpush.bf16.xpose.msra.mxu0 %v3466
        %3482 = vmatmul.bf16.gmra.mxu0 %v3220
        %v3483 = vpop.f32.mrf.mxu0
        %v3484 = vadd.f32 0.0, %v3483
        %v3485 = vpop.f32.mrf.mxu0
        %v3486 = vadd.f32 0.0, %v3485
        %3487 = vdwg.mxu0
        %v3496 = vunpack.c.l.b16 %v3010
        %v3497 = vunpack.c.l.b16 %v3011
        %v3498 = vunpack.c.l.b16 %v3012
        %v3499 = vunpack.c.l.b16 %v3013
        %v3500 = vunpack.c.l.b16 %v3014
        %v3501 = vunpack.c.l.b16 %v3015
        %v3502 = vunpack.c.l.b16 %v3016
        %v3503 = vunpack.c.l.b16 %v3017
        %v3504 = vpack.c.b16 %v3497, %v3496
        %v3505 = vpack.c.b16 %v3499, %v3498
        %v3506 = vpack.c.b16 %v3501, %v3500
        %v3507 = vpack.c.b16 %v3503, %v3502
        %3512 = vmatpush.bf16.xpose.msra.mxu0 0
        %3513 = vmatpush.bf16.xpose.msra.mxu0 0
        %3514 = vmatpush.bf16.xpose.msra.mxu0 0
        %3515 = vmatpush.bf16.xpose.msra.mxu0 0
        %3516 = vmatpush.bf16.xpose.msra.mxu0 %v3507
        %3517 = vmatpush.bf16.xpose.msra.mxu0 %v3506
        %3518 = vmatpush.bf16.xpose.msra.mxu0 %v3505
        %3519 = vmatpush.bf16.xpose.msra.mxu0 %v3504
        %3520 = vmatmul.bf16.gmra.mxu0 %v3220
        %v3521 = vpop.f32.mrf.mxu0
        %v3522 = vadd.f32 0.0, %v3521
        %v3523 = vpop.f32.mrf.mxu0
        %v3524 = vadd.f32 0.0, %v3523
        %3525 = vdwg.mxu0
        %v3530 = vunpack.c.l.b16 %v3212
        %v3531 = vunpack.c.l.b16 %v3213
        %v3532 = vunpack.c.l.b16 %v3214
        %v3533 = vunpack.c.l.b16 %v3215
        %v3534 = vpack.c.b16 %v3531, %v3530
        %v3535 = vpack.c.b16 %v3533, %v3532
        %v3546 = vunpack.c.l.b16 %v3018
        %v3547 = vunpack.c.l.b16 %v3019
        %v3548 = vunpack.c.l.b16 %v3020
        %v3549 = vunpack.c.l.b16 %v3021
        %v3550 = vunpack.c.l.b16 %v3022
        %v3551 = vunpack.c.l.b16 %v3023
        %v3552 = vunpack.c.l.b16 %v3024
        %v3553 = vunpack.c.l.b16 %v3025
        %v3554 = vpack.c.b16 %v3547, %v3546
        %v3555 = vpack.c.b16 %v3549, %v3548
        %v3556 = vpack.c.b16 %v3551, %v3550
        %v3557 = vpack.c.b16 %v3553, %v3552
        %3562 = vmatpush.bf16.xpose.msra.mxu0 0
        %3563 = vmatpush.bf16.xpose.msra.mxu0 0
        %3564 = vmatpush.bf16.xpose.msra.mxu0 0
        %3565 = vmatpush.bf16.xpose.msra.mxu0 0
        %3566 = vmatpush.bf16.xpose.msra.mxu0 %v3557
        %3567 = vmatpush.bf16.xpose.msra.mxu0 %v3556
        %3568 = vmatpush.bf16.xpose.msra.mxu0 %v3555
        %3569 = vmatpush.bf16.xpose.msra.mxu0 %v3554
        %3570 = vmatmul.bf16.gmra.mxu0 %v3534
        %v3571 = vpop.f32.mrf.mxu0
        %v3572 = vadd.f32 0.0, %v3571
        %v3573 = vpop.f32.mrf.mxu0
        %v3574 = vadd.f32 0.0, %v3573
        %3575 = vmatmul.bf16.gmra.mxu0 %v3535
        %v3576 = vpop.f32.mrf.mxu0
        %v3577 = vadd.f32 0.0, %v3576
        %v3578 = vpop.f32.mrf.mxu0
        %v3579 = vadd.f32 0.0, %v3578
        %3580 = vdwg.mxu0
        %v3589 = vunpack.c.l.b16 %v3026
        %v3590 = vunpack.c.l.b16 %v3027
        %v3591 = vunpack.c.l.b16 %v3028
        %v3592 = vunpack.c.l.b16 %v3029
        %v3593 = vunpack.c.l.b16 %v3030
        %v3594 = vunpack.c.l.b16 %v3031
        %v3595 = vunpack.c.l.b16 %v3032
        %v3596 = vunpack.c.l.b16 %v3033
        %v3597 = vpack.c.b16 %v3590, %v3589
        %v3598 = vpack.c.b16 %v3592, %v3591
        %v3599 = vpack.c.b16 %v3594, %v3593
        %v3600 = vpack.c.b16 %v3596, %v3595
        %3605 = vmatpush.bf16.xpose.msra.mxu0 0
        %3606 = vmatpush.bf16.xpose.msra.mxu0 0
        %3607 = vmatpush.bf16.xpose.msra.mxu0 0
        %3608 = vmatpush.bf16.xpose.msra.mxu0 0
        %3609 = vmatpush.bf16.xpose.msra.mxu0 %v3600
        %3610 = vmatpush.bf16.xpose.msra.mxu0 %v3599
        %3611 = vmatpush.bf16.xpose.msra.mxu0 %v3598
        %3612 = vmatpush.bf16.xpose.msra.mxu0 %v3597
        %3613 = vmatmul.bf16.gmra.mxu0 %v3534
        %v3614 = vpop.f32.mrf.mxu0
        %v3615 = vadd.f32 0.0, %v3614
        %v3616 = vpop.f32.mrf.mxu0
        %v3617 = vadd.f32 0.0, %v3616
        %3618 = vmatmul.bf16.gmra.mxu0 %v3535
        %v3619 = vpop.f32.mrf.mxu0
        %v3620 = vadd.f32 0.0, %v3619
        %v3621 = vpop.f32.mrf.mxu0
        %v3622 = vadd.f32 0.0, %v3621
        %3623 = vdwg.mxu0
        %v3632 = vunpack.c.l.b16 %v3034
        %v3633 = vunpack.c.l.b16 %v3035
        %v3634 = vunpack.c.l.b16 %v3036
        %v3635 = vunpack.c.l.b16 %v3037
        %v3636 = vunpack.c.l.b16 %v3038
        %v3637 = vunpack.c.l.b16 %v3039
        %v3638 = vunpack.c.l.b16 %v3040
        %v3639 = vunpack.c.l.b16 %v3041
        %v3640 = vpack.c.b16 %v3633, %v3632
        %v3641 = vpack.c.b16 %v3635, %v3634
        %v3642 = vpack.c.b16 %v3637, %v3636
        %v3643 = vpack.c.b16 %v3639, %v3638
        %3648 = vmatpush.bf16.xpose.msra.mxu0 0
        %3649 = vmatpush.bf16.xpose.msra.mxu0 0
        %3650 = vmatpush.bf16.xpose.msra.mxu0 0
        %3651 = vmatpush.bf16.xpose.msra.mxu0 0
        %3652 = vmatpush.bf16.xpose.msra.mxu0 %v3643
        %3653 = vmatpush.bf16.xpose.msra.mxu0 %v3642
        %3654 = vmatpush.bf16.xpose.msra.mxu0 %v3641
        %3655 = vmatpush.bf16.xpose.msra.mxu0 %v3640
        %3656 = vmatmul.bf16.gmra.mxu0 %v3534
        %v3657 = vpop.f32.mrf.mxu0
        %v3658 = vadd.f32 0.0, %v3657
        %v3659 = vpop.f32.mrf.mxu0
        %v3660 = vadd.f32 0.0, %v3659
        %3661 = vmatmul.bf16.gmra.mxu0 %v3535
        %v3662 = vpop.f32.mrf.mxu0
        %v3663 = vadd.f32 0.0, %v3662
        %v3664 = vpop.f32.mrf.mxu0
        %v3665 = vadd.f32 0.0, %v3664
        %3666 = vdwg.mxu0
        %v3675 = vunpack.c.l.b16 %v3042
        %v3676 = vunpack.c.l.b16 %v3043
        %v3677 = vunpack.c.l.b16 %v3044
        %v3678 = vunpack.c.l.b16 %v3045
        %v3679 = vunpack.c.l.b16 %v3046
        %v3680 = vunpack.c.l.b16 %v3047
        %v3681 = vunpack.c.l.b16 %v3048
        %v3682 = vunpack.c.l.b16 %v3049
        %v3683 = vpack.c.b16 %v3676, %v3675
        %v3684 = vpack.c.b16 %v3678, %v3677
        %v3685 = vpack.c.b16 %v3680, %v3679
        %v3686 = vpack.c.b16 %v3682, %v3681
        %3691 = vmatpush.bf16.xpose.msra.mxu0 0
        %3692 = vmatpush.bf16.xpose.msra.mxu0 0
        %3693 = vmatpush.bf16.xpose.msra.mxu0 0
        %3694 = vmatpush.bf16.xpose.msra.mxu0 0
        %3695 = vmatpush.bf16.xpose.msra.mxu0 %v3686
        %3696 = vmatpush.bf16.xpose.msra.mxu0 %v3685
        %3697 = vmatpush.bf16.xpose.msra.mxu0 %v3684
        %3698 = vmatpush.bf16.xpose.msra.mxu0 %v3683
        %3699 = vmatmul.bf16.gmra.mxu0 %v3534
        %v3700 = vpop.f32.mrf.mxu0
        %v3701 = vadd.f32 0.0, %v3700
        %v3702 = vpop.f32.mrf.mxu0
        %v3703 = vadd.f32 0.0, %v3702
        %3704 = vmatmul.bf16.gmra.mxu0 %v3535
        %v3705 = vpop.f32.mrf.mxu0
        %v3706 = vadd.f32 0.0, %v3705
        %v3707 = vpop.f32.mrf.mxu0
        %v3708 = vadd.f32 0.0, %v3707
        %3709 = vdwg.mxu0
        %v3718 = vunpack.c.l.b16 %v3050
        %v3719 = vunpack.c.l.b16 %v3051
        %v3720 = vunpack.c.l.b16 %v3052
        %v3721 = vunpack.c.l.b16 %v3053
        %v3722 = vunpack.c.l.b16 %v3054
        %v3723 = vunpack.c.l.b16 %v3055
        %v3724 = vunpack.c.l.b16 %v3056
        %v3725 = vunpack.c.l.b16 %v3057
        %v3726 = vpack.c.b16 %v3719, %v3718
        %v3727 = vpack.c.b16 %v3721, %v3720
        %v3728 = vpack.c.b16 %v3723, %v3722
        %v3729 = vpack.c.b16 %v3725, %v3724
        %3734 = vmatpush.bf16.xpose.msra.mxu0 0
        %3735 = vmatpush.bf16.xpose.msra.mxu0 0
        %3736 = vmatpush.bf16.xpose.msra.mxu0 0
        %3737 = vmatpush.bf16.xpose.msra.mxu0 0
        %3738 = vmatpush.bf16.xpose.msra.mxu0 %v3729
        %3739 = vmatpush.bf16.xpose.msra.mxu0 %v3728
        %3740 = vmatpush.bf16.xpose.msra.mxu0 %v3727
        %3741 = vmatpush.bf16.xpose.msra.mxu0 %v3726
        %3742 = vmatmul.bf16.gmra.mxu0 %v3534
        %v3743 = vpop.f32.mrf.mxu0
        %v3744 = vadd.f32 0.0, %v3743
        %v3745 = vpop.f32.mrf.mxu0
        %v3746 = vadd.f32 0.0, %v3745
        %3747 = vmatmul.bf16.gmra.mxu0 %v3535
        %v3748 = vpop.f32.mrf.mxu0
        %v3749 = vadd.f32 0.0, %v3748
        %v3750 = vpop.f32.mrf.mxu0
        %v3751 = vadd.f32 0.0, %v3750
        %3752 = vdwg.mxu0
        %v3761 = vunpack.c.l.b16 %v3058
        %v3762 = vunpack.c.l.b16 %v3059
        %v3763 = vunpack.c.l.b16 %v3060
        %v3764 = vunpack.c.l.b16 %v3061
        %v3765 = vunpack.c.l.b16 %v3062
        %v3766 = vunpack.c.l.b16 %v3063
        %v3767 = vunpack.c.l.b16 %v3064
        %v3768 = vunpack.c.l.b16 %v3065
        %v3769 = vpack.c.b16 %v3762, %v3761
        %v3770 = vpack.c.b16 %v3764, %v3763
        %v3771 = vpack.c.b16 %v3766, %v3765
        %v3772 = vpack.c.b16 %v3768, %v3767
        %3777 = vmatpush.bf16.xpose.msra.mxu0 0
        %3778 = vmatpush.bf16.xpose.msra.mxu0 0
        %3779 = vmatpush.bf16.xpose.msra.mxu0 0
        %3780 = vmatpush.bf16.xpose.msra.mxu0 0
        %3781 = vmatpush.bf16.xpose.msra.mxu0 %v3772
        %3782 = vmatpush.bf16.xpose.msra.mxu0 %v3771
        %3783 = vmatpush.bf16.xpose.msra.mxu0 %v3770
        %3784 = vmatpush.bf16.xpose.msra.mxu0 %v3769
        %3785 = vmatmul.bf16.gmra.mxu0 %v3534
        %v3786 = vpop.f32.mrf.mxu0
        %v3787 = vadd.f32 0.0, %v3786
        %v3788 = vpop.f32.mrf.mxu0
        %v3789 = vadd.f32 0.0, %v3788
        %3790 = vmatmul.bf16.gmra.mxu0 %v3535
        %v3791 = vpop.f32.mrf.mxu0
        %v3792 = vadd.f32 0.0, %v3791
        %v3793 = vpop.f32.mrf.mxu0
        %v3794 = vadd.f32 0.0, %v3793
        %3795 = vdwg.mxu0
        %v3804 = vunpack.c.l.b16 %v3066
        %v3805 = vunpack.c.l.b16 %v3067
        %v3806 = vunpack.c.l.b16 %v3068
        %v3807 = vunpack.c.l.b16 %v3069
        %v3808 = vunpack.c.l.b16 %v3070
        %v3809 = vunpack.c.l.b16 %v3071
        %v3810 = vunpack.c.l.b16 %v3072
        %v3811 = vunpack.c.l.b16 %v3073
        %v3812 = vpack.c.b16 %v3805, %v3804
        %v3813 = vpack.c.b16 %v3807, %v3806
        %v3814 = vpack.c.b16 %v3809, %v3808
        %v3815 = vpack.c.b16 %v3811, %v3810
        %3820 = vmatpush.bf16.xpose.msra.mxu0 0
        %3821 = vmatpush.bf16.xpose.msra.mxu0 0
        %3822 = vmatpush.bf16.xpose.msra.mxu0 0
        %3823 = vmatpush.bf16.xpose.msra.mxu0 0
        %3824 = vmatpush.bf16.xpose.msra.mxu0 %v3815
        %3825 = vmatpush.bf16.xpose.msra.mxu0 %v3814
        %3826 = vmatpush.bf16.xpose.msra.mxu0 %v3813
        %3827 = vmatpush.bf16.xpose.msra.mxu0 %v3812
        %3828 = vmatmul.bf16.gmra.mxu0 %v3534
        %v3829 = vpop.f32.mrf.mxu0
        %v3830 = vadd.f32 0.0, %v3829
        %v3831 = vpop.f32.mrf.mxu0
        %v3832 = vadd.f32 0.0, %v3831
        %3833 = vmatmul.bf16.gmra.mxu0 %v3535
        %v3834 = vpop.f32.mrf.mxu0
        %v3835 = vadd.f32 0.0, %v3834
        %v3836 = vpop.f32.mrf.mxu0
        %v3837 = vadd.f32 0.0, %v3836
        %3838 = vdwg.mxu0
        %v3847 = vunpack.c.l.b16 %v3074
        %v3848 = vunpack.c.l.b16 %v3075
        %v3849 = vunpack.c.l.b16 %v3076
        %v3850 = vunpack.c.l.b16 %v3077
        %v3851 = vunpack.c.l.b16 %v3078
        %v3852 = vunpack.c.l.b16 %v3079
        %v3853 = vunpack.c.l.b16 %v3080
        %v3854 = vunpack.c.l.b16 %v3081
        %v3855 = vpack.c.b16 %v3848, %v3847
        %v3856 = vpack.c.b16 %v3850, %v3849
        %v3857 = vpack.c.b16 %v3852, %v3851
        %v3858 = vpack.c.b16 %v3854, %v3853
        %3863 = vmatpush.bf16.xpose.msra.mxu0 0
        %3864 = vmatpush.bf16.xpose.msra.mxu0 0
        %3865 = vmatpush.bf16.xpose.msra.mxu0 0
        %3866 = vmatpush.bf16.xpose.msra.mxu0 0
        %3867 = vmatpush.bf16.xpose.msra.mxu0 %v3858
        %3868 = vmatpush.bf16.xpose.msra.mxu0 %v3857
        %3869 = vmatpush.bf16.xpose.msra.mxu0 %v3856
        %3870 = vmatpush.bf16.xpose.msra.mxu0 %v3855
        %3871 = vmatmul.bf16.gmra.mxu0 %v3534
        %v3872 = vpop.f32.mrf.mxu0
        %v3873 = vadd.f32 0.0, %v3872
        %v3874 = vpop.f32.mrf.mxu0
        %v3875 = vadd.f32 0.0, %v3874
        %3876 = vmatmul.bf16.gmra.mxu0 %v3535
        %v3877 = vpop.f32.mrf.mxu0
        %v3878 = vadd.f32 0.0, %v3877
        %v3879 = vpop.f32.mrf.mxu0
        %v3880 = vadd.f32 0.0, %v3879
        %3881 = vdwg.mxu0
        %v3890 = vunpack.c.l.b16 %v3082
        %v3891 = vunpack.c.l.b16 %v3083
        %v3892 = vunpack.c.l.b16 %v3084
        %v3893 = vunpack.c.l.b16 %v3085
        %v3894 = vunpack.c.l.b16 %v3086
        %v3895 = vunpack.c.l.b16 %v3087
        %v3896 = vunpack.c.l.b16 %v3088
        %v3897 = vunpack.c.l.b16 %v3089
        %v3898 = vpack.c.b16 %v3891, %v3890
        %v3899 = vpack.c.b16 %v3893, %v3892
        %v3900 = vpack.c.b16 %v3895, %v3894
        %v3901 = vpack.c.b16 %v3897, %v3896
        %3906 = vmatpush.bf16.xpose.msra.mxu0 0
        %3907 = vmatpush.bf16.xpose.msra.mxu0 0
        %3908 = vmatpush.bf16.xpose.msra.mxu0 0
        %3909 = vmatpush.bf16.xpose.msra.mxu0 0
        %3910 = vmatpush.bf16.xpose.msra.mxu0 %v3901
        %3911 = vmatpush.bf16.xpose.msra.mxu0 %v3900
        %3912 = vmatpush.bf16.xpose.msra.mxu0 %v3899
        %3913 = vmatpush.bf16.xpose.msra.mxu0 %v3898
        %3914 = vmatmul.bf16.gmra.mxu0 %v3534
        %v3915 = vpop.f32.mrf.mxu0
        %v3916 = vadd.f32 0.0, %v3915
        %v3917 = vpop.f32.mrf.mxu0
        %v3918 = vadd.f32 0.0, %v3917
        %3919 = vmatmul.bf16.gmra.mxu0 %v3535
        %v3920 = vpop.f32.mrf.mxu0
        %v3921 = vadd.f32 0.0, %v3920
        %v3922 = vpop.f32.mrf.mxu0
        %v3923 = vadd.f32 0.0, %v3922
        %3924 = vdwg.mxu0
        %v3933 = vunpack.c.l.b16 %v3090
        %v3934 = vunpack.c.l.b16 %v3091
        %v3935 = vunpack.c.l.b16 %v3092
        %v3936 = vunpack.c.l.b16 %v3093
        %v3937 = vunpack.c.l.b16 %v3094
        %v3938 = vunpack.c.l.b16 %v3095
        %v3939 = vunpack.c.l.b16 %v3096
        %v3940 = vunpack.c.l.b16 %v3097
        %v3941 = vpack.c.b16 %v3934, %v3933
        %v3942 = vpack.c.b16 %v3936, %v3935
        %v3943 = vpack.c.b16 %v3938, %v3937
        %v3944 = vpack.c.b16 %v3940, %v3939
        %3949 = vmatpush.bf16.xpose.msra.mxu0 0
        %3950 = vmatpush.bf16.xpose.msra.mxu0 0
        %3951 = vmatpush.bf16.xpose.msra.mxu0 0
        %3952 = vmatpush.bf16.xpose.msra.mxu0 0
        %3953 = vmatpush.bf16.xpose.msra.mxu0 %v3944
        %3954 = vmatpush.bf16.xpose.msra.mxu0 %v3943
        %3955 = vmatpush.bf16.xpose.msra.mxu0 %v3942
        %3956 = vmatpush.bf16.xpose.msra.mxu0 %v3941
        %3957 = vmatmul.bf16.gmra.mxu0 %v3534
        %v3958 = vpop.f32.mrf.mxu0
        %v3959 = vadd.f32 0.0, %v3958
        %v3960 = vpop.f32.mrf.mxu0
        %v3961 = vadd.f32 0.0, %v3960
        %3962 = vmatmul.bf16.gmra.mxu0 %v3535
        %v3963 = vpop.f32.mrf.mxu0
        %v3964 = vadd.f32 0.0, %v3963
        %v3965 = vpop.f32.mrf.mxu0
        %v3966 = vadd.f32 0.0, %v3965
        %3967 = vdwg.mxu0
        %v3976 = vunpack.c.l.b16 %v3098
        %v3977 = vunpack.c.l.b16 %v3099
        %v3978 = vunpack.c.l.b16 %v3100
        %v3979 = vunpack.c.l.b16 %v3101
        %v3980 = vunpack.c.l.b16 %v3102
        %v3981 = vunpack.c.l.b16 %v3103
        %v3982 = vunpack.c.l.b16 %v3104
        %v3983 = vunpack.c.l.b16 %v3105
        %v3984 = vpack.c.b16 %v3977, %v3976
        %v3985 = vpack.c.b16 %v3979, %v3978
        %v3986 = vpack.c.b16 %v3981, %v3980
        %v3987 = vpack.c.b16 %v3983, %v3982
        %3992 = vmatpush.bf16.xpose.msra.mxu0 0
        %3993 = vmatpush.bf16.xpose.msra.mxu0 0
        %3994 = vmatpush.bf16.xpose.msra.mxu0 0
        %3995 = vmatpush.bf16.xpose.msra.mxu0 0
        %3996 = vmatpush.bf16.xpose.msra.mxu0 %v3987
        %3997 = vmatpush.bf16.xpose.msra.mxu0 %v3986
        %3998 = vmatpush.bf16.xpose.msra.mxu0 %v3985
        %3999 = vmatpush.bf16.xpose.msra.mxu0 %v3984
        %4000 = vmatmul.bf16.gmra.mxu0 %v3534
        %v4001 = vpop.f32.mrf.mxu0
        %v4002 = vadd.f32 0.0, %v4001
        %v4003 = vpop.f32.mrf.mxu0
        %v4004 = vadd.f32 0.0, %v4003
        %4005 = vmatmul.bf16.gmra.mxu0 %v3535
        %v4006 = vpop.f32.mrf.mxu0
        %v4007 = vadd.f32 0.0, %v4006
        %v4008 = vpop.f32.mrf.mxu0
        %v4009 = vadd.f32 0.0, %v4008
        %4010 = vdwg.mxu0
        %v4019 = vunpack.c.l.b16 %v3106
        %v4020 = vunpack.c.l.b16 %v3107
        %v4021 = vunpack.c.l.b16 %v3108
        %v4022 = vunpack.c.l.b16 %v3109
        %v4023 = vunpack.c.l.b16 %v3110
        %v4024 = vunpack.c.l.b16 %v3111
        %v4025 = vunpack.c.l.b16 %v3112
        %v4026 = vunpack.c.l.b16 %v3113
        %v4027 = vpack.c.b16 %v4020, %v4019
        %v4028 = vpack.c.b16 %v4022, %v4021
        %v4029 = vpack.c.b16 %v4024, %v4023
        %v4030 = vpack.c.b16 %v4026, %v4025
        %4035 = vmatpush.bf16.xpose.msra.mxu0 0
        %4036 = vmatpush.bf16.xpose.msra.mxu0 0
        %4037 = vmatpush.bf16.xpose.msra.mxu0 0
        %4038 = vmatpush.bf16.xpose.msra.mxu0 0
        %4039 = vmatpush.bf16.xpose.msra.mxu0 %v4030
        %4040 = vmatpush.bf16.xpose.msra.mxu0 %v4029
        %4041 = vmatpush.bf16.xpose.msra.mxu0 %v4028
        %4042 = vmatpush.bf16.xpose.msra.mxu0 %v4027
        %4043 = vmatmul.bf16.gmra.mxu0 %v3534
        %v4044 = vpop.f32.mrf.mxu0
        %v4045 = vadd.f32 0.0, %v4044
        %v4046 = vpop.f32.mrf.mxu0
        %v4047 = vadd.f32 0.0, %v4046
        %4048 = vmatmul.bf16.gmra.mxu0 %v3535
        %v4049 = vpop.f32.mrf.mxu0
        %v4050 = vadd.f32 0.0, %v4049
        %v4051 = vpop.f32.mrf.mxu0
        %v4052 = vadd.f32 0.0, %v4051
        %4053 = vdwg.mxu0
        %v4062 = vunpack.c.l.b16 %v3114
        %v4063 = vunpack.c.l.b16 %v3115
        %v4064 = vunpack.c.l.b16 %v3116
        %v4065 = vunpack.c.l.b16 %v3117
        %v4066 = vunpack.c.l.b16 %v3118
        %v4067 = vunpack.c.l.b16 %v3119
        %v4068 = vunpack.c.l.b16 %v3120
        %v4069 = vunpack.c.l.b16 %v3121
        %v4070 = vpack.c.b16 %v4063, %v4062
        %v4071 = vpack.c.b16 %v4065, %v4064
        %v4072 = vpack.c.b16 %v4067, %v4066
        %v4073 = vpack.c.b16 %v4069, %v4068
        %4078 = vmatpush.bf16.xpose.msra.mxu0 0
        %4079 = vmatpush.bf16.xpose.msra.mxu0 0
        %4080 = vmatpush.bf16.xpose.msra.mxu0 0
        %4081 = vmatpush.bf16.xpose.msra.mxu0 0
        %4082 = vmatpush.bf16.xpose.msra.mxu0 %v4073
        %4083 = vmatpush.bf16.xpose.msra.mxu0 %v4072
        %4084 = vmatpush.bf16.xpose.msra.mxu0 %v4071
        %4085 = vmatpush.bf16.xpose.msra.mxu0 %v4070
        %4086 = vmatmul.bf16.gmra.mxu0 %v3534
        %v4087 = vpop.f32.mrf.mxu0
        %v4088 = vadd.f32 0.0, %v4087
        %v4089 = vpop.f32.mrf.mxu0
        %v4090 = vadd.f32 0.0, %v4089
        %4091 = vmatmul.bf16.gmra.mxu0 %v3535
        %v4092 = vpop.f32.mrf.mxu0
        %v4093 = vadd.f32 0.0, %v4092
        %v4094 = vpop.f32.mrf.mxu0
        %v4095 = vadd.f32 0.0, %v4094
        %4096 = vdwg.mxu0
        %v4105 = vunpack.c.l.b16 %v3122
        %v4106 = vunpack.c.l.b16 %v3123
        %v4107 = vunpack.c.l.b16 %v3124
        %v4108 = vunpack.c.l.b16 %v3125
        %v4109 = vunpack.c.l.b16 %v3126
        %v4110 = vunpack.c.l.b16 %v3127
        %v4111 = vunpack.c.l.b16 %v3128
        %v4112 = vunpack.c.l.b16 %v3129
        %v4113 = vpack.c.b16 %v4106, %v4105
        %v4114 = vpack.c.b16 %v4108, %v4107
        %v4115 = vpack.c.b16 %v4110, %v4109
        %v4116 = vpack.c.b16 %v4112, %v4111
        %4121 = vmatpush.bf16.xpose.msra.mxu0 0
        %4122 = vmatpush.bf16.xpose.msra.mxu0 0
        %4123 = vmatpush.bf16.xpose.msra.mxu0 0
        %4124 = vmatpush.bf16.xpose.msra.mxu0 0
        %4125 = vmatpush.bf16.xpose.msra.mxu0 %v4116
        %4126 = vmatpush.bf16.xpose.msra.mxu0 %v4115
        %4127 = vmatpush.bf16.xpose.msra.mxu0 %v4114
        %4128 = vmatpush.bf16.xpose.msra.mxu0 %v4113
        %4129 = vmatmul.bf16.gmra.mxu0 %v3534
        %v4130 = vpop.f32.mrf.mxu0
        %v4131 = vadd.f32 0.0, %v4130
        %v4132 = vpop.f32.mrf.mxu0
        %v4133 = vadd.f32 0.0, %v4132
        %4134 = vmatmul.bf16.gmra.mxu0 %v3535
        %v4135 = vpop.f32.mrf.mxu0
        %v4136 = vadd.f32 0.0, %v4135
        %v4137 = vpop.f32.mrf.mxu0
        %v4138 = vadd.f32 0.0, %v4137
        %4139 = vdwg.mxu0
        %v4148 = vunpack.c.l.b16 %v3130
        %v4149 = vunpack.c.l.b16 %v3131
        %v4150 = vunpack.c.l.b16 %v3132
        %v4151 = vunpack.c.l.b16 %v3133
        %v4152 = vunpack.c.l.b16 %v3134
        %v4153 = vunpack.c.l.b16 %v3135
        %v4154 = vunpack.c.l.b16 %v3136
        %v4155 = vunpack.c.l.b16 %v3137
        %v4156 = vpack.c.b16 %v4149, %v4148
        %v4157 = vpack.c.b16 %v4151, %v4150
        %v4158 = vpack.c.b16 %v4153, %v4152
        %v4159 = vpack.c.b16 %v4155, %v4154
        %4164 = vmatpush.bf16.xpose.msra.mxu0 0
        %4165 = vmatpush.bf16.xpose.msra.mxu0 0
        %4166 = vmatpush.bf16.xpose.msra.mxu0 0
        %4167 = vmatpush.bf16.xpose.msra.mxu0 0
        %4168 = vmatpush.bf16.xpose.msra.mxu0 %v4159
        %4169 = vmatpush.bf16.xpose.msra.mxu0 %v4158
        %4170 = vmatpush.bf16.xpose.msra.mxu0 %v4157
        %4171 = vmatpush.bf16.xpose.msra.mxu0 %v4156
        %4172 = vmatmul.bf16.gmra.mxu0 %v3534
        %v4173 = vpop.f32.mrf.mxu0
        %v4174 = vadd.f32 0.0, %v4173
        %v4175 = vpop.f32.mrf.mxu0
        %v4176 = vadd.f32 0.0, %v4175
        %4177 = vmatmul.bf16.gmra.mxu0 %v3535
        %v4178 = vpop.f32.mrf.mxu0
        %v4179 = vadd.f32 0.0, %v4178
        %v4180 = vpop.f32.mrf.mxu0
        %v4181 = vadd.f32 0.0, %v4180
        %4182 = vdwg.mxu0
        %v4191 = vunpack.c.l.b16 %v3138
        %v4192 = vunpack.c.l.b16 %v3139
        %v4193 = vunpack.c.l.b16 %v3140
        %v4194 = vunpack.c.l.b16 %v3141
        %v4195 = vunpack.c.l.b16 %v3142
        %v4196 = vunpack.c.l.b16 %v3143
        %v4197 = vunpack.c.l.b16 %v3144
        %v4198 = vunpack.c.l.b16 %v3145
        %v4199 = vpack.c.b16 %v4192, %v4191
        %v4200 = vpack.c.b16 %v4194, %v4193
        %v4201 = vpack.c.b16 %v4196, %v4195
        %v4202 = vpack.c.b16 %v4198, %v4197
        %4207 = vmatpush.bf16.xpose.msra.mxu0 0
        %4208 = vmatpush.bf16.xpose.msra.mxu0 0
        %4209 = vmatpush.bf16.xpose.msra.mxu0 0
        %4210 = vmatpush.bf16.xpose.msra.mxu0 0
        %4211 = vmatpush.bf16.xpose.msra.mxu0 %v4202
        %4212 = vmatpush.bf16.xpose.msra.mxu0 %v4201
        %4213 = vmatpush.bf16.xpose.msra.mxu0 %v4200
        %4214 = vmatpush.bf16.xpose.msra.mxu0 %v4199
        %4215 = vmatmul.bf16.gmra.mxu0 %v3534
        %v4216 = vpop.f32.mrf.mxu0
        %v4217 = vadd.f32 0.0, %v4216
        %v4218 = vpop.f32.mrf.mxu0
        %v4219 = vadd.f32 0.0, %v4218
        %4220 = vmatmul.bf16.gmra.mxu0 %v3535
        %v4221 = vpop.f32.mrf.mxu0
        %v4222 = vadd.f32 0.0, %v4221
        %v4223 = vpop.f32.mrf.mxu0
        %v4224 = vadd.f32 0.0, %v4223
        %4225 = vdwg.mxu0
        %v4226 = vpack.c.bf16 %v3256, %v3256
        %v4227 = vpack.c.bf16 %v3258, %v3258
        %v4228 = vpack.c.bf16 %v3294, %v3294
        %v4229 = vpack.c.bf16 %v3296, %v3296
        %v4230 = vpack.c.bf16 %v3332, %v3332
        %v4231 = vpack.c.bf16 %v3334, %v3334
        %v4232 = vpack.c.bf16 %v3370, %v3370
        %v4233 = vpack.c.bf16 %v3372, %v3372
        %v4234 = vpack.c.bf16 %v3408, %v3408
        %v4235 = vpack.c.bf16 %v3410, %v3410
        %v4236 = vpack.c.bf16 %v3446, %v3446
        %v4237 = vpack.c.bf16 %v3448, %v3448
        %v4238 = vpack.c.bf16 %v3484, %v3484
        %v4239 = vpack.c.bf16 %v3486, %v3486
        %v4240 = vpack.c.bf16 %v3522, %v3522
        %v4241 = vpack.c.bf16 %v3524, %v3524
        %v4242 = vpack.c.bf16 %v3572, %v3572
        %v4243 = vpack.c.bf16 %v3574, %v3574
        %v4244 = vpack.c.bf16 %v3577, %v3577
        %v4245 = vpack.c.bf16 %v3579, %v3579
        %v4246 = vpack.c.bf16 %v3615, %v3615
        %v4247 = vpack.c.bf16 %v3617, %v3617
        %v4248 = vpack.c.bf16 %v3620, %v3620
        %v4249 = vpack.c.bf16 %v3622, %v3622
        %v4250 = vpack.c.bf16 %v3658, %v3658
        %v4251 = vpack.c.bf16 %v3660, %v3660
        %v4252 = vpack.c.bf16 %v3663, %v3663
        %v4253 = vpack.c.bf16 %v3665, %v3665
        %v4254 = vpack.c.bf16 %v3701, %v3701
        %v4255 = vpack.c.bf16 %v3703, %v3703
        %v4256 = vpack.c.bf16 %v3706, %v3706
        %v4257 = vpack.c.bf16 %v3708, %v3708
        %v4258 = vpack.c.bf16 %v3744, %v3744
        %v4259 = vpack.c.bf16 %v3746, %v3746
        %v4260 = vpack.c.bf16 %v3749, %v3749
        %v4261 = vpack.c.bf16 %v3751, %v3751
        %v4262 = vpack.c.bf16 %v3787, %v3787
        %v4263 = vpack.c.bf16 %v3789, %v3789
        %v4264 = vpack.c.bf16 %v3792, %v3792
        %v4265 = vpack.c.bf16 %v3794, %v3794
        %v4266 = vpack.c.bf16 %v3830, %v3830
        %v4267 = vpack.c.bf16 %v3832, %v3832
        %v4268 = vpack.c.bf16 %v3835, %v3835
        %v4269 = vpack.c.bf16 %v3837, %v3837
        %v4270 = vpack.c.bf16 %v3873, %v3873
        %v4271 = vpack.c.bf16 %v3875, %v3875
        %v4272 = vpack.c.bf16 %v3878, %v3878
        %v4273 = vpack.c.bf16 %v3880, %v3880
        %v4276 = vunpack.c.l.b16 %v4226
        %v4277 = vunpack.c.l.b16 %v4227
        %v4278 = vpack.c.b16 %v4277, %v4276
        %v4283 = vunpack.c.l.b16 %v4242
        %v4284 = vunpack.c.l.b16 %v4243
        %v4285 = vunpack.c.l.b16 %v4244
        %v4286 = vunpack.c.l.b16 %v4245
        %v4287 = vpack.c.b16 %v4284, %v4283
        %v4288 = vpack.c.b16 %v4286, %v4285
        %v4290 = vsel %vm1825, %v4278, 0
        %v4293 = vsel %vm1825, %v4287, 0
        %v4296 = vsel %vm1825, %v4288, 0
        %4298 = vmatpush.bf16.xpose.msra.mxu0 0
        %4299 = vmatpush.bf16.xpose.msra.mxu0 0
        %4300 = vmatpush.bf16.xpose.msra.mxu0 0
        %4301 = vmatpush.bf16.xpose.msra.mxu0 0
        %4302 = vmatpush.bf16.xpose.msra.mxu0 0
        %4303 = vmatpush.bf16.xpose.msra.mxu0 0
        %4304 = vmatpush.bf16.xpose.msra.mxu0 %v4296
        %4305 = vmatpush.bf16.xpose.msra.mxu0 %v4293
        %4306 = vmatmul.bf16.gmra.mxu0 %v4290
        %v4307 = vpop.f32.mrf.mxu0
        %v4308 = vadd.f32 %v2952, %v4307
        %v4309 = vpop.f32.mrf.mxu0
        %v4310 = vadd.f32 %v2953, %v4309
        %4311 = vdwg.mxu0
        %v4314 = vunpack.c.l.b16 %v4228
        %v4315 = vunpack.c.l.b16 %v4229
        %v4316 = vpack.c.b16 %v4315, %v4314
        %v4321 = vunpack.c.l.b16 %v4246
        %v4322 = vunpack.c.l.b16 %v4247
        %v4323 = vunpack.c.l.b16 %v4248
        %v4324 = vunpack.c.l.b16 %v4249
        %v4325 = vpack.c.b16 %v4322, %v4321
        %v4326 = vpack.c.b16 %v4324, %v4323
        %v4328 = vsel %vm1825, %v4316, 0
        %v4331 = vsel %vm1825, %v4325, 0
        %v4334 = vsel %vm1825, %v4326, 0
        %4336 = vmatpush.bf16.xpose.msra.mxu0 0
        %4337 = vmatpush.bf16.xpose.msra.mxu0 0
        %4338 = vmatpush.bf16.xpose.msra.mxu0 0
        %4339 = vmatpush.bf16.xpose.msra.mxu0 0
        %4340 = vmatpush.bf16.xpose.msra.mxu0 0
        %4341 = vmatpush.bf16.xpose.msra.mxu0 0
        %4342 = vmatpush.bf16.xpose.msra.mxu0 %v4334
        %4343 = vmatpush.bf16.xpose.msra.mxu0 %v4331
        %4344 = vmatmul.bf16.gmra.mxu0 %v4328
        %v4345 = vpop.f32.mrf.mxu0
        %v4346 = vadd.f32 %v2952, %v4345
        %v4347 = vpop.f32.mrf.mxu0
        %v4348 = vadd.f32 %v2953, %v4347
        %4349 = vdwg.mxu0
        %v4352 = vunpack.c.l.b16 %v4230
        %v4353 = vunpack.c.l.b16 %v4231
        %v4354 = vpack.c.b16 %v4353, %v4352
        %v4359 = vunpack.c.l.b16 %v4250
        %v4360 = vunpack.c.l.b16 %v4251
        %v4361 = vunpack.c.l.b16 %v4252
        %v4362 = vunpack.c.l.b16 %v4253
        %v4363 = vpack.c.b16 %v4360, %v4359
        %v4364 = vpack.c.b16 %v4362, %v4361
        %v4366 = vsel %vm1825, %v4354, 0
        %v4369 = vsel %vm1825, %v4363, 0
        %v4372 = vsel %vm1825, %v4364, 0
        %4374 = vmatpush.bf16.xpose.msra.mxu0 0
        %4375 = vmatpush.bf16.xpose.msra.mxu0 0
        %4376 = vmatpush.bf16.xpose.msra.mxu0 0
        %4377 = vmatpush.bf16.xpose.msra.mxu0 0
        %4378 = vmatpush.bf16.xpose.msra.mxu0 0
        %4379 = vmatpush.bf16.xpose.msra.mxu0 0
        %4380 = vmatpush.bf16.xpose.msra.mxu0 %v4372
        %4381 = vmatpush.bf16.xpose.msra.mxu0 %v4369
        %4382 = vmatmul.bf16.gmra.mxu0 %v4366
        %v4383 = vpop.f32.mrf.mxu0
        %v4384 = vadd.f32 %v2952, %v4383
        %v4385 = vpop.f32.mrf.mxu0
        %v4386 = vadd.f32 %v2953, %v4385
        %4387 = vdwg.mxu0
        %v4390 = vunpack.c.l.b16 %v4232
        %v4391 = vunpack.c.l.b16 %v4233
        %v4392 = vpack.c.b16 %v4391, %v4390
        %v4397 = vunpack.c.l.b16 %v4254
        %v4398 = vunpack.c.l.b16 %v4255
        %v4399 = vunpack.c.l.b16 %v4256
        %v4400 = vunpack.c.l.b16 %v4257
        %v4401 = vpack.c.b16 %v4398, %v4397
        %v4402 = vpack.c.b16 %v4400, %v4399
        %v4404 = vsel %vm1825, %v4392, 0
        %v4407 = vsel %vm1825, %v4401, 0
        %v4410 = vsel %vm1825, %v4402, 0
        %4412 = vmatpush.bf16.xpose.msra.mxu0 0
        %4413 = vmatpush.bf16.xpose.msra.mxu0 0
        %4414 = vmatpush.bf16.xpose.msra.mxu0 0
        %4415 = vmatpush.bf16.xpose.msra.mxu0 0
        %4416 = vmatpush.bf16.xpose.msra.mxu0 0
        %4417 = vmatpush.bf16.xpose.msra.mxu0 0
        %4418 = vmatpush.bf16.xpose.msra.mxu0 %v4410
        %4419 = vmatpush.bf16.xpose.msra.mxu0 %v4407
        %4420 = vmatmul.bf16.gmra.mxu0 %v4404
        %v4421 = vpop.f32.mrf.mxu0
        %v4422 = vadd.f32 %v2952, %v4421
        %v4423 = vpop.f32.mrf.mxu0
        %v4424 = vadd.f32 %v2953, %v4423
        %4425 = vdwg.mxu0
        %v4428 = vunpack.c.l.b16 %v4234
        %v4429 = vunpack.c.l.b16 %v4235
        %v4430 = vpack.c.b16 %v4429, %v4428
        %v4435 = vunpack.c.l.b16 %v4258
        %v4436 = vunpack.c.l.b16 %v4259
        %v4437 = vunpack.c.l.b16 %v4260
        %v4438 = vunpack.c.l.b16 %v4261
        %v4439 = vpack.c.b16 %v4436, %v4435
        %v4440 = vpack.c.b16 %v4438, %v4437
        %v4442 = vsel %vm1825, %v4430, 0
        %v4445 = vsel %vm1825, %v4439, 0
        %v4448 = vsel %vm1825, %v4440, 0
        %4450 = vmatpush.bf16.xpose.msra.mxu0 0
        %4451 = vmatpush.bf16.xpose.msra.mxu0 0
        %4452 = vmatpush.bf16.xpose.msra.mxu0 0
        %4453 = vmatpush.bf16.xpose.msra.mxu0 0
        %4454 = vmatpush.bf16.xpose.msra.mxu0 0
        %4455 = vmatpush.bf16.xpose.msra.mxu0 0
        %4456 = vmatpush.bf16.xpose.msra.mxu0 %v4448
        %4457 = vmatpush.bf16.xpose.msra.mxu0 %v4445
        %4458 = vmatmul.bf16.gmra.mxu0 %v4442
        %v4459 = vpop.f32.mrf.mxu0
        %v4460 = vadd.f32 %v2952, %v4459
        %v4461 = vpop.f32.mrf.mxu0
        %v4462 = vadd.f32 %v2953, %v4461
        %4463 = vdwg.mxu0
        %v4466 = vunpack.c.l.b16 %v4236
        %v4467 = vunpack.c.l.b16 %v4237
        %v4468 = vpack.c.b16 %v4467, %v4466
        %v4473 = vunpack.c.l.b16 %v4262
        %v4474 = vunpack.c.l.b16 %v4263
        %v4475 = vunpack.c.l.b16 %v4264
        %v4476 = vunpack.c.l.b16 %v4265
        %v4477 = vpack.c.b16 %v4474, %v4473
        %v4478 = vpack.c.b16 %v4476, %v4475
        %v4480 = vsel %vm1825, %v4468, 0
        %v4483 = vsel %vm1825, %v4477, 0
        %v4486 = vsel %vm1825, %v4478, 0
        %4488 = vmatpush.bf16.xpose.msra.mxu0 0
        %4489 = vmatpush.bf16.xpose.msra.mxu0 0
        %4490 = vmatpush.bf16.xpose.msra.mxu0 0
        %4491 = vmatpush.bf16.xpose.msra.mxu0 0
        %4492 = vmatpush.bf16.xpose.msra.mxu0 0
        %4493 = vmatpush.bf16.xpose.msra.mxu0 0
        %4494 = vmatpush.bf16.xpose.msra.mxu0 %v4486
        %4495 = vmatpush.bf16.xpose.msra.mxu0 %v4483
        %4496 = vmatmul.bf16.gmra.mxu0 %v4480
        %v4497 = vpop.f32.mrf.mxu0
        %v4498 = vadd.f32 %v2952, %v4497
        %v4499 = vpop.f32.mrf.mxu0
        %v4500 = vadd.f32 %v2953, %v4499
        %4501 = vdwg.mxu0
        %v4504 = vunpack.c.l.b16 %v4238
        %v4505 = vunpack.c.l.b16 %v4239
        %v4506 = vpack.c.b16 %v4505, %v4504
        %v4511 = vunpack.c.l.b16 %v4266
        %v4512 = vunpack.c.l.b16 %v4267
        %v4513 = vunpack.c.l.b16 %v4268
        %v4514 = vunpack.c.l.b16 %v4269
        %v4515 = vpack.c.b16 %v4512, %v4511
        %v4516 = vpack.c.b16 %v4514, %v4513
        %v4518 = vsel %vm1825, %v4506, 0
        %v4521 = vsel %vm1825, %v4515, 0
        %v4524 = vsel %vm1825, %v4516, 0
        %4526 = vmatpush.bf16.xpose.msra.mxu0 0
        %4527 = vmatpush.bf16.xpose.msra.mxu0 0
        %4528 = vmatpush.bf16.xpose.msra.mxu0 0
        %4529 = vmatpush.bf16.xpose.msra.mxu0 0
        %4530 = vmatpush.bf16.xpose.msra.mxu0 0
        %4531 = vmatpush.bf16.xpose.msra.mxu0 0
        %4532 = vmatpush.bf16.xpose.msra.mxu0 %v4524
        %4533 = vmatpush.bf16.xpose.msra.mxu0 %v4521
        %4534 = vmatmul.bf16.gmra.mxu0 %v4518
        %v4535 = vpop.f32.mrf.mxu0
        %v4536 = vadd.f32 %v2952, %v4535
        %v4537 = vpop.f32.mrf.mxu0
        %v4538 = vadd.f32 %v2953, %v4537
        %4539 = vdwg.mxu0
        %v4542 = vunpack.c.l.b16 %v4240
        %v4543 = vunpack.c.l.b16 %v4241
        %v4544 = vpack.c.b16 %v4543, %v4542
        %v4549 = vunpack.c.l.b16 %v4270
        %v4550 = vunpack.c.l.b16 %v4271
        %v4551 = vunpack.c.l.b16 %v4272
        %v4552 = vunpack.c.l.b16 %v4273
        %v4553 = vpack.c.b16 %v4550, %v4549
        %v4554 = vpack.c.b16 %v4552, %v4551
        %v4556 = vsel %vm1825, %v4544, 0
        %v4559 = vsel %vm1825, %v4553, 0
        %v4562 = vsel %vm1825, %v4554, 0
        %4564 = vmatpush.bf16.xpose.msra.mxu0 0
        %4565 = vmatpush.bf16.xpose.msra.mxu0 0
        %4566 = vmatpush.bf16.xpose.msra.mxu0 0
        %4567 = vmatpush.bf16.xpose.msra.mxu0 0
        %4568 = vmatpush.bf16.xpose.msra.mxu0 0
        %4569 = vmatpush.bf16.xpose.msra.mxu0 0
        %4570 = vmatpush.bf16.xpose.msra.mxu0 %v4562
        %4571 = vmatpush.bf16.xpose.msra.mxu0 %v4559
        %4572 = vmatmul.bf16.gmra.mxu0 %v4556
        %v4573 = vpop.f32.mrf.mxu0
        %v4574 = vadd.f32 %v2952, %v4573
        %v4575 = vpop.f32.mrf.mxu0
        %v4576 = vadd.f32 %v2953, %v4575
        %4577 = vdwg.mxu0
        %vm4578 = vcmask 261120
        %v4579 = vsel %vm4578, %v4308, -inf
        %4580 = vmax.xlane.f32.xlu0 %v4579
        %v4581 = vpop.xlane.xlu0 %4580
        %v4582 = vsel %vm4578, %v4310, -inf
        %4583 = vmax.xlane.f32.xlu0 %v4582
        %v4584 = vpop.xlane.xlu0 %4583
        %v4585 = vsel %vm4578, %v4346, -inf
        %4586 = vmax.xlane.f32.xlu0 %v4585
        %v4587 = vpop.xlane.xlu0 %4586
        %v4588 = vsel %vm4578, %v4348, -inf
        %4589 = vmax.xlane.f32.xlu0 %v4588
        %v4590 = vpop.xlane.xlu0 %4589
        %v4591 = vsel %vm4578, %v4384, -inf
        %4592 = vmax.xlane.f32.xlu0 %v4591
        %v4593 = vpop.xlane.xlu0 %4592
        %v4594 = vsel %vm4578, %v4386, -inf
        %4595 = vmax.xlane.f32.xlu0 %v4594
        %v4596 = vpop.xlane.xlu0 %4595
        %v4597 = vsel %vm4578, %v4422, -inf
        %4598 = vmax.xlane.f32.xlu0 %v4597
        %v4599 = vpop.xlane.xlu0 %4598
        %v4600 = vsel %vm4578, %v4424, -inf
        %4601 = vmax.xlane.f32.xlu0 %v4600
        %v4602 = vpop.xlane.xlu0 %4601
        %v4603 = vsel %vm4578, %v4460, -inf
        %4604 = vmax.xlane.f32.xlu0 %v4603
        %v4605 = vpop.xlane.xlu0 %4604
        %v4606 = vsel %vm4578, %v4462, -inf
        %4607 = vmax.xlane.f32.xlu0 %v4606
        %v4608 = vpop.xlane.xlu0 %4607
        %v4609 = vsel %vm4578, %v4498, -inf
        %4610 = vmax.xlane.f32.xlu0 %v4609
        %v4611 = vpop.xlane.xlu0 %4610
        %v4612 = vsel %vm4578, %v4500, -inf
        %4613 = vmax.xlane.f32.xlu0 %v4612
        %v4614 = vpop.xlane.xlu0 %4613
        %v4615 = vsel %vm4578, %v4536, -inf
        %4616 = vmax.xlane.f32.xlu0 %v4615
        %v4617 = vpop.xlane.xlu0 %4616
        %v4618 = vsel %vm4578, %v4538, -inf
        %4619 = vmax.xlane.f32.xlu0 %v4618
        %v4620 = vpop.xlane.xlu0 %4619
        %v4621 = vsel %vm4578, %v4574, -inf
        %4622 = vmax.xlane.f32.xlu0 %v4621
        %v4623 = vpop.xlane.xlu0 %4622
        %v4624 = vsel %vm4578, %v4576, -inf
        %4625 = vmax.xlane.f32.xlu0 %v4624
        %v4626 = vpop.xlane.xlu0 %4625
        %v4627 = vsub.f32 %v4308, %v4581
        %v4628 = vsub.f32 %v4310, %v4584
        %v4629 = vsub.f32 %v4346, %v4587
        %v4630 = vsub.f32 %v4348, %v4590
        %v4631 = vsub.f32 %v4384, %v4593
        %v4632 = vsub.f32 %v4386, %v4596
        %v4633 = vsub.f32 %v4422, %v4599
        %v4634 = vsub.f32 %v4424, %v4602
        %v4635 = vsub.f32 %v4460, %v4605
        %v4636 = vsub.f32 %v4462, %v4608
        %v4637 = vsub.f32 %v4498, %v4611
        %v4638 = vsub.f32 %v4500, %v4614
        %v4639 = vsub.f32 %v4536, %v4617
        %v4640 = vsub.f32 %v4538, %v4620
        %v4641 = vsub.f32 %v4574, %v4623
        %v4642 = vsub.f32 %v4576, %v4626
        %v4643 = vmul.f32 %v4627, 1.442695
        %v4644 = vpow.pop %v4643
        %v4645 = vmul.f32 %v4628, 1.442695
        %v4646 = vpow.pop %v4645
        %v4647 = vmul.f32 %v4629, 1.442695
        %v4648 = vpow.pop %v4647
        %v4649 = vmul.f32 %v4630, 1.442695
        %v4650 = vpow.pop %v4649
        %v4651 = vmul.f32 %v4631, 1.442695
        %v4652 = vpow.pop %v4651
        %v4653 = vmul.f32 %v4632, 1.442695
        %v4654 = vpow.pop %v4653
        %v4655 = vmul.f32 %v4633, 1.442695
        %v4656 = vpow.pop %v4655
        %v4657 = vmul.f32 %v4634, 1.442695
        %v4658 = vpow.pop %v4657
        %v4659 = vmul.f32 %v4635, 1.442695
        %v4660 = vpow.pop %v4659
        %v4661 = vmul.f32 %v4636, 1.442695
        %v4662 = vpow.pop %v4661
        %v4663 = vmul.f32 %v4637, 1.442695
        %v4664 = vpow.pop %v4663
        %v4665 = vmul.f32 %v4638, 1.442695
        %v4666 = vpow.pop %v4665
        %v4667 = vmul.f32 %v4639, 1.442695
        %v4668 = vpow.pop %v4667
        %v4669 = vmul.f32 %v4640, 1.442695
        %v4670 = vpow.pop %v4669
        %v4671 = vmul.f32 %v4641, 1.442695
        %v4672 = vpow.pop %v4671
        %v4673 = vmul.f32 %v4642, 1.442695
        %v4674 = vpow.pop %v4673
        %v4675 = vsel %vm4578, %v4644, 0.0
        %4676 = vadd.xlane.f32.xlu0 %v4675
        %v4677 = vpop.xlane.xlu0 %4676
        %v4678 = vsel %vm4578, %v4646, 0.0
        %4679 = vadd.xlane.f32.xlu0 %v4678
        %v4680 = vpop.xlane.xlu0 %4679
        %v4681 = vsel %vm4578, %v4648, 0.0
        %4682 = vadd.xlane.f32.xlu0 %v4681
        %v4683 = vpop.xlane.xlu0 %4682
        %v4684 = vsel %vm4578, %v4650, 0.0
        %4685 = vadd.xlane.f32.xlu0 %v4684
        %v4686 = vpop.xlane.xlu0 %4685
        %v4687 = vsel %vm4578, %v4652, 0.0
        %4688 = vadd.xlane.f32.xlu0 %v4687
        %v4689 = vpop.xlane.xlu0 %4688
        %v4690 = vsel %vm4578, %v4654, 0.0
        %4691 = vadd.xlane.f32.xlu0 %v4690
        %v4692 = vpop.xlane.xlu0 %4691
        %v4693 = vsel %vm4578, %v4656, 0.0
        %4694 = vadd.xlane.f32.xlu0 %v4693
        %v4695 = vpop.xlane.xlu0 %4694
        %v4696 = vsel %vm4578, %v4658, 0.0
        %4697 = vadd.xlane.f32.xlu0 %v4696
        %v4698 = vpop.xlane.xlu0 %4697
        %v4699 = vsel %vm4578, %v4660, 0.0
        %4700 = vadd.xlane.f32.xlu0 %v4699
        %v4701 = vpop.xlane.xlu0 %4700
        %v4702 = vsel %vm4578, %v4662, 0.0
        %4703 = vadd.xlane.f32.xlu0 %v4702
        %v4704 = vpop.xlane.xlu0 %4703
        %v4705 = vsel %vm4578, %v4664, 0.0
        %4706 = vadd.xlane.f32.xlu0 %v4705
        %v4707 = vpop.xlane.xlu0 %4706
        %v4708 = vsel %vm4578, %v4666, 0.0
        %4709 = vadd.xlane.f32.xlu0 %v4708
        %v4710 = vpop.xlane.xlu0 %4709
        %v4711 = vsel %vm4578, %v4668, 0.0
        %4712 = vadd.xlane.f32.xlu0 %v4711
        %v4713 = vpop.xlane.xlu0 %4712
        %v4714 = vsel %vm4578, %v4670, 0.0
        %4715 = vadd.xlane.f32.xlu0 %v4714
        %v4716 = vpop.xlane.xlu0 %4715
        %v4717 = vsel %vm4578, %v4672, 0.0
        %4718 = vadd.xlane.f32.xlu0 %v4717
        %v4719 = vpop.xlane.xlu0 %4718
        %v4720 = vsel %vm4578, %v4674, 0.0
        %4721 = vadd.xlane.f32.xlu0 %v4720
        %v4722 = vpop.xlane.xlu0 %4721
        %v4723 = vrcp.pop %v4677
        %v4724 = vrcp.pop %v4680
        %v4725 = vrcp.pop %v4683
        %v4726 = vrcp.pop %v4686
        %v4727 = vrcp.pop %v4689
        %v4728 = vrcp.pop %v4692
        %v4729 = vrcp.pop %v4695
        %v4730 = vrcp.pop %v4698
        %v4731 = vrcp.pop %v4701
        %v4732 = vrcp.pop %v4704
        %v4733 = vrcp.pop %v4707
        %v4734 = vrcp.pop %v4710
        %v4735 = vrcp.pop %v4713
        %v4736 = vrcp.pop %v4716
        %v4737 = vrcp.pop %v4719
        %v4738 = vrcp.pop %v4722
        %v4739 = vmul.f32 %v4644, %v4723
        %v4740 = vmul.f32 %v4646, %v4724
        %v4741 = vmul.f32 %v4648, %v4725
        %v4742 = vmul.f32 %v4650, %v4726
        %v4743 = vmul.f32 %v4652, %v4727
        %v4744 = vmul.f32 %v4654, %v4728
        %v4745 = vmul.f32 %v4656, %v4729
        %v4746 = vmul.f32 %v4658, %v4730
        %v4747 = vmul.f32 %v4660, %v4731
        %v4748 = vmul.f32 %v4662, %v4732
        %v4749 = vmul.f32 %v4664, %v4733
        %v4750 = vmul.f32 %v4666, %v4734
        %v4751 = vmul.f32 %v4668, %v4735
        %v4752 = vmul.f32 %v4670, %v4736
        %v4753 = vmul.f32 %v4672, %v4737
        %v4754 = vmul.f32 %v4674, %v4738
        %v4755 = vpack.c.bf16 %v4739, %v4739
        %v4756 = vpack.c.bf16 %v4740, %v4740
        %v4757 = vpack.c.bf16 %v4741, %v4741
        %v4758 = vpack.c.bf16 %v4742, %v4742
        %v4759 = vpack.c.bf16 %v4743, %v4743
        %v4760 = vpack.c.bf16 %v4744, %v4744
        %v4761 = vpack.c.bf16 %v4745, %v4745
        %v4762 = vpack.c.bf16 %v4746, %v4746
        %v4763 = vpack.c.bf16 %v4747, %v4747
        %v4764 = vpack.c.bf16 %v4748, %v4748
        %v4765 = vpack.c.bf16 %v4749, %v4749
        %v4766 = vpack.c.bf16 %v4750, %v4750
        %v4767 = vpack.c.bf16 %v4751, %v4751
        %v4768 = vpack.c.bf16 %v4752, %v4752
        %v4769 = vpack.c.bf16 %v4753, %v4753
        %v4770 = vpack.c.bf16 %v4754, %v4754
        %v4771 = vpack.c.bf16 %v3916, %v3916
        %v4772 = vpack.c.bf16 %v3918, %v3918
        %v4773 = vpack.c.bf16 %v3921, %v3921
        %v4774 = vpack.c.bf16 %v3923, %v3923
        %v4775 = vpack.c.bf16 %v3959, %v3959
        %v4776 = vpack.c.bf16 %v3961, %v3961
        %v4777 = vpack.c.bf16 %v3964, %v3964
        %v4778 = vpack.c.bf16 %v3966, %v3966
        %v4779 = vpack.c.bf16 %v4002, %v4002
        %v4780 = vpack.c.bf16 %v4004, %v4004
        %v4781 = vpack.c.bf16 %v4007, %v4007
        %v4782 = vpack.c.bf16 %v4009, %v4009
        %v4783 = vpack.c.bf16 %v4045, %v4045
        %v4784 = vpack.c.bf16 %v4047, %v4047
        %v4785 = vpack.c.bf16 %v4050, %v4050
        %v4786 = vpack.c.bf16 %v4052, %v4052
        %v4787 = vpack.c.bf16 %v4088, %v4088
        %v4788 = vpack.c.bf16 %v4090, %v4090
        %v4789 = vpack.c.bf16 %v4093, %v4093
        %v4790 = vpack.c.bf16 %v4095, %v4095
        %v4791 = vpack.c.bf16 %v4131, %v4131
        %v4792 = vpack.c.bf16 %v4133, %v4133
        %v4793 = vpack.c.bf16 %v4136, %v4136
        %v4794 = vpack.c.bf16 %v4138, %v4138
        %v4795 = vpack.c.bf16 %v4174, %v4174
        %v4796 = vpack.c.bf16 %v4176, %v4176
        %v4797 = vpack.c.bf16 %v4179, %v4179
        %v4798 = vpack.c.bf16 %v4181, %v4181
        %v4799 = vpack.c.bf16 %v4217, %v4217
        %v4800 = vpack.c.bf16 %v4219, %v4219
        %v4801 = vpack.c.bf16 %v4222, %v4222
        %v4802 = vpack.c.bf16 %v4224, %v4224
        %v4805 = vunpack.c.l.b16 %v4755
        %v4806 = vunpack.c.l.b16 %v4756
        %v4807 = vpack.c.b16 %v4806, %v4805
        %v4812 = vunpack.c.l.b16 %v4771
        %v4813 = vunpack.c.l.b16 %v4772
        %v4814 = vunpack.c.l.b16 %v4773
        %v4815 = vunpack.c.l.b16 %v4774
        %v4816 = vpack.c.b16 %v4813, %v4812
        %v4817 = vpack.c.b16 %v4815, %v4814
        %v4821 = vsel %vm4578, %v4807, 0
        %4823 = vmatpush.bf16.msra.mxu0 0
        %4824 = vmatpush.bf16.msra.mxu0 0
        %4825 = vmatpush.bf16.msra.mxu0 0
        %4826 = vmatpush.bf16.msra.mxu0 0
        %4827 = vmatpush.bf16.msra.mxu0 0
        %4828 = vmatpush.bf16.msra.mxu0 0
        %4829 = vmatpush.bf16.msra.mxu0 %v4817
        %4830 = vmatpush.bf16.msra.mxu0 %v4816
        %4831 = vmatmul.bf16.gmra.mxu0 %v4821
        %v4832 = vpop.f32.mrf.mxu0
        %v4833 = vadd.f32 0.0, %v4832
        %v4834 = vpop.f32.mrf.mxu0
        %v4835 = vadd.f32 0.0, %v4834
        %4836 = vdwg.mxu0
        %v4839 = vunpack.c.l.b16 %v4757
        %v4840 = vunpack.c.l.b16 %v4758
        %v4841 = vpack.c.b16 %v4840, %v4839
        %v4846 = vunpack.c.l.b16 %v4775
        %v4847 = vunpack.c.l.b16 %v4776
        %v4848 = vunpack.c.l.b16 %v4777
        %v4849 = vunpack.c.l.b16 %v4778
        %v4850 = vpack.c.b16 %v4847, %v4846
        %v4851 = vpack.c.b16 %v4849, %v4848
        %v4855 = vsel %vm4578, %v4841, 0
        %4857 = vmatpush.bf16.msra.mxu0 0
        %4858 = vmatpush.bf16.msra.mxu0 0
        %4859 = vmatpush.bf16.msra.mxu0 0
        %4860 = vmatpush.bf16.msra.mxu0 0
        %4861 = vmatpush.bf16.msra.mxu0 0
        %4862 = vmatpush.bf16.msra.mxu0 0
        %4863 = vmatpush.bf16.msra.mxu0 %v4851
        %4864 = vmatpush.bf16.msra.mxu0 %v4850
        %4865 = vmatmul.bf16.gmra.mxu0 %v4855
        %v4866 = vpop.f32.mrf.mxu0
        %v4867 = vadd.f32 0.0, %v4866
        %v4868 = vpop.f32.mrf.mxu0
        %v4869 = vadd.f32 0.0, %v4868
        %4870 = vdwg.mxu0
        %v4873 = vunpack.c.l.b16 %v4759
        %v4874 = vunpack.c.l.b16 %v4760
        %v4875 = vpack.c.b16 %v4874, %v4873
        %v4880 = vunpack.c.l.b16 %v4779
        %v4881 = vunpack.c.l.b16 %v4780
        %v4882 = vunpack.c.l.b16 %v4781
        %v4883 = vunpack.c.l.b16 %v4782
        %v4884 = vpack.c.b16 %v4881, %v4880
        %v4885 = vpack.c.b16 %v4883, %v4882
        %v4889 = vsel %vm4578, %v4875, 0
        %4891 = vmatpush.bf16.msra.mxu0 0
        %4892 = vmatpush.bf16.msra.mxu0 0
        %4893 = vmatpush.bf16.msra.mxu0 0
        %4894 = vmatpush.bf16.msra.mxu0 0
        %4895 = vmatpush.bf16.msra.mxu0 0
        %4896 = vmatpush.bf16.msra.mxu0 0
        %4897 = vmatpush.bf16.msra.mxu0 %v4885
        %4898 = vmatpush.bf16.msra.mxu0 %v4884
        %4899 = vmatmul.bf16.gmra.mxu0 %v4889
        %v4900 = vpop.f32.mrf.mxu0
        %v4901 = vadd.f32 0.0, %v4900
        %v4902 = vpop.f32.mrf.mxu0
        %v4903 = vadd.f32 0.0, %v4902
        %4904 = vdwg.mxu0
        %v4907 = vunpack.c.l.b16 %v4761
        %v4908 = vunpack.c.l.b16 %v4762
        %v4909 = vpack.c.b16 %v4908, %v4907
        %v4914 = vunpack.c.l.b16 %v4783
        %v4915 = vunpack.c.l.b16 %v4784
        %v4916 = vunpack.c.l.b16 %v4785
        %v4917 = vunpack.c.l.b16 %v4786
        %v4918 = vpack.c.b16 %v4915, %v4914
        %v4919 = vpack.c.b16 %v4917, %v4916
        %v4923 = vsel %vm4578, %v4909, 0
        %4925 = vmatpush.bf16.msra.mxu0 0
        %4926 = vmatpush.bf16.msra.mxu0 0
        %4927 = vmatpush.bf16.msra.mxu0 0
        %4928 = vmatpush.bf16.msra.mxu0 0
        %4929 = vmatpush.bf16.msra.mxu0 0
        %4930 = vmatpush.bf16.msra.mxu0 0
        %4931 = vmatpush.bf16.msra.mxu0 %v4919
        %4932 = vmatpush.bf16.msra.mxu0 %v4918
        %4933 = vmatmul.bf16.gmra.mxu0 %v4923
        %v4934 = vpop.f32.mrf.mxu0
        %v4935 = vadd.f32 0.0, %v4934
        %v4936 = vpop.f32.mrf.mxu0
        %v4937 = vadd.f32 0.0, %v4936
        %4938 = vdwg.mxu0
        %v4941 = vunpack.c.l.b16 %v4763
        %v4942 = vunpack.c.l.b16 %v4764
        %v4943 = vpack.c.b16 %v4942, %v4941
        %v4948 = vunpack.c.l.b16 %v4787
        %v4949 = vunpack.c.l.b16 %v4788
        %v4950 = vunpack.c.l.b16 %v4789
        %v4951 = vunpack.c.l.b16 %v4790
        %v4952 = vpack.c.b16 %v4949, %v4948
        %v4953 = vpack.c.b16 %v4951, %v4950
        %v4957 = vsel %vm4578, %v4943, 0
        %4959 = vmatpush.bf16.msra.mxu0 0
        %4960 = vmatpush.bf16.msra.mxu0 0
        %4961 = vmatpush.bf16.msra.mxu0 0
        %4962 = vmatpush.bf16.msra.mxu0 0
        %4963 = vmatpush.bf16.msra.mxu0 0
        %4964 = vmatpush.bf16.msra.mxu0 0
        %4965 = vmatpush.bf16.msra.mxu0 %v4953
        %4966 = vmatpush.bf16.msra.mxu0 %v4952
        %4967 = vmatmul.bf16.gmra.mxu0 %v4957
        %v4968 = vpop.f32.mrf.mxu0
        %v4969 = vadd.f32 0.0, %v4968
        %v4970 = vpop.f32.mrf.mxu0
        %v4971 = vadd.f32 0.0, %v4970
        %4972 = vdwg.mxu0
        %v4975 = vunpack.c.l.b16 %v4765
        %v4976 = vunpack.c.l.b16 %v4766
        %v4977 = vpack.c.b16 %v4976, %v4975
        %v4982 = vunpack.c.l.b16 %v4791
        %v4983 = vunpack.c.l.b16 %v4792
        %v4984 = vunpack.c.l.b16 %v4793
        %v4985 = vunpack.c.l.b16 %v4794
        %v4986 = vpack.c.b16 %v4983, %v4982
        %v4987 = vpack.c.b16 %v4985, %v4984
        %v4991 = vsel %vm4578, %v4977, 0
        %4993 = vmatpush.bf16.msra.mxu0 0
        %4994 = vmatpush.bf16.msra.mxu0 0
        %4995 = vmatpush.bf16.msra.mxu0 0
        %4996 = vmatpush.bf16.msra.mxu0 0
        %4997 = vmatpush.bf16.msra.mxu0 0
        %4998 = vmatpush.bf16.msra.mxu0 0
        %4999 = vmatpush.bf16.msra.mxu0 %v4987
        %5000 = vmatpush.bf16.msra.mxu0 %v4986
        %5001 = vmatmul.bf16.gmra.mxu0 %v4991
        %v5002 = vpop.f32.mrf.mxu0
        %v5003 = vadd.f32 0.0, %v5002
        %v5004 = vpop.f32.mrf.mxu0
        %v5005 = vadd.f32 0.0, %v5004
        %5006 = vdwg.mxu0
        %v5009 = vunpack.c.l.b16 %v4767
        %v5010 = vunpack.c.l.b16 %v4768
        %v5011 = vpack.c.b16 %v5010, %v5009
        %v5016 = vunpack.c.l.b16 %v4795
        %v5017 = vunpack.c.l.b16 %v4796
        %v5018 = vunpack.c.l.b16 %v4797
        %v5019 = vunpack.c.l.b16 %v4798
        %v5020 = vpack.c.b16 %v5017, %v5016
        %v5021 = vpack.c.b16 %v5019, %v5018
        %v5025 = vsel %vm4578, %v5011, 0
        %5027 = vmatpush.bf16.msra.mxu0 0
        %5028 = vmatpush.bf16.msra.mxu0 0
        %5029 = vmatpush.bf16.msra.mxu0 0
        %5030 = vmatpush.bf16.msra.mxu0 0
        %5031 = vmatpush.bf16.msra.mxu0 0
        %5032 = vmatpush.bf16.msra.mxu0 0
        %5033 = vmatpush.bf16.msra.mxu0 %v5021
        %5034 = vmatpush.bf16.msra.mxu0 %v5020
        %5035 = vmatmul.bf16.gmra.mxu0 %v5025
        %v5036 = vpop.f32.mrf.mxu0
        %v5037 = vadd.f32 0.0, %v5036
        %v5038 = vpop.f32.mrf.mxu0
        %v5039 = vadd.f32 0.0, %v5038
        %5040 = vdwg.mxu0
        %v5043 = vunpack.c.l.b16 %v4769
        %v5044 = vunpack.c.l.b16 %v4770
        %v5045 = vpack.c.b16 %v5044, %v5043
        %v5050 = vunpack.c.l.b16 %v4799
        %v5051 = vunpack.c.l.b16 %v4800
        %v5052 = vunpack.c.l.b16 %v4801
        %v5053 = vunpack.c.l.b16 %v4802
        %v5054 = vpack.c.b16 %v5051, %v5050
        %v5055 = vpack.c.b16 %v5053, %v5052
        %v5059 = vsel %vm4578, %v5045, 0
        %5061 = vmatpush.bf16.msra.mxu0 0
        %5062 = vmatpush.bf16.msra.mxu0 0
        %5063 = vmatpush.bf16.msra.mxu0 0
        %5064 = vmatpush.bf16.msra.mxu0 0
        %5065 = vmatpush.bf16.msra.mxu0 0
        %5066 = vmatpush.bf16.msra.mxu0 0
        %5067 = vmatpush.bf16.msra.mxu0 %v5055
        %5068 = vmatpush.bf16.msra.mxu0 %v5054
        %5069 = vmatmul.bf16.gmra.mxu0 %v5059
        %v5070 = vpop.f32.mrf.mxu0
        %v5071 = vadd.f32 0.0, %v5070
        %v5072 = vpop.f32.mrf.mxu0
        %v5073 = vadd.f32 0.0, %v5072
        %5074 = vdwg.mxu0
        %v5075 = vpack.c.bf16 %v4833, %v4833
        %v5076 = vpack.c.bf16 %v4835, %v4835
        %v5077 = vpack.c.bf16 %v4867, %v4867
        %v5078 = vpack.c.bf16 %v4869, %v4869
        %v5079 = vpack.c.bf16 %v4901, %v4901
        %v5080 = vpack.c.bf16 %v4903, %v4903
        %v5081 = vpack.c.bf16 %v4935, %v4935
        %v5082 = vpack.c.bf16 %v4937, %v4937
        %v5083 = vpack.c.bf16 %v4969, %v4969
        %v5084 = vpack.c.bf16 %v4971, %v4971
        %v5085 = vpack.c.bf16 %v5003, %v5003
        %v5086 = vpack.c.bf16 %v5005, %v5005
        %v5087 = vpack.c.bf16 %v5037, %v5037
        %v5088 = vpack.c.bf16 %v5039, %v5039
        %v5089 = vpack.c.bf16 %v5071, %v5071
        %v5090 = vpack.c.bf16 %v5073, %v5073
        %v5093 = vunpack.c.l.b16 %v5075
        %v5094 = vunpack.c.l.b16 %v5076
        %v5095 = vpack.c.b16 %v5094, %v5093
        %v5104 = vunpack.c.l.b16 %v3146
        %v5105 = vunpack.c.l.b16 %v3147
        %v5106 = vunpack.c.l.b16 %v3148
        %v5107 = vunpack.c.l.b16 %v3149
        %v5108 = vunpack.c.l.b16 %v3150
        %v5109 = vunpack.c.l.b16 %v3151
        %v5110 = vunpack.c.l.b16 %v3152
        %v5111 = vunpack.c.l.b16 %v3153
        %v5112 = vpack.c.b16 %v5105, %v5104
        %v5113 = vpack.c.b16 %v5107, %v5106
        %v5114 = vpack.c.b16 %v5109, %v5108
        %v5115 = vpack.c.b16 %v5111, %v5110
        %v5121 = vsel %vm1825, %v5095, 0
        %5123 = vmatpush.bf16.msra.mxu0 0
        %5124 = vmatpush.bf16.msra.mxu0 0
        %5125 = vmatpush.bf16.msra.mxu0 0
        %5126 = vmatpush.bf16.msra.mxu0 0
        %5127 = vmatpush.bf16.msra.mxu0 %v5115
        %5128 = vmatpush.bf16.msra.mxu0 %v5114
        %5129 = vmatpush.bf16.msra.mxu0 %v5113
        %5130 = vmatpush.bf16.msra.mxu0 %v5112
        %5131 = vmatmul.bf16.gmra.mxu0 %v5121
        %v5132 = vpop.f32.mrf.mxu0
        %v5133 = vadd.f32 0.0, %v5132
        %v5134 = vpop.f32.mrf.mxu0
        %v5135 = vadd.f32 0.0, %v5134
        %5136 = vdwg.mxu0
        %v5139 = vunpack.c.l.b16 %v5077
        %v5140 = vunpack.c.l.b16 %v5078
        %v5141 = vpack.c.b16 %v5140, %v5139
        %v5150 = vunpack.c.l.b16 %v3154
        %v5151 = vunpack.c.l.b16 %v3155
        %v5152 = vunpack.c.l.b16 %v3156
        %v5153 = vunpack.c.l.b16 %v3157
        %v5154 = vunpack.c.l.b16 %v3158
        %v5155 = vunpack.c.l.b16 %v3159
        %v5156 = vunpack.c.l.b16 %v3160
        %v5157 = vunpack.c.l.b16 %v3161
        %v5158 = vpack.c.b16 %v5151, %v5150
        %v5159 = vpack.c.b16 %v5153, %v5152
        %v5160 = vpack.c.b16 %v5155, %v5154
        %v5161 = vpack.c.b16 %v5157, %v5156
        %v5167 = vsel %vm1825, %v5141, 0
        %5169 = vmatpush.bf16.msra.mxu0 0
        %5170 = vmatpush.bf16.msra.mxu0 0
        %5171 = vmatpush.bf16.msra.mxu0 0
        %5172 = vmatpush.bf16.msra.mxu0 0
        %5173 = vmatpush.bf16.msra.mxu0 %v5161
        %5174 = vmatpush.bf16.msra.mxu0 %v5160
        %5175 = vmatpush.bf16.msra.mxu0 %v5159
        %5176 = vmatpush.bf16.msra.mxu0 %v5158
        %5177 = vmatmul.bf16.gmra.mxu0 %v5167
        %v5178 = vpop.f32.mrf.mxu0
        %v5179 = vadd.f32 0.0, %v5178
        %v5180 = vpop.f32.mrf.mxu0
        %v5181 = vadd.f32 0.0, %v5180
        %5182 = vdwg.mxu0
        %v5185 = vunpack.c.l.b16 %v5079
        %v5186 = vunpack.c.l.b16 %v5080
        %v5187 = vpack.c.b16 %v5186, %v5185
        %v5196 = vunpack.c.l.b16 %v3162
        %v5197 = vunpack.c.l.b16 %v3163
        %v5198 = vunpack.c.l.b16 %v3164
        %v5199 = vunpack.c.l.b16 %v3165
        %v5200 = vunpack.c.l.b16 %v3166
        %v5201 = vunpack.c.l.b16 %v3167
        %v5202 = vunpack.c.l.b16 %v3168
        %v5203 = vunpack.c.l.b16 %v3169
        %v5204 = vpack.c.b16 %v5197, %v5196
        %v5205 = vpack.c.b16 %v5199, %v5198
        %v5206 = vpack.c.b16 %v5201, %v5200
        %v5207 = vpack.c.b16 %v5203, %v5202
        %v5213 = vsel %vm1825, %v5187, 0
        %5215 = vmatpush.bf16.msra.mxu0 0
        %5216 = vmatpush.bf16.msra.mxu0 0
        %5217 = vmatpush.bf16.msra.mxu0 0
        %5218 = vmatpush.bf16.msra.mxu0 0
        %5219 = vmatpush.bf16.msra.mxu0 %v5207
        %5220 = vmatpush.bf16.msra.mxu0 %v5206
        %5221 = vmatpush.bf16.msra.mxu0 %v5205
        %5222 = vmatpush.bf16.msra.mxu0 %v5204
        %5223 = vmatmul.bf16.gmra.mxu0 %v5213
        %v5224 = vpop.f32.mrf.mxu0
        %v5225 = vadd.f32 0.0, %v5224
        %v5226 = vpop.f32.mrf.mxu0
        %v5227 = vadd.f32 0.0, %v5226
        %5228 = vdwg.mxu0
        %v5231 = vunpack.c.l.b16 %v5081
        %v5232 = vunpack.c.l.b16 %v5082
        %v5233 = vpack.c.b16 %v5232, %v5231
        %v5242 = vunpack.c.l.b16 %v3170
        %v5243 = vunpack.c.l.b16 %v3171
        %v5244 = vunpack.c.l.b16 %v3172
        %v5245 = vunpack.c.l.b16 %v3173
        %v5246 = vunpack.c.l.b16 %v3174
        %v5247 = vunpack.c.l.b16 %v3175
        %v5248 = vunpack.c.l.b16 %v3176
        %v5249 = vunpack.c.l.b16 %v3177
        %v5250 = vpack.c.b16 %v5243, %v5242
        %v5251 = vpack.c.b16 %v5245, %v5244
        %v5252 = vpack.c.b16 %v5247, %v5246
        %v5253 = vpack.c.b16 %v5249, %v5248
        %v5259 = vsel %vm1825, %v5233, 0
        %5261 = vmatpush.bf16.msra.mxu0 0
        %5262 = vmatpush.bf16.msra.mxu0 0
        %5263 = vmatpush.bf16.msra.mxu0 0
        %5264 = vmatpush.bf16.msra.mxu0 0
        %5265 = vmatpush.bf16.msra.mxu0 %v5253
        %5266 = vmatpush.bf16.msra.mxu0 %v5252
        %5267 = vmatpush.bf16.msra.mxu0 %v5251
        %5268 = vmatpush.bf16.msra.mxu0 %v5250
        %5269 = vmatmul.bf16.gmra.mxu0 %v5259
        %v5270 = vpop.f32.mrf.mxu0
        %v5271 = vadd.f32 0.0, %v5270
        %v5272 = vpop.f32.mrf.mxu0
        %v5273 = vadd.f32 0.0, %v5272
        %5274 = vdwg.mxu0
        %v5277 = vunpack.c.l.b16 %v5083
        %v5278 = vunpack.c.l.b16 %v5084
        %v5279 = vpack.c.b16 %v5278, %v5277
        %v5288 = vunpack.c.l.b16 %v3178
        %v5289 = vunpack.c.l.b16 %v3179
        %v5290 = vunpack.c.l.b16 %v3180
        %v5291 = vunpack.c.l.b16 %v3181
        %v5292 = vunpack.c.l.b16 %v3182
        %v5293 = vunpack.c.l.b16 %v3183
        %v5294 = vunpack.c.l.b16 %v3184
        %v5295 = vunpack.c.l.b16 %v3185
        %v5296 = vpack.c.b16 %v5289, %v5288
        %v5297 = vpack.c.b16 %v5291, %v5290
        %v5298 = vpack.c.b16 %v5293, %v5292
        %v5299 = vpack.c.b16 %v5295, %v5294
        %v5305 = vsel %vm1825, %v5279, 0
        %5307 = vmatpush.bf16.msra.mxu0 0
        %5308 = vmatpush.bf16.msra.mxu0 0
        %5309 = vmatpush.bf16.msra.mxu0 0
        %5310 = vmatpush.bf16.msra.mxu0 0
        %5311 = vmatpush.bf16.msra.mxu0 %v5299
        %5312 = vmatpush.bf16.msra.mxu0 %v5298
        %5313 = vmatpush.bf16.msra.mxu0 %v5297
        %5314 = vmatpush.bf16.msra.mxu0 %v5296
        %5315 = vmatmul.bf16.gmra.mxu0 %v5305
        %v5316 = vpop.f32.mrf.mxu0
        %v5317 = vadd.f32 0.0, %v5316
        %v5318 = vpop.f32.mrf.mxu0
        %v5319 = vadd.f32 0.0, %v5318
        %5320 = vdwg.mxu0
        %v5323 = vunpack.c.l.b16 %v5085
        %v5324 = vunpack.c.l.b16 %v5086
        %v5325 = vpack.c.b16 %v5324, %v5323
        %v5334 = vunpack.c.l.b16 %v3186
        %v5335 = vunpack.c.l.b16 %v3187
        %v5336 = vunpack.c.l.b16 %v3188
        %v5337 = vunpack.c.l.b16 %v3189
        %v5338 = vunpack.c.l.b16 %v3190
        %v5339 = vunpack.c.l.b16 %v3191
        %v5340 = vunpack.c.l.b16 %v3192
        %v5341 = vunpack.c.l.b16 %v3193
        %v5342 = vpack.c.b16 %v5335, %v5334
        %v5343 = vpack.c.b16 %v5337, %v5336
        %v5344 = vpack.c.b16 %v5339, %v5338
        %v5345 = vpack.c.b16 %v5341, %v5340
        %v5351 = vsel %vm1825, %v5325, 0
        %5353 = vmatpush.bf16.msra.mxu0 0
        %5354 = vmatpush.bf16.msra.mxu0 0
        %5355 = vmatpush.bf16.msra.mxu0 0
        %5356 = vmatpush.bf16.msra.mxu0 0
        %5357 = vmatpush.bf16.msra.mxu0 %v5345
        %5358 = vmatpush.bf16.msra.mxu0 %v5344
        %5359 = vmatpush.bf16.msra.mxu0 %v5343
        %5360 = vmatpush.bf16.msra.mxu0 %v5342
        %5361 = vmatmul.bf16.gmra.mxu0 %v5351
        %v5362 = vpop.f32.mrf.mxu0
        %v5363 = vadd.f32 0.0, %v5362
        %v5364 = vpop.f32.mrf.mxu0
        %v5365 = vadd.f32 0.0, %v5364
        %5366 = vdwg.mxu0
        %v5369 = vunpack.c.l.b16 %v5087
        %v5370 = vunpack.c.l.b16 %v5088
        %v5371 = vpack.c.b16 %v5370, %v5369
        %v5380 = vunpack.c.l.b16 %v3194
        %v5381 = vunpack.c.l.b16 %v3195
        %v5382 = vunpack.c.l.b16 %v3196
        %v5383 = vunpack.c.l.b16 %v3197
        %v5384 = vunpack.c.l.b16 %v3198
        %v5385 = vunpack.c.l.b16 %v3199
        %v5386 = vunpack.c.l.b16 %v3200
        %v5387 = vunpack.c.l.b16 %v3201
        %v5388 = vpack.c.b16 %v5381, %v5380
        %v5389 = vpack.c.b16 %v5383, %v5382
        %v5390 = vpack.c.b16 %v5385, %v5384
        %v5391 = vpack.c.b16 %v5387, %v5386
        %v5397 = vsel %vm1825, %v5371, 0
        %5399 = vmatpush.bf16.msra.mxu0 0
        %5400 = vmatpush.bf16.msra.mxu0 0
        %5401 = vmatpush.bf16.msra.mxu0 0
        %5402 = vmatpush.bf16.msra.mxu0 0
        %5403 = vmatpush.bf16.msra.mxu0 %v5391
        %5404 = vmatpush.bf16.msra.mxu0 %v5390
        %5405 = vmatpush.bf16.msra.mxu0 %v5389
        %5406 = vmatpush.bf16.msra.mxu0 %v5388
        %5407 = vmatmul.bf16.gmra.mxu0 %v5397
        %v5408 = vpop.f32.mrf.mxu0
        %v5409 = vadd.f32 0.0, %v5408
        %v5410 = vpop.f32.mrf.mxu0
        %v5411 = vadd.f32 0.0, %v5410
        %5412 = vdwg.mxu0
        %v5415 = vunpack.c.l.b16 %v5089
        %v5416 = vunpack.c.l.b16 %v5090
        %v5417 = vpack.c.b16 %v5416, %v5415
        %v5426 = vunpack.c.l.b16 %v3202
        %v5427 = vunpack.c.l.b16 %v3203
        %v5428 = vunpack.c.l.b16 %v3204
        %v5429 = vunpack.c.l.b16 %v3205
        %v5430 = vunpack.c.l.b16 %v3206
        %v5431 = vunpack.c.l.b16 %v3207
        %v5432 = vunpack.c.l.b16 %v3208
        %v5433 = vunpack.c.l.b16 %v3209
        %v5434 = vpack.c.b16 %v5427, %v5426
        %v5435 = vpack.c.b16 %v5429, %v5428
        %v5436 = vpack.c.b16 %v5431, %v5430
        %v5437 = vpack.c.b16 %v5433, %v5432
        %v5443 = vsel %vm1825, %v5417, 0
        %5445 = vmatpush.bf16.msra.mxu0 0
        %5446 = vmatpush.bf16.msra.mxu0 0
        %5447 = vmatpush.bf16.msra.mxu0 0
        %5448 = vmatpush.bf16.msra.mxu0 0
        %5449 = vmatpush.bf16.msra.mxu0 %v5437
        %5450 = vmatpush.bf16.msra.mxu0 %v5436
        %5451 = vmatpush.bf16.msra.mxu0 %v5435
        %5452 = vmatpush.bf16.msra.mxu0 %v5434
        %5453 = vmatmul.bf16.gmra.mxu0 %v5443
        %v5454 = vpop.f32.mrf.mxu0
        %v5455 = vadd.f32 0.0, %v5454
        %v5456 = vpop.f32.mrf.mxu0
        %v5457 = vadd.f32 0.0, %v5456
        %5458 = vdwg.mxu0
        %v5459 = vadd.f32 %v5133, %v5179
        %v5460 = vadd.f32 %v5459, %v5225
        %v5461 = vadd.f32 %v5460, %v5271
        %v5462 = vadd.f32 %v5461, %v5317
        %v5463 = vadd.f32 %v5462, %v5363
        %v5464 = vadd.f32 %v5463, %v5409
        %v5465 = vadd.f32 %v5464, %v5455
        %v5466 = vadd.f32 %v5135, %v5181
        %v5467 = vadd.f32 %v5466, %v5227
        %v5468 = vadd.f32 %v5467, %v5273
        %v5469 = vadd.f32 %v5468, %v5319
        %v5470 = vadd.f32 %v5469, %v5365
        %v5471 = vadd.f32 %v5470, %v5411
        %v5472 = vadd.f32 %v5471, %v5457
        %v5473 = vadd.f32 %v5465, %v2934
        %v5474 = vadd.f32 %v5472, %v2935
        %5475 = vadd.xlane.f32.xlu0 %v5473
        %v5476 = vpop.xlane.xlu0 %5475
        %5477 = vadd.xlane.f32.xlu0 %v5474
        %v5478 = vpop.xlane.xlu0 %5477
        %v5479 = vmul.f32 %v5476, %v2899
        %v5480 = vmul.f32 %v5478, %v2899
        %v5481 = vsub.f32 %v5473, %v5479
        %v5482 = vsub.f32 %v5474, %v5480
        %v5483 = vmul.f32 %v5481, %v5481
        %v5484 = vmul.f32 %v5482, %v5482
        %5485 = vadd.xlane.f32.xlu0 %v5483
        %v5486 = vpop.xlane.xlu0 %5485
        %5487 = vadd.xlane.f32.xlu0 %v5484
        %v5488 = vpop.xlane.xlu0 %5487
        %v5489 = vmul.f32 %v5486, %v2899
        %v5490 = vmul.f32 %v5488, %v2899
        %v5491 = vadd.f32 %v5489, 1e-05
        %v5492 = vadd.f32 %v5490, 1e-05
        %v5493 = vrsqrt.pop %v5491
        %v5494 = vmul.f32 %v5493, %v5491
        %v5495 = vmul.f32 %v5494, %v5493
        %v5496 = vmul.f32 0.5, %v5495
        %v5497 = vsub.f32 1.5, %v5496
        %v5498 = vmul.f32 %v5493, %v5497
        %vm5499 = vweird.f32 %v5491
        %vm5500 = vweird.f32 %v5493
        %vm5501 = vmor %vm5499, %vm5500
        %v5502 = vsel %vm5501, %v5493, %v5498
        %v5503 = vrsqrt.pop %v5492
        %v5504 = vmul.f32 %v5503, %v5492
        %v5505 = vmul.f32 %v5504, %v5503
        %v5506 = vmul.f32 0.5, %v5505
        %v5507 = vsub.f32 1.5, %v5506
        %v5508 = vmul.f32 %v5503, %v5507
        %vm5509 = vweird.f32 %v5492
        %vm5510 = vweird.f32 %v5503
        %vm5511 = vmor %vm5509, %vm5510
        %v5512 = vsel %vm5511, %v5503, %v5508
        %v5513 = vmul.f32 %v5481, %v5502
        %v5514 = vmul.f32 %v5482, %v5512
        %5515 = vst.msk [vmem:[%s577] sm:$0xff] %vm4578, %v4739
        %5516 = vst.msk [vmem:[%s577 + $0x8] sm:$0xff] %vm4578, %v4740
        %5517 = vst.msk [vmem:[%s577 + $0x10] sm:$0xff] %vm4578, %v4741
        %5518 = vst.msk [vmem:[%s577 + $0x18] sm:$0xff] %vm4578, %v4742
        %5519 = vst.msk [vmem:[%s577 + $0x20] sm:$0xff] %vm4578, %v4743
        %5520 = vst.msk [vmem:[%s577 + $0x28] sm:$0xff] %vm4578, %v4744
        %5521 = vst.msk [vmem:[%s577 + $0x30] sm:$0xff] %vm4578, %v4745
        %5522 = vst.msk [vmem:[%s577 + $0x38] sm:$0xff] %vm4578, %v4746
        %5523 = vst.msk [vmem:[%s577 + $0x40] sm:$0xff] %vm4578, %v4747
        %5524 = vst.msk [vmem:[%s577 + $0x48] sm:$0xff] %vm4578, %v4748
        %5525 = vst.msk [vmem:[%s577 + $0x50] sm:$0xff] %vm4578, %v4749
        %5526 = vst.msk [vmem:[%s577 + $0x58] sm:$0xff] %vm4578, %v4750
        %5527 = vst.msk [vmem:[%s577 + $0x60] sm:$0xff] %vm4578, %v4751
        %5528 = vst.msk [vmem:[%s577 + $0x68] sm:$0xff] %vm4578, %v4752
        %5529 = vst.msk [vmem:[%s577 + $0x70] sm:$0xff] %vm4578, %v4753
        %5530 = vst.msk [vmem:[%s577 + $0x78] sm:$0xff] %vm4578, %v4754
        %v5531 = vpack.c.bf16 %v5514, %v5513
        %v5532 = vld [vmem:[%s12] sm:$0xff]
        %v5533 = vld [vmem:[%s12 + $0x8] sm:$0xff]
        %v5534 = vld [vmem:[%s12 + $0x10] sm:$0xff]
        %v5535 = vld [vmem:[%s12 + $0x18] sm:$0xff]
        %v5536 = vld [vmem:[%s12 + $0x20] sm:$0xff]
        %v5537 = vld [vmem:[%s12 + $0x28] sm:$0xff]
        %v5538 = vld [vmem:[%s12 + $0x30] sm:$0xff]
        %v5539 = vld [vmem:[%s12 + $0x38] sm:$0xff]
        %v5540 = vld [vmem:[%s12 + $0x40] sm:$0xff]
        %v5541 = vld [vmem:[%s12 + $0x48] sm:$0xff]
        %v5542 = vld [vmem:[%s12 + $0x50] sm:$0xff]
        %v5543 = vld [vmem:[%s12 + $0x58] sm:$0xff]
        %v5544 = vld [vmem:[%s12 + $0x60] sm:$0xff]
        %v5545 = vld [vmem:[%s12 + $0x68] sm:$0xff]
        %v5546 = vld [vmem:[%s12 + $0x70] sm:$0xff]
        %v5547 = vld [vmem:[%s12 + $0x78] sm:$0xff]
        %v5548 = vld [vmem:[%s12 + $0x80] sm:$0xff]
        %v5549 = vld [vmem:[%s12 + $0x88] sm:$0xff]
        %v5550 = vld [vmem:[%s12 + $0x90] sm:$0xff]
        %v5551 = vld [vmem:[%s12 + $0x98] sm:$0xff]
        %v5552 = vld [vmem:[%s12 + $0xa0] sm:$0xff]
        %v5553 = vld [vmem:[%s12 + $0xa8] sm:$0xff]
        %v5554 = vld [vmem:[%s12 + $0xb0] sm:$0xff]
        %v5555 = vld [vmem:[%s12 + $0xb8] sm:$0xff]
        %v5556 = vld [vmem:[%s12 + $0xc0] sm:$0xff]
        %v5557 = vld [vmem:[%s12 + $0xc8] sm:$0xff]
        %v5558 = vld [vmem:[%s12 + $0xd0] sm:$0xff]
        %v5559 = vld [vmem:[%s12 + $0xd8] sm:$0xff]
        %v5560 = vld [vmem:[%s12 + $0xe0] sm:$0xff]
        %v5561 = vld [vmem:[%s12 + $0xe8] sm:$0xff]
        %v5562 = vld [vmem:[%s12 + $0xf0] sm:$0xff]
        %v5563 = vld [vmem:[%s12 + $0xf8] sm:$0xff]
        %v5564 = vld [vmem:[%s12 + $0x100] sm:$0xff]
        %v5565 = vld [vmem:[%s12 + $0x108] sm:$0xff]
        %v5566 = vld [vmem:[%s12 + $0x110] sm:$0xff]
        %v5567 = vld [vmem:[%s12 + $0x118] sm:$0xff]
        %v5568 = vld [vmem:[%s12 + $0x120] sm:$0xff]
        %v5569 = vld [vmem:[%s12 + $0x128] sm:$0xff]
        %v5570 = vld [vmem:[%s12 + $0x130] sm:$0xff]
        %v5571 = vld [vmem:[%s12 + $0x138] sm:$0xff]
        %v5572 = vld [vmem:[%s12 + $0x140] sm:$0xff]
        %v5573 = vld [vmem:[%s12 + $0x148] sm:$0xff]
        %v5574 = vld [vmem:[%s12 + $0x150] sm:$0xff]
        %v5575 = vld [vmem:[%s12 + $0x158] sm:$0xff]
        %v5576 = vld [vmem:[%s12 + $0x160] sm:$0xff]
        %v5577 = vld [vmem:[%s12 + $0x168] sm:$0xff]
        %v5578 = vld [vmem:[%s12 + $0x170] sm:$0xff]
        %v5579 = vld [vmem:[%s12 + $0x178] sm:$0xff]
        %v5580 = vld [vmem:[%s12 + $0x180] sm:$0xff]
        %v5581 = vld [vmem:[%s12 + $0x188] sm:$0xff]
        %v5582 = vld [vmem:[%s12 + $0x190] sm:$0xff]
        %v5583 = vld [vmem:[%s12 + $0x198] sm:$0xff]
        %v5584 = vld [vmem:[%s12 + $0x1a0] sm:$0xff]
        %v5585 = vld [vmem:[%s12 + $0x1a8] sm:$0xff]
        %v5586 = vld [vmem:[%s12 + $0x1b0] sm:$0xff]
        %v5587 = vld [vmem:[%s12 + $0x1b8] sm:$0xff]
        %v5588 = vld [vmem:[%s12 + $0x1c0] sm:$0xff]
        %v5589 = vld [vmem:[%s12 + $0x1c8] sm:$0xff]
        %v5590 = vld [vmem:[%s12 + $0x1d0] sm:$0xff]
        %v5591 = vld [vmem:[%s12 + $0x1d8] sm:$0xff]
        %v5592 = vld [vmem:[%s12 + $0x1e0] sm:$0xff]
        %v5593 = vld [vmem:[%s12 + $0x1e8] sm:$0xff]
        %v5594 = vld [vmem:[%s12 + $0x1f0] sm:$0xff]
        %v5595 = vld [vmem:[%s12 + $0x1f8] sm:$0xff]
        %v5596 = vld [vmem:[%s12 + $0x200] sm:$0xff]
        %v5597 = vld [vmem:[%s12 + $0x208] sm:$0xff]
        %v5598 = vld [vmem:[%s12 + $0x210] sm:$0xff]
        %v5599 = vld [vmem:[%s12 + $0x218] sm:$0xff]
        %v5600 = vld [vmem:[%s12 + $0x220] sm:$0xff]
        %v5601 = vld [vmem:[%s12 + $0x228] sm:$0xff]
        %v5602 = vld [vmem:[%s12 + $0x230] sm:$0xff]
        %v5603 = vld [vmem:[%s12 + $0x238] sm:$0xff]
        %v5604 = vld [vmem:[%s12 + $0x240] sm:$0xff]
        %v5605 = vld [vmem:[%s12 + $0x248] sm:$0xff]
        %v5606 = vld [vmem:[%s12 + $0x250] sm:$0xff]
        %v5607 = vld [vmem:[%s12 + $0x258] sm:$0xff]
        %v5608 = vld [vmem:[%s12 + $0x260] sm:$0xff]
        %v5609 = vld [vmem:[%s12 + $0x268] sm:$0xff]
        %v5610 = vld [vmem:[%s12 + $0x270] sm:$0xff]
        %v5611 = vld [vmem:[%s12 + $0x278] sm:$0xff]
        %v5612 = vld [vmem:[%s12 + $0x280] sm:$0xff]
        %v5613 = vld [vmem:[%s12 + $0x288] sm:$0xff]
        %v5614 = vld [vmem:[%s12 + $0x290] sm:$0xff]
        %v5615 = vld [vmem:[%s12 + $0x298] sm:$0xff]
        %v5616 = vld [vmem:[%s12 + $0x2a0] sm:$0xff]
        %v5617 = vld [vmem:[%s12 + $0x2a8] sm:$0xff]
        %v5618 = vld [vmem:[%s12 + $0x2b0] sm:$0xff]
        %v5619 = vld [vmem:[%s12 + $0x2b8] sm:$0xff]
        %v5620 = vld [vmem:[%s12 + $0x2c0] sm:$0xff]
        %v5621 = vld [vmem:[%s12 + $0x2c8] sm:$0xff]
        %v5622 = vld [vmem:[%s12 + $0x2d0] sm:$0xff]
        %v5623 = vld [vmem:[%s12 + $0x2d8] sm:$0xff]
        %v5624 = vld [vmem:[%s12 + $0x2e0] sm:$0xff]
        %v5625 = vld [vmem:[%s12 + $0x2e8] sm:$0xff]
        %v5626 = vld [vmem:[%s12 + $0x2f0] sm:$0xff]
        %v5627 = vld [vmem:[%s12 + $0x2f8] sm:$0xff]
        %v5628 = vld [vmem:[%s12 + $0x300] sm:$0xff]
        %v5629 = vld [vmem:[%s12 + $0x308] sm:$0xff]
        %v5630 = vld [vmem:[%s12 + $0x310] sm:$0xff]
        %v5631 = vld [vmem:[%s12 + $0x318] sm:$0xff]
        %v5632 = vld [vmem:[%s12 + $0x320] sm:$0xff]
        %v5633 = vld [vmem:[%s12 + $0x328] sm:$0xff]
        %v5634 = vld [vmem:[%s12 + $0x330] sm:$0xff]
        %v5635 = vld [vmem:[%s12 + $0x338] sm:$0xff]
        %v5636 = vld [vmem:[%s12 + $0x340] sm:$0xff]
        %v5637 = vld [vmem:[%s12 + $0x348] sm:$0xff]
        %v5638 = vld [vmem:[%s12 + $0x350] sm:$0xff]
        %v5639 = vld [vmem:[%s12 + $0x358] sm:$0xff]
        %v5640 = vld [vmem:[%s12 + $0x360] sm:$0xff]
        %v5641 = vld [vmem:[%s12 + $0x368] sm:$0xff]
        %v5642 = vld [vmem:[%s12 + $0x370] sm:$0xff]
        %v5643 = vld [vmem:[%s12 + $0x378] sm:$0xff]
        %v5644 = vld [vmem:[%s12 + $0x380] sm:$0xff]
        %v5645 = vld [vmem:[%s12 + $0x388] sm:$0xff]
        %v5646 = vld [vmem:[%s12 + $0x390] sm:$0xff]
        %v5647 = vld [vmem:[%s12 + $0x398] sm:$0xff]
        %v5648 = vld [vmem:[%s12 + $0x3a0] sm:$0xff]
        %v5649 = vld [vmem:[%s12 + $0x3a8] sm:$0xff]
        %v5650 = vld [vmem:[%s12 + $0x3b0] sm:$0xff]
        %v5651 = vld [vmem:[%s12 + $0x3b8] sm:$0xff]
        %v5652 = vld [vmem:[%s12 + $0x3c0] sm:$0xff]
        %v5653 = vld [vmem:[%s12 + $0x3c8] sm:$0xff]
        %v5654 = vld [vmem:[%s12 + $0x3d0] sm:$0xff]
        %v5655 = vld [vmem:[%s12 + $0x3d8] sm:$0xff]
        %v5656 = vld [vmem:[%s12 + $0x3e0] sm:$0xff]
        %v5657 = vld [vmem:[%s12 + $0x3e8] sm:$0xff]
        %v5658 = vld [vmem:[%s12 + $0x3f0] sm:$0xff]
        %v5659 = vld [vmem:[%s12 + $0x3f8] sm:$0xff]
        %v5788 = vunpack.c.l.b16 %v5532
        %v5789 = vunpack.c.h.b16 %v5532
        %v5790 = vunpack.c.l.b16 %v5533
        %v5791 = vunpack.c.h.b16 %v5533
        %v5792 = vunpack.c.l.b16 %v5534
        %v5793 = vunpack.c.h.b16 %v5534
        %v5794 = vunpack.c.l.b16 %v5535
        %v5795 = vunpack.c.h.b16 %v5535
        %v5796 = vunpack.c.l.b16 %v5536
        %v5797 = vunpack.c.h.b16 %v5536
        %v5798 = vunpack.c.l.b16 %v5537
        %v5799 = vunpack.c.h.b16 %v5537
        %v5800 = vunpack.c.l.b16 %v5538
        %v5801 = vunpack.c.h.b16 %v5538
        %v5802 = vunpack.c.l.b16 %v5539
        %v5803 = vunpack.c.h.b16 %v5539
        %v5804 = vunpack.c.l.b16 %v5540
        %v5805 = vunpack.c.h.b16 %v5540
        %v5806 = vunpack.c.l.b16 %v5541
        %v5807 = vunpack.c.h.b16 %v5541
        %v5808 = vunpack.c.l.b16 %v5542
        %v5809 = vunpack.c.h.b16 %v5542
        %v5810 = vunpack.c.l.b16 %v5543
        %v5811 = vunpack.c.h.b16 %v5543
        %v5812 = vunpack.c.l.b16 %v5544
        %v5813 = vunpack.c.h.b16 %v5544
        %v5814 = vunpack.c.l.b16 %v5545
        %v5815 = vunpack.c.h.b16 %v5545
        %v5816 = vunpack.c.l.b16 %v5546
        %v5817 = vunpack.c.h.b16 %v5546
        %v5818 = vunpack.c.l.b16 %v5547
        %v5819 = vunpack.c.h.b16 %v5547
        %v5820 = vunpack.c.l.b16 %v5548
        %v5821 = vunpack.c.h.b16 %v5548
        %v5822 = vunpack.c.l.b16 %v5549
        %v5823 = vunpack.c.h.b16 %v5549
        %v5824 = vunpack.c.l.b16 %v5550
        %v5825 = vunpack.c.h.b16 %v5550
        %v5826 = vunpack.c.l.b16 %v5551
        %v5827 = vunpack.c.h.b16 %v5551
        %v5828 = vunpack.c.l.b16 %v5552
        %v5829 = vunpack.c.h.b16 %v5552
        %v5830 = vunpack.c.l.b16 %v5553
        %v5831 = vunpack.c.h.b16 %v5553
        %v5832 = vunpack.c.l.b16 %v5554
        %v5833 = vunpack.c.h.b16 %v5554
        %v5834 = vunpack.c.l.b16 %v5555
        %v5835 = vunpack.c.h.b16 %v5555
        %v5836 = vunpack.c.l.b16 %v5556
        %v5837 = vunpack.c.h.b16 %v5556
        %v5838 = vunpack.c.l.b16 %v5557
        %v5839 = vunpack.c.h.b16 %v5557
        %v5840 = vunpack.c.l.b16 %v5558
        %v5841 = vunpack.c.h.b16 %v5558
        %v5842 = vunpack.c.l.b16 %v5559
        %v5843 = vunpack.c.h.b16 %v5559
        %v5844 = vunpack.c.l.b16 %v5560
        %v5845 = vunpack.c.h.b16 %v5560
        %v5846 = vunpack.c.l.b16 %v5561
        %v5847 = vunpack.c.h.b16 %v5561
        %v5848 = vunpack.c.l.b16 %v5562
        %v5849 = vunpack.c.h.b16 %v5562
        %v5850 = vunpack.c.l.b16 %v5563
        %v5851 = vunpack.c.h.b16 %v5563
        %v5852 = vunpack.c.l.b16 %v5564
        %v5853 = vunpack.c.h.b16 %v5564
        %v5854 = vunpack.c.l.b16 %v5565
        %v5855 = vunpack.c.h.b16 %v5565
        %v5856 = vunpack.c.l.b16 %v5566
        %v5857 = vunpack.c.h.b16 %v5566
        %v5858 = vunpack.c.l.b16 %v5567
        %v5859 = vunpack.c.h.b16 %v5567
        %v5860 = vunpack.c.l.b16 %v5568
        %v5861 = vunpack.c.h.b16 %v5568
        %v5862 = vunpack.c.l.b16 %v5569
        %v5863 = vunpack.c.h.b16 %v5569
        %v5864 = vunpack.c.l.b16 %v5570
        %v5865 = vunpack.c.h.b16 %v5570
        %v5866 = vunpack.c.l.b16 %v5571
        %v5867 = vunpack.c.h.b16 %v5571
        %v5868 = vunpack.c.l.b16 %v5572
        %v5869 = vunpack.c.h.b16 %v5572
        %v5870 = vunpack.c.l.b16 %v5573
        %v5871 = vunpack.c.h.b16 %v5573
        %v5872 = vunpack.c.l.b16 %v5574
        %v5873 = vunpack.c.h.b16 %v5574
        %v5874 = vunpack.c.l.b16 %v5575
        %v5875 = vunpack.c.h.b16 %v5575
        %v5876 = vunpack.c.l.b16 %v5576
        %v5877 = vunpack.c.h.b16 %v5576
        %v5878 = vunpack.c.l.b16 %v5577
        %v5879 = vunpack.c.h.b16 %v5577
        %v5880 = vunpack.c.l.b16 %v5578
        %v5881 = vunpack.c.h.b16 %v5578
        %v5882 = vunpack.c.l.b16 %v5579
        %v5883 = vunpack.c.h.b16 %v5579
        %v5884 = vunpack.c.l.b16 %v5580
        %v5885 = vunpack.c.h.b16 %v5580
        %v5886 = vunpack.c.l.b16 %v5581
        %v5887 = vunpack.c.h.b16 %v5581
        %v5888 = vunpack.c.l.b16 %v5582
        %v5889 = vunpack.c.h.b16 %v5582
        %v5890 = vunpack.c.l.b16 %v5583
        %v5891 = vunpack.c.h.b16 %v5583
        %v5892 = vunpack.c.l.b16 %v5584
        %v5893 = vunpack.c.h.b16 %v5584
        %v5894 = vunpack.c.l.b16 %v5585
        %v5895 = vunpack.c.h.b16 %v5585
        %v5896 = vunpack.c.l.b16 %v5586
        %v5897 = vunpack.c.h.b16 %v5586
        %v5898 = vunpack.c.l.b16 %v5587
        %v5899 = vunpack.c.h.b16 %v5587
        %v5900 = vunpack.c.l.b16 %v5588
        %v5901 = vunpack.c.h.b16 %v5588
        %v5902 = vunpack.c.l.b16 %v5589
        %v5903 = vunpack.c.h.b16 %v5589
        %v5904 = vunpack.c.l.b16 %v5590
        %v5905 = vunpack.c.h.b16 %v5590
        %v5906 = vunpack.c.l.b16 %v5591
        %v5907 = vunpack.c.h.b16 %v5591
        %v5908 = vunpack.c.l.b16 %v5592
        %v5909 = vunpack.c.h.b16 %v5592
        %v5910 = vunpack.c.l.b16 %v5593
        %v5911 = vunpack.c.h.b16 %v5593
        %v5912 = vunpack.c.l.b16 %v5594
        %v5913 = vunpack.c.h.b16 %v5594
        %v5914 = vunpack.c.l.b16 %v5595
        %v5915 = vunpack.c.h.b16 %v5595
        %v5916 = vunpack.c.l.b16 %v5596
        %v5917 = vunpack.c.h.b16 %v5596
        %v5918 = vunpack.c.l.b16 %v5597
        %v5919 = vunpack.c.h.b16 %v5597
        %v5920 = vunpack.c.l.b16 %v5598
        %v5921 = vunpack.c.h.b16 %v5598
        %v5922 = vunpack.c.l.b16 %v5599
        %v5923 = vunpack.c.h.b16 %v5599
        %v5924 = vunpack.c.l.b16 %v5600
        %v5925 = vunpack.c.h.b16 %v5600
        %v5926 = vunpack.c.l.b16 %v5601
        %v5927 = vunpack.c.h.b16 %v5601
        %v5928 = vunpack.c.l.b16 %v5602
        %v5929 = vunpack.c.h.b16 %v5602
        %v5930 = vunpack.c.l.b16 %v5603
        %v5931 = vunpack.c.h.b16 %v5603
        %v5932 = vunpack.c.l.b16 %v5604
        %v5933 = vunpack.c.h.b16 %v5604
        %v5934 = vunpack.c.l.b16 %v5605
        %v5935 = vunpack.c.h.b16 %v5605
        %v5936 = vunpack.c.l.b16 %v5606
        %v5937 = vunpack.c.h.b16 %v5606
        %v5938 = vunpack.c.l.b16 %v5607
        %v5939 = vunpack.c.h.b16 %v5607
        %v5940 = vunpack.c.l.b16 %v5608
        %v5941 = vunpack.c.h.b16 %v5608
        %v5942 = vunpack.c.l.b16 %v5609
        %v5943 = vunpack.c.h.b16 %v5609
        %v5944 = vunpack.c.l.b16 %v5610
        %v5945 = vunpack.c.h.b16 %v5610
        %v5946 = vunpack.c.l.b16 %v5611
        %v5947 = vunpack.c.h.b16 %v5611
        %v5948 = vunpack.c.l.b16 %v5612
        %v5949 = vunpack.c.h.b16 %v5612
        %v5950 = vunpack.c.l.b16 %v5613
        %v5951 = vunpack.c.h.b16 %v5613
        %v5952 = vunpack.c.l.b16 %v5614
        %v5953 = vunpack.c.h.b16 %v5614
        %v5954 = vunpack.c.l.b16 %v5615
        %v5955 = vunpack.c.h.b16 %v5615
        %v5956 = vunpack.c.l.b16 %v5616
        %v5957 = vunpack.c.h.b16 %v5616
        %v5958 = vunpack.c.l.b16 %v5617
        %v5959 = vunpack.c.h.b16 %v5617
        %v5960 = vunpack.c.l.b16 %v5618
        %v5961 = vunpack.c.h.b16 %v5618
        %v5962 = vunpack.c.l.b16 %v5619
        %v5963 = vunpack.c.h.b16 %v5619
        %v5964 = vunpack.c.l.b16 %v5620
        %v5965 = vunpack.c.h.b16 %v5620
        %v5966 = vunpack.c.l.b16 %v5621
        %v5967 = vunpack.c.h.b16 %v5621
        %v5968 = vunpack.c.l.b16 %v5622
        %v5969 = vunpack.c.h.b16 %v5622
        %v5970 = vunpack.c.l.b16 %v5623
        %v5971 = vunpack.c.h.b16 %v5623
        %v5972 = vunpack.c.l.b16 %v5624
        %v5973 = vunpack.c.h.b16 %v5624
        %v5974 = vunpack.c.l.b16 %v5625
        %v5975 = vunpack.c.h.b16 %v5625
        %v5976 = vunpack.c.l.b16 %v5626
        %v5977 = vunpack.c.h.b16 %v5626
        %v5978 = vunpack.c.l.b16 %v5627
        %v5979 = vunpack.c.h.b16 %v5627
        %v5980 = vunpack.c.l.b16 %v5628
        %v5981 = vunpack.c.h.b16 %v5628
        %v5982 = vunpack.c.l.b16 %v5629
        %v5983 = vunpack.c.h.b16 %v5629
        %v5984 = vunpack.c.l.b16 %v5630
        %v5985 = vunpack.c.h.b16 %v5630
        %v5986 = vunpack.c.l.b16 %v5631
        %v5987 = vunpack.c.h.b16 %v5631
        %v5988 = vunpack.c.l.b16 %v5632
        %v5989 = vunpack.c.h.b16 %v5632
        %v5990 = vunpack.c.l.b16 %v5633
        %v5991 = vunpack.c.h.b16 %v5633
        %v5992 = vunpack.c.l.b16 %v5634
        %v5993 = vunpack.c.h.b16 %v5634
        %v5994 = vunpack.c.l.b16 %v5635
        %v5995 = vunpack.c.h.b16 %v5635
        %v5996 = vunpack.c.l.b16 %v5636
        %v5997 = vunpack.c.h.b16 %v5636
        %v5998 = vunpack.c.l.b16 %v5637
        %v5999 = vunpack.c.h.b16 %v5637
        %v6000 = vunpack.c.l.b16 %v5638
        %v6001 = vunpack.c.h.b16 %v5638
        %v6002 = vunpack.c.l.b16 %v5639
        %v6003 = vunpack.c.h.b16 %v5639
        %v6004 = vunpack.c.l.b16 %v5640
        %v6005 = vunpack.c.h.b16 %v5640
        %v6006 = vunpack.c.l.b16 %v5641
        %v6007 = vunpack.c.h.b16 %v5641
        %v6008 = vunpack.c.l.b16 %v5642
        %v6009 = vunpack.c.h.b16 %v5642
        %v6010 = vunpack.c.l.b16 %v5643
        %v6011 = vunpack.c.h.b16 %v5643
        %v6012 = vunpack.c.l.b16 %v5644
        %v6013 = vunpack.c.h.b16 %v5644
        %v6014 = vunpack.c.l.b16 %v5645
        %v6015 = vunpack.c.h.b16 %v5645
        %v6016 = vunpack.c.l.b16 %v5646
        %v6017 = vunpack.c.h.b16 %v5646
        %v6018 = vunpack.c.l.b16 %v5647
        %v6019 = vunpack.c.h.b16 %v5647
        %v6020 = vunpack.c.l.b16 %v5648
        %v6021 = vunpack.c.h.b16 %v5648
        %v6022 = vunpack.c.l.b16 %v5649
        %v6023 = vunpack.c.h.b16 %v5649
        %v6024 = vunpack.c.l.b16 %v5650
        %v6025 = vunpack.c.h.b16 %v5650
        %v6026 = vunpack.c.l.b16 %v5651
        %v6027 = vunpack.c.h.b16 %v5651
        %v6028 = vunpack.c.l.b16 %v5652
        %v6029 = vunpack.c.h.b16 %v5652
        %v6030 = vunpack.c.l.b16 %v5653
        %v6031 = vunpack.c.h.b16 %v5653
        %v6032 = vunpack.c.l.b16 %v5654
        %v6033 = vunpack.c.h.b16 %v5654
        %v6034 = vunpack.c.l.b16 %v5655
        %v6035 = vunpack.c.h.b16 %v5655
        %v6036 = vunpack.c.l.b16 %v5656
        %v6037 = vunpack.c.h.b16 %v5656
        %v6038 = vunpack.c.l.b16 %v5657
        %v6039 = vunpack.c.h.b16 %v5657
        %v6040 = vunpack.c.l.b16 %v5658
        %v6041 = vunpack.c.h.b16 %v5658
        %v6042 = vunpack.c.l.b16 %v5659
        %v6043 = vunpack.c.h.b16 %v5659
        %v6044 = vpack.c.b16 %v5804, %v5788
        %v6045 = vpack.c.b16 %v5805, %v5789
        %v6046 = vpack.c.b16 %v5806, %v5790
        %v6047 = vpack.c.b16 %v5807, %v5791
        %v6048 = vpack.c.b16 %v5808, %v5792
        %v6049 = vpack.c.b16 %v5809, %v5793
        %v6050 = vpack.c.b16 %v5810, %v5794
        %v6051 = vpack.c.b16 %v5811, %v5795
        %v6052 = vpack.c.b16 %v5812, %v5796
        %v6053 = vpack.c.b16 %v5813, %v5797
        %v6054 = vpack.c.b16 %v5814, %v5798
        %v6055 = vpack.c.b16 %v5815, %v5799
        %v6056 = vpack.c.b16 %v5816, %v5800
        %v6057 = vpack.c.b16 %v5817, %v5801
        %v6058 = vpack.c.b16 %v5818, %v5802
        %v6059 = vpack.c.b16 %v5819, %v5803
        %v6060 = vpack.c.b16 %v5836, %v5820
        %v6061 = vpack.c.b16 %v5837, %v5821
        %v6062 = vpack.c.b16 %v5838, %v5822
        %v6063 = vpack.c.b16 %v5839, %v5823
        %v6064 = vpack.c.b16 %v5840, %v5824
        %v6065 = vpack.c.b16 %v5841, %v5825
        %v6066 = vpack.c.b16 %v5842, %v5826
        %v6067 = vpack.c.b16 %v5843, %v5827
        %v6068 = vpack.c.b16 %v5844, %v5828
        %v6069 = vpack.c.b16 %v5845, %v5829
        %v6070 = vpack.c.b16 %v5846, %v5830
        %v6071 = vpack.c.b16 %v5847, %v5831
        %v6072 = vpack.c.b16 %v5848, %v5832
        %v6073 = vpack.c.b16 %v5849, %v5833
        %v6074 = vpack.c.b16 %v5850, %v5834
        %v6075 = vpack.c.b16 %v5851, %v5835
        %v6076 = vpack.c.b16 %v5868, %v5852
        %v6077 = vpack.c.b16 %v5869, %v5853
        %v6078 = vpack.c.b16 %v5870, %v5854
        %v6079 = vpack.c.b16 %v5871, %v5855
        %v6080 = vpack.c.b16 %v5872, %v5856
        %v6081 = vpack.c.b16 %v5873, %v5857
        %v6082 = vpack.c.b16 %v5874, %v5858
        %v6083 = vpack.c.b16 %v5875, %v5859
        %v6084 = vpack.c.b16 %v5876, %v5860
        %v6085 = vpack.c.b16 %v5877, %v5861
        %v6086 = vpack.c.b16 %v5878, %v5862
        %v6087 = vpack.c.b16 %v5879, %v5863
        %v6088 = vpack.c.b16 %v5880, %v5864
        %v6089 = vpack.c.b16 %v5881, %v5865
        %v6090 = vpack.c.b16 %v5882, %v5866
        %v6091 = vpack.c.b16 %v5883, %v5867
        %v6092 = vpack.c.b16 %v5900, %v5884
        %v6093 = vpack.c.b16 %v5901, %v5885
        %v6094 = vpack.c.b16 %v5902, %v5886
        %v6095 = vpack.c.b16 %v5903, %v5887
        %v6096 = vpack.c.b16 %v5904, %v5888
        %v6097 = vpack.c.b16 %v5905, %v5889
        %v6098 = vpack.c.b16 %v5906, %v5890
        %v6099 = vpack.c.b16 %v5907, %v5891
        %v6100 = vpack.c.b16 %v5908, %v5892
        %v6101 = vpack.c.b16 %v5909, %v5893
        %v6102 = vpack.c.b16 %v5910, %v5894
        %v6103 = vpack.c.b16 %v5911, %v5895
        %v6104 = vpack.c.b16 %v5912, %v5896
        %v6105 = vpack.c.b16 %v5913, %v5897
        %v6106 = vpack.c.b16 %v5914, %v5898
        %v6107 = vpack.c.b16 %v5915, %v5899
        %v6108 = vpack.c.b16 %v5932, %v5916
        %v6109 = vpack.c.b16 %v5933, %v5917
        %v6110 = vpack.c.b16 %v5934, %v5918
        %v6111 = vpack.c.b16 %v5935, %v5919
        %v6112 = vpack.c.b16 %v5936, %v5920
        %v6113 = vpack.c.b16 %v5937, %v5921
        %v6114 = vpack.c.b16 %v5938, %v5922
        %v6115 = vpack.c.b16 %v5939, %v5923
        %v6116 = vpack.c.b16 %v5940, %v5924
        %v6117 = vpack.c.b16 %v5941, %v5925
        %v6118 = vpack.c.b16 %v5942, %v5926
        %v6119 = vpack.c.b16 %v5943, %v5927
        %v6120 = vpack.c.b16 %v5944, %v5928
        %v6121 = vpack.c.b16 %v5945, %v5929
        %v6122 = vpack.c.b16 %v5946, %v5930
        %v6123 = vpack.c.b16 %v5947, %v5931
        %v6124 = vpack.c.b16 %v5964, %v5948
        %v6125 = vpack.c.b16 %v5965, %v5949
        %v6126 = vpack.c.b16 %v5966, %v5950
        %v6127 = vpack.c.b16 %v5967, %v5951
        %v6128 = vpack.c.b16 %v5968, %v5952
        %v6129 = vpack.c.b16 %v5969, %v5953
        %v6130 = vpack.c.b16 %v5970, %v5954
        %v6131 = vpack.c.b16 %v5971, %v5955
        %v6132 = vpack.c.b16 %v5972, %v5956
        %v6133 = vpack.c.b16 %v5973, %v5957
        %v6134 = vpack.c.b16 %v5974, %v5958
        %v6135 = vpack.c.b16 %v5975, %v5959
        %v6136 = vpack.c.b16 %v5976, %v5960
        %v6137 = vpack.c.b16 %v5977, %v5961
        %v6138 = vpack.c.b16 %v5978, %v5962
        %v6139 = vpack.c.b16 %v5979, %v5963
        %v6140 = vpack.c.b16 %v5996, %v5980
        %v6141 = vpack.c.b16 %v5997, %v5981
        %v6142 = vpack.c.b16 %v5998, %v5982
        %v6143 = vpack.c.b16 %v5999, %v5983
        %v6144 = vpack.c.b16 %v6000, %v5984
        %v6145 = vpack.c.b16 %v6001, %v5985
        %v6146 = vpack.c.b16 %v6002, %v5986
        %v6147 = vpack.c.b16 %v6003, %v5987
        %v6148 = vpack.c.b16 %v6004, %v5988
        %v6149 = vpack.c.b16 %v6005, %v5989
        %v6150 = vpack.c.b16 %v6006, %v5990
        %v6151 = vpack.c.b16 %v6007, %v5991
        %v6152 = vpack.c.b16 %v6008, %v5992
        %v6153 = vpack.c.b16 %v6009, %v5993
        %v6154 = vpack.c.b16 %v6010, %v5994
        %v6155 = vpack.c.b16 %v6011, %v5995
        %v6156 = vpack.c.b16 %v6028, %v6012
        %v6157 = vpack.c.b16 %v6029, %v6013
        %v6158 = vpack.c.b16 %v6030, %v6014
        %v6159 = vpack.c.b16 %v6031, %v6015
        %v6160 = vpack.c.b16 %v6032, %v6016
        %v6161 = vpack.c.b16 %v6033, %v6017
        %v6162 = vpack.c.b16 %v6034, %v6018
        %v6163 = vpack.c.b16 %v6035, %v6019
        %v6164 = vpack.c.b16 %v6036, %v6020
        %v6165 = vpack.c.b16 %v6037, %v6021
        %v6166 = vpack.c.b16 %v6038, %v6022
        %v6167 = vpack.c.b16 %v6039, %v6023
        %v6168 = vpack.c.b16 %v6040, %v6024
        %v6169 = vpack.c.b16 %v6041, %v6025
        %v6170 = vpack.c.b16 %v6042, %v6026
        %v6171 = vpack.c.b16 %v6043, %v6027
        %6300 = vmatpush.bf16.msra.mxu0 %v6156
        %6301 = vmatpush.bf16.msra.mxu0 %v6140
        %6302 = vmatpush.bf16.msra.mxu0 %v6124
        %6303 = vmatpush.bf16.msra.mxu0 %v6108
        %6304 = vmatpush.bf16.msra.mxu0 %v6092
        %6305 = vmatpush.bf16.msra.mxu0 %v6076
        %6306 = vmatpush.bf16.msra.mxu0 %v6060
        %6307 = vmatpush.bf16.msra.mxu0 %v6044
        %6308 = vmatmul.bf16.gmra.mxu0 %v5531
        %v6309 = vpop.f32.mrf.mxu0
        %v6310 = vadd.f32 0.0, %v6309
        %v6311 = vpop.f32.mrf.mxu0
        %v6312 = vadd.f32 0.0, %v6311
        %6313 = vdwg.mxu0
        %6314 = vmatpush.bf16.msra.mxu0 %v6157
        %6315 = vmatpush.bf16.msra.mxu0 %v6141
        %6316 = vmatpush.bf16.msra.mxu0 %v6125
        %6317 = vmatpush.bf16.msra.mxu0 %v6109
        %6318 = vmatpush.bf16.msra.mxu0 %v6093
        %6319 = vmatpush.bf16.msra.mxu0 %v6077
        %6320 = vmatpush.bf16.msra.mxu0 %v6061
        %6321 = vmatpush.bf16.msra.mxu0 %v6045
        %6322 = vmatmul.bf16.gmra.mxu0 %v5531
        %v6323 = vpop.f32.mrf.mxu0
        %v6324 = vadd.f32 0.0, %v6323
        %v6325 = vpop.f32.mrf.mxu0
        %v6326 = vadd.f32 0.0, %v6325
        %6327 = vdwg.mxu0
        %6328 = vmatpush.bf16.msra.mxu0 %v6158
        %6329 = vmatpush.bf16.msra.mxu0 %v6142
        %6330 = vmatpush.bf16.msra.mxu0 %v6126
        %6331 = vmatpush.bf16.msra.mxu0 %v6110
        %6332 = vmatpush.bf16.msra.mxu0 %v6094
        %6333 = vmatpush.bf16.msra.mxu0 %v6078
        %6334 = vmatpush.bf16.msra.mxu0 %v6062
        %6335 = vmatpush.bf16.msra.mxu0 %v6046
        %6336 = vmatmul.bf16.gmra.mxu0 %v5531
        %v6337 = vpop.f32.mrf.mxu0
        %v6338 = vadd.f32 0.0, %v6337
        %v6339 = vpop.f32.mrf.mxu0
        %v6340 = vadd.f32 0.0, %v6339
        %6341 = vdwg.mxu0
        %6342 = vmatpush.bf16.msra.mxu0 %v6159
        %6343 = vmatpush.bf16.msra.mxu0 %v6143
        %6344 = vmatpush.bf16.msra.mxu0 %v6127
        %6345 = vmatpush.bf16.msra.mxu0 %v6111
        %6346 = vmatpush.bf16.msra.mxu0 %v6095
        %6347 = vmatpush.bf16.msra.mxu0 %v6079
        %6348 = vmatpush.bf16.msra.mxu0 %v6063
        %6349 = vmatpush.bf16.msra.mxu0 %v6047
        %6350 = vmatmul.bf16.gmra.mxu0 %v5531
        %v6351 = vpop.f32.mrf.mxu0
        %v6352 = vadd.f32 0.0, %v6351
        %v6353 = vpop.f32.mrf.mxu0
        %v6354 = vadd.f32 0.0, %v6353
        %6355 = vdwg.mxu0
        %6356 = vmatpush.bf16.msra.mxu0 %v6160
        %6357 = vmatpush.bf16.msra.mxu0 %v6144
        %6358 = vmatpush.bf16.msra.mxu0 %v6128
        %6359 = vmatpush.bf16.msra.mxu0 %v6112
        %6360 = vmatpush.bf16.msra.mxu0 %v6096
        %6361 = vmatpush.bf16.msra.mxu0 %v6080
        %6362 = vmatpush.bf16.msra.mxu0 %v6064
        %6363 = vmatpush.bf16.msra.mxu0 %v6048
        %6364 = vmatmul.bf16.gmra.mxu0 %v5531
        %v6365 = vpop.f32.mrf.mxu0
        %v6366 = vadd.f32 0.0, %v6365
        %v6367 = vpop.f32.mrf.mxu0
        %v6368 = vadd.f32 0.0, %v6367
        %6369 = vdwg.mxu0
        %6370 = vmatpush.bf16.msra.mxu0 %v6161
        %6371 = vmatpush.bf16.msra.mxu0 %v6145
        %6372 = vmatpush.bf16.msra.mxu0 %v6129
        %6373 = vmatpush.bf16.msra.mxu0 %v6113
        %6374 = vmatpush.bf16.msra.mxu0 %v6097
        %6375 = vmatpush.bf16.msra.mxu0 %v6081
        %6376 = vmatpush.bf16.msra.mxu0 %v6065
        %6377 = vmatpush.bf16.msra.mxu0 %v6049
        %6378 = vmatmul.bf16.gmra.mxu0 %v5531
        %v6379 = vpop.f32.mrf.mxu0
        %v6380 = vadd.f32 0.0, %v6379
        %v6381 = vpop.f32.mrf.mxu0
        %v6382 = vadd.f32 0.0, %v6381
        %6383 = vdwg.mxu0
        %6384 = vmatpush.bf16.msra.mxu0 %v6162
        %6385 = vmatpush.bf16.msra.mxu0 %v6146
        %6386 = vmatpush.bf16.msra.mxu0 %v6130
        %6387 = vmatpush.bf16.msra.mxu0 %v6114
        %6388 = vmatpush.bf16.msra.mxu0 %v6098
        %6389 = vmatpush.bf16.msra.mxu0 %v6082
        %6390 = vmatpush.bf16.msra.mxu0 %v6066
        %6391 = vmatpush.bf16.msra.mxu0 %v6050
        %6392 = vmatmul.bf16.gmra.mxu0 %v5531
        %v6393 = vpop.f32.mrf.mxu0
        %v6394 = vadd.f32 0.0, %v6393
        %v6395 = vpop.f32.mrf.mxu0
        %v6396 = vadd.f32 0.0, %v6395
        %6397 = vdwg.mxu0
        %6398 = vmatpush.bf16.msra.mxu0 %v6163
        %6399 = vmatpush.bf16.msra.mxu0 %v6147
        %6400 = vmatpush.bf16.msra.mxu0 %v6131
        %6401 = vmatpush.bf16.msra.mxu0 %v6115
        %6402 = vmatpush.bf16.msra.mxu0 %v6099
        %6403 = vmatpush.bf16.msra.mxu0 %v6083
        %6404 = vmatpush.bf16.msra.mxu0 %v6067
        %6405 = vmatpush.bf16.msra.mxu0 %v6051
        %6406 = vmatmul.bf16.gmra.mxu0 %v5531
        %v6407 = vpop.f32.mrf.mxu0
        %v6408 = vadd.f32 0.0, %v6407
        %v6409 = vpop.f32.mrf.mxu0
        %v6410 = vadd.f32 0.0, %v6409
        %6411 = vdwg.mxu0
        %6412 = vmatpush.bf16.msra.mxu0 %v6164
        %6413 = vmatpush.bf16.msra.mxu0 %v6148
        %6414 = vmatpush.bf16.msra.mxu0 %v6132
        %6415 = vmatpush.bf16.msra.mxu0 %v6116
        %6416 = vmatpush.bf16.msra.mxu0 %v6100
        %6417 = vmatpush.bf16.msra.mxu0 %v6084
        %6418 = vmatpush.bf16.msra.mxu0 %v6068
        %6419 = vmatpush.bf16.msra.mxu0 %v6052
        %6420 = vmatmul.bf16.gmra.mxu0 %v5531
        %v6421 = vpop.f32.mrf.mxu0
        %v6422 = vadd.f32 0.0, %v6421
        %v6423 = vpop.f32.mrf.mxu0
        %v6424 = vadd.f32 0.0, %v6423
        %6425 = vdwg.mxu0
        %6426 = vmatpush.bf16.msra.mxu0 %v6165
        %6427 = vmatpush.bf16.msra.mxu0 %v6149
        %6428 = vmatpush.bf16.msra.mxu0 %v6133
        %6429 = vmatpush.bf16.msra.mxu0 %v6117
        %6430 = vmatpush.bf16.msra.mxu0 %v6101
        %6431 = vmatpush.bf16.msra.mxu0 %v6085
        %6432 = vmatpush.bf16.msra.mxu0 %v6069
        %6433 = vmatpush.bf16.msra.mxu0 %v6053
        %6434 = vmatmul.bf16.gmra.mxu0 %v5531
        %v6435 = vpop.f32.mrf.mxu0
        %v6436 = vadd.f32 0.0, %v6435
        %v6437 = vpop.f32.mrf.mxu0
        %v6438 = vadd.f32 0.0, %v6437
        %6439 = vdwg.mxu0
        %6440 = vmatpush.bf16.msra.mxu0 %v6166
        %6441 = vmatpush.bf16.msra.mxu0 %v6150
        %6442 = vmatpush.bf16.msra.mxu0 %v6134
        %6443 = vmatpush.bf16.msra.mxu0 %v6118
        %6444 = vmatpush.bf16.msra.mxu0 %v6102
        %6445 = vmatpush.bf16.msra.mxu0 %v6086
        %6446 = vmatpush.bf16.msra.mxu0 %v6070
        %6447 = vmatpush.bf16.msra.mxu0 %v6054
        %6448 = vmatmul.bf16.gmra.mxu0 %v5531
        %v6449 = vpop.f32.mrf.mxu0
        %v6450 = vadd.f32 0.0, %v6449
        %v6451 = vpop.f32.mrf.mxu0
        %v6452 = vadd.f32 0.0, %v6451
        %6453 = vdwg.mxu0
        %6454 = vmatpush.bf16.msra.mxu0 %v6167
        %6455 = vmatpush.bf16.msra.mxu0 %v6151
        %6456 = vmatpush.bf16.msra.mxu0 %v6135
        %6457 = vmatpush.bf16.msra.mxu0 %v6119
        %6458 = vmatpush.bf16.msra.mxu0 %v6103
        %6459 = vmatpush.bf16.msra.mxu0 %v6087
        %6460 = vmatpush.bf16.msra.mxu0 %v6071
        %6461 = vmatpush.bf16.msra.mxu0 %v6055
        %6462 = vmatmul.bf16.gmra.mxu0 %v5531
        %v6463 = vpop.f32.mrf.mxu0
        %v6464 = vadd.f32 0.0, %v6463
        %v6465 = vpop.f32.mrf.mxu0
        %v6466 = vadd.f32 0.0, %v6465
        %6467 = vdwg.mxu0
        %6468 = vmatpush.bf16.msra.mxu0 %v6168
        %6469 = vmatpush.bf16.msra.mxu0 %v6152
        %6470 = vmatpush.bf16.msra.mxu0 %v6136
        %6471 = vmatpush.bf16.msra.mxu0 %v6120
        %6472 = vmatpush.bf16.msra.mxu0 %v6104
        %6473 = vmatpush.bf16.msra.mxu0 %v6088
        %6474 = vmatpush.bf16.msra.mxu0 %v6072
        %6475 = vmatpush.bf16.msra.mxu0 %v6056
        %6476 = vmatmul.bf16.gmra.mxu0 %v5531
        %v6477 = vpop.f32.mrf.mxu0
        %v6478 = vadd.f32 0.0, %v6477
        %v6479 = vpop.f32.mrf.mxu0
        %v6480 = vadd.f32 0.0, %v6479
        %6481 = vdwg.mxu0
        %6482 = vmatpush.bf16.msra.mxu0 %v6169
        %6483 = vmatpush.bf16.msra.mxu0 %v6153
        %6484 = vmatpush.bf16.msra.mxu0 %v6137
        %6485 = vmatpush.bf16.msra.mxu0 %v6121
        %6486 = vmatpush.bf16.msra.mxu0 %v6105
        %6487 = vmatpush.bf16.msra.mxu0 %v6089
        %6488 = vmatpush.bf16.msra.mxu0 %v6073
        %6489 = vmatpush.bf16.msra.mxu0 %v6057
        %6490 = vmatmul.bf16.gmra.mxu0 %v5531
        %v6491 = vpop.f32.mrf.mxu0
        %v6492 = vadd.f32 0.0, %v6491
        %v6493 = vpop.f32.mrf.mxu0
        %v6494 = vadd.f32 0.0, %v6493
        %6495 = vdwg.mxu0
        %6496 = vmatpush.bf16.msra.mxu0 %v6170
        %6497 = vmatpush.bf16.msra.mxu0 %v6154
        %6498 = vmatpush.bf16.msra.mxu0 %v6138
        %6499 = vmatpush.bf16.msra.mxu0 %v6122
        %6500 = vmatpush.bf16.msra.mxu0 %v6106
        %6501 = vmatpush.bf16.msra.mxu0 %v6090
        %6502 = vmatpush.bf16.msra.mxu0 %v6074
        %6503 = vmatpush.bf16.msra.mxu0 %v6058
        %6504 = vmatmul.bf16.gmra.mxu0 %v5531
        %v6505 = vpop.f32.mrf.mxu0
        %v6506 = vadd.f32 0.0, %v6505
        %v6507 = vpop.f32.mrf.mxu0
        %v6508 = vadd.f32 0.0, %v6507
        %6509 = vdwg.mxu0
        %6510 = vmatpush.bf16.msra.mxu0 %v6171
        %6511 = vmatpush.bf16.msra.mxu0 %v6155
        %6512 = vmatpush.bf16.msra.mxu0 %v6139
        %6513 = vmatpush.bf16.msra.mxu0 %v6123
        %6514 = vmatpush.bf16.msra.mxu0 %v6107
        %6515 = vmatpush.bf16.msra.mxu0 %v6091
        %6516 = vmatpush.bf16.msra.mxu0 %v6075
        %6517 = vmatpush.bf16.msra.mxu0 %v6059
        %6518 = vmatmul.bf16.gmra.mxu0 %v5531
        %v6519 = vpop.f32.mrf.mxu0
        %v6520 = vadd.f32 0.0, %v6519
        %v6521 = vpop.f32.mrf.mxu0
        %v6522 = vadd.f32 0.0, %v6521
        %6523 = vdwg.mxu0
        %v6524 = vmax.f32 %v6310, 0.0
        %v6525 = vmax.f32 %v6324, 0.0
        %v6526 = vmax.f32 %v6338, 0.0
        %v6527 = vmax.f32 %v6352, 0.0
        %v6528 = vmax.f32 %v6366, 0.0
        %v6529 = vmax.f32 %v6380, 0.0
        %v6530 = vmax.f32 %v6394, 0.0
        %v6531 = vmax.f32 %v6408, 0.0
        %v6532 = vmax.f32 %v6422, 0.0
        %v6533 = vmax.f32 %v6436, 0.0
        %v6534 = vmax.f32 %v6450, 0.0
        %v6535 = vmax.f32 %v6464, 0.0
        %v6536 = vmax.f32 %v6478, 0.0
        %v6537 = vmax.f32 %v6492, 0.0
        %v6538 = vmax.f32 %v6506, 0.0
        %v6539 = vmax.f32 %v6520, 0.0
        %v6540 = vmax.f32 %v6312, 0.0
        %v6541 = vmax.f32 %v6326, 0.0
        %v6542 = vmax.f32 %v6340, 0.0
        %v6543 = vmax.f32 %v6354, 0.0
        %v6544 = vmax.f32 %v6368, 0.0
        %v6545 = vmax.f32 %v6382, 0.0
        %v6546 = vmax.f32 %v6396, 0.0
        %v6547 = vmax.f32 %v6410, 0.0
        %v6548 = vmax.f32 %v6424, 0.0
        %v6549 = vmax.f32 %v6438, 0.0
        %v6550 = vmax.f32 %v6452, 0.0
        %v6551 = vmax.f32 %v6466, 0.0
        %v6552 = vmax.f32 %v6480, 0.0
        %v6553 = vmax.f32 %v6494, 0.0
        %v6554 = vmax.f32 %v6508, 0.0
        %v6555 = vmax.f32 %v6522, 0.0
        %v6556 = vpack.c.bf16 %v6540, %v6524
        %v6557 = vpack.c.bf16 %v6541, %v6525
        %v6558 = vpack.c.bf16 %v6542, %v6526
        %v6559 = vpack.c.bf16 %v6543, %v6527
        %v6560 = vpack.c.bf16 %v6544, %v6528
        %v6561 = vpack.c.bf16 %v6545, %v6529
        %v6562 = vpack.c.bf16 %v6546, %v6530
        %v6563 = vpack.c.bf16 %v6547, %v6531
        %v6564 = vpack.c.bf16 %v6548, %v6532
        %v6565 = vpack.c.bf16 %v6549, %v6533
        %v6566 = vpack.c.bf16 %v6550, %v6534
        %v6567 = vpack.c.bf16 %v6551, %v6535
        %v6568 = vpack.c.bf16 %v6552, %v6536
        %v6569 = vpack.c.bf16 %v6553, %v6537
        %v6570 = vpack.c.bf16 %v6554, %v6538
        %v6571 = vpack.c.bf16 %v6555, %v6539
        %v6572 = vld [vmem:[%s13] sm:$0xf]
        %v6573 = vld [vmem:[%s13 + $0x4] sm:$0xf]
        %v6574 = vld [vmem:[%s13 + $0x8] sm:$0xf]
        %v6575 = vld [vmem:[%s13 + $0xc] sm:$0xf]
        %v6576 = vld [vmem:[%s13 + $0x10] sm:$0xf]
        %v6577 = vld [vmem:[%s13 + $0x14] sm:$0xf]
        %v6578 = vld [vmem:[%s13 + $0x18] sm:$0xf]
        %v6579 = vld [vmem:[%s13 + $0x1c] sm:$0xf]
        %v6580 = vld [vmem:[%s13 + $0x20] sm:$0xf]
        %v6581 = vld [vmem:[%s13 + $0x24] sm:$0xf]
        %v6582 = vld [vmem:[%s13 + $0x28] sm:$0xf]
        %v6583 = vld [vmem:[%s13 + $0x2c] sm:$0xf]
        %v6584 = vld [vmem:[%s13 + $0x30] sm:$0xf]
        %v6585 = vld [vmem:[%s13 + $0x34] sm:$0xf]
        %v6586 = vld [vmem:[%s13 + $0x38] sm:$0xf]
        %v6587 = vld [vmem:[%s13 + $0x3c] sm:$0xf]
        %v6588 = vld [vmem:[%s13 + $0x40] sm:$0xf]
        %v6589 = vld [vmem:[%s13 + $0x44] sm:$0xf]
        %v6590 = vld [vmem:[%s13 + $0x48] sm:$0xf]
        %v6591 = vld [vmem:[%s13 + $0x4c] sm:$0xf]
        %v6592 = vld [vmem:[%s13 + $0x50] sm:$0xf]
        %v6593 = vld [vmem:[%s13 + $0x54] sm:$0xf]
        %v6594 = vld [vmem:[%s13 + $0x58] sm:$0xf]
        %v6595 = vld [vmem:[%s13 + $0x5c] sm:$0xf]
        %v6596 = vld [vmem:[%s13 + $0x60] sm:$0xf]
        %v6597 = vld [vmem:[%s13 + $0x64] sm:$0xf]
        %v6598 = vld [vmem:[%s13 + $0x68] sm:$0xf]
        %v6599 = vld [vmem:[%s13 + $0x6c] sm:$0xf]
        %v6600 = vld [vmem:[%s13 + $0x70] sm:$0xf]
        %v6601 = vld [vmem:[%s13 + $0x74] sm:$0xf]
        %v6602 = vld [vmem:[%s13 + $0x78] sm:$0xf]
        %v6603 = vld [vmem:[%s13 + $0x7c] sm:$0xf]
        %v6604 = vld [vmem:[%s13 + $0x80] sm:$0xf]
        %v6605 = vld [vmem:[%s13 + $0x84] sm:$0xf]
        %v6606 = vld [vmem:[%s13 + $0x88] sm:$0xf]
        %v6607 = vld [vmem:[%s13 + $0x8c] sm:$0xf]
        %v6608 = vld [vmem:[%s13 + $0x90] sm:$0xf]
        %v6609 = vld [vmem:[%s13 + $0x94] sm:$0xf]
        %v6610 = vld [vmem:[%s13 + $0x98] sm:$0xf]
        %v6611 = vld [vmem:[%s13 + $0x9c] sm:$0xf]
        %v6612 = vld [vmem:[%s13 + $0xa0] sm:$0xf]
        %v6613 = vld [vmem:[%s13 + $0xa4] sm:$0xf]
        %v6614 = vld [vmem:[%s13 + $0xa8] sm:$0xf]
        %v6615 = vld [vmem:[%s13 + $0xac] sm:$0xf]
        %v6616 = vld [vmem:[%s13 + $0xb0] sm:$0xf]
        %v6617 = vld [vmem:[%s13 + $0xb4] sm:$0xf]
        %v6618 = vld [vmem:[%s13 + $0xb8] sm:$0xf]
        %v6619 = vld [vmem:[%s13 + $0xbc] sm:$0xf]
        %v6620 = vld [vmem:[%s13 + $0xc0] sm:$0xf]
        %v6621 = vld [vmem:[%s13 + $0xc4] sm:$0xf]
        %v6622 = vld [vmem:[%s13 + $0xc8] sm:$0xf]
        %v6623 = vld [vmem:[%s13 + $0xcc] sm:$0xf]
        %v6624 = vld [vmem:[%s13 + $0xd0] sm:$0xf]
        %v6625 = vld [vmem:[%s13 + $0xd4] sm:$0xf]
        %v6626 = vld [vmem:[%s13 + $0xd8] sm:$0xf]
        %v6627 = vld [vmem:[%s13 + $0xdc] sm:$0xf]
        %v6628 = vld [vmem:[%s13 + $0xe0] sm:$0xf]
        %v6629 = vld [vmem:[%s13 + $0xe4] sm:$0xf]
        %v6630 = vld [vmem:[%s13 + $0xe8] sm:$0xf]
        %v6631 = vld [vmem:[%s13 + $0xec] sm:$0xf]
        %v6632 = vld [vmem:[%s13 + $0xf0] sm:$0xf]
        %v6633 = vld [vmem:[%s13 + $0xf4] sm:$0xf]
        %v6634 = vld [vmem:[%s13 + $0xf8] sm:$0xf]
        %v6635 = vld [vmem:[%s13 + $0xfc] sm:$0xf]
        %v6636 = vld [vmem:[%s13 + $0x100] sm:$0xf]
        %v6637 = vld [vmem:[%s13 + $0x104] sm:$0xf]
        %v6638 = vld [vmem:[%s13 + $0x108] sm:$0xf]
        %v6639 = vld [vmem:[%s13 + $0x10c] sm:$0xf]
        %v6640 = vld [vmem:[%s13 + $0x110] sm:$0xf]
        %v6641 = vld [vmem:[%s13 + $0x114] sm:$0xf]
        %v6642 = vld [vmem:[%s13 + $0x118] sm:$0xf]
        %v6643 = vld [vmem:[%s13 + $0x11c] sm:$0xf]
        %v6644 = vld [vmem:[%s13 + $0x120] sm:$0xf]
        %v6645 = vld [vmem:[%s13 + $0x124] sm:$0xf]
        %v6646 = vld [vmem:[%s13 + $0x128] sm:$0xf]
        %v6647 = vld [vmem:[%s13 + $0x12c] sm:$0xf]
        %v6648 = vld [vmem:[%s13 + $0x130] sm:$0xf]
        %v6649 = vld [vmem:[%s13 + $0x134] sm:$0xf]
        %v6650 = vld [vmem:[%s13 + $0x138] sm:$0xf]
        %v6651 = vld [vmem:[%s13 + $0x13c] sm:$0xf]
        %v6652 = vld [vmem:[%s13 + $0x140] sm:$0xf]
        %v6653 = vld [vmem:[%s13 + $0x144] sm:$0xf]
        %v6654 = vld [vmem:[%s13 + $0x148] sm:$0xf]
        %v6655 = vld [vmem:[%s13 + $0x14c] sm:$0xf]
        %v6656 = vld [vmem:[%s13 + $0x150] sm:$0xf]
        %v6657 = vld [vmem:[%s13 + $0x154] sm:$0xf]
        %v6658 = vld [vmem:[%s13 + $0x158] sm:$0xf]
        %v6659 = vld [vmem:[%s13 + $0x15c] sm:$0xf]
        %v6660 = vld [vmem:[%s13 + $0x160] sm:$0xf]
        %v6661 = vld [vmem:[%s13 + $0x164] sm:$0xf]
        %v6662 = vld [vmem:[%s13 + $0x168] sm:$0xf]
        %v6663 = vld [vmem:[%s13 + $0x16c] sm:$0xf]
        %v6664 = vld [vmem:[%s13 + $0x170] sm:$0xf]
        %v6665 = vld [vmem:[%s13 + $0x174] sm:$0xf]
        %v6666 = vld [vmem:[%s13 + $0x178] sm:$0xf]
        %v6667 = vld [vmem:[%s13 + $0x17c] sm:$0xf]
        %v6668 = vld [vmem:[%s13 + $0x180] sm:$0xf]
        %v6669 = vld [vmem:[%s13 + $0x184] sm:$0xf]
        %v6670 = vld [vmem:[%s13 + $0x188] sm:$0xf]
        %v6671 = vld [vmem:[%s13 + $0x18c] sm:$0xf]
        %v6672 = vld [vmem:[%s13 + $0x190] sm:$0xf]
        %v6673 = vld [vmem:[%s13 + $0x194] sm:$0xf]
        %v6674 = vld [vmem:[%s13 + $0x198] sm:$0xf]
        %v6675 = vld [vmem:[%s13 + $0x19c] sm:$0xf]
        %v6676 = vld [vmem:[%s13 + $0x1a0] sm:$0xf]
        %v6677 = vld [vmem:[%s13 + $0x1a4] sm:$0xf]
        %v6678 = vld [vmem:[%s13 + $0x1a8] sm:$0xf]
        %v6679 = vld [vmem:[%s13 + $0x1ac] sm:$0xf]
        %v6680 = vld [vmem:[%s13 + $0x1b0] sm:$0xf]
        %v6681 = vld [vmem:[%s13 + $0x1b4] sm:$0xf]
        %v6682 = vld [vmem:[%s13 + $0x1b8] sm:$0xf]
        %v6683 = vld [vmem:[%s13 + $0x1bc] sm:$0xf]
        %v6684 = vld [vmem:[%s13 + $0x1c0] sm:$0xf]
        %v6685 = vld [vmem:[%s13 + $0x1c4] sm:$0xf]
        %v6686 = vld [vmem:[%s13 + $0x1c8] sm:$0xf]
        %v6687 = vld [vmem:[%s13 + $0x1cc] sm:$0xf]
        %v6688 = vld [vmem:[%s13 + $0x1d0] sm:$0xf]
        %v6689 = vld [vmem:[%s13 + $0x1d4] sm:$0xf]
        %v6690 = vld [vmem:[%s13 + $0x1d8] sm:$0xf]
        %v6691 = vld [vmem:[%s13 + $0x1dc] sm:$0xf]
        %v6692 = vld [vmem:[%s13 + $0x1e0] sm:$0xf]
        %v6693 = vld [vmem:[%s13 + $0x1e4] sm:$0xf]
        %v6694 = vld [vmem:[%s13 + $0x1e8] sm:$0xf]
        %v6695 = vld [vmem:[%s13 + $0x1ec] sm:$0xf]
        %v6696 = vld [vmem:[%s13 + $0x1f0] sm:$0xf]
        %v6697 = vld [vmem:[%s13 + $0x1f4] sm:$0xf]
        %v6698 = vld [vmem:[%s13 + $0x1f8] sm:$0xf]
        %v6699 = vld [vmem:[%s13 + $0x1fc] sm:$0xf]
        %v6700 = vld [vmem:[%s13 + $0x200] sm:$0xf]
        %v6701 = vld [vmem:[%s13 + $0x204] sm:$0xf]
        %v6702 = vld [vmem:[%s13 + $0x208] sm:$0xf]
        %v6703 = vld [vmem:[%s13 + $0x20c] sm:$0xf]
        %v6704 = vld [vmem:[%s13 + $0x210] sm:$0xf]
        %v6705 = vld [vmem:[%s13 + $0x214] sm:$0xf]
        %v6706 = vld [vmem:[%s13 + $0x218] sm:$0xf]
        %v6707 = vld [vmem:[%s13 + $0x21c] sm:$0xf]
        %v6708 = vld [vmem:[%s13 + $0x220] sm:$0xf]
        %v6709 = vld [vmem:[%s13 + $0x224] sm:$0xf]
        %v6710 = vld [vmem:[%s13 + $0x228] sm:$0xf]
        %v6711 = vld [vmem:[%s13 + $0x22c] sm:$0xf]
        %v6712 = vld [vmem:[%s13 + $0x230] sm:$0xf]
        %v6713 = vld [vmem:[%s13 + $0x234] sm:$0xf]
        %v6714 = vld [vmem:[%s13 + $0x238] sm:$0xf]
        %v6715 = vld [vmem:[%s13 + $0x23c] sm:$0xf]
        %v6716 = vld [vmem:[%s13 + $0x240] sm:$0xf]
        %v6717 = vld [vmem:[%s13 + $0x244] sm:$0xf]
        %v6718 = vld [vmem:[%s13 + $0x248] sm:$0xf]
        %v6719 = vld [vmem:[%s13 + $0x24c] sm:$0xf]
        %v6720 = vld [vmem:[%s13 + $0x250] sm:$0xf]
        %v6721 = vld [vmem:[%s13 + $0x254] sm:$0xf]
        %v6722 = vld [vmem:[%s13 + $0x258] sm:$0xf]
        %v6723 = vld [vmem:[%s13 + $0x25c] sm:$0xf]
        %v6724 = vld [vmem:[%s13 + $0x260] sm:$0xf]
        %v6725 = vld [vmem:[%s13 + $0x264] sm:$0xf]
        %v6726 = vld [vmem:[%s13 + $0x268] sm:$0xf]
        %v6727 = vld [vmem:[%s13 + $0x26c] sm:$0xf]
        %v6728 = vld [vmem:[%s13 + $0x270] sm:$0xf]
        %v6729 = vld [vmem:[%s13 + $0x274] sm:$0xf]
        %v6730 = vld [vmem:[%s13 + $0x278] sm:$0xf]
        %v6731 = vld [vmem:[%s13 + $0x27c] sm:$0xf]
        %v6732 = vld [vmem:[%s13 + $0x280] sm:$0xf]
        %v6733 = vld [vmem:[%s13 + $0x284] sm:$0xf]
        %v6734 = vld [vmem:[%s13 + $0x288] sm:$0xf]
        %v6735 = vld [vmem:[%s13 + $0x28c] sm:$0xf]
        %v6736 = vld [vmem:[%s13 + $0x290] sm:$0xf]
        %v6737 = vld [vmem:[%s13 + $0x294] sm:$0xf]
        %v6738 = vld [vmem:[%s13 + $0x298] sm:$0xf]
        %v6739 = vld [vmem:[%s13 + $0x29c] sm:$0xf]
        %v6740 = vld [vmem:[%s13 + $0x2a0] sm:$0xf]
        %v6741 = vld [vmem:[%s13 + $0x2a4] sm:$0xf]
        %v6742 = vld [vmem:[%s13 + $0x2a8] sm:$0xf]
        %v6743 = vld [vmem:[%s13 + $0x2ac] sm:$0xf]
        %v6744 = vld [vmem:[%s13 + $0x2b0] sm:$0xf]
        %v6745 = vld [vmem:[%s13 + $0x2b4] sm:$0xf]
        %v6746 = vld [vmem:[%s13 + $0x2b8] sm:$0xf]
        %v6747 = vld [vmem:[%s13 + $0x2bc] sm:$0xf]
        %v6748 = vld [vmem:[%s13 + $0x2c0] sm:$0xf]
        %v6749 = vld [vmem:[%s13 + $0x2c4] sm:$0xf]
        %v6750 = vld [vmem:[%s13 + $0x2c8] sm:$0xf]
        %v6751 = vld [vmem:[%s13 + $0x2cc] sm:$0xf]
        %v6752 = vld [vmem:[%s13 + $0x2d0] sm:$0xf]
        %v6753 = vld [vmem:[%s13 + $0x2d4] sm:$0xf]
        %v6754 = vld [vmem:[%s13 + $0x2d8] sm:$0xf]
        %v6755 = vld [vmem:[%s13 + $0x2dc] sm:$0xf]
        %v6756 = vld [vmem:[%s13 + $0x2e0] sm:$0xf]
        %v6757 = vld [vmem:[%s13 + $0x2e4] sm:$0xf]
        %v6758 = vld [vmem:[%s13 + $0x2e8] sm:$0xf]
        %v6759 = vld [vmem:[%s13 + $0x2ec] sm:$0xf]
        %v6760 = vld [vmem:[%s13 + $0x2f0] sm:$0xf]
        %v6761 = vld [vmem:[%s13 + $0x2f4] sm:$0xf]
        %v6762 = vld [vmem:[%s13 + $0x2f8] sm:$0xf]
        %v6763 = vld [vmem:[%s13 + $0x2fc] sm:$0xf]
        %v6764 = vld [vmem:[%s13 + $0x300] sm:$0xf]
        %v6765 = vld [vmem:[%s13 + $0x304] sm:$0xf]
        %v6766 = vld [vmem:[%s13 + $0x308] sm:$0xf]
        %v6767 = vld [vmem:[%s13 + $0x30c] sm:$0xf]
        %v6768 = vld [vmem:[%s13 + $0x310] sm:$0xf]
        %v6769 = vld [vmem:[%s13 + $0x314] sm:$0xf]
        %v6770 = vld [vmem:[%s13 + $0x318] sm:$0xf]
        %v6771 = vld [vmem:[%s13 + $0x31c] sm:$0xf]
        %v6772 = vld [vmem:[%s13 + $0x320] sm:$0xf]
        %v6773 = vld [vmem:[%s13 + $0x324] sm:$0xf]
        %v6774 = vld [vmem:[%s13 + $0x328] sm:$0xf]
        %v6775 = vld [vmem:[%s13 + $0x32c] sm:$0xf]
        %v6776 = vld [vmem:[%s13 + $0x330] sm:$0xf]
        %v6777 = vld [vmem:[%s13 + $0x334] sm:$0xf]
        %v6778 = vld [vmem:[%s13 + $0x338] sm:$0xf]
        %v6779 = vld [vmem:[%s13 + $0x33c] sm:$0xf]
        %v6780 = vld [vmem:[%s13 + $0x340] sm:$0xf]
        %v6781 = vld [vmem:[%s13 + $0x344] sm:$0xf]
        %v6782 = vld [vmem:[%s13 + $0x348] sm:$0xf]
        %v6783 = vld [vmem:[%s13 + $0x34c] sm:$0xf]
        %v6784 = vld [vmem:[%s13 + $0x350] sm:$0xf]
        %v6785 = vld [vmem:[%s13 + $0x354] sm:$0xf]
        %v6786 = vld [vmem:[%s13 + $0x358] sm:$0xf]
        %v6787 = vld [vmem:[%s13 + $0x35c] sm:$0xf]
        %v6788 = vld [vmem:[%s13 + $0x360] sm:$0xf]
        %v6789 = vld [vmem:[%s13 + $0x364] sm:$0xf]
        %v6790 = vld [vmem:[%s13 + $0x368] sm:$0xf]
        %v6791 = vld [vmem:[%s13 + $0x36c] sm:$0xf]
        %v6792 = vld [vmem:[%s13 + $0x370] sm:$0xf]
        %v6793 = vld [vmem:[%s13 + $0x374] sm:$0xf]
        %v6794 = vld [vmem:[%s13 + $0x378] sm:$0xf]
        %v6795 = vld [vmem:[%s13 + $0x37c] sm:$0xf]
        %v6796 = vld [vmem:[%s13 + $0x380] sm:$0xf]
        %v6797 = vld [vmem:[%s13 + $0x384] sm:$0xf]
        %v6798 = vld [vmem:[%s13 + $0x388] sm:$0xf]
        %v6799 = vld [vmem:[%s13 + $0x38c] sm:$0xf]
        %v6800 = vld [vmem:[%s13 + $0x390] sm:$0xf]
        %v6801 = vld [vmem:[%s13 + $0x394] sm:$0xf]
        %v6802 = vld [vmem:[%s13 + $0x398] sm:$0xf]
        %v6803 = vld [vmem:[%s13 + $0x39c] sm:$0xf]
        %v6804 = vld [vmem:[%s13 + $0x3a0] sm:$0xf]
        %v6805 = vld [vmem:[%s13 + $0x3a4] sm:$0xf]
        %v6806 = vld [vmem:[%s13 + $0x3a8] sm:$0xf]
        %v6807 = vld [vmem:[%s13 + $0x3ac] sm:$0xf]
        %v6808 = vld [vmem:[%s13 + $0x3b0] sm:$0xf]
        %v6809 = vld [vmem:[%s13 + $0x3b4] sm:$0xf]
        %v6810 = vld [vmem:[%s13 + $0x3b8] sm:$0xf]
        %v6811 = vld [vmem:[%s13 + $0x3bc] sm:$0xf]
        %v6812 = vld [vmem:[%s13 + $0x3c0] sm:$0xf]
        %v6813 = vld [vmem:[%s13 + $0x3c4] sm:$0xf]
        %v6814 = vld [vmem:[%s13 + $0x3c8] sm:$0xf]
        %v6815 = vld [vmem:[%s13 + $0x3cc] sm:$0xf]
        %v6816 = vld [vmem:[%s13 + $0x3d0] sm:$0xf]
        %v6817 = vld [vmem:[%s13 + $0x3d4] sm:$0xf]
        %v6818 = vld [vmem:[%s13 + $0x3d8] sm:$0xf]
        %v6819 = vld [vmem:[%s13 + $0x3dc] sm:$0xf]
        %v6820 = vld [vmem:[%s13 + $0x3e0] sm:$0xf]
        %v6821 = vld [vmem:[%s13 + $0x3e4] sm:$0xf]
        %v6822 = vld [vmem:[%s13 + $0x3e8] sm:$0xf]
        %v6823 = vld [vmem:[%s13 + $0x3ec] sm:$0xf]
        %v6824 = vld [vmem:[%s13 + $0x3f0] sm:$0xf]
        %v6825 = vld [vmem:[%s13 + $0x3f4] sm:$0xf]
        %v6826 = vld [vmem:[%s13 + $0x3f8] sm:$0xf]
        %v6827 = vld [vmem:[%s13 + $0x3fc] sm:$0xf]
        %v7084 = vunpack.c.l.b16 %v6572
        %v7085 = vunpack.c.l.b16 %v6573
        %v7086 = vunpack.c.l.b16 %v6574
        %v7087 = vunpack.c.l.b16 %v6575
        %v7088 = vunpack.c.l.b16 %v6576
        %v7089 = vunpack.c.l.b16 %v6577
        %v7090 = vunpack.c.l.b16 %v6578
        %v7091 = vunpack.c.l.b16 %v6579
        %v7092 = vunpack.c.l.b16 %v6580
        %v7093 = vunpack.c.l.b16 %v6581
        %v7094 = vunpack.c.l.b16 %v6582
        %v7095 = vunpack.c.l.b16 %v6583
        %v7096 = vunpack.c.l.b16 %v6584
        %v7097 = vunpack.c.l.b16 %v6585
        %v7098 = vunpack.c.l.b16 %v6586
        %v7099 = vunpack.c.l.b16 %v6587
        %v7100 = vunpack.c.l.b16 %v6588
        %v7101 = vunpack.c.l.b16 %v6589
        %v7102 = vunpack.c.l.b16 %v6590
        %v7103 = vunpack.c.l.b16 %v6591
        %v7104 = vunpack.c.l.b16 %v6592
        %v7105 = vunpack.c.l.b16 %v6593
        %v7106 = vunpack.c.l.b16 %v6594
        %v7107 = vunpack.c.l.b16 %v6595
        %v7108 = vunpack.c.l.b16 %v6596
        %v7109 = vunpack.c.l.b16 %v6597
        %v7110 = vunpack.c.l.b16 %v6598
        %v7111 = vunpack.c.l.b16 %v6599
        %v7112 = vunpack.c.l.b16 %v6600
        %v7113 = vunpack.c.l.b16 %v6601
        %v7114 = vunpack.c.l.b16 %v6602
        %v7115 = vunpack.c.l.b16 %v6603
        %v7116 = vunpack.c.l.b16 %v6604
        %v7117 = vunpack.c.l.b16 %v6605
        %v7118 = vunpack.c.l.b16 %v6606
        %v7119 = vunpack.c.l.b16 %v6607
        %v7120 = vunpack.c.l.b16 %v6608
        %v7121 = vunpack.c.l.b16 %v6609
        %v7122 = vunpack.c.l.b16 %v6610
        %v7123 = vunpack.c.l.b16 %v6611
        %v7124 = vunpack.c.l.b16 %v6612
        %v7125 = vunpack.c.l.b16 %v6613
        %v7126 = vunpack.c.l.b16 %v6614
        %v7127 = vunpack.c.l.b16 %v6615
        %v7128 = vunpack.c.l.b16 %v6616
        %v7129 = vunpack.c.l.b16 %v6617
        %v7130 = vunpack.c.l.b16 %v6618
        %v7131 = vunpack.c.l.b16 %v6619
        %v7132 = vunpack.c.l.b16 %v6620
        %v7133 = vunpack.c.l.b16 %v6621
        %v7134 = vunpack.c.l.b16 %v6622
        %v7135 = vunpack.c.l.b16 %v6623
        %v7136 = vunpack.c.l.b16 %v6624
        %v7137 = vunpack.c.l.b16 %v6625
        %v7138 = vunpack.c.l.b16 %v6626
        %v7139 = vunpack.c.l.b16 %v6627
        %v7140 = vunpack.c.l.b16 %v6628
        %v7141 = vunpack.c.l.b16 %v6629
        %v7142 = vunpack.c.l.b16 %v6630
        %v7143 = vunpack.c.l.b16 %v6631
        %v7144 = vunpack.c.l.b16 %v6632
        %v7145 = vunpack.c.l.b16 %v6633
        %v7146 = vunpack.c.l.b16 %v6634
        %v7147 = vunpack.c.l.b16 %v6635
        %v7148 = vunpack.c.l.b16 %v6636
        %v7149 = vunpack.c.l.b16 %v6637
        %v7150 = vunpack.c.l.b16 %v6638
        %v7151 = vunpack.c.l.b16 %v6639
        %v7152 = vunpack.c.l.b16 %v6640
        %v7153 = vunpack.c.l.b16 %v6641
        %v7154 = vunpack.c.l.b16 %v6642
        %v7155 = vunpack.c.l.b16 %v6643
        %v7156 = vunpack.c.l.b16 %v6644
        %v7157 = vunpack.c.l.b16 %v6645
        %v7158 = vunpack.c.l.b16 %v6646
        %v7159 = vunpack.c.l.b16 %v6647
        %v7160 = vunpack.c.l.b16 %v6648
        %v7161 = vunpack.c.l.b16 %v6649
        %v7162 = vunpack.c.l.b16 %v6650
        %v7163 = vunpack.c.l.b16 %v6651
        %v7164 = vunpack.c.l.b16 %v6652
        %v7165 = vunpack.c.l.b16 %v6653
        %v7166 = vunpack.c.l.b16 %v6654
        %v7167 = vunpack.c.l.b16 %v6655
        %v7168 = vunpack.c.l.b16 %v6656
        %v7169 = vunpack.c.l.b16 %v6657
        %v7170 = vunpack.c.l.b16 %v6658
        %v7171 = vunpack.c.l.b16 %v6659
        %v7172 = vunpack.c.l.b16 %v6660
        %v7173 = vunpack.c.l.b16 %v6661
        %v7174 = vunpack.c.l.b16 %v6662
        %v7175 = vunpack.c.l.b16 %v6663
        %v7176 = vunpack.c.l.b16 %v6664
        %v7177 = vunpack.c.l.b16 %v6665
        %v7178 = vunpack.c.l.b16 %v6666
        %v7179 = vunpack.c.l.b16 %v6667
        %v7180 = vunpack.c.l.b16 %v6668
        %v7181 = vunpack.c.l.b16 %v6669
        %v7182 = vunpack.c.l.b16 %v6670
        %v7183 = vunpack.c.l.b16 %v6671
        %v7184 = vunpack.c.l.b16 %v6672
        %v7185 = vunpack.c.l.b16 %v6673
        %v7186 = vunpack.c.l.b16 %v6674
        %v7187 = vunpack.c.l.b16 %v6675
        %v7188 = vunpack.c.l.b16 %v6676
        %v7189 = vunpack.c.l.b16 %v6677
        %v7190 = vunpack.c.l.b16 %v6678
        %v7191 = vunpack.c.l.b16 %v6679
        %v7192 = vunpack.c.l.b16 %v6680
        %v7193 = vunpack.c.l.b16 %v6681
        %v7194 = vunpack.c.l.b16 %v6682
        %v7195 = vunpack.c.l.b16 %v6683
        %v7196 = vunpack.c.l.b16 %v6684
        %v7197 = vunpack.c.l.b16 %v6685
        %v7198 = vunpack.c.l.b16 %v6686
        %v7199 = vunpack.c.l.b16 %v6687
        %v7200 = vunpack.c.l.b16 %v6688
        %v7201 = vunpack.c.l.b16 %v6689
        %v7202 = vunpack.c.l.b16 %v6690
        %v7203 = vunpack.c.l.b16 %v6691
        %v7204 = vunpack.c.l.b16 %v6692
        %v7205 = vunpack.c.l.b16 %v6693
        %v7206 = vunpack.c.l.b16 %v6694
        %v7207 = vunpack.c.l.b16 %v6695
        %v7208 = vunpack.c.l.b16 %v6696
        %v7209 = vunpack.c.l.b16 %v6697
        %v7210 = vunpack.c.l.b16 %v6698
        %v7211 = vunpack.c.l.b16 %v6699
        %v7212 = vunpack.c.l.b16 %v6700
        %v7213 = vunpack.c.l.b16 %v6701
        %v7214 = vunpack.c.l.b16 %v6702
        %v7215 = vunpack.c.l.b16 %v6703
        %v7216 = vunpack.c.l.b16 %v6704
        %v7217 = vunpack.c.l.b16 %v6705
        %v7218 = vunpack.c.l.b16 %v6706
        %v7219 = vunpack.c.l.b16 %v6707
        %v7220 = vunpack.c.l.b16 %v6708
        %v7221 = vunpack.c.l.b16 %v6709
        %v7222 = vunpack.c.l.b16 %v6710
        %v7223 = vunpack.c.l.b16 %v6711
        %v7224 = vunpack.c.l.b16 %v6712
        %v7225 = vunpack.c.l.b16 %v6713
        %v7226 = vunpack.c.l.b16 %v6714
        %v7227 = vunpack.c.l.b16 %v6715
        %v7228 = vunpack.c.l.b16 %v6716
        %v7229 = vunpack.c.l.b16 %v6717
        %v7230 = vunpack.c.l.b16 %v6718
        %v7231 = vunpack.c.l.b16 %v6719
        %v7232 = vunpack.c.l.b16 %v6720
        %v7233 = vunpack.c.l.b16 %v6721
        %v7234 = vunpack.c.l.b16 %v6722
        %v7235 = vunpack.c.l.b16 %v6723
        %v7236 = vunpack.c.l.b16 %v6724
        %v7237 = vunpack.c.l.b16 %v6725
        %v7238 = vunpack.c.l.b16 %v6726
        %v7239 = vunpack.c.l.b16 %v6727
        %v7240 = vunpack.c.l.b16 %v6728
        %v7241 = vunpack.c.l.b16 %v6729
        %v7242 = vunpack.c.l.b16 %v6730
        %v7243 = vunpack.c.l.b16 %v6731
        %v7244 = vunpack.c.l.b16 %v6732
        %v7245 = vunpack.c.l.b16 %v6733
        %v7246 = vunpack.c.l.b16 %v6734
        %v7247 = vunpack.c.l.b16 %v6735
        %v7248 = vunpack.c.l.b16 %v6736
        %v7249 = vunpack.c.l.b16 %v6737
        %v7250 = vunpack.c.l.b16 %v6738
        %v7251 = vunpack.c.l.b16 %v6739
        %v7252 = vunpack.c.l.b16 %v6740
        %v7253 = vunpack.c.l.b16 %v6741
        %v7254 = vunpack.c.l.b16 %v6742
        %v7255 = vunpack.c.l.b16 %v6743
        %v7256 = vunpack.c.l.b16 %v6744
        %v7257 = vunpack.c.l.b16 %v6745
        %v7258 = vunpack.c.l.b16 %v6746
        %v7259 = vunpack.c.l.b16 %v6747
        %v7260 = vunpack.c.l.b16 %v6748
        %v7261 = vunpack.c.l.b16 %v6749
        %v7262 = vunpack.c.l.b16 %v6750
        %v7263 = vunpack.c.l.b16 %v6751
        %v7264 = vunpack.c.l.b16 %v6752
        %v7265 = vunpack.c.l.b16 %v6753
        %v7266 = vunpack.c.l.b16 %v6754
        %v7267 = vunpack.c.l.b16 %v6755
        %v7268 = vunpack.c.l.b16 %v6756
        %v7269 = vunpack.c.l.b16 %v6757
        %v7270 = vunpack.c.l.b16 %v6758
        %v7271 = vunpack.c.l.b16 %v6759
        %v7272 = vunpack.c.l.b16 %v6760
        %v7273 = vunpack.c.l.b16 %v6761
        %v7274 = vunpack.c.l.b16 %v6762
        %v7275 = vunpack.c.l.b16 %v6763
        %v7276 = vunpack.c.l.b16 %v6764
        %v7277 = vunpack.c.l.b16 %v6765
        %v7278 = vunpack.c.l.b16 %v6766
        %v7279 = vunpack.c.l.b16 %v6767
        %v7280 = vunpack.c.l.b16 %v6768
        %v7281 = vunpack.c.l.b16 %v6769
        %v7282 = vunpack.c.l.b16 %v6770
        %v7283 = vunpack.c.l.b16 %v6771
        %v7284 = vunpack.c.l.b16 %v6772
        %v7285 = vunpack.c.l.b16 %v6773
        %v7286 = vunpack.c.l.b16 %v6774
        %v7287 = vunpack.c.l.b16 %v6775
        %v7288 = vunpack.c.l.b16 %v6776
        %v7289 = vunpack.c.l.b16 %v6777
        %v7290 = vunpack.c.l.b16 %v6778
        %v7291 = vunpack.c.l.b16 %v6779
        %v7292 = vunpack.c.l.b16 %v6780
        %v7293 = vunpack.c.l.b16 %v6781
        %v7294 = vunpack.c.l.b16 %v6782
        %v7295 = vunpack.c.l.b16 %v6783
        %v7296 = vunpack.c.l.b16 %v6784
        %v7297 = vunpack.c.l.b16 %v6785
        %v7298 = vunpack.c.l.b16 %v6786
        %v7299 = vunpack.c.l.b16 %v6787
        %v7300 = vunpack.c.l.b16 %v6788
        %v7301 = vunpack.c.l.b16 %v6789
        %v7302 = vunpack.c.l.b16 %v6790
        %v7303 = vunpack.c.l.b16 %v6791
        %v7304 = vunpack.c.l.b16 %v6792
        %v7305 = vunpack.c.l.b16 %v6793
        %v7306 = vunpack.c.l.b16 %v6794
        %v7307 = vunpack.c.l.b16 %v6795
        %v7308 = vunpack.c.l.b16 %v6796
        %v7309 = vunpack.c.l.b16 %v6797
        %v7310 = vunpack.c.l.b16 %v6798
        %v7311 = vunpack.c.l.b16 %v6799
        %v7312 = vunpack.c.l.b16 %v6800
        %v7313 = vunpack.c.l.b16 %v6801
        %v7314 = vunpack.c.l.b16 %v6802
        %v7315 = vunpack.c.l.b16 %v6803
        %v7316 = vunpack.c.l.b16 %v6804
        %v7317 = vunpack.c.l.b16 %v6805
        %v7318 = vunpack.c.l.b16 %v6806
        %v7319 = vunpack.c.l.b16 %v6807
        %v7320 = vunpack.c.l.b16 %v6808
        %v7321 = vunpack.c.l.b16 %v6809
        %v7322 = vunpack.c.l.b16 %v6810
        %v7323 = vunpack.c.l.b16 %v6811
        %v7324 = vunpack.c.l.b16 %v6812
        %v7325 = vunpack.c.l.b16 %v6813
        %v7326 = vunpack.c.l.b16 %v6814
        %v7327 = vunpack.c.l.b16 %v6815
        %v7328 = vunpack.c.l.b16 %v6816
        %v7329 = vunpack.c.l.b16 %v6817
        %v7330 = vunpack.c.l.b16 %v6818
        %v7331 = vunpack.c.l.b16 %v6819
        %v7332 = vunpack.c.l.b16 %v6820
        %v7333 = vunpack.c.l.b16 %v6821
        %v7334 = vunpack.c.l.b16 %v6822
        %v7335 = vunpack.c.l.b16 %v6823
        %v7336 = vunpack.c.l.b16 %v6824
        %v7337 = vunpack.c.l.b16 %v6825
        %v7338 = vunpack.c.l.b16 %v6826
        %v7339 = vunpack.c.l.b16 %v6827
        %v7340 = vpack.c.b16 %v7085, %v7084
        %v7341 = vpack.c.b16 %v7087, %v7086
        %v7342 = vpack.c.b16 %v7089, %v7088
        %v7343 = vpack.c.b16 %v7091, %v7090
        %v7344 = vpack.c.b16 %v7093, %v7092
        %v7345 = vpack.c.b16 %v7095, %v7094
        %v7346 = vpack.c.b16 %v7097, %v7096
        %v7347 = vpack.c.b16 %v7099, %v7098
        %v7348 = vpack.c.b16 %v7101, %v7100
        %v7349 = vpack.c.b16 %v7103, %v7102
        %v7350 = vpack.c.b16 %v7105, %v7104
        %v7351 = vpack.c.b16 %v7107, %v7106
        %v7352 = vpack.c.b16 %v7109, %v7108
        %v7353 = vpack.c.b16 %v7111, %v7110
        %v7354 = vpack.c.b16 %v7113, %v7112
        %v7355 = vpack.c.b16 %v7115, %v7114
        %v7356 = vpack.c.b16 %v7117, %v7116
        %v7357 = vpack.c.b16 %v7119, %v7118
        %v7358 = vpack.c.b16 %v7121, %v7120
        %v7359 = vpack.c.b16 %v7123, %v7122
        %v7360 = vpack.c.b16 %v7125, %v7124
        %v7361 = vpack.c.b16 %v7127, %v7126
        %v7362 = vpack.c.b16 %v7129, %v7128
        %v7363 = vpack.c.b16 %v7131, %v7130
        %v7364 = vpack.c.b16 %v7133, %v7132
        %v7365 = vpack.c.b16 %v7135, %v7134
        %v7366 = vpack.c.b16 %v7137, %v7136
        %v7367 = vpack.c.b16 %v7139, %v7138
        %v7368 = vpack.c.b16 %v7141, %v7140
        %v7369 = vpack.c.b16 %v7143, %v7142
        %v7370 = vpack.c.b16 %v7145, %v7144
        %v7371 = vpack.c.b16 %v7147, %v7146
        %v7372 = vpack.c.b16 %v7149, %v7148
        %v7373 = vpack.c.b16 %v7151, %v7150
        %v7374 = vpack.c.b16 %v7153, %v7152
        %v7375 = vpack.c.b16 %v7155, %v7154
        %v7376 = vpack.c.b16 %v7157, %v7156
        %v7377 = vpack.c.b16 %v7159, %v7158
        %v7378 = vpack.c.b16 %v7161, %v7160
        %v7379 = vpack.c.b16 %v7163, %v7162
        %v7380 = vpack.c.b16 %v7165, %v7164
        %v7381 = vpack.c.b16 %v7167, %v7166
        %v7382 = vpack.c.b16 %v7169, %v7168
        %v7383 = vpack.c.b16 %v7171, %v7170
        %v7384 = vpack.c.b16 %v7173, %v7172
        %v7385 = vpack.c.b16 %v7175, %v7174
        %v7386 = vpack.c.b16 %v7177, %v7176
        %v7387 = vpack.c.b16 %v7179, %v7178
        %v7388 = vpack.c.b16 %v7181, %v7180
        %v7389 = vpack.c.b16 %v7183, %v7182
        %v7390 = vpack.c.b16 %v7185, %v7184
        %v7391 = vpack.c.b16 %v7187, %v7186
        %v7392 = vpack.c.b16 %v7189, %v7188
        %v7393 = vpack.c.b16 %v7191, %v7190
        %v7394 = vpack.c.b16 %v7193, %v7192
        %v7395 = vpack.c.b16 %v7195, %v7194
        %v7396 = vpack.c.b16 %v7197, %v7196
        %v7397 = vpack.c.b16 %v7199, %v7198
        %v7398 = vpack.c.b16 %v7201, %v7200
        %v7399 = vpack.c.b16 %v7203, %v7202
        %v7400 = vpack.c.b16 %v7205, %v7204
        %v7401 = vpack.c.b16 %v7207, %v7206
        %v7402 = vpack.c.b16 %v7209, %v7208
        %v7403 = vpack.c.b16 %v7211, %v7210
        %v7404 = vpack.c.b16 %v7213, %v7212
        %v7405 = vpack.c.b16 %v7215, %v7214
        %v7406 = vpack.c.b16 %v7217, %v7216
        %v7407 = vpack.c.b16 %v7219, %v7218
        %v7408 = vpack.c.b16 %v7221, %v7220
        %v7409 = vpack.c.b16 %v7223, %v7222
        %v7410 = vpack.c.b16 %v7225, %v7224
        %v7411 = vpack.c.b16 %v7227, %v7226
        %v7412 = vpack.c.b16 %v7229, %v7228
        %v7413 = vpack.c.b16 %v7231, %v7230
        %v7414 = vpack.c.b16 %v7233, %v7232
        %v7415 = vpack.c.b16 %v7235, %v7234
        %v7416 = vpack.c.b16 %v7237, %v7236
        %v7417 = vpack.c.b16 %v7239, %v7238
        %v7418 = vpack.c.b16 %v7241, %v7240
        %v7419 = vpack.c.b16 %v7243, %v7242
        %v7420 = vpack.c.b16 %v7245, %v7244
        %v7421 = vpack.c.b16 %v7247, %v7246
        %v7422 = vpack.c.b16 %v7249, %v7248
        %v7423 = vpack.c.b16 %v7251, %v7250
        %v7424 = vpack.c.b16 %v7253, %v7252
        %v7425 = vpack.c.b16 %v7255, %v7254
        %v7426 = vpack.c.b16 %v7257, %v7256
        %v7427 = vpack.c.b16 %v7259, %v7258
        %v7428 = vpack.c.b16 %v7261, %v7260
        %v7429 = vpack.c.b16 %v7263, %v7262
        %v7430 = vpack.c.b16 %v7265, %v7264
        %v7431 = vpack.c.b16 %v7267, %v7266
        %v7432 = vpack.c.b16 %v7269, %v7268
        %v7433 = vpack.c.b16 %v7271, %v7270
        %v7434 = vpack.c.b16 %v7273, %v7272
        %v7435 = vpack.c.b16 %v7275, %v7274
        %v7436 = vpack.c.b16 %v7277, %v7276
        %v7437 = vpack.c.b16 %v7279, %v7278
        %v7438 = vpack.c.b16 %v7281, %v7280
        %v7439 = vpack.c.b16 %v7283, %v7282
        %v7440 = vpack.c.b16 %v7285, %v7284
        %v7441 = vpack.c.b16 %v7287, %v7286
        %v7442 = vpack.c.b16 %v7289, %v7288
        %v7443 = vpack.c.b16 %v7291, %v7290
        %v7444 = vpack.c.b16 %v7293, %v7292
        %v7445 = vpack.c.b16 %v7295, %v7294
        %v7446 = vpack.c.b16 %v7297, %v7296
        %v7447 = vpack.c.b16 %v7299, %v7298
        %v7448 = vpack.c.b16 %v7301, %v7300
        %v7449 = vpack.c.b16 %v7303, %v7302
        %v7450 = vpack.c.b16 %v7305, %v7304
        %v7451 = vpack.c.b16 %v7307, %v7306
        %v7452 = vpack.c.b16 %v7309, %v7308
        %v7453 = vpack.c.b16 %v7311, %v7310
        %v7454 = vpack.c.b16 %v7313, %v7312
        %v7455 = vpack.c.b16 %v7315, %v7314
        %v7456 = vpack.c.b16 %v7317, %v7316
        %v7457 = vpack.c.b16 %v7319, %v7318
        %v7458 = vpack.c.b16 %v7321, %v7320
        %v7459 = vpack.c.b16 %v7323, %v7322
        %v7460 = vpack.c.b16 %v7325, %v7324
        %v7461 = vpack.c.b16 %v7327, %v7326
        %v7462 = vpack.c.b16 %v7329, %v7328
        %v7463 = vpack.c.b16 %v7331, %v7330
        %v7464 = vpack.c.b16 %v7333, %v7332
        %v7465 = vpack.c.b16 %v7335, %v7334
        %v7466 = vpack.c.b16 %v7337, %v7336
        %v7467 = vpack.c.b16 %v7339, %v7338
        %7596 = vmatpush.bf16.msra.mxu0 %v7347
        %7597 = vmatpush.bf16.msra.mxu0 %v7346
        %7598 = vmatpush.bf16.msra.mxu0 %v7345
        %7599 = vmatpush.bf16.msra.mxu0 %v7344
        %7600 = vmatpush.bf16.msra.mxu0 %v7343
        %7601 = vmatpush.bf16.msra.mxu0 %v7342
        %7602 = vmatpush.bf16.msra.mxu0 %v7341
        %7603 = vmatpush.bf16.msra.mxu0 %v7340
        %7604 = vmatmul.bf16.gmra.mxu0 %v6556
        %v7605 = vpop.f32.mrf.mxu0
        %v7606 = vadd.f32 %v5513, %v7605
        %v7607 = vpop.f32.mrf.mxu0
        %v7608 = vadd.f32 %v5514, %v7607
        %7609 = vdwg.mxu0
        %7610 = vmatpush.bf16.msra.mxu0 %v7355
        %7611 = vmatpush.bf16.msra.mxu0 %v7354
        %7612 = vmatpush.bf16.msra.mxu0 %v7353
        %7613 = vmatpush.bf16.msra.mxu0 %v7352
        %7614 = vmatpush.bf16.msra.mxu0 %v7351
        %7615 = vmatpush.bf16.msra.mxu0 %v7350
        %7616 = vmatpush.bf16.msra.mxu0 %v7349
        %7617 = vmatpush.bf16.msra.mxu0 %v7348
        %7618 = vmatmul.bf16.gmra.mxu0 %v6557
        %v7619 = vpop.f32.mrf.mxu0
        %v7620 = vadd.f32 %v7606, %v7619
        %v7621 = vpop.f32.mrf.mxu0
        %v7622 = vadd.f32 %v7608, %v7621
        %7623 = vdwg.mxu0
        %7624 = vmatpush.bf16.msra.mxu0 %v7363
        %7625 = vmatpush.bf16.msra.mxu0 %v7362
        %7626 = vmatpush.bf16.msra.mxu0 %v7361
        %7627 = vmatpush.bf16.msra.mxu0 %v7360
        %7628 = vmatpush.bf16.msra.mxu0 %v7359
        %7629 = vmatpush.bf16.msra.mxu0 %v7358
        %7630 = vmatpush.bf16.msra.mxu0 %v7357
        %7631 = vmatpush.bf16.msra.mxu0 %v7356
        %7632 = vmatmul.bf16.gmra.mxu0 %v6558
        %v7633 = vpop.f32.mrf.mxu0
        %v7634 = vadd.f32 %v7620, %v7633
        %v7635 = vpop.f32.mrf.mxu0
        %v7636 = vadd.f32 %v7622, %v7635
        %7637 = vdwg.mxu0
        %7638 = vmatpush.bf16.msra.mxu0 %v7371
        %7639 = vmatpush.bf16.msra.mxu0 %v7370
        %7640 = vmatpush.bf16.msra.mxu0 %v7369
        %7641 = vmatpush.bf16.msra.mxu0 %v7368
        %7642 = vmatpush.bf16.msra.mxu0 %v7367
        %7643 = vmatpush.bf16.msra.mxu0 %v7366
        %7644 = vmatpush.bf16.msra.mxu0 %v7365
        %7645 = vmatpush.bf16.msra.mxu0 %v7364
        %7646 = vmatmul.bf16.gmra.mxu0 %v6559
        %v7647 = vpop.f32.mrf.mxu0
        %v7648 = vadd.f32 %v7634, %v7647
        %v7649 = vpop.f32.mrf.mxu0
        %v7650 = vadd.f32 %v7636, %v7649
        %7651 = vdwg.mxu0
        %7652 = vmatpush.bf16.msra.mxu0 %v7379
        %7653 = vmatpush.bf16.msra.mxu0 %v7378
        %7654 = vmatpush.bf16.msra.mxu0 %v7377
        %7655 = vmatpush.bf16.msra.mxu0 %v7376
        %7656 = vmatpush.bf16.msra.mxu0 %v7375
        %7657 = vmatpush.bf16.msra.mxu0 %v7374
        %7658 = vmatpush.bf16.msra.mxu0 %v7373
        %7659 = vmatpush.bf16.msra.mxu0 %v7372
        %7660 = vmatmul.bf16.gmra.mxu0 %v6560
        %v7661 = vpop.f32.mrf.mxu0
        %v7662 = vadd.f32 %v7648, %v7661
        %v7663 = vpop.f32.mrf.mxu0
        %v7664 = vadd.f32 %v7650, %v7663
        %7665 = vdwg.mxu0
        %7666 = vmatpush.bf16.msra.mxu0 %v7387
        %7667 = vmatpush.bf16.msra.mxu0 %v7386
        %7668 = vmatpush.bf16.msra.mxu0 %v7385
        %7669 = vmatpush.bf16.msra.mxu0 %v7384
        %7670 = vmatpush.bf16.msra.mxu0 %v7383
        %7671 = vmatpush.bf16.msra.mxu0 %v7382
        %7672 = vmatpush.bf16.msra.mxu0 %v7381
        %7673 = vmatpush.bf16.msra.mxu0 %v7380
        %7674 = vmatmul.bf16.gmra.mxu0 %v6561
        %v7675 = vpop.f32.mrf.mxu0
        %v7676 = vadd.f32 %v7662, %v7675
        %v7677 = vpop.f32.mrf.mxu0
        %v7678 = vadd.f32 %v7664, %v7677
        %7679 = vdwg.mxu0
        %7680 = vmatpush.bf16.msra.mxu0 %v7395
        %7681 = vmatpush.bf16.msra.mxu0 %v7394
        %7682 = vmatpush.bf16.msra.mxu0 %v7393
        %7683 = vmatpush.bf16.msra.mxu0 %v7392
        %7684 = vmatpush.bf16.msra.mxu0 %v7391
        %7685 = vmatpush.bf16.msra.mxu0 %v7390
        %7686 = vmatpush.bf16.msra.mxu0 %v7389
        %7687 = vmatpush.bf16.msra.mxu0 %v7388
        %7688 = vmatmul.bf16.gmra.mxu0 %v6562
        %v7689 = vpop.f32.mrf.mxu0
        %v7690 = vadd.f32 %v7676, %v7689
        %v7691 = vpop.f32.mrf.mxu0
        %v7692 = vadd.f32 %v7678, %v7691
        %7693 = vdwg.mxu0
        %7694 = vmatpush.bf16.msra.mxu0 %v7403
        %7695 = vmatpush.bf16.msra.mxu0 %v7402
        %7696 = vmatpush.bf16.msra.mxu0 %v7401
        %7697 = vmatpush.bf16.msra.mxu0 %v7400
        %7698 = vmatpush.bf16.msra.mxu0 %v7399
        %7699 = vmatpush.bf16.msra.mxu0 %v7398
        %7700 = vmatpush.bf16.msra.mxu0 %v7397
        %7701 = vmatpush.bf16.msra.mxu0 %v7396
        %7702 = vmatmul.bf16.gmra.mxu0 %v6563
        %v7703 = vpop.f32.mrf.mxu0
        %v7704 = vadd.f32 %v7690, %v7703
        %v7705 = vpop.f32.mrf.mxu0
        %v7706 = vadd.f32 %v7692, %v7705
        %7707 = vdwg.mxu0
        %7708 = vmatpush.bf16.msra.mxu0 %v7411
        %7709 = vmatpush.bf16.msra.mxu0 %v7410
        %7710 = vmatpush.bf16.msra.mxu0 %v7409
        %7711 = vmatpush.bf16.msra.mxu0 %v7408
        %7712 = vmatpush.bf16.msra.mxu0 %v7407
        %7713 = vmatpush.bf16.msra.mxu0 %v7406
        %7714 = vmatpush.bf16.msra.mxu0 %v7405
        %7715 = vmatpush.bf16.msra.mxu0 %v7404
        %7716 = vmatmul.bf16.gmra.mxu0 %v6564
        %v7717 = vpop.f32.mrf.mxu0
        %v7718 = vadd.f32 %v7704, %v7717
        %v7719 = vpop.f32.mrf.mxu0
        %v7720 = vadd.f32 %v7706, %v7719
        %7721 = vdwg.mxu0
        %7722 = vmatpush.bf16.msra.mxu0 %v7419
        %7723 = vmatpush.bf16.msra.mxu0 %v7418
        %7724 = vmatpush.bf16.msra.mxu0 %v7417
        %7725 = vmatpush.bf16.msra.mxu0 %v7416
        %7726 = vmatpush.bf16.msra.mxu0 %v7415
        %7727 = vmatpush.bf16.msra.mxu0 %v7414
        %7728 = vmatpush.bf16.msra.mxu0 %v7413
        %7729 = vmatpush.bf16.msra.mxu0 %v7412
        %7730 = vmatmul.bf16.gmra.mxu0 %v6565
        %v7731 = vpop.f32.mrf.mxu0
        %v7732 = vadd.f32 %v7718, %v7731
        %v7733 = vpop.f32.mrf.mxu0
        %v7734 = vadd.f32 %v7720, %v7733
        %7735 = vdwg.mxu0
        %7736 = vmatpush.bf16.msra.mxu0 %v7427
        %7737 = vmatpush.bf16.msra.mxu0 %v7426
        %7738 = vmatpush.bf16.msra.mxu0 %v7425
        %7739 = vmatpush.bf16.msra.mxu0 %v7424
        %7740 = vmatpush.bf16.msra.mxu0 %v7423
        %7741 = vmatpush.bf16.msra.mxu0 %v7422
        %7742 = vmatpush.bf16.msra.mxu0 %v7421
        %7743 = vmatpush.bf16.msra.mxu0 %v7420
        %7744 = vmatmul.bf16.gmra.mxu0 %v6566
        %v7745 = vpop.f32.mrf.mxu0
        %v7746 = vadd.f32 %v7732, %v7745
        %v7747 = vpop.f32.mrf.mxu0
        %v7748 = vadd.f32 %v7734, %v7747
        %7749 = vdwg.mxu0
        %7750 = vmatpush.bf16.msra.mxu0 %v7435
        %7751 = vmatpush.bf16.msra.mxu0 %v7434
        %7752 = vmatpush.bf16.msra.mxu0 %v7433
        %7753 = vmatpush.bf16.msra.mxu0 %v7432
        %7754 = vmatpush.bf16.msra.mxu0 %v7431
        %7755 = vmatpush.bf16.msra.mxu0 %v7430
        %7756 = vmatpush.bf16.msra.mxu0 %v7429
        %7757 = vmatpush.bf16.msra.mxu0 %v7428
        %7758 = vmatmul.bf16.gmra.mxu0 %v6567
        %v7759 = vpop.f32.mrf.mxu0
        %v7760 = vadd.f32 %v7746, %v7759
        %v7761 = vpop.f32.mrf.mxu0
        %v7762 = vadd.f32 %v7748, %v7761
        %7763 = vdwg.mxu0
        %7764 = vmatpush.bf16.msra.mxu0 %v7443
        %7765 = vmatpush.bf16.msra.mxu0 %v7442
        %7766 = vmatpush.bf16.msra.mxu0 %v7441
        %7767 = vmatpush.bf16.msra.mxu0 %v7440
        %7768 = vmatpush.bf16.msra.mxu0 %v7439
        %7769 = vmatpush.bf16.msra.mxu0 %v7438
        %7770 = vmatpush.bf16.msra.mxu0 %v7437
        %7771 = vmatpush.bf16.msra.mxu0 %v7436
        %7772 = vmatmul.bf16.gmra.mxu0 %v6568
        %v7773 = vpop.f32.mrf.mxu0
        %v7774 = vadd.f32 %v7760, %v7773
        %v7775 = vpop.f32.mrf.mxu0
        %v7776 = vadd.f32 %v7762, %v7775
        %7777 = vdwg.mxu0
        %7778 = vmatpush.bf16.msra.mxu0 %v7451
        %7779 = vmatpush.bf16.msra.mxu0 %v7450
        %7780 = vmatpush.bf16.msra.mxu0 %v7449
        %7781 = vmatpush.bf16.msra.mxu0 %v7448
        %7782 = vmatpush.bf16.msra.mxu0 %v7447
        %7783 = vmatpush.bf16.msra.mxu0 %v7446
        %7784 = vmatpush.bf16.msra.mxu0 %v7445
        %7785 = vmatpush.bf16.msra.mxu0 %v7444
        %7786 = vmatmul.bf16.gmra.mxu0 %v6569
        %v7787 = vpop.f32.mrf.mxu0
        %v7788 = vadd.f32 %v7774, %v7787
        %v7789 = vpop.f32.mrf.mxu0
        %v7790 = vadd.f32 %v7776, %v7789
        %7791 = vdwg.mxu0
        %7792 = vmatpush.bf16.msra.mxu0 %v7459
        %7793 = vmatpush.bf16.msra.mxu0 %v7458
        %7794 = vmatpush.bf16.msra.mxu0 %v7457
        %7795 = vmatpush.bf16.msra.mxu0 %v7456
        %7796 = vmatpush.bf16.msra.mxu0 %v7455
        %7797 = vmatpush.bf16.msra.mxu0 %v7454
        %7798 = vmatpush.bf16.msra.mxu0 %v7453
        %7799 = vmatpush.bf16.msra.mxu0 %v7452
        %7800 = vmatmul.bf16.gmra.mxu0 %v6570
        %v7801 = vpop.f32.mrf.mxu0
        %v7802 = vadd.f32 %v7788, %v7801
        %v7803 = vpop.f32.mrf.mxu0
        %v7804 = vadd.f32 %v7790, %v7803
        %7805 = vdwg.mxu0
        %7806 = vmatpush.bf16.msra.mxu0 %v7467
        %7807 = vmatpush.bf16.msra.mxu0 %v7466
        %7808 = vmatpush.bf16.msra.mxu0 %v7465
        %7809 = vmatpush.bf16.msra.mxu0 %v7464
        %7810 = vmatpush.bf16.msra.mxu0 %v7463
        %7811 = vmatpush.bf16.msra.mxu0 %v7462
        %7812 = vmatpush.bf16.msra.mxu0 %v7461
        %7813 = vmatpush.bf16.msra.mxu0 %v7460
        %7814 = vmatmul.bf16.gmra.mxu0 %v6571
        %v7815 = vpop.f32.mrf.mxu0
        %v7816 = vadd.f32 %v7802, %v7815
        %v7817 = vpop.f32.mrf.mxu0
        %v7818 = vadd.f32 %v7804, %v7817
        %7819 = vdwg.mxu0
        %7820 = vadd.xlane.f32.xlu0 %v7816
        %v7821 = vpop.xlane.xlu0 %7820
        %7822 = vadd.xlane.f32.xlu0 %v7818
        %v7823 = vpop.xlane.xlu0 %7822
        %v7824 = vmul.f32 %v7821, %v2899
        %v7825 = vmul.f32 %v7823, %v2899
        %v7826 = vsub.f32 %v7816, %v7824
        %v7827 = vsub.f32 %v7818, %v7825
        %v7828 = vmul.f32 %v7826, %v7826
        %v7829 = vmul.f32 %v7827, %v7827
        %7830 = vadd.xlane.f32.xlu0 %v7828
        %v7831 = vpop.xlane.xlu0 %7830
        %7832 = vadd.xlane.f32.xlu0 %v7829
        %v7833 = vpop.xlane.xlu0 %7832
        %v7834 = vmul.f32 %v7831, %v2899
        %v7835 = vmul.f32 %v7833, %v2899
        %v7836 = vadd.f32 %v7834, 1e-05
        %v7837 = vadd.f32 %v7835, 1e-05
        %v7838 = vrsqrt.pop %v7836
        %v7839 = vmul.f32 %v7838, %v7836
        %v7840 = vmul.f32 %v7839, %v7838
        %v7841 = vmul.f32 0.5, %v7840
        %v7842 = vsub.f32 1.5, %v7841
        %v7843 = vmul.f32 %v7838, %v7842
        %vm7844 = vweird.f32 %v7836
        %vm7845 = vweird.f32 %v7838
        %vm7846 = vmor %vm7844, %vm7845
        %v7847 = vsel %vm7846, %v7838, %v7843
        %v7848 = vrsqrt.pop %v7837
        %v7849 = vmul.f32 %v7848, %v7837
        %v7850 = vmul.f32 %v7849, %v7848
        %v7851 = vmul.f32 0.5, %v7850
        %v7852 = vsub.f32 1.5, %v7851
        %v7853 = vmul.f32 %v7848, %v7852
        %vm7854 = vweird.f32 %v7837
        %vm7855 = vweird.f32 %v7848
        %vm7856 = vmor %vm7854, %vm7855
        %v7857 = vsel %vm7856, %v7848, %v7853
        %v7858 = vmul.f32 %v7826, %v7847
        %v7859 = vmul.f32 %v7827, %v7857
        %7860 = vst [vmem:[%s563] sm:$0xff] %v7858
        %7861 = vst [vmem:[%s563 + $0x8] sm:$0xff] %v7859
        %s7862 = sand.u32 %s356, 1
        %s7863 = scalar_lea.sflag [#allocation3], %s7862
        %s7864 = sand.u32 %s356, 1
        %s7865 = smul.addr %s7864, 16
        %s7866 = scalar_lea.vmem [#allocation2], %s7865
        %s7867 = sand.u32 %s34, 1
        %s7868 = scalar_lea.sflag [#allocation5], %s7867
        %s7869 = sand.u32 %s382, 1
        %s7870 = smul.addr %s7869, 128
        %s7871 = scalar_lea.vmem [#allocation4], %s7870
        %s7872 = sand.u32 %s34, 1
        %s7873 = scalar_lea.sflag [#allocation5], %s7872
        %s7874 = sand.u32 %s408, 1
        %s7875 = smul.addr %s7874, 128
        %s7876 = scalar_lea.vmem [#allocation6], %s7875
        // Predicated region
        $region77: #{decoder_layer.1} parent=75 // pred_check
          %p7877 = pneg %p366
        $region78: #{decoder_layer.1} parent=75 // pred_check_branch
          %7879 = sbr.rel (%p7877) target = $region80
        $region79: #{decoder_layer.1} parent=75 // pred_region
          %7881 = vsyncadd %s7863, 0
          %s7882 = smul.addr %s34, 2
          %s7883 = smul.addr %s7882, 8
          %s7884 = scalar_lea.hbm %s14, %s7883
          %s7885 = sshll.u32 %s7866, 4
          %s7886 = int_to_ptr.vmem [resolvable:$true] %s7885
          %s7887 = sshll.u32 %s7884, 4
          %s7888 = int_to_ptr.hbm [resolvable:$true] %s7887
          %7893 = dma.vmem_to_hbm [thread:$0]  %s7886, 256, %s7888, %s7863, 128, 128, 8
        $region80: #{decoder_layer.1} parent=75 // pred_fallthru
          _
        // Predicated region
        $region81: #{decoder_layer.1} parent=75 // pred_check
          %p7894 = pneg %p392
        $region82: #{decoder_layer.1} parent=75 // pred_check_branch
          %7896 = sbr.rel (%p7894) target = $region84
        $region83: #{decoder_layer.1} parent=75 // pred_region
          %7898 = vsyncadd %s7868, 0
          %s7899 = smul.addr %s34, 16
          %s7900 = smul.addr %s7899, 8
          %s7901 = scalar_lea.hbm %s15, %s7900
          %s7902 = sshll.u32 %s7871, 4
          %s7903 = int_to_ptr.vmem [resolvable:$true] %s7902
          %s7904 = sshll.u32 %s7901, 4
          %s7905 = int_to_ptr.hbm [resolvable:$true] %s7904
          %7910 = dma.vmem_to_hbm [thread:$0]  %s7903, 2048, %s7905, %s7868, 128, 128, 8
        $region84: #{decoder_layer.1} parent=75 // pred_fallthru
          _
        // Predicated region
        $region85: #{decoder_layer.1} parent=75 // pred_check
          %p7911 = pneg %p418
        $region86: #{decoder_layer.1} parent=75 // pred_check_branch
          %7913 = sbr.rel (%p7911) target = $region88
        $region87: #{decoder_layer.1} parent=75 // pred_region
          %7915 = vsyncadd %s7873, 0
          %s7916 = smul.addr %s34, 16
          %s7917 = smul.addr %s7916, 8
          %s7918 = scalar_lea.hbm %s16, %s7917
          %s7919 = sshll.u32 %s7876, 4
          %s7920 = int_to_ptr.vmem [resolvable:$true] %s7919
          %s7921 = sshll.u32 %s7918, 4
          %s7922 = int_to_ptr.hbm [resolvable:$true] %s7921
          %7927 = dma.vmem_to_hbm [thread:$0]  %s7920, 2048, %s7922, %s7873, 128, 128, 8
        $region88: #{decoder_layer.1} parent=75 // pred_fallthru
          _
      $region76: #{decoder_layer.1} parent=5 // pred_fallthru
        _
      %p7928 = scmp.le.s32.totalorder 2, %s29
      // Predicated region
      $region89: #{decoder_layer.1} parent=5 // pred_check
        %p7929 = pneg %p7928
      $region90: #{decoder_layer.1} parent=5 // pred_check_branch
        %7931 = sbr.rel (%p7929) target = $region92
      $region91: #{decoder_layer.1} parent=5 // pred_region
        %s7932 = ssub.s32 %s29, 2
        // Predicated region
        $region93: #{decoder_layer.1} parent=91 // pred_check
          %p7933 = pneg %p372
        $region94: #{decoder_layer.1} parent=91 // pred_check_branch
          %7935 = sbr.rel (%p7933) target = $region96
        $region95: #{decoder_layer.1} parent=91 // pred_region
          %s7936 = sand.u32 %s357, 1
          %s7937 = scalar_lea.sflag [#allocation3], %s7936
          %s7938 = sand.u32 %s357, 1
          %s7939 = smul.addr %s7938, 16
          %s7940 = scalar_lea.vmem [#allocation2], %s7939
          %7942 = dma.done %s7937, 256
        $region96: #{decoder_layer.1} parent=91 // pred_fallthru
          _
        // Predicated region
        $region97: #{decoder_layer.1} parent=91 // pred_check
          %p7943 = pneg %p398
        $region98: #{decoder_layer.1} parent=91 // pred_check_branch
          %7945 = sbr.rel (%p7943) target = $region100
        $region99: #{decoder_layer.1} parent=91 // pred_region
          %s7946 = sand.u32 %s35, 1
          %s7947 = scalar_lea.sflag [#allocation5], %s7946
          %s7948 = sand.u32 %s383, 1
          %s7949 = smul.addr %s7948, 128
          %s7950 = scalar_lea.vmem [#allocation4], %s7949
          %7952 = dma.done %s7947, 2048
        $region100: #{decoder_layer.1} parent=91 // pred_fallthru
          _
        // Predicated region
        $region101: #{decoder_layer.1} parent=91 // pred_check
          %p7953 = pneg %p424
        $region102: #{decoder_layer.1} parent=91 // pred_check_branch
          %7955 = sbr.rel (%p7953) target = $region104
        $region103: #{decoder_layer.1} parent=91 // pred_region
          %s7956 = sand.u32 %s35, 1
          %s7957 = scalar_lea.sflag [#allocation5], %s7956
          %s7958 = sand.u32 %s409, 1
          %s7959 = smul.addr %s7958, 128
          %s7960 = scalar_lea.vmem [#allocation6], %s7959
          %7962 = dma.done %s7957, 2048
        $region104: #{decoder_layer.1} parent=91 // pred_fallthru
          _
      $region92: #{decoder_layer.1} parent=5 // pred_fallthru
        _
    $region6: #{decoder_layer.1} parent=1 // loop_footer
      %s33 = sadd.s32 1, %s29
    $region7: #{decoder_layer.1} parent=1 // loop_footer_branch
      %28 = sbr.rel target = $region3
    $region8: #{decoder_layer.1} parent=1 // loop_exit
      _
    %7963 = vsyncpa [#allocation3], 1
    %s7964 = scalar_lea.sflag [#allocation3], 1
    %7965 = vsyncpa %s7964, 1
    %7966 = vsyncpa [#allocation5], 1
    %s7967 = scalar_lea.sflag [#allocation5], 1
    %7968 = vsyncpa %s7967, 1

</llo_original>
